<compile_context>
chip_gen: v7x
topology: tpu7x:2x2x1
jax: 0.10.0
libtpu: 0.0.40
codegen_flags: <defaults>
</compile_context>

<pallas_src>
import functools
import math

import jax
import jax.numpy as jnp
from jax.experimental import pallas as pl
from jax.experimental.pallas import tpu as pltpu

EPS = 1e-6
NEG_INF = -1e18


def _layer_norm(x, gamma, beta):
    mu = jnp.mean(x, axis=-1, keepdims=True)
    var = jnp.mean((x - mu) ** 2, axis=-1, keepdims=True)
    return (x - mu) * jax.lax.rsqrt(var + EPS) * gamma + beta


# ---------------------------------------------------------------------------
# Fused encoder layer kernel.  grid = (B,); one step = one whole layer for one batch row.
# ---------------------------------------------------------------------------
def _encoder_layer_kernel(x_ref, bias_ref,
                          att_g_ref, att_b_ref,
                          wqkv_ref, bqkv_ref, wo_ref, bo_ref,
                          pff_g_ref, pff_b_ref,
                          w1_ref, b1_ref, w2_ref, b2_ref,
                          fin_g_ref, fin_b_ref,
                          o_ref,
                          *, heads, ff_chunk, apply_final_ln):
    f32 = jnp.float32
    cdt = wqkv_ref.dtype                      # MXU compute dtype (bf16 by default)

    x = x_ref[0]                              # (L, D) f32 residual stream
    L, D = x.shape
    dh = D // heads

    # ---- self-attention -------------------------------------------------
    xn = _layer_norm(x, att_g_ref[...], att_b_ref[...]).astype(cdt)      # (L, D) cast once

    # Fused full-width QKV projection: one (L,D)x(D,3D) MXU matmul + one bias add.
    qkv = jnp.dot(xn, wqkv_ref[...], preferred_element_type=f32) + bqkv_ref[...]   # (L, 3D)
    q = qkv[:, :D] * f32(1.0 / math.sqrt(dh))     # ONMT: query / sqrt(dim_per_head)
    k = qkv[:, D:2 * D]
    v = qkv[:, 2 * D:]

    bias = bias_ref[0]                        # (1, L) additive key-padding bias (precomputed)

    # Per-head attention (static unroll, H small).  dh-deep contractions are inherent to MHA;
    # all projections around them are full-width.
    ctx_parts = []
    for h in range(heads):
        sl = slice(h * dh, (h + 1) * dh)
        qh = q[:, sl].astype(cdt)
        kh = k[:, sl].astype(cdt)
        vh = v[:, sl].astype(cdt)
        s = jnp.dot(qh, kh.T, preferred_element_type=f32) + bias         # (L, L), lane-dense
        s = s - jnp.max(s, axis=-1, keepdims=True)
        p = jnp.exp(s)
        p = p * pl.reciprocal(jnp.sum(p, axis=-1, keepdims=True), approx=True)   # EUP divide
        ctx_parts.append(jnp.dot(p.astype(cdt), vh, preferred_element_type=f32))  # (L, dh)

    # Lane-pack heads -> (L, D), then ONE full-K output projection.
    ctx = jnp.concatenate(ctx_parts, axis=-1)
    attn_out = jnp.dot(ctx.astype(cdt), wo_ref[...], preferred_element_type=f32) + bo_ref[...]
    x1 = x + attn_out                         # dropout(.) = identity (eval)

    # ---- feed-forward ----------------------------------------------------
    xn2 = _layer_norm(x1, att_g_ref[...], att_b_ref[...])    # do_ffnn uses att_layer_norm (quirk)
    yn = _layer_norm(xn2, pff_g_ref[...], pff_b_ref[...]).astype(cdt)    # PFF internal LayerNorm

    d_ff = w1_ref.shape[-1]
    ff = jnp.zeros((L, D), f32)
    for c in range(d_ff // ff_chunk):         # chunk d_ff: bounds the (L, d_ff) intermediate
        lo, hi = c * ff_chunk, (c + 1) * ff_chunk
        hid = jnp.maximum(
            jnp.dot(yn, w1_ref[:, lo:hi], preferred_element_type=f32) + b1_ref[:, lo:hi], 0.0)
        ff = ff + jnp.dot(hid.astype(cdt), w2_ref[lo:hi, :], preferred_element_type=f32)
    ff = ff + b2_ref[...]

    out = (ff + xn2) + x1                     # PFF residual, then outer residual
    if apply_final_ln:
        out = _layer_norm(out, fin_g_ref[...], fin_b_ref[...])
    o_ref[0] = out


def encoder_layer(x, attn_bias, params, heads, final_ln=None):
    """One fused encoder layer.  final_ln=(gamma, beta) also applies the stack's final LayerNorm."""
    B, L, D = x.shape
    assert D % heads == 0
    attn, ffn = params["attn"], params["ffn"]
    d_ff = ffn["w1"].shape[-1]
    ff_chunk = d_ff if d_ff <= 512 else 512
    assert d_ff % ff_chunk == 0

    apply_final_ln = final_ln is not None
    fin_g, fin_b = final_ln if apply_final_ln else (attn["ln_g"], attn["ln_b"])

    const = lambda shp: pl.BlockSpec(shp, lambda b: (0,) * len(shp))   # grid-invariant block
    # TODO(synk): on v7x, single-buffer these grid-invariant weights (pipeline_mode) once the
    # buffer-count plumbing is available in the deployed JAX version.

    in_specs = [
        pl.BlockSpec((1, L, D), lambda b: (b, 0, 0)),   # x
        pl.BlockSpec((1, 1, L), lambda b: (b, 0, 0)),   # additive key-padding bias
        const((1, D)), const((1, D)),                   # att LN gamma / beta
        const((D, 3 * D)), const((1, 3 * D)),           # fused Wqkv, bqkv
        const((D, D)), const((1, D)),                   # Wo, bo
        const((1, D)), const((1, D)),                   # PFF LN gamma / beta
        const((D, d_ff)), const((1, d_ff)),             # W1, b1
        const((d_ff, D)), const((1, D)),                # W2, b2
        const((1, D)), const((1, D)),                   # final LN gamma / beta
    ]

    # Derive the VMEM limit from the actual (double-buffered) block footprint; cap at v7x's 64 MiB.
    f32b = 4
    wb = jnp.dtype(attn["wqkv"].dtype).itemsize
    block_bytes = (
        L * D * f32b                       # x block
        + L * f32b                         # bias block
        + 6 * D * f32b                     # att LN + PFF LN + final LN params
        + D * 3 * D * wb + 3 * D * f32b    # Wqkv, bqkv
        + D * D * wb + D * f32b            # Wo, bo
        + D * d_ff * wb + d_ff * f32b      # W1, b1
        + d_ff * D * wb + D * f32b         # W2, b2
        + L * D * f32b                     # out block
    )
    vmem_limit = int(min(max(2 * block_bytes + (8 << 20), 16 << 20), 64 << 20))

    return pl.pallas_call(
        functools.partial(_encoder_layer_kernel, heads=heads, ff_chunk=ff_chunk,
                          apply_final_ln=apply_final_ln),
        out_shape=jax.ShapeDtypeStruct((B, L, D), jnp.float32),
        grid=(B,),
        in_specs=in_specs,
        out_specs=pl.BlockSpec((1, L, D), lambda b: (b, 0, 0)),
        compiler_params=pltpu.CompilerParams(
            dimension_semantics=("parallel",),
            vmem_limit_bytes=vmem_limit),
    )(x, attn_bias,
      attn["ln_g"], attn["ln_b"],
      attn["wqkv"], attn["bqkv"], attn["wo"], attn["bo"],
      ffn["pff_ln_g"], ffn["pff_ln_b"],
      ffn["w1"], ffn["b1"], ffn["w2"], ffn["b2"],
      fin_g, fin_b)


# ---------------------------------------------------------------------------
# Parameter construction (deterministic, synthetic).  Matmul weights in bf16 with the fused
# QKV layout built ONCE at init time; biases / LayerNorm params in f32.
# ---------------------------------------------------------------------------
def init_layer_params(key, d_model, d_ff, weight_dtype=jnp.bfloat16):
    ks = jax.random.split(key, 6)
    s = 0.02
    w = lambda k, shp: (s * jax.random.normal(k, shp, jnp.float32)).astype(weight_dtype)
    zeros = lambda shp: jnp.zeros(shp, jnp.float32)
    ones = lambda shp: jnp.ones(shp, jnp.float32)
    wq, wk, wv = (w(ks[0], (d_model, d_model)), w(ks[1], (d_model, d_model)),
                  w(ks[2], (d_model, d_model)))
    attn = dict(
        ln_g=ones((1, d_model)), ln_b=zeros((1, d_model)),
        wqkv=jnp.concatenate([wq, wk, wv], axis=-1),     # (D, 3D), built once
        bqkv=zeros((1, 3 * d_model)),
        wo=w(ks[3], (d_model, d_model)), bo=zeros((1, d_model)),
    )
    ffn = dict(
        pff_ln_g=ones((1, d_model)), pff_ln_b=zeros((1, d_model)),
        w1=w(ks[4], (d_model, d_ff)), b1=zeros((1, d_ff)),
        w2=w(ks[5], (d_ff, d_model)), b2=zeros((1, d_model)),
    )
    return dict(attn=attn, ffn=ffn)


# ---------------------------------------------------------------------------
# TransformerEncoder.forward
# returns (emb, out.transpose(0,1), mask, auto_trans_out=None) like the PyTorch module.
# ---------------------------------------------------------------------------
def transformer_encoder_forward(src, src_length, emb_table, layer_params,
                                final_ln_g, final_ln_b, heads, padding_idx):
    del src_length  # only used for .size() in the exercised config
    emb = emb_table[src]                                  # (L, B, D) embedding lookup (glue)
    # TODO(synk): onmt Embeddings may add positional encodings; plain lookup used here.
    out = jnp.transpose(emb, (1, 0, 2))                   # (B, L, D)
    words = src.T                                         # (B, L)
    mask = (words == padding_idx)[:, None, :]             # (B, 1, L) bool
    attn_bias = mask.astype(jnp.float32) * jnp.float32(NEG_INF)   # additive bias, computed once

    n_layers = len(layer_params)
    for i, p in enumerate(layer_params):
        fin = (final_ln_g, final_ln_b) if i == n_layers - 1 else None
        out = encoder_layer(out, attn_bias, p, heads, final_ln=fin)   # fused attn + FFN (+ final LN)

    return emb, jnp.transpose(out, (1, 0, 2)), mask, None


# ---------------------------------------------------------------------------
# Pure-JAX reference (same bf16 matmul casts, exact softmax) for a sanity check.
# ---------------------------------------------------------------------------
def _reference_forward(src, emb_table, layer_params, final_ln_g, final_ln_b, heads, padding_idx):
    def ln(x, g, b):
        mu = x.mean(-1, keepdims=True)
        var = ((x - mu) ** 2).mean(-1, keepdims=True)
        return (x - mu) / jnp.sqrt(var + EPS) * g + b

    x = jnp.transpose(emb_table[src], (1, 0, 2)).astype(jnp.float32)   # (B, L, D)
    mask = (src.T == padding_idx)[:, None, None, :]                    # (B, 1, 1, L)
    B, L, D = x.shape
    dh = D // heads
    for p in layer_params:
        a, f = p["attn"], p["ffn"]
        cdt = a["wqkv"].dtype
        wq, wk, wv = a["wqkv"][:, :D], a["wqkv"][:, D:2 * D], a["wqkv"][:, 2 * D:]
        bq, bk, bv = a["bqkv"][:, :D], a["bqkv"][:, D:2 * D], a["bqkv"][:, 2 * D:]
        mm = lambda u, w: jnp.dot(u.astype(cdt), w, preferred_element_type=jnp.float32)
        xn = ln(x, a["ln_g"], a["ln_b"])
        q = mm(xn, wq) + bq
        k = mm(xn, wk) + bk
        v = mm(xn, wv) + bv
        split = lambda t: jnp.transpose(t.reshape(B, L, heads, dh), (0, 2, 1, 3))
        qh = split(q) * (1.0 / (dh ** 0.5))
        kh, vh = split(k), split(v)
        s = jnp.einsum('bhqd,bhkd->bhqk', qh.astype(cdt), kh.astype(cdt),
                       preferred_element_type=jnp.float32)
        s = jnp.where(mask, jnp.float32(NEG_INF), s)
        pa = jax.nn.softmax(s, axis=-1)
        ctx = jnp.einsum('bhqk,bhkd->bhqd', pa.astype(cdt), vh.astype(cdt),
                         preferred_element_type=jnp.float32)
        ctx = jnp.transpose(ctx, (0, 2, 1, 3)).reshape(B, L, D)
        x = x + mm(ctx, a["wo"]) + a["bo"]
        xn2 = ln(x, a["ln_g"], a["ln_b"])
        yn = ln(xn2, f["pff_ln_g"], f["pff_ln_b"])
        hid = jax.nn.relu(mm(yn, f["w1"]) + f["b1"])
        x = (mm(hid, f["w2"]) + f["b2"]) + xn2 + x
    x = ln(x, final_ln_g, final_ln_b)
    return jnp.transpose(x, (1, 0, 2))


if __name__ == "__main__":
    # Small but TPU-friendly config: d_model = 128 and seq_len = 128 keep every lane axis dense.
    NUM_LAYERS, D_MODEL, HEADS, D_FF = 2, 128, 4, 256
    SEQ_LEN, BATCH, VOCAB, PAD_IDX = 128, 2, 32, 1

    key = jax.random.PRNGKey(0)
    k_emb, k_src, *k_layers = jax.random.split(key, 2 + NUM_LAYERS)

    emb_table = (0.02 * jax.random.normal(k_emb, (VOCAB, D_MODEL))).astype(jnp.float32)
    src = jax.random.randint(k_src, (SEQ_LEN, BATCH), 2, VOCAB).astype(jnp.int32)
    src = src.at[-32:, 1].set(PAD_IDX)                    # pad tail of second sequence
    src_length = jnp.array([[SEQ_LEN, SEQ_LEN - 32]], dtype=jnp.int32)   # (doc_num=1, sent_num=2)

    layer_params = [init_layer_params(k_layers[i], D_MODEL, D_FF) for i in range(NUM_LAYERS)]
    final_ln_g = jnp.ones((1, D_MODEL), jnp.float32)
    final_ln_b = jnp.zeros((1, D_MODEL), jnp.float32)

    fwd = jax.jit(functools.partial(transformer_encoder_forward,
                                    heads=HEADS, padding_idx=PAD_IDX))
    emb, out, mask, auto_trans_out = fwd(src, src_length, emb_table, layer_params,
                                         final_ln_g, final_ln_b)
    jax.block_until_ready(out)

    assert emb.shape == (SEQ_LEN, BATCH, D_MODEL)
    assert out.shape == (SEQ_LEN, BATCH, D_MODEL)
    assert mask.shape == (BATCH, 1, SEQ_LEN)
    assert auto_trans_out is None
    assert bool(jnp.all(jnp.isfinite(out)))

    ref = _reference_forward(src, emb_table, layer_params, final_ln_g, final_ln_b,
                             HEADS, PAD_IDX)
    max_err = float(jnp.max(jnp.abs(out - ref)))
    assert max_err < 3e-2, f"mismatch vs reference: {max_err}"

    print("KERNEL_OK")
</pallas_src>

<mosaic_0001>
module attributes {stable_mosaic.version = 11 : i64} {
  func.func @_encoder_layer_kernel(%arg0: i32, %arg1: memref<1x128x128xf32, #tpu.memory_space<vmem>>, %arg2: memref<1x1x128xf32, #tpu.memory_space<vmem>>, %arg3: memref<1x128xf32, #tpu.memory_space<vmem>>, %arg4: memref<1x128xf32, #tpu.memory_space<vmem>>, %arg5: memref<128x384xbf16, #tpu.memory_space<vmem>>, %arg6: memref<1x384xf32, #tpu.memory_space<vmem>>, %arg7: memref<128x128xbf16, #tpu.memory_space<vmem>>, %arg8: memref<1x128xf32, #tpu.memory_space<vmem>>, %arg9: memref<1x128xf32, #tpu.memory_space<vmem>>, %arg10: memref<1x128xf32, #tpu.memory_space<vmem>>, %arg11: memref<128x256xbf16, #tpu.memory_space<vmem>>, %arg12: memref<1x256xf32, #tpu.memory_space<vmem>>, %arg13: memref<256x128xbf16, #tpu.memory_space<vmem>>, %arg14: memref<1x128xf32, #tpu.memory_space<vmem>>, %arg15: memref<1x128xf32, #tpu.memory_space<vmem>>, %arg16: memref<1x128xf32, #tpu.memory_space<vmem>>, %arg17: memref<1x128x128xf32, #tpu.memory_space<vmem>>) attributes {dimension_semantics = [#tpu.dimension_semantics<parallel>], iteration_bounds = array<i64: 2>, scalar_prefetch = 0 : i64, scratch_operands = 0 : i64, tpu.core_type = #tpu.core_type<tc>, window_params = [{transform_indices = @transform_0, window_bounds = array<i64: 1, 128, 128>}, {transform_indices = @transform_1, window_bounds = array<i64: 1, 1, 128>}, {pipeline_mode = #tpu.pipeline_mode<synchronous>, transform_indices = @transform_2, window_bounds = array<i64: 1, 128>}, {pipeline_mode = #tpu.pipeline_mode<synchronous>, transform_indices = @transform_3, window_bounds = array<i64: 1, 128>}, {pipeline_mode = #tpu.pipeline_mode<synchronous>, transform_indices = @transform_4, window_bounds = array<i64: 128, 384>}, {pipeline_mode = #tpu.pipeline_mode<synchronous>, transform_indices = @transform_5, window_bounds = array<i64: 1, 384>}, {pipeline_mode = #tpu.pipeline_mode<synchronous>, transform_indices = @transform_6, window_bounds = array<i64: 128, 128>}, {pipeline_mode = #tpu.pipeline_mode<synchronous>, transform_indices = @transform_7, window_bounds = array<i64: 1, 128>}, {pipeline_mode = #tpu.pipeline_mode<synchronous>, transform_indices = @transform_8, window_bounds = array<i64: 1, 128>}, {pipeline_mode = #tpu.pipeline_mode<synchronous>, transform_indices = @transform_9, window_bounds = array<i64: 1, 128>}, {pipeline_mode = #tpu.pipeline_mode<synchronous>, transform_indices = @transform_10, window_bounds = array<i64: 128, 256>}, {pipeline_mode = #tpu.pipeline_mode<synchronous>, transform_indices = @transform_11, window_bounds = array<i64: 1, 256>}, {pipeline_mode = #tpu.pipeline_mode<synchronous>, transform_indices = @transform_12, window_bounds = array<i64: 256, 128>}, {pipeline_mode = #tpu.pipeline_mode<synchronous>, transform_indices = @transform_13, window_bounds = array<i64: 1, 128>}, {pipeline_mode = #tpu.pipeline_mode<synchronous>, transform_indices = @transform_14, window_bounds = array<i64: 1, 128>}, {pipeline_mode = #tpu.pipeline_mode<synchronous>, transform_indices = @transform_15, window_bounds = array<i64: 1, 128>}, {transform_indices = @transform_16, window_bounds = array<i64: 1, 128, 128>}]} {
    %c0 = arith.constant 0 : index
    %c0_0 = arith.constant 0 : index
    %c0_1 = arith.constant 0 : index
    %0 = vector.load %arg1[%c0, %c0_0, %c0_1] : memref<1x128x128xf32, #tpu.memory_space<vmem>>, vector<1x128x128xf32>
    %1 = vector.shape_cast %0 : vector<1x128x128xf32> to vector<128x128xf32>
    %c0_2 = arith.constant 0 : index
    %c0_3 = arith.constant 0 : index
    %2 = vector.load %arg3[%c0_2, %c0_3] : memref<1x128xf32, #tpu.memory_space<vmem>>, vector<1x128xf32>
    %c0_4 = arith.constant 0 : index
    %c0_5 = arith.constant 0 : index
    %3 = vector.load %arg4[%c0_4, %c0_5] : memref<1x128xf32, #tpu.memory_space<vmem>>, vector<1x128xf32>
    %cst = arith.constant dense<0.000000e+00> : vector<128xf32>
    %4 = vector.multi_reduction <add>, %1, %cst [1] : vector<128x128xf32> to vector<128xf32>
    %5 = vector.shape_cast %4 : vector<128xf32> to vector<128x1xf32>
    %cst_6 = arith.constant 1.280000e+02 : f32
    %6 = vector.broadcast %cst_6 : f32 to vector<128x1xf32>
    %7 = arith.divf %5, %6 : vector<128x1xf32>
    %8 = vector.broadcast %7 : vector<128x1xf32> to vector<128x128xf32>
    %9 = arith.subf %1, %8 : vector<128x128xf32>
    %10 = arith.mulf %9, %9 : vector<128x128xf32>
    %cst_7 = arith.constant dense<0.000000e+00> : vector<128xf32>
    %11 = vector.multi_reduction <add>, %10, %cst_7 [1] : vector<128x128xf32> to vector<128xf32>
    %12 = vector.shape_cast %11 : vector<128xf32> to vector<128x1xf32>
    %cst_8 = arith.constant 1.280000e+02 : f32
    %13 = vector.broadcast %cst_8 : f32 to vector<128x1xf32>
    %14 = arith.divf %12, %13 : vector<128x1xf32>
    %15 = vector.broadcast %7 : vector<128x1xf32> to vector<128x128xf32>
    %16 = arith.subf %1, %15 : vector<128x128xf32>
    %cst_9 = arith.constant 9.99999997E-7 : f32
    %17 = vector.broadcast %cst_9 : f32 to vector<128x1xf32>
    %18 = arith.addf %14, %17 : vector<128x1xf32>
    %19 = math.rsqrt %18 : vector<128x1xf32>
    %20 = vector.broadcast %19 : vector<128x1xf32> to vector<128x128xf32>
    %21 = arith.mulf %16, %20 : vector<128x128xf32>
    %22 = vector.broadcast %2 : vector<1x128xf32> to vector<128x128xf32>
    %23 = arith.mulf %21, %22 : vector<128x128xf32>
    %24 = vector.broadcast %3 : vector<1x128xf32> to vector<128x128xf32>
    %25 = arith.addf %23, %24 : vector<128x128xf32>
    %26 = arith.truncf %25 : vector<128x128xf32> to vector<128x128xbf16>
    %c0_10 = arith.constant 0 : index
    %c0_11 = arith.constant 0 : index
    %27 = vector.load %arg5[%c0_10, %c0_11] : memref<128x384xbf16, #tpu.memory_space<vmem>>, vector<128x384xbf16>
    %cst_12 = arith.constant dense<0.000000e+00> : vector<128x384xf32>
    %28 = tpu.matmul %26, %27, %cst_12 {dimension_numbers = #tpu.dot_dimension_numbers<[1], [0], [0], [1], [0, 0, 1, 1], [], []>} : vector<128x128xbf16>, vector<128x384xbf16>, vector<128x384xf32> -> vector<128x384xf32>
    %c0_13 = arith.constant 0 : index
    %c0_14 = arith.constant 0 : index
    %29 = vector.load %arg6[%c0_13, %c0_14] : memref<1x384xf32, #tpu.memory_space<vmem>>, vector<1x384xf32>
    %30 = vector.broadcast %29 : vector<1x384xf32> to vector<128x384xf32>
    %31 = arith.addf %28, %30 : vector<128x384xf32>
    %32 = vector.extract_strided_slice %31 {offsets = [0, 0], sizes = [128, 128], strides = [1, 1]} : vector<128x384xf32> to vector<128x128xf32>
    %cst_15 = arith.constant 0.176776692 : f32
    %33 = vector.broadcast %cst_15 : f32 to vector<128x128xf32>
    %34 = arith.mulf %32, %33 : vector<128x128xf32>
    %35 = vector.extract_strided_slice %31 {offsets = [0, 128], sizes = [128, 128], strides = [1, 1]} : vector<128x384xf32> to vector<128x128xf32>
    %36 = vector.extract_strided_slice %31 {offsets = [0, 256], sizes = [128, 128], strides = [1, 1]} : vector<128x384xf32> to vector<128x128xf32>
    %c0_16 = arith.constant 0 : index
    %c0_17 = arith.constant 0 : index
    %c0_18 = arith.constant 0 : index
    %37 = vector.load %arg2[%c0_16, %c0_17, %c0_18] : memref<1x1x128xf32, #tpu.memory_space<vmem>>, vector<1x1x128xf32>
    %38 = vector.shape_cast %37 : vector<1x1x128xf32> to vector<1x128xf32>
    %39 = vector.extract_strided_slice %34 {offsets = [0, 0], sizes = [128, 32], strides = [1, 1]} : vector<128x128xf32> to vector<128x32xf32>
    %40 = arith.truncf %39 : vector<128x32xf32> to vector<128x32xbf16>
    %41 = vector.extract_strided_slice %35 {offsets = [0, 0], sizes = [128, 32], strides = [1, 1]} : vector<128x128xf32> to vector<128x32xf32>
    %42 = arith.truncf %41 : vector<128x32xf32> to vector<128x32xbf16>
    %43 = vector.extract_strided_slice %36 {offsets = [0, 0], sizes = [128, 32], strides = [1, 1]} : vector<128x128xf32> to vector<128x32xf32>
    %44 = arith.truncf %43 : vector<128x32xf32> to vector<128x32xbf16>
    %45 = tpu.transpose %42, [1, 0] : vector<128x32xbf16> -> vector<32x128xbf16>
    %cst_19 = arith.constant dense<0.000000e+00> : vector<128x128xf32>
    %46 = tpu.matmul %40, %45, %cst_19 {dimension_numbers = #tpu.dot_dimension_numbers<[1], [0], [0], [1], [0, 0, 1, 1], [], []>} : vector<128x32xbf16>, vector<32x128xbf16>, vector<128x128xf32> -> vector<128x128xf32>
    %47 = vector.broadcast %38 : vector<1x128xf32> to vector<128x128xf32>
    %48 = arith.addf %46, %47 : vector<128x128xf32>
    %cst_20 = arith.constant dense<0xFF800000> : vector<128xf32>
    %49 = vector.multi_reduction <maximumf>, %48, %cst_20 [1] : vector<128x128xf32> to vector<128xf32>
    %50 = vector.shape_cast %49 : vector<128xf32> to vector<128x1xf32>
    %51 = vector.broadcast %50 : vector<128x1xf32> to vector<128x128xf32>
    %52 = arith.subf %48, %51 : vector<128x128xf32>
    %53 = math.exp %52 : vector<128x128xf32>
    %cst_21 = arith.constant dense<0.000000e+00> : vector<128xf32>
    %54 = vector.multi_reduction <add>, %53, %cst_21 [1] : vector<128x128xf32> to vector<128xf32>
    %55 = vector.shape_cast %54 : vector<128xf32> to vector<128x1xf32>
    %56 = tpu.reciprocal %55 {approx = true} : vector<128x1xf32> -> vector<128x1xf32>
    %57 = vector.broadcast %56 : vector<128x1xf32> to vector<128x128xf32>
    %58 = arith.mulf %53, %57 : vector<128x128xf32>
    %59 = arith.truncf %58 : vector<128x128xf32> to vector<128x128xbf16>
    %cst_22 = arith.constant dense<0.000000e+00> : vector<128x32xf32>
    %60 = tpu.matmul %59, %44, %cst_22 {dimension_numbers = #tpu.dot_dimension_numbers<[1], [0], [0], [1], [0, 0, 1, 1], [], []>} : vector<128x128xbf16>, vector<128x32xbf16>, vector<128x32xf32> -> vector<128x32xf32>
    %61 = vector.extract_strided_slice %34 {offsets = [0, 32], sizes = [128, 32], strides = [1, 1]} : vector<128x128xf32> to vector<128x32xf32>
    %62 = arith.truncf %61 : vector<128x32xf32> to vector<128x32xbf16>
    %63 = vector.extract_strided_slice %35 {offsets = [0, 32], sizes = [128, 32], strides = [1, 1]} : vector<128x128xf32> to vector<128x32xf32>
    %64 = arith.truncf %63 : vector<128x32xf32> to vector<128x32xbf16>
    %65 = vector.extract_strided_slice %36 {offsets = [0, 32], sizes = [128, 32], strides = [1, 1]} : vector<128x128xf32> to vector<128x32xf32>
    %66 = arith.truncf %65 : vector<128x32xf32> to vector<128x32xbf16>
    %67 = tpu.transpose %64, [1, 0] : vector<128x32xbf16> -> vector<32x128xbf16>
    %cst_23 = arith.constant dense<0.000000e+00> : vector<128x128xf32>
    %68 = tpu.matmul %62, %67, %cst_23 {dimension_numbers = #tpu.dot_dimension_numbers<[1], [0], [0], [1], [0, 0, 1, 1], [], []>} : vector<128x32xbf16>, vector<32x128xbf16>, vector<128x128xf32> -> vector<128x128xf32>
    %69 = vector.broadcast %38 : vector<1x128xf32> to vector<128x128xf32>
    %70 = arith.addf %68, %69 : vector<128x128xf32>
    %cst_24 = arith.constant dense<0xFF800000> : vector<128xf32>
    %71 = vector.multi_reduction <maximumf>, %70, %cst_24 [1] : vector<128x128xf32> to vector<128xf32>
    %72 = vector.shape_cast %71 : vector<128xf32> to vector<128x1xf32>
    %73 = vector.broadcast %72 : vector<128x1xf32> to vector<128x128xf32>
    %74 = arith.subf %70, %73 : vector<128x128xf32>
    %75 = math.exp %74 : vector<128x128xf32>
    %cst_25 = arith.constant dense<0.000000e+00> : vector<128xf32>
    %76 = vector.multi_reduction <add>, %75, %cst_25 [1] : vector<128x128xf32> to vector<128xf32>
    %77 = vector.shape_cast %76 : vector<128xf32> to vector<128x1xf32>
    %78 = tpu.reciprocal %77 {approx = true} : vector<128x1xf32> -> vector<128x1xf32>
    %79 = vector.broadcast %78 : vector<128x1xf32> to vector<128x128xf32>
    %80 = arith.mulf %75, %79 : vector<128x128xf32>
    %81 = arith.truncf %80 : vector<128x128xf32> to vector<128x128xbf16>
    %cst_26 = arith.constant dense<0.000000e+00> : vector<128x32xf32>
    %82 = tpu.matmul %81, %66, %cst_26 {dimension_numbers = #tpu.dot_dimension_numbers<[1], [0], [0], [1], [0, 0, 1, 1], [], []>} : vector<128x128xbf16>, vector<128x32xbf16>, vector<128x32xf32> -> vector<128x32xf32>
    %83 = vector.extract_strided_slice %34 {offsets = [0, 64], sizes = [128, 32], strides = [1, 1]} : vector<128x128xf32> to vector<128x32xf32>
    %84 = arith.truncf %83 : vector<128x32xf32> to vector<128x32xbf16>
    %85 = vector.extract_strided_slice %35 {offsets = [0, 64], sizes = [128, 32], strides = [1, 1]} : vector<128x128xf32> to vector<128x32xf32>
    %86 = arith.truncf %85 : vector<128x32xf32> to vector<128x32xbf16>
    %87 = vector.extract_strided_slice %36 {offsets = [0, 64], sizes = [128, 32], strides = [1, 1]} : vector<128x128xf32> to vector<128x32xf32>
    %88 = arith.truncf %87 : vector<128x32xf32> to vector<128x32xbf16>
    %89 = tpu.transpose %86, [1, 0] : vector<128x32xbf16> -> vector<32x128xbf16>
    %cst_27 = arith.constant dense<0.000000e+00> : vector<128x128xf32>
    %90 = tpu.matmul %84, %89, %cst_27 {dimension_numbers = #tpu.dot_dimension_numbers<[1], [0], [0], [1], [0, 0, 1, 1], [], []>} : vector<128x32xbf16>, vector<32x128xbf16>, vector<128x128xf32> -> vector<128x128xf32>
    %91 = vector.broadcast %38 : vector<1x128xf32> to vector<128x128xf32>
    %92 = arith.addf %90, %91 : vector<128x128xf32>
    %cst_28 = arith.constant dense<0xFF800000> : vector<128xf32>
    %93 = vector.multi_reduction <maximumf>, %92, %cst_28 [1] : vector<128x128xf32> to vector<128xf32>
    %94 = vector.shape_cast %93 : vector<128xf32> to vector<128x1xf32>
    %95 = vector.broadcast %94 : vector<128x1xf32> to vector<128x128xf32>
    %96 = arith.subf %92, %95 : vector<128x128xf32>
    %97 = math.exp %96 : vector<128x128xf32>
    %cst_29 = arith.constant dense<0.000000e+00> : vector<128xf32>
    %98 = vector.multi_reduction <add>, %97, %cst_29 [1] : vector<128x128xf32> to vector<128xf32>
    %99 = vector.shape_cast %98 : vector<128xf32> to vector<128x1xf32>
    %100 = tpu.reciprocal %99 {approx = true} : vector<128x1xf32> -> vector<128x1xf32>
    %101 = vector.broadcast %100 : vector<128x1xf32> to vector<128x128xf32>
    %102 = arith.mulf %97, %101 : vector<128x128xf32>
    %103 = arith.truncf %102 : vector<128x128xf32> to vector<128x128xbf16>
    %cst_30 = arith.constant dense<0.000000e+00> : vector<128x32xf32>
    %104 = tpu.matmul %103, %88, %cst_30 {dimension_numbers = #tpu.dot_dimension_numbers<[1], [0], [0], [1], [0, 0, 1, 1], [], []>} : vector<128x128xbf16>, vector<128x32xbf16>, vector<128x32xf32> -> vector<128x32xf32>
    %105 = vector.extract_strided_slice %34 {offsets = [0, 96], sizes = [128, 32], strides = [1, 1]} : vector<128x128xf32> to vector<128x32xf32>
    %106 = arith.truncf %105 : vector<128x32xf32> to vector<128x32xbf16>
    %107 = vector.extract_strided_slice %35 {offsets = [0, 96], sizes = [128, 32], strides = [1, 1]} : vector<128x128xf32> to vector<128x32xf32>
    %108 = arith.truncf %107 : vector<128x32xf32> to vector<128x32xbf16>
    %109 = vector.extract_strided_slice %36 {offsets = [0, 96], sizes = [128, 32], strides = [1, 1]} : vector<128x128xf32> to vector<128x32xf32>
    %110 = arith.truncf %109 : vector<128x32xf32> to vector<128x32xbf16>
    %111 = tpu.transpose %108, [1, 0] : vector<128x32xbf16> -> vector<32x128xbf16>
    %cst_31 = arith.constant dense<0.000000e+00> : vector<128x128xf32>
    %112 = tpu.matmul %106, %111, %cst_31 {dimension_numbers = #tpu.dot_dimension_numbers<[1], [0], [0], [1], [0, 0, 1, 1], [], []>} : vector<128x32xbf16>, vector<32x128xbf16>, vector<128x128xf32> -> vector<128x128xf32>
    %113 = vector.broadcast %38 : vector<1x128xf32> to vector<128x128xf32>
    %114 = arith.addf %112, %113 : vector<128x128xf32>
    %cst_32 = arith.constant dense<0xFF800000> : vector<128xf32>
    %115 = vector.multi_reduction <maximumf>, %114, %cst_32 [1] : vector<128x128xf32> to vector<128xf32>
    %116 = vector.shape_cast %115 : vector<128xf32> to vector<128x1xf32>
    %117 = vector.broadcast %116 : vector<128x1xf32> to vector<128x128xf32>
    %118 = arith.subf %114, %117 : vector<128x128xf32>
    %119 = math.exp %118 : vector<128x128xf32>
    %cst_33 = arith.constant dense<0.000000e+00> : vector<128xf32>
    %120 = vector.multi_reduction <add>, %119, %cst_33 [1] : vector<128x128xf32> to vector<128xf32>
    %121 = vector.shape_cast %120 : vector<128xf32> to vector<128x1xf32>
    %122 = tpu.reciprocal %121 {approx = true} : vector<128x1xf32> -> vector<128x1xf32>
    %123 = vector.broadcast %122 : vector<128x1xf32> to vector<128x128xf32>
    %124 = arith.mulf %119, %123 : vector<128x128xf32>
    %125 = arith.truncf %124 : vector<128x128xf32> to vector<128x128xbf16>
    %cst_34 = arith.constant dense<0.000000e+00> : vector<128x32xf32>
    %126 = tpu.matmul %125, %110, %cst_34 {dimension_numbers = #tpu.dot_dimension_numbers<[1], [0], [0], [1], [0, 0, 1, 1], [], []>} : vector<128x128xbf16>, vector<128x32xbf16>, vector<128x32xf32> -> vector<128x32xf32>
    %127 = tpu.concatenate %60, %82, %104, %126 in 1 : vector<128x32xf32>, vector<128x32xf32>, vector<128x32xf32>, vector<128x32xf32> -> vector<128x128xf32>
    %128 = arith.truncf %127 : vector<128x128xf32> to vector<128x128xbf16>
    %c0_35 = arith.constant 0 : index
    %c0_36 = arith.constant 0 : index
    %129 = vector.load %arg7[%c0_35, %c0_36] : memref<128x128xbf16, #tpu.memory_space<vmem>>, vector<128x128xbf16>
    %cst_37 = arith.constant dense<0.000000e+00> : vector<128x128xf32>
    %130 = tpu.matmul %128, %129, %cst_37 {dimension_numbers = #tpu.dot_dimension_numbers<[1], [0], [0], [1], [0, 0, 1, 1], [], []>} : vector<128x128xbf16>, vector<128x128xbf16>, vector<128x128xf32> -> vector<128x128xf32>
    %c0_38 = arith.constant 0 : index
    %c0_39 = arith.constant 0 : index
    %131 = vector.load %arg8[%c0_38, %c0_39] : memref<1x128xf32, #tpu.memory_space<vmem>>, vector<1x128xf32>
    %132 = vector.broadcast %131 : vector<1x128xf32> to vector<128x128xf32>
    %133 = arith.addf %130, %132 : vector<128x128xf32>
    %134 = arith.addf %1, %133 : vector<128x128xf32>
    %c0_40 = arith.constant 0 : index
    %c0_41 = arith.constant 0 : index
    %135 = vector.load %arg3[%c0_40, %c0_41] : memref<1x128xf32, #tpu.memory_space<vmem>>, vector<1x128xf32>
    %c0_42 = arith.constant 0 : index
    %c0_43 = arith.constant 0 : index
    %136 = vector.load %arg4[%c0_42, %c0_43] : memref<1x128xf32, #tpu.memory_space<vmem>>, vector<1x128xf32>
    %cst_44 = arith.constant dense<0.000000e+00> : vector<128xf32>
    %137 = vector.multi_reduction <add>, %134, %cst_44 [1] : vector<128x128xf32> to vector<128xf32>
    %138 = vector.shape_cast %137 : vector<128xf32> to vector<128x1xf32>
    %cst_45 = arith.constant 1.280000e+02 : f32
    %139 = vector.broadcast %cst_45 : f32 to vector<128x1xf32>
    %140 = arith.divf %138, %139 : vector<128x1xf32>
    %141 = vector.broadcast %140 : vector<128x1xf32> to vector<128x128xf32>
    %142 = arith.subf %134, %141 : vector<128x128xf32>
    %143 = arith.mulf %142, %142 : vector<128x128xf32>
    %cst_46 = arith.constant dense<0.000000e+00> : vector<128xf32>
    %144 = vector.multi_reduction <add>, %143, %cst_46 [1] : vector<128x128xf32> to vector<128xf32>
    %145 = vector.shape_cast %144 : vector<128xf32> to vector<128x1xf32>
    %cst_47 = arith.constant 1.280000e+02 : f32
    %146 = vector.broadcast %cst_47 : f32 to vector<128x1xf32>
    %147 = arith.divf %145, %146 : vector<128x1xf32>
    %148 = vector.broadcast %140 : vector<128x1xf32> to vector<128x128xf32>
    %149 = arith.subf %134, %148 : vector<128x128xf32>
    %cst_48 = arith.constant 9.99999997E-7 : f32
    %150 = vector.broadcast %cst_48 : f32 to vector<128x1xf32>
    %151 = arith.addf %147, %150 : vector<128x1xf32>
    %152 = math.rsqrt %151 : vector<128x1xf32>
    %153 = vector.broadcast %152 : vector<128x1xf32> to vector<128x128xf32>
    %154 = arith.mulf %149, %153 : vector<128x128xf32>
    %155 = vector.broadcast %135 : vector<1x128xf32> to vector<128x128xf32>
    %156 = arith.mulf %154, %155 : vector<128x128xf32>
    %157 = vector.broadcast %136 : vector<1x128xf32> to vector<128x128xf32>
    %158 = arith.addf %156, %157 : vector<128x128xf32>
    %c0_49 = arith.constant 0 : index
    %c0_50 = arith.constant 0 : index
    %159 = vector.load %arg9[%c0_49, %c0_50] : memref<1x128xf32, #tpu.memory_space<vmem>>, vector<1x128xf32>
    %c0_51 = arith.constant 0 : index
    %c0_52 = arith.constant 0 : index
    %160 = vector.load %arg10[%c0_51, %c0_52] : memref<1x128xf32, #tpu.memory_space<vmem>>, vector<1x128xf32>
    %cst_53 = arith.constant dense<0.000000e+00> : vector<128xf32>
    %161 = vector.multi_reduction <add>, %158, %cst_53 [1] : vector<128x128xf32> to vector<128xf32>
    %162 = vector.shape_cast %161 : vector<128xf32> to vector<128x1xf32>
    %cst_54 = arith.constant 1.280000e+02 : f32
    %163 = vector.broadcast %cst_54 : f32 to vector<128x1xf32>
    %164 = arith.divf %162, %163 : vector<128x1xf32>
    %165 = vector.broadcast %164 : vector<128x1xf32> to vector<128x128xf32>
    %166 = arith.subf %158, %165 : vector<128x128xf32>
    %167 = arith.mulf %166, %166 : vector<128x128xf32>
    %cst_55 = arith.constant dense<0.000000e+00> : vector<128xf32>
    %168 = vector.multi_reduction <add>, %167, %cst_55 [1] : vector<128x128xf32> to vector<128xf32>
    %169 = vector.shape_cast %168 : vector<128xf32> to vector<128x1xf32>
    %cst_56 = arith.constant 1.280000e+02 : f32
    %170 = vector.broadcast %cst_56 : f32 to vector<128x1xf32>
    %171 = arith.divf %169, %170 : vector<128x1xf32>
    %172 = vector.broadcast %164 : vector<128x1xf32> to vector<128x128xf32>
    %173 = arith.subf %158, %172 : vector<128x128xf32>
    %cst_57 = arith.constant 9.99999997E-7 : f32
    %174 = vector.broadcast %cst_57 : f32 to vector<128x1xf32>
    %175 = arith.addf %171, %174 : vector<128x1xf32>
    %176 = math.rsqrt %175 : vector<128x1xf32>
    %177 = vector.broadcast %176 : vector<128x1xf32> to vector<128x128xf32>
    %178 = arith.mulf %173, %177 : vector<128x128xf32>
    %179 = vector.broadcast %159 : vector<1x128xf32> to vector<128x128xf32>
    %180 = arith.mulf %178, %179 : vector<128x128xf32>
    %181 = vector.broadcast %160 : vector<1x128xf32> to vector<128x128xf32>
    %182 = arith.addf %180, %181 : vector<128x128xf32>
    %183 = arith.truncf %182 : vector<128x128xf32> to vector<128x128xbf16>
    %cst_58 = arith.constant 0.000000e+00 : f32
    %184 = vector.broadcast %cst_58 : f32 to vector<128x128xf32>
    %c0_59 = arith.constant 0 : index
    %c0_60 = arith.constant 0 : index
    %185 = vector.load %arg11[%c0_59, %c0_60] : memref<128x256xbf16, #tpu.memory_space<vmem>>, vector<128x256xbf16>
    %cst_61 = arith.constant dense<0.000000e+00> : vector<128x256xf32>
    %186 = tpu.matmul %183, %185, %cst_61 {dimension_numbers = #tpu.dot_dimension_numbers<[1], [0], [0], [1], [0, 0, 1, 1], [], []>} : vector<128x128xbf16>, vector<128x256xbf16>, vector<128x256xf32> -> vector<128x256xf32>
    %c0_62 = arith.constant 0 : index
    %c0_63 = arith.constant 0 : index
    %187 = vector.load %arg12[%c0_62, %c0_63] : memref<1x256xf32, #tpu.memory_space<vmem>>, vector<1x256xf32>
    %188 = vector.broadcast %187 : vector<1x256xf32> to vector<128x256xf32>
    %189 = arith.addf %186, %188 : vector<128x256xf32>
    %cst_64 = arith.constant 0.000000e+00 : f32
    %190 = vector.broadcast %cst_64 : f32 to vector<128x256xf32>
    %191 = arith.maximumf %189, %190 : vector<128x256xf32>
    %192 = arith.truncf %191 : vector<128x256xf32> to vector<128x256xbf16>
    %c0_65 = arith.constant 0 : index
    %c0_66 = arith.constant 0 : index
    %193 = vector.load %arg13[%c0_65, %c0_66] : memref<256x128xbf16, #tpu.memory_space<vmem>>, vector<256x128xbf16>
    %cst_67 = arith.constant dense<0.000000e+00> : vector<128x128xf32>
    %194 = tpu.matmul %192, %193, %cst_67 {dimension_numbers = #tpu.dot_dimension_numbers<[1], [0], [0], [1], [0, 0, 1, 1], [], []>} : vector<128x256xbf16>, vector<256x128xbf16>, vector<128x128xf32> -> vector<128x128xf32>
    %195 = arith.addf %184, %194 : vector<128x128xf32>
    %c0_68 = arith.constant 0 : index
    %c0_69 = arith.constant 0 : index
    %196 = vector.load %arg14[%c0_68, %c0_69] : memref<1x128xf32, #tpu.memory_space<vmem>>, vector<1x128xf32>
    %197 = vector.broadcast %196 : vector<1x128xf32> to vector<128x128xf32>
    %198 = arith.addf %195, %197 : vector<128x128xf32>
    %199 = arith.addf %198, %158 : vector<128x128xf32>
    %200 = arith.addf %199, %134 : vector<128x128xf32>
    %c0_70 = arith.constant 0 : index
    %c0_71 = arith.constant 0 : index
    %c0_72 = arith.constant 0 : index
    %201 = vector.load %arg17[%c0_70, %c0_71, %c0_72] : memref<1x128x128xf32, #tpu.memory_space<vmem>>, vector<1x128x128xf32>
    %202 = vector.shape_cast %201 : vector<1x128x128xf32> to vector<128x128xf32>
    %203 = vector.shape_cast %200 : vector<128x128xf32> to vector<1x128x128xf32>
    tpu.vector_store %arg17[%c0_70, %c0_71, %c0_72], %203 {strides = array<i32>} : memref<1x128x128xf32, #tpu.memory_space<vmem>>, vector<1x128x128xf32>,
    return
  }
  func.func @transform_0(%arg0: i32) -> (i32, i32, i32) {
    %c0_i32 = arith.constant 0 : i32
    %c0_i32_0 = arith.constant 0 : i32
    %c0_i32_1 = arith.constant 0 : i32
    return %arg0, %c0_i32, %c0_i32_0 : i32, i32, i32
  }
  func.func @transform_1(%arg0: i32) -> (i32, i32, i32) {
    %c0_i32 = arith.constant 0 : i32
    %c0_i32_0 = arith.constant 0 : i32
    %c0_i32_1 = arith.constant 0 : i32
    return %arg0, %c0_i32, %c0_i32_0 : i32, i32, i32
  }
  func.func @transform_2(%arg0: i32) -> (i32, i32) {
    %c0_i32 = arith.constant 0 : i32
    %c0_i32_0 = arith.constant 0 : i32
    %c0_i32_1 = arith.constant 0 : i32
    return %c0_i32, %c0_i32_0 : i32, i32
  }
  func.func @transform_3(%arg0: i32) -> (i32, i32) {
    %c0_i32 = arith.constant 0 : i32
    %c0_i32_0 = arith.constant 0 : i32
    %c0_i32_1 = arith.constant 0 : i32
    return %c0_i32, %c0_i32_0 : i32, i32
  }
  func.func @transform_4(%arg0: i32) -> (i32, i32) {
    %c0_i32 = arith.constant 0 : i32
    %c0_i32_0 = arith.constant 0 : i32
    %c0_i32_1 = arith.constant 0 : i32
    return %c0_i32, %c0_i32_0 : i32, i32
  }
  func.func @transform_5(%arg0: i32) -> (i32, i32) {
    %c0_i32 = arith.constant 0 : i32
    %c0_i32_0 = arith.constant 0 : i32
    %c0_i32_1 = arith.constant 0 : i32
    return %c0_i32, %c0_i32_0 : i32, i32
  }
  func.func @transform_6(%arg0: i32) -> (i32, i32) {
    %c0_i32 = arith.constant 0 : i32
    %c0_i32_0 = arith.constant 0 : i32
    %c0_i32_1 = arith.constant 0 : i32
    return %c0_i32, %c0_i32_0 : i32, i32
  }
  func.func @transform_7(%arg0: i32) -> (i32, i32) {
    %c0_i32 = arith.constant 0 : i32
    %c0_i32_0 = arith.constant 0 : i32
    %c0_i32_1 = arith.constant 0 : i32
    return %c0_i32, %c0_i32_0 : i32, i32
  }
  func.func @transform_8(%arg0: i32) -> (i32, i32) {
    %c0_i32 = arith.constant 0 : i32
    %c0_i32_0 = arith.constant 0 : i32
    %c0_i32_1 = arith.constant 0 : i32
    return %c0_i32, %c0_i32_0 : i32, i32
  }
  func.func @transform_9(%arg0: i32) -> (i32, i32) {
    %c0_i32 = arith.constant 0 : i32
    %c0_i32_0 = arith.constant 0 : i32
    %c0_i32_1 = arith.constant 0 : i32
    return %c0_i32, %c0_i32_0 : i32, i32
  }
  func.func @transform_10(%arg0: i32) -> (i32, i32) {
    %c0_i32 = arith.constant 0 : i32
    %c0_i32_0 = arith.constant 0 : i32
    %c0_i32_1 = arith.constant 0 : i32
    return %c0_i32, %c0_i32_0 : i32, i32
  }
  func.func @transform_11(%arg0: i32) -> (i32, i32) {
    %c0_i32 = arith.constant 0 : i32
    %c0_i32_0 = arith.constant 0 : i32
    %c0_i32_1 = arith.constant 0 : i32
    return %c0_i32, %c0_i32_0 : i32, i32
  }
  func.func @transform_12(%arg0: i32) -> (i32, i32) {
    %c0_i32 = arith.constant 0 : i32
    %c0_i32_0 = arith.constant 0 : i32
    %c0_i32_1 = arith.constant 0 : i32
    return %c0_i32, %c0_i32_0 : i32, i32
  }
  func.func @transform_13(%arg0: i32) -> (i32, i32) {
    %c0_i32 = arith.constant 0 : i32
    %c0_i32_0 = arith.constant 0 : i32
    %c0_i32_1 = arith.constant 0 : i32
    return %c0_i32, %c0_i32_0 : i32, i32
  }
  func.func @transform_14(%arg0: i32) -> (i32, i32) {
    %c0_i32 = arith.constant 0 : i32
    %c0_i32_0 = arith.constant 0 : i32
    %c0_i32_1 = arith.constant 0 : i32
    return %c0_i32, %c0_i32_0 : i32, i32
  }
  func.func @transform_15(%arg0: i32) -> (i32, i32) {
    %c0_i32 = arith.constant 0 : i32
    %c0_i32_0 = arith.constant 0 : i32
    %c0_i32_1 = arith.constant 0 : i32
    return %c0_i32, %c0_i32_0 : i32, i32
  }
  func.func @transform_16(%arg0: i32) -> (i32, i32, i32) {
    %c0_i32 = arith.constant 0 : i32
    %c0_i32_0 = arith.constant 0 : i32
    %c0_i32_1 = arith.constant 0 : i32
    return %arg0, %c0_i32, %c0_i32_0 : i32, i32, i32
  }
}

module attributes {stable_mosaic.version = 11 : i64} {
  func.func @_encoder_layer_kernel(%arg0: i32, %arg1: memref<1x128x128xf32, #tpu.memory_space<vmem>>, %arg2: memref<1x1x128xf32, #tpu.memory_space<vmem>>, %arg3: memref<1x128xf32, #tpu.memory_space<vmem>>, %arg4: memref<1x128xf32, #tpu.memory_space<vmem>>, %arg5: memref<128x384xbf16, #tpu.memory_space<vmem>>, %arg6: memref<1x384xf32, #tpu.memory_space<vmem>>, %arg7: memref<128x128xbf16, #tpu.memory_space<vmem>>, %arg8: memref<1x128xf32, #tpu.memory_space<vmem>>, %arg9: memref<1x128xf32, #tpu.memory_space<vmem>>, %arg10: memref<1x128xf32, #tpu.memory_space<vmem>>, %arg11: memref<128x256xbf16, #tpu.memory_space<vmem>>, %arg12: memref<1x256xf32, #tpu.memory_space<vmem>>, %arg13: memref<256x128xbf16, #tpu.memory_space<vmem>>, %arg14: memref<1x128xf32, #tpu.memory_space<vmem>>, %arg15: memref<1x128xf32, #tpu.memory_space<vmem>>, %arg16: memref<1x128xf32, #tpu.memory_space<vmem>>, %arg17: memref<1x128x128xf32, #tpu.memory_space<vmem>>) attributes {dimension_semantics = [#tpu.dimension_semantics<parallel>], iteration_bounds = array<i64: 2>, scalar_prefetch = 0 : i64, scratch_operands = 0 : i64, tpu.core_type = #tpu.core_type<tc>, window_params = [{transform_indices = @transform_0, window_bounds = array<i64: 1, 128, 128>}, {transform_indices = @transform_1, window_bounds = array<i64: 1, 1, 128>}, {pipeline_mode = #tpu.pipeline_mode<synchronous>, transform_indices = @transform_2, window_bounds = array<i64: 1, 128>}, {pipeline_mode = #tpu.pipeline_mode<synchronous>, transform_indices = @transform_3, window_bounds = array<i64: 1, 128>}, {pipeline_mode = #tpu.pipeline_mode<synchronous>, transform_indices = @transform_4, window_bounds = array<i64: 128, 384>}, {pipeline_mode = #tpu.pipeline_mode<synchronous>, transform_indices = @transform_5, window_bounds = array<i64: 1, 384>}, {pipeline_mode = #tpu.pipeline_mode<synchronous>, transform_indices = @transform_6, window_bounds = array<i64: 128, 128>}, {pipeline_mode = #tpu.pipeline_mode<synchronous>, transform_indices = @transform_7, window_bounds = array<i64: 1, 128>}, {pipeline_mode = #tpu.pipeline_mode<synchronous>, transform_indices = @transform_8, window_bounds = array<i64: 1, 128>}, {pipeline_mode = #tpu.pipeline_mode<synchronous>, transform_indices = @transform_9, window_bounds = array<i64: 1, 128>}, {pipeline_mode = #tpu.pipeline_mode<synchronous>, transform_indices = @transform_10, window_bounds = array<i64: 128, 256>}, {pipeline_mode = #tpu.pipeline_mode<synchronous>, transform_indices = @transform_11, window_bounds = array<i64: 1, 256>}, {pipeline_mode = #tpu.pipeline_mode<synchronous>, transform_indices = @transform_12, window_bounds = array<i64: 256, 128>}, {pipeline_mode = #tpu.pipeline_mode<synchronous>, transform_indices = @transform_13, window_bounds = array<i64: 1, 128>}, {pipeline_mode = #tpu.pipeline_mode<synchronous>, transform_indices = @transform_14, window_bounds = array<i64: 1, 128>}, {pipeline_mode = #tpu.pipeline_mode<synchronous>, transform_indices = @transform_15, window_bounds = array<i64: 1, 128>}, {transform_indices = @transform_16, window_bounds = array<i64: 1, 128, 128>}]} {
    %c0 = arith.constant 0 : index
    %c0_0 = arith.constant 0 : index
    %c0_1 = arith.constant 0 : index
    %0 = vector.load %arg1[%c0, %c0_0, %c0_1] : memref<1x128x128xf32, #tpu.memory_space<vmem>>, vector<1x128x128xf32>
    %1 = vector.shape_cast %0 : vector<1x128x128xf32> to vector<128x128xf32>
    %c0_2 = arith.constant 0 : index
    %c0_3 = arith.constant 0 : index
    %2 = vector.load %arg3[%c0_2, %c0_3] : memref<1x128xf32, #tpu.memory_space<vmem>>, vector<1x128xf32>
    %c0_4 = arith.constant 0 : index
    %c0_5 = arith.constant 0 : index
    %3 = vector.load %arg4[%c0_4, %c0_5] : memref<1x128xf32, #tpu.memory_space<vmem>>, vector<1x128xf32>
    %cst = arith.constant dense<0.000000e+00> : vector<128xf32>
    %4 = vector.multi_reduction <add>, %1, %cst [1] : vector<128x128xf32> to vector<128xf32>
    %5 = vector.shape_cast %4 : vector<128xf32> to vector<128x1xf32>
    %cst_6 = arith.constant 1.280000e+02 : f32
    %6 = vector.broadcast %cst_6 : f32 to vector<128x1xf32>
    %7 = arith.divf %5, %6 : vector<128x1xf32>
    %8 = vector.broadcast %7 : vector<128x1xf32> to vector<128x128xf32>
    %9 = arith.subf %1, %8 : vector<128x128xf32>
    %10 = arith.mulf %9, %9 : vector<128x128xf32>
    %cst_7 = arith.constant dense<0.000000e+00> : vector<128xf32>
    %11 = vector.multi_reduction <add>, %10, %cst_7 [1] : vector<128x128xf32> to vector<128xf32>
    %12 = vector.shape_cast %11 : vector<128xf32> to vector<128x1xf32>
    %cst_8 = arith.constant 1.280000e+02 : f32
    %13 = vector.broadcast %cst_8 : f32 to vector<128x1xf32>
    %14 = arith.divf %12, %13 : vector<128x1xf32>
    %15 = vector.broadcast %7 : vector<128x1xf32> to vector<128x128xf32>
    %16 = arith.subf %1, %15 : vector<128x128xf32>
    %cst_9 = arith.constant 9.99999997E-7 : f32
    %17 = vector.broadcast %cst_9 : f32 to vector<128x1xf32>
    %18 = arith.addf %14, %17 : vector<128x1xf32>
    %19 = math.rsqrt %18 : vector<128x1xf32>
    %20 = vector.broadcast %19 : vector<128x1xf32> to vector<128x128xf32>
    %21 = arith.mulf %16, %20 : vector<128x128xf32>
    %22 = vector.broadcast %2 : vector<1x128xf32> to vector<128x128xf32>
    %23 = arith.mulf %21, %22 : vector<128x128xf32>
    %24 = vector.broadcast %3 : vector<1x128xf32> to vector<128x128xf32>
    %25 = arith.addf %23, %24 : vector<128x128xf32>
    %26 = arith.truncf %25 : vector<128x128xf32> to vector<128x128xbf16>
    %c0_10 = arith.constant 0 : index
    %c0_11 = arith.constant 0 : index
    %27 = vector.load %arg5[%c0_10, %c0_11] : memref<128x384xbf16, #tpu.memory_space<vmem>>, vector<128x384xbf16>
    %cst_12 = arith.constant dense<0.000000e+00> : vector<128x384xf32>
    %28 = tpu.matmul %26, %27, %cst_12 {dimension_numbers = #tpu.dot_dimension_numbers<[1], [0], [0], [1], [0, 0, 1, 1], [], []>} : vector<128x128xbf16>, vector<128x384xbf16>, vector<128x384xf32> -> vector<128x384xf32>
    %c0_13 = arith.constant 0 : index
    %c0_14 = arith.constant 0 : index
    %29 = vector.load %arg6[%c0_13, %c0_14] : memref<1x384xf32, #tpu.memory_space<vmem>>, vector<1x384xf32>
    %30 = vector.broadcast %29 : vector<1x384xf32> to vector<128x384xf32>
    %31 = arith.addf %28, %30 : vector<128x384xf32>
    %32 = vector.extract_strided_slice %31 {offsets = [0, 0], sizes = [128, 128], strides = [1, 1]} : vector<128x384xf32> to vector<128x128xf32>
    %cst_15 = arith.constant 0.176776692 : f32
    %33 = vector.broadcast %cst_15 : f32 to vector<128x128xf32>
    %34 = arith.mulf %32, %33 : vector<128x128xf32>
    %35 = vector.extract_strided_slice %31 {offsets = [0, 128], sizes = [128, 128], strides = [1, 1]} : vector<128x384xf32> to vector<128x128xf32>
    %36 = vector.extract_strided_slice %31 {offsets = [0, 256], sizes = [128, 128], strides = [1, 1]} : vector<128x384xf32> to vector<128x128xf32>
    %c0_16 = arith.constant 0 : index
    %c0_17 = arith.constant 0 : index
    %c0_18 = arith.constant 0 : index
    %37 = vector.load %arg2[%c0_16, %c0_17, %c0_18] : memref<1x1x128xf32, #tpu.memory_space<vmem>>, vector<1x1x128xf32>
    %38 = vector.shape_cast %37 : vector<1x1x128xf32> to vector<1x128xf32>
    %39 = vector.extract_strided_slice %34 {offsets = [0, 0], sizes = [128, 32], strides = [1, 1]} : vector<128x128xf32> to vector<128x32xf32>
    %40 = arith.truncf %39 : vector<128x32xf32> to vector<128x32xbf16>
    %41 = vector.extract_strided_slice %35 {offsets = [0, 0], sizes = [128, 32], strides = [1, 1]} : vector<128x128xf32> to vector<128x32xf32>
    %42 = arith.truncf %41 : vector<128x32xf32> to vector<128x32xbf16>
    %43 = vector.extract_strided_slice %36 {offsets = [0, 0], sizes = [128, 32], strides = [1, 1]} : vector<128x128xf32> to vector<128x32xf32>
    %44 = arith.truncf %43 : vector<128x32xf32> to vector<128x32xbf16>
    %45 = tpu.transpose %42, [1, 0] : vector<128x32xbf16> -> vector<32x128xbf16>
    %cst_19 = arith.constant dense<0.000000e+00> : vector<128x128xf32>
    %46 = tpu.matmul %40, %45, %cst_19 {dimension_numbers = #tpu.dot_dimension_numbers<[1], [0], [0], [1], [0, 0, 1, 1], [], []>} : vector<128x32xbf16>, vector<32x128xbf16>, vector<128x128xf32> -> vector<128x128xf32>
    %47 = vector.broadcast %38 : vector<1x128xf32> to vector<128x128xf32>
    %48 = arith.addf %46, %47 : vector<128x128xf32>
    %cst_20 = arith.constant dense<0xFF800000> : vector<128xf32>
    %49 = vector.multi_reduction <maximumf>, %48, %cst_20 [1] : vector<128x128xf32> to vector<128xf32>
    %50 = vector.shape_cast %49 : vector<128xf32> to vector<128x1xf32>
    %51 = vector.broadcast %50 : vector<128x1xf32> to vector<128x128xf32>
    %52 = arith.subf %48, %51 : vector<128x128xf32>
    %53 = math.exp %52 : vector<128x128xf32>
    %cst_21 = arith.constant dense<0.000000e+00> : vector<128xf32>
    %54 = vector.multi_reduction <add>, %53, %cst_21 [1] : vector<128x128xf32> to vector<128xf32>
    %55 = vector.shape_cast %54 : vector<128xf32> to vector<128x1xf32>
    %56 = tpu.reciprocal %55 {approx = true} : vector<128x1xf32> -> vector<128x1xf32>
    %57 = vector.broadcast %56 : vector<128x1xf32> to vector<128x128xf32>
    %58 = arith.mulf %53, %57 : vector<128x128xf32>
    %59 = arith.truncf %58 : vector<128x128xf32> to vector<128x128xbf16>
    %cst_22 = arith.constant dense<0.000000e+00> : vector<128x32xf32>
    %60 = tpu.matmul %59, %44, %cst_22 {dimension_numbers = #tpu.dot_dimension_numbers<[1], [0], [0], [1], [0, 0, 1, 1], [], []>} : vector<128x128xbf16>, vector<128x32xbf16>, vector<128x32xf32> -> vector<128x32xf32>
    %61 = vector.extract_strided_slice %34 {offsets = [0, 32], sizes = [128, 32], strides = [1, 1]} : vector<128x128xf32> to vector<128x32xf32>
    %62 = arith.truncf %61 : vector<128x32xf32> to vector<128x32xbf16>
    %63 = vector.extract_strided_slice %35 {offsets = [0, 32], sizes = [128, 32], strides = [1, 1]} : vector<128x128xf32> to vector<128x32xf32>
    %64 = arith.truncf %63 : vector<128x32xf32> to vector<128x32xbf16>
    %65 = vector.extract_strided_slice %36 {offsets = [0, 32], sizes = [128, 32], strides = [1, 1]} : vector<128x128xf32> to vector<128x32xf32>
    %66 = arith.truncf %65 : vector<128x32xf32> to vector<128x32xbf16>
    %67 = tpu.transpose %64, [1, 0] : vector<128x32xbf16> -> vector<32x128xbf16>
    %cst_23 = arith.constant dense<0.000000e+00> : vector<128x128xf32>
    %68 = tpu.matmul %62, %67, %cst_23 {dimension_numbers = #tpu.dot_dimension_numbers<[1], [0], [0], [1], [0, 0, 1, 1], [], []>} : vector<128x32xbf16>, vector<32x128xbf16>, vector<128x128xf32> -> vector<128x128xf32>
    %69 = vector.broadcast %38 : vector<1x128xf32> to vector<128x128xf32>
    %70 = arith.addf %68, %69 : vector<128x128xf32>
    %cst_24 = arith.constant dense<0xFF800000> : vector<128xf32>
    %71 = vector.multi_reduction <maximumf>, %70, %cst_24 [1] : vector<128x128xf32> to vector<128xf32>
    %72 = vector.shape_cast %71 : vector<128xf32> to vector<128x1xf32>
    %73 = vector.broadcast %72 : vector<128x1xf32> to vector<128x128xf32>
    %74 = arith.subf %70, %73 : vector<128x128xf32>
    %75 = math.exp %74 : vector<128x128xf32>
    %cst_25 = arith.constant dense<0.000000e+00> : vector<128xf32>
    %76 = vector.multi_reduction <add>, %75, %cst_25 [1] : vector<128x128xf32> to vector<128xf32>
    %77 = vector.shape_cast %76 : vector<128xf32> to vector<128x1xf32>
    %78 = tpu.reciprocal %77 {approx = true} : vector<128x1xf32> -> vector<128x1xf32>
    %79 = vector.broadcast %78 : vector<128x1xf32> to vector<128x128xf32>
    %80 = arith.mulf %75, %79 : vector<128x128xf32>
    %81 = arith.truncf %80 : vector<128x128xf32> to vector<128x128xbf16>
    %cst_26 = arith.constant dense<0.000000e+00> : vector<128x32xf32>
    %82 = tpu.matmul %81, %66, %cst_26 {dimension_numbers = #tpu.dot_dimension_numbers<[1], [0], [0], [1], [0, 0, 1, 1], [], []>} : vector<128x128xbf16>, vector<128x32xbf16>, vector<128x32xf32> -> vector<128x32xf32>
    %83 = vector.extract_strided_slice %34 {offsets = [0, 64], sizes = [128, 32], strides = [1, 1]} : vector<128x128xf32> to vector<128x32xf32>
    %84 = arith.truncf %83 : vector<128x32xf32> to vector<128x32xbf16>
    %85 = vector.extract_strided_slice %35 {offsets = [0, 64], sizes = [128, 32], strides = [1, 1]} : vector<128x128xf32> to vector<128x32xf32>
    %86 = arith.truncf %85 : vector<128x32xf32> to vector<128x32xbf16>
    %87 = vector.extract_strided_slice %36 {offsets = [0, 64], sizes = [128, 32], strides = [1, 1]} : vector<128x128xf32> to vector<128x32xf32>
    %88 = arith.truncf %87 : vector<128x32xf32> to vector<128x32xbf16>
    %89 = tpu.transpose %86, [1, 0] : vector<128x32xbf16> -> vector<32x128xbf16>
    %cst_27 = arith.constant dense<0.000000e+00> : vector<128x128xf32>
    %90 = tpu.matmul %84, %89, %cst_27 {dimension_numbers = #tpu.dot_dimension_numbers<[1], [0], [0], [1], [0, 0, 1, 1], [], []>} : vector<128x32xbf16>, vector<32x128xbf16>, vector<128x128xf32> -> vector<128x128xf32>
    %91 = vector.broadcast %38 : vector<1x128xf32> to vector<128x128xf32>
    %92 = arith.addf %90, %91 : vector<128x128xf32>
    %cst_28 = arith.constant dense<0xFF800000> : vector<128xf32>
    %93 = vector.multi_reduction <maximumf>, %92, %cst_28 [1] : vector<128x128xf32> to vector<128xf32>
    %94 = vector.shape_cast %93 : vector<128xf32> to vector<128x1xf32>
    %95 = vector.broadcast %94 : vector<128x1xf32> to vector<128x128xf32>
    %96 = arith.subf %92, %95 : vector<128x128xf32>
    %97 = math.exp %96 : vector<128x128xf32>
    %cst_29 = arith.constant dense<0.000000e+00> : vector<128xf32>
    %98 = vector.multi_reduction <add>, %97, %cst_29 [1] : vector<128x128xf32> to vector<128xf32>
    %99 = vector.shape_cast %98 : vector<128xf32> to vector<128x1xf32>
    %100 = tpu.reciprocal %99 {approx = true} : vector<128x1xf32> -> vector<128x1xf32>
    %101 = vector.broadcast %100 : vector<128x1xf32> to vector<128x128xf32>
    %102 = arith.mulf %97, %101 : vector<128x128xf32>
    %103 = arith.truncf %102 : vector<128x128xf32> to vector<128x128xbf16>
    %cst_30 = arith.constant dense<0.000000e+00> : vector<128x32xf32>
    %104 = tpu.matmul %103, %88, %cst_30 {dimension_numbers = #tpu.dot_dimension_numbers<[1], [0], [0], [1], [0, 0, 1, 1], [], []>} : vector<128x128xbf16>, vector<128x32xbf16>, vector<128x32xf32> -> vector<128x32xf32>
    %105 = vector.extract_strided_slice %34 {offsets = [0, 96], sizes = [128, 32], strides = [1, 1]} : vector<128x128xf32> to vector<128x32xf32>
    %106 = arith.truncf %105 : vector<128x32xf32> to vector<128x32xbf16>
    %107 = vector.extract_strided_slice %35 {offsets = [0, 96], sizes = [128, 32], strides = [1, 1]} : vector<128x128xf32> to vector<128x32xf32>
    %108 = arith.truncf %107 : vector<128x32xf32> to vector<128x32xbf16>
    %109 = vector.extract_strided_slice %36 {offsets = [0, 96], sizes = [128, 32], strides = [1, 1]} : vector<128x128xf32> to vector<128x32xf32>
    %110 = arith.truncf %109 : vector<128x32xf32> to vector<128x32xbf16>
    %111 = tpu.transpose %108, [1, 0] : vector<128x32xbf16> -> vector<32x128xbf16>
    %cst_31 = arith.constant dense<0.000000e+00> : vector<128x128xf32>
    %112 = tpu.matmul %106, %111, %cst_31 {dimension_numbers = #tpu.dot_dimension_numbers<[1], [0], [0], [1], [0, 0, 1, 1], [], []>} : vector<128x32xbf16>, vector<32x128xbf16>, vector<128x128xf32> -> vector<128x128xf32>
    %113 = vector.broadcast %38 : vector<1x128xf32> to vector<128x128xf32>
    %114 = arith.addf %112, %113 : vector<128x128xf32>
    %cst_32 = arith.constant dense<0xFF800000> : vector<128xf32>
    %115 = vector.multi_reduction <maximumf>, %114, %cst_32 [1] : vector<128x128xf32> to vector<128xf32>
    %116 = vector.shape_cast %115 : vector<128xf32> to vector<128x1xf32>
    %117 = vector.broadcast %116 : vector<128x1xf32> to vector<128x128xf32>
    %118 = arith.subf %114, %117 : vector<128x128xf32>
    %119 = math.exp %118 : vector<128x128xf32>
    %cst_33 = arith.constant dense<0.000000e+00> : vector<128xf32>
    %120 = vector.multi_reduction <add>, %119, %cst_33 [1] : vector<128x128xf32> to vector<128xf32>
    %121 = vector.shape_cast %120 : vector<128xf32> to vector<128x1xf32>
    %122 = tpu.reciprocal %121 {approx = true} : vector<128x1xf32> -> vector<128x1xf32>
    %123 = vector.broadcast %122 : vector<128x1xf32> to vector<128x128xf32>
    %124 = arith.mulf %119, %123 : vector<128x128xf32>
    %125 = arith.truncf %124 : vector<128x128xf32> to vector<128x128xbf16>
    %cst_34 = arith.constant dense<0.000000e+00> : vector<128x32xf32>
    %126 = tpu.matmul %125, %110, %cst_34 {dimension_numbers = #tpu.dot_dimension_numbers<[1], [0], [0], [1], [0, 0, 1, 1], [], []>} : vector<128x128xbf16>, vector<128x32xbf16>, vector<128x32xf32> -> vector<128x32xf32>
    %127 = tpu.concatenate %60, %82, %104, %126 in 1 : vector<128x32xf32>, vector<128x32xf32>, vector<128x32xf32>, vector<128x32xf32> -> vector<128x128xf32>
    %128 = arith.truncf %127 : vector<128x128xf32> to vector<128x128xbf16>
    %c0_35 = arith.constant 0 : index
    %c0_36 = arith.constant 0 : index
    %129 = vector.load %arg7[%c0_35, %c0_36] : memref<128x128xbf16, #tpu.memory_space<vmem>>, vector<128x128xbf16>
    %cst_37 = arith.constant dense<0.000000e+00> : vector<128x128xf32>
    %130 = tpu.matmul %128, %129, %cst_37 {dimension_numbers = #tpu.dot_dimension_numbers<[1], [0], [0], [1], [0, 0, 1, 1], [], []>} : vector<128x128xbf16>, vector<128x128xbf16>, vector<128x128xf32> -> vector<128x128xf32>
    %c0_38 = arith.constant 0 : index
    %c0_39 = arith.constant 0 : index
    %131 = vector.load %arg8[%c0_38, %c0_39] : memref<1x128xf32, #tpu.memory_space<vmem>>, vector<1x128xf32>
    %132 = vector.broadcast %131 : vector<1x128xf32> to vector<128x128xf32>
    %133 = arith.addf %130, %132 : vector<128x128xf32>
    %134 = arith.addf %1, %133 : vector<128x128xf32>
    %c0_40 = arith.constant 0 : index
    %c0_41 = arith.constant 0 : index
    %135 = vector.load %arg3[%c0_40, %c0_41] : memref<1x128xf32, #tpu.memory_space<vmem>>, vector<1x128xf32>
    %c0_42 = arith.constant 0 : index
    %c0_43 = arith.constant 0 : index
    %136 = vector.load %arg4[%c0_42, %c0_43] : memref<1x128xf32, #tpu.memory_space<vmem>>, vector<1x128xf32>
    %cst_44 = arith.constant dense<0.000000e+00> : vector<128xf32>
    %137 = vector.multi_reduction <add>, %134, %cst_44 [1] : vector<128x128xf32> to vector<128xf32>
    %138 = vector.shape_cast %137 : vector<128xf32> to vector<128x1xf32>
    %cst_45 = arith.constant 1.280000e+02 : f32
    %139 = vector.broadcast %cst_45 : f32 to vector<128x1xf32>
    %140 = arith.divf %138, %139 : vector<128x1xf32>
    %141 = vector.broadcast %140 : vector<128x1xf32> to vector<128x128xf32>
    %142 = arith.subf %134, %141 : vector<128x128xf32>
    %143 = arith.mulf %142, %142 : vector<128x128xf32>
    %cst_46 = arith.constant dense<0.000000e+00> : vector<128xf32>
    %144 = vector.multi_reduction <add>, %143, %cst_46 [1] : vector<128x128xf32> to vector<128xf32>
    %145 = vector.shape_cast %144 : vector<128xf32> to vector<128x1xf32>
    %cst_47 = arith.constant 1.280000e+02 : f32
    %146 = vector.broadcast %cst_47 : f32 to vector<128x1xf32>
    %147 = arith.divf %145, %146 : vector<128x1xf32>
    %148 = vector.broadcast %140 : vector<128x1xf32> to vector<128x128xf32>
    %149 = arith.subf %134, %148 : vector<128x128xf32>
    %cst_48 = arith.constant 9.99999997E-7 : f32
    %150 = vector.broadcast %cst_48 : f32 to vector<128x1xf32>
    %151 = arith.addf %147, %150 : vector<128x1xf32>
    %152 = math.rsqrt %151 : vector<128x1xf32>
    %153 = vector.broadcast %152 : vector<128x1xf32> to vector<128x128xf32>
    %154 = arith.mulf %149, %153 : vector<128x128xf32>
    %155 = vector.broadcast %135 : vector<1x128xf32> to vector<128x128xf32>
    %156 = arith.mulf %154, %155 : vector<128x128xf32>
    %157 = vector.broadcast %136 : vector<1x128xf32> to vector<128x128xf32>
    %158 = arith.addf %156, %157 : vector<128x128xf32>
    %c0_49 = arith.constant 0 : index
    %c0_50 = arith.constant 0 : index
    %159 = vector.load %arg9[%c0_49, %c0_50] : memref<1x128xf32, #tpu.memory_space<vmem>>, vector<1x128xf32>
    %c0_51 = arith.constant 0 : index
    %c0_52 = arith.constant 0 : index
    %160 = vector.load %arg10[%c0_51, %c0_52] : memref<1x128xf32, #tpu.memory_space<vmem>>, vector<1x128xf32>
    %cst_53 = arith.constant dense<0.000000e+00> : vector<128xf32>
    %161 = vector.multi_reduction <add>, %158, %cst_53 [1] : vector<128x128xf32> to vector<128xf32>
    %162 = vector.shape_cast %161 : vector<128xf32> to vector<128x1xf32>
    %cst_54 = arith.constant 1.280000e+02 : f32
    %163 = vector.broadcast %cst_54 : f32 to vector<128x1xf32>
    %164 = arith.divf %162, %163 : vector<128x1xf32>
    %165 = vector.broadcast %164 : vector<128x1xf32> to vector<128x128xf32>
    %166 = arith.subf %158, %165 : vector<128x128xf32>
    %167 = arith.mulf %166, %166 : vector<128x128xf32>
    %cst_55 = arith.constant dense<0.000000e+00> : vector<128xf32>
    %168 = vector.multi_reduction <add>, %167, %cst_55 [1] : vector<128x128xf32> to vector<128xf32>
    %169 = vector.shape_cast %168 : vector<128xf32> to vector<128x1xf32>
    %cst_56 = arith.constant 1.280000e+02 : f32
    %170 = vector.broadcast %cst_56 : f32 to vector<128x1xf32>
    %171 = arith.divf %169, %170 : vector<128x1xf32>
    %172 = vector.broadcast %164 : vector<128x1xf32> to vector<128x128xf32>
    %173 = arith.subf %158, %172 : vector<128x128xf32>
    %cst_57 = arith.constant 9.99999997E-7 : f32
    %174 = vector.broadcast %cst_57 : f32 to vector<128x1xf32>
    %175 = arith.addf %171, %174 : vector<128x1xf32>
    %176 = math.rsqrt %175 : vector<128x1xf32>
    %177 = vector.broadcast %176 : vector<128x1xf32> to vector<128x128xf32>
    %178 = arith.mulf %173, %177 : vector<128x128xf32>
    %179 = vector.broadcast %159 : vector<1x128xf32> to vector<128x128xf32>
    %180 = arith.mulf %178, %179 : vector<128x128xf32>
    %181 = vector.broadcast %160 : vector<1x128xf32> to vector<128x128xf32>
    %182 = arith.addf %180, %181 : vector<128x128xf32>
    %183 = arith.truncf %182 : vector<128x128xf32> to vector<128x128xbf16>
    %cst_58 = arith.constant 0.000000e+00 : f32
    %184 = vector.broadcast %cst_58 : f32 to vector<128x128xf32>
    %c0_59 = arith.constant 0 : index
    %c0_60 = arith.constant 0 : index
    %185 = vector.load %arg11[%c0_59, %c0_60] : memref<128x256xbf16, #tpu.memory_space<vmem>>, vector<128x256xbf16>
    %cst_61 = arith.constant dense<0.000000e+00> : vector<128x256xf32>
    %186 = tpu.matmul %183, %185, %cst_61 {dimension_numbers = #tpu.dot_dimension_numbers<[1], [0], [0], [1], [0, 0, 1, 1], [], []>} : vector<128x128xbf16>, vector<128x256xbf16>, vector<128x256xf32> -> vector<128x256xf32>
    %c0_62 = arith.constant 0 : index
    %c0_63 = arith.constant 0 : index
    %187 = vector.load %arg12[%c0_62, %c0_63] : memref<1x256xf32, #tpu.memory_space<vmem>>, vector<1x256xf32>
    %188 = vector.broadcast %187 : vector<1x256xf32> to vector<128x256xf32>
    %189 = arith.addf %186, %188 : vector<128x256xf32>
    %cst_64 = arith.constant 0.000000e+00 : f32
    %190 = vector.broadcast %cst_64 : f32 to vector<128x256xf32>
    %191 = arith.maximumf %189, %190 : vector<128x256xf32>
    %192 = arith.truncf %191 : vector<128x256xf32> to vector<128x256xbf16>
    %c0_65 = arith.constant 0 : index
    %c0_66 = arith.constant 0 : index
    %193 = vector.load %arg13[%c0_65, %c0_66] : memref<256x128xbf16, #tpu.memory_space<vmem>>, vector<256x128xbf16>
    %cst_67 = arith.constant dense<0.000000e+00> : vector<128x128xf32>
    %194 = tpu.matmul %192, %193, %cst_67 {dimension_numbers = #tpu.dot_dimension_numbers<[1], [0], [0], [1], [0, 0, 1, 1], [], []>} : vector<128x256xbf16>, vector<256x128xbf16>, vector<128x128xf32> -> vector<128x128xf32>
    %195 = arith.addf %184, %194 : vector<128x128xf32>
    %c0_68 = arith.constant 0 : index
    %c0_69 = arith.constant 0 : index
    %196 = vector.load %arg14[%c0_68, %c0_69] : memref<1x128xf32, #tpu.memory_space<vmem>>, vector<1x128xf32>
    %197 = vector.broadcast %196 : vector<1x128xf32> to vector<128x128xf32>
    %198 = arith.addf %195, %197 : vector<128x128xf32>
    %199 = arith.addf %198, %158 : vector<128x128xf32>
    %200 = arith.addf %199, %134 : vector<128x128xf32>
    %c0_70 = arith.constant 0 : index
    %c0_71 = arith.constant 0 : index
    %201 = vector.load %arg15[%c0_70, %c0_71] : memref<1x128xf32, #tpu.memory_space<vmem>>, vector<1x128xf32>
    %c0_72 = arith.constant 0 : index
    %c0_73 = arith.constant 0 : index
    %202 = vector.load %arg16[%c0_72, %c0_73] : memref<1x128xf32, #tpu.memory_space<vmem>>, vector<1x128xf32>
    %cst_74 = arith.constant dense<0.000000e+00> : vector<128xf32>
    %203 = vector.multi_reduction <add>, %200, %cst_74 [1] : vector<128x128xf32> to vector<128xf32>
    %204 = vector.shape_cast %203 : vector<128xf32> to vector<128x1xf32>
    %cst_75 = arith.constant 1.280000e+02 : f32
    %205 = vector.broadcast %cst_75 : f32 to vector<128x1xf32>
    %206 = arith.divf %204, %205 : vector<128x1xf32>
    %207 = vector.broadcast %206 : vector<128x1xf32> to vector<128x128xf32>
    %208 = arith.subf %200, %207 : vector<128x128xf32>
    %209 = arith.mulf %208, %208 : vector<128x128xf32>
    %cst_76 = arith.constant dense<0.000000e+00> : vector<128xf32>
    %210 = vector.multi_reduction <add>, %209, %cst_76 [1] : vector<128x128xf32> to vector<128xf32>
    %211 = vector.shape_cast %210 : vector<128xf32> to vector<128x1xf32>
    %cst_77 = arith.constant 1.280000e+02 : f32
    %212 = vector.broadcast %cst_77 : f32 to vector<128x1xf32>
    %213 = arith.divf %211, %212 : vector<128x1xf32>
    %214 = vector.broadcast %206 : vector<128x1xf32> to vector<128x128xf32>
    %215 = arith.subf %200, %214 : vector<128x128xf32>
    %cst_78 = arith.constant 9.99999997E-7 : f32
    %216 = vector.broadcast %cst_78 : f32 to vector<128x1xf32>
    %217 = arith.addf %213, %216 : vector<128x1xf32>
    %218 = math.rsqrt %217 : vector<128x1xf32>
    %219 = vector.broadcast %218 : vector<128x1xf32> to vector<128x128xf32>
    %220 = arith.mulf %215, %219 : vector<128x128xf32>
    %221 = vector.broadcast %201 : vector<1x128xf32> to vector<128x128xf32>
    %222 = arith.mulf %220, %221 : vector<128x128xf32>
    %223 = vector.broadcast %202 : vector<1x128xf32> to vector<128x128xf32>
    %224 = arith.addf %222, %223 : vector<128x128xf32>
    %c0_79 = arith.constant 0 : index
    %c0_80 = arith.constant 0 : index
    %c0_81 = arith.constant 0 : index
    %225 = vector.load %arg17[%c0_79, %c0_80, %c0_81] : memref<1x128x128xf32, #tpu.memory_space<vmem>>, vector<1x128x128xf32>
    %226 = vector.shape_cast %225 : vector<1x128x128xf32> to vector<128x128xf32>
    %227 = vector.shape_cast %224 : vector<128x128xf32> to vector<1x128x128xf32>
    tpu.vector_store %arg17[%c0_79, %c0_80, %c0_81], %227 {strides = array<i32>} : memref<1x128x128xf32, #tpu.memory_space<vmem>>, vector<1x128x128xf32>,
    return
  }
  func.func @transform_0(%arg0: i32) -> (i32, i32, i32) {
    %c0_i32 = arith.constant 0 : i32
    %c0_i32_0 = arith.constant 0 : i32
    %c0_i32_1 = arith.constant 0 : i32
    return %arg0, %c0_i32, %c0_i32_0 : i32, i32, i32
  }
  func.func @transform_1(%arg0: i32) -> (i32, i32, i32) {
    %c0_i32 = arith.constant 0 : i32
    %c0_i32_0 = arith.constant 0 : i32
    %c0_i32_1 = arith.constant 0 : i32
    return %arg0, %c0_i32, %c0_i32_0 : i32, i32, i32
  }
  func.func @transform_2(%arg0: i32) -> (i32, i32) {
    %c0_i32 = arith.constant 0 : i32
    %c0_i32_0 = arith.constant 0 : i32
    %c0_i32_1 = arith.constant 0 : i32
    return %c0_i32, %c0_i32_0 : i32, i32
  }
  func.func @transform_3(%arg0: i32) -> (i32, i32) {
    %c0_i32 = arith.constant 0 : i32
    %c0_i32_0 = arith.constant 0 : i32
    %c0_i32_1 = arith.constant 0 : i32
    return %c0_i32, %c0_i32_0 : i32, i32
  }
  func.func @transform_4(%arg0: i32) -> (i32, i32) {
    %c0_i32 = arith.constant 0 : i32
    %c0_i32_0 = arith.constant 0 : i32
    %c0_i32_1 = arith.constant 0 : i32
    return %c0_i32, %c0_i32_0 : i32, i32
  }
  func.func @transform_5(%arg0: i32) -> (i32, i32) {
    %c0_i32 = arith.constant 0 : i32
    %c0_i32_0 = arith.constant 0 : i32
    %c0_i32_1 = arith.constant 0 : i32
    return %c0_i32, %c0_i32_0 : i32, i32
  }
  func.func @transform_6(%arg0: i32) -> (i32, i32) {
    %c0_i32 = arith.constant 0 : i32
    %c0_i32_0 = arith.constant 0 : i32
    %c0_i32_1 = arith.constant 0 : i32
    return %c0_i32, %c0_i32_0 : i32, i32
  }
  func.func @transform_7(%arg0: i32) -> (i32, i32) {
    %c0_i32 = arith.constant 0 : i32
    %c0_i32_0 = arith.constant 0 : i32
    %c0_i32_1 = arith.constant 0 : i32
    return %c0_i32, %c0_i32_0 : i32, i32
  }
  func.func @transform_8(%arg0: i32) -> (i32, i32) {
    %c0_i32 = arith.constant 0 : i32
    %c0_i32_0 = arith.constant 0 : i32
    %c0_i32_1 = arith.constant 0 : i32
    return %c0_i32, %c0_i32_0 : i32, i32
  }
  func.func @transform_9(%arg0: i32) -> (i32, i32) {
    %c0_i32 = arith.constant 0 : i32
    %c0_i32_0 = arith.constant 0 : i32
    %c0_i32_1 = arith.constant 0 : i32
    return %c0_i32, %c0_i32_0 : i32, i32
  }
  func.func @transform_10(%arg0: i32) -> (i32, i32) {
    %c0_i32 = arith.constant 0 : i32
    %c0_i32_0 = arith.constant 0 : i32
    %c0_i32_1 = arith.constant 0 : i32
    return %c0_i32, %c0_i32_0 : i32, i32
  }
  func.func @transform_11(%arg0: i32) -> (i32, i32) {
    %c0_i32 = arith.constant 0 : i32
    %c0_i32_0 = arith.constant 0 : i32
    %c0_i32_1 = arith.constant 0 : i32
    return %c0_i32, %c0_i32_0 : i32, i32
  }
  func.func @transform_12(%arg0: i32) -> (i32, i32) {
    %c0_i32 = arith.constant 0 : i32
    %c0_i32_0 = arith.constant 0 : i32
    %c0_i32_1 = arith.constant 0 : i32
    return %c0_i32, %c0_i32_0 : i32, i32
  }
  func.func @transform_13(%arg0: i32) -> (i32, i32) {
    %c0_i32 = arith.constant 0 : i32
    %c0_i32_0 = arith.constant 0 : i32
    %c0_i32_1 = arith.constant 0 : i32
    return %c0_i32, %c0_i32_0 : i32, i32
  }
  func.func @transform_14(%arg0: i32) -> (i32, i32) {
    %c0_i32 = arith.constant 0 : i32
    %c0_i32_0 = arith.constant 0 : i32
    %c0_i32_1 = arith.constant 0 : i32
    return %c0_i32, %c0_i32_0 : i32, i32
  }
  func.func @transform_15(%arg0: i32) -> (i32, i32) {
    %c0_i32 = arith.constant 0 : i32
    %c0_i32_0 = arith.constant 0 : i32
    %c0_i32_1 = arith.constant 0 : i32
    return %c0_i32, %c0_i32_0 : i32, i32
  }
  func.func @transform_16(%arg0: i32) -> (i32, i32, i32) {
    %c0_i32 = arith.constant 0 : i32
    %c0_i32_0 = arith.constant 0 : i32
    %c0_i32_1 = arith.constant 0 : i32
    return %arg0, %c0_i32, %c0_i32_0 : i32, i32, i32
  }
}

</mosaic_0001>

<llo_original>
// kernel: transformer_encoder_forward.2
$region0: #{transformer_encoder_forward.2}
  #allocation0 [shape = 'u32[]', space=smem, size = 0x4, offset = 0x4, fixed_abs, tag = 'smem constant byte address 0x4 - core index']
  #allocation1 [shape = 'u32[144,128]{1,0:T(1,128)}', space=vmem, size = 0x12000, scoped, tag = 'internal scratch']
  %s0 = inlined_call_operand.vmem [shape: f32[2,128,128], index: 0, kind: input, shape index: {}]
  %s1 = inlined_call_operand.vmem [shape: f32[2,1,128], index: 1, kind: input, shape index: {}]
  %s2 = inlined_call_operand.vmem [shape: f32[1,128], index: 2, kind: input, shape index: {}, may-alias: {2,14}]
  %s3 = inlined_call_operand.vmem [shape: f32[1,128], index: 3, kind: input, shape index: {}, may-alias: {3,15}]
  %s4 = inlined_call_operand.vmem [shape: bf16[128,384], index: 4, kind: input, shape index: {}]
  %s5 = inlined_call_operand.vmem [shape: f32[1,384], index: 5, kind: input, shape index: {}]
  %s6 = inlined_call_operand.vmem [shape: bf16[128,128], index: 6, kind: input, shape index: {}]
  %s7 = inlined_call_operand.vmem [shape: f32[1,128], index: 7, kind: input, shape index: {}]
  %s8 = inlined_call_operand.vmem [shape: f32[1,128], index: 8, kind: input, shape index: {}]
  %s9 = inlined_call_operand.vmem [shape: f32[1,128], index: 9, kind: input, shape index: {}]
  %s10 = inlined_call_operand.vmem [shape: bf16[128,256], index: 10, kind: input, shape index: {}]
  %s11 = inlined_call_operand.vmem [shape: f32[1,256], index: 11, kind: input, shape index: {}]
  %s12 = inlined_call_operand.vmem [shape: bf16[256,128], index: 12, kind: input, shape index: {}]
  %s13 = inlined_call_operand.vmem [shape: f32[1,128], index: 13, kind: input, shape index: {}]
  %s14 = inlined_call_operand.vmem [shape: f32[1,128], index: 14, kind: input, shape index: {}, may-alias: {2,14}]
  %s15 = inlined_call_operand.vmem [shape: f32[1,128], index: 15, kind: input, shape index: {}, may-alias: {3,15}]
  %s16 = inlined_call_operand.vmem [shape: f32[2,128,128], index: 16, kind: output, shape index: {}]
  %s17 = sld [smem:[#allocation0]]
  $region97: #{transformer_encoder_forward.2} parent=0
    _
  %s19 = ssub.s32 1, %s17
  %s20 = scalar_select 0, %s19, %s17
  loop: start=0, step=1, limit=4
  $region2: #{transformer_encoder_forward.2} parent=0 // loop_pre_header
    _
  $region3: #{transformer_encoder_forward.2} parent=0 // loop_header
    %s22 = sphi 0, %s26
    %p23 = scmp.ge.s32.totalorder %s22, 4
    %s32 = sphi 0, %s34
    %s35 = sphi 0, %s32
    %s36 = sphi 0, %s35
    %s52 = sphi 0, %s36
    %s58 = sphi 0, %s60
    %s61 = sphi 0, %s58
    %s62 = sphi 0, %s61
    %s78 = sphi 0, %s62
    %s82 = sphi 0, %s82
    %s84 = sphi 0, %s82
    %s85 = sphi 0, %s84
    %s99 = sphi 0, %s85
    %s103 = sphi 0, %s103
    %s105 = sphi 0, %s103
    %s106 = sphi 0, %s105
    %s120 = sphi 0, %s106
    %s124 = sphi 0, %s124
    %s126 = sphi 0, %s124
    %s127 = sphi 0, %s126
    %s141 = sphi 0, %s127
    %s145 = sphi 0, %s145
    %s147 = sphi 0, %s145
    %s148 = sphi 0, %s147
    %s162 = sphi 0, %s148
    %s166 = sphi 0, %s166
    %s168 = sphi 0, %s166
    %s169 = sphi 0, %s168
    %s183 = sphi 0, %s169
    %s187 = sphi 0, %s187
    %s189 = sphi 0, %s187
    %s190 = sphi 0, %s189
    %s204 = sphi 0, %s190
    %s208 = sphi 0, %s208
    %s210 = sphi 0, %s208
    %s211 = sphi 0, %s210
    %s225 = sphi 0, %s211
    %s229 = sphi 0, %s229
    %s231 = sphi 0, %s229
    %s232 = sphi 0, %s231
    %s246 = sphi 0, %s232
    %s250 = sphi 0, %s250
    %s252 = sphi 0, %s250
    %s253 = sphi 0, %s252
    %s267 = sphi 0, %s253
    %s271 = sphi 0, %s271
    %s273 = sphi 0, %s271
    %s274 = sphi 0, %s273
    %s288 = sphi 0, %s274
    %s292 = sphi 0, %s292
    %s294 = sphi 0, %s292
    %s295 = sphi 0, %s294
    %s309 = sphi 0, %s295
    %s313 = sphi 0, %s313
    %s315 = sphi 0, %s313
    %s316 = sphi 0, %s315
    %s330 = sphi 0, %s316
    %s334 = sphi 0, %s334
    %s336 = sphi 0, %s334
    %s337 = sphi 0, %s336
    %s351 = sphi 0, %s337
    %s355 = sphi 0, %s355
    %s357 = sphi 0, %s355
    %s358 = sphi 0, %s357
    %s372 = sphi 0, %s358
    %s378 = sphi 0, %s380
    %s381 = sphi 0, %s378
    %s382 = sphi 0, %s381
    %s398 = sphi 0, %s382
  $region4: #{transformer_encoder_forward.2} parent=0 // loop_header_branch
    %25 = sbr.rel (%p23) target = $region8
  $region5: #{transformer_encoder_forward.2} parent=0 // loop_body
    %s27 = ssub.s32 %s22, 1
    %s28 = ssub.s32 %s22, 2
    %s29 = sadd.s32 %s22, 1
    %s30 = ssub.s32 %s22, %s29
    %p31 = scmp.eq.s32.totalorder %s30, 0
    %s33 = sadd.s32 %s32, 1
    %s34 = scalar_select %p31, %s32, %s33
    %p37 = pneg %p31
    %p38 = scmp.eq.s32.totalorder %s22, 1
    %p39 = por %p37, %p38
    %p40 = scmp.ne.s32.totalorder %s32, %s35
    %p41 = scmp.eq.s32.totalorder %s22, 0
    %p42 = por %p40, %p41
    %p43 = scmp.ne.s32.totalorder %s32, %s35
    %p44 = scmp.eq.s32.totalorder %s27, 1
    %p45 = por %p43, %p44
    %p46 = scmp.ne.s32.totalorder %s35, %s36
    %p47 = scmp.eq.s32.totalorder %s27, 0
    %p48 = por %p46, %p47
    %p49 = scmp.ne.s32.totalorder %s35, %s36
    %p50 = scmp.eq.s32.totalorder %s28, 1
    %p51 = por %p49, %p50
    %p53 = scmp.ne.s32.totalorder %s36, %s52
    %p54 = scmp.eq.s32.totalorder %s28, 0
    %p55 = por %p53, %p54
    %s56 = ssub.s32 %s22, %s29
    %p57 = scmp.eq.s32.totalorder %s56, 0
    %s59 = sadd.s32 %s58, 1
    %s60 = scalar_select %p57, %s58, %s59
    %p63 = pneg %p57
    %p64 = scmp.eq.s32.totalorder %s22, 1
    %p65 = por %p63, %p64
    %p66 = scmp.ne.s32.totalorder %s58, %s61
    %p67 = scmp.eq.s32.totalorder %s22, 0
    %p68 = por %p66, %p67
    %p69 = scmp.ne.s32.totalorder %s58, %s61
    %p70 = scmp.eq.s32.totalorder %s27, 1
    %p71 = por %p69, %p70
    %p72 = scmp.ne.s32.totalorder %s61, %s62
    %p73 = scmp.eq.s32.totalorder %s27, 0
    %p74 = por %p72, %p73
    %p75 = scmp.ne.s32.totalorder %s61, %s62
    %p76 = scmp.eq.s32.totalorder %s28, 1
    %p77 = por %p75, %p76
    %p79 = scmp.ne.s32.totalorder %s62, %s78
    %p80 = scmp.eq.s32.totalorder %s28, 0
    %p81 = por %p79, %p80
    %s83 = sadd.s32 %s82, 1
    %p86 = scmp.eq.s32.totalorder %s22, 1
    %p87 = scmp.ne.s32.totalorder %s82, %s84
    %p88 = scmp.eq.s32.totalorder %s22, 0
    %p89 = por %p87, %p88
    %p90 = scmp.ne.s32.totalorder %s82, %s84
    %p91 = scmp.eq.s32.totalorder %s27, 1
    %p92 = por %p90, %p91
    %p93 = scmp.ne.s32.totalorder %s84, %s85
    %p94 = scmp.eq.s32.totalorder %s27, 0
    %p95 = por %p93, %p94
    %p96 = scmp.ne.s32.totalorder %s84, %s85
    %p97 = scmp.eq.s32.totalorder %s28, 1
    %p98 = por %p96, %p97
    %p100 = scmp.ne.s32.totalorder %s85, %s99
    %p101 = scmp.eq.s32.totalorder %s28, 0
    %p102 = por %p100, %p101
    %s104 = sadd.s32 %s103, 1
    %p107 = scmp.eq.s32.totalorder %s22, 1
    %p108 = scmp.ne.s32.totalorder %s103, %s105
    %p109 = scmp.eq.s32.totalorder %s22, 0
    %p110 = por %p108, %p109
    %p111 = scmp.ne.s32.totalorder %s103, %s105
    %p112 = scmp.eq.s32.totalorder %s27, 1
    %p113 = por %p111, %p112
    %p114 = scmp.ne.s32.totalorder %s105, %s106
    %p115 = scmp.eq.s32.totalorder %s27, 0
    %p116 = por %p114, %p115
    %p117 = scmp.ne.s32.totalorder %s105, %s106
    %p118 = scmp.eq.s32.totalorder %s28, 1
    %p119 = por %p117, %p118
    %p121 = scmp.ne.s32.totalorder %s106, %s120
    %p122 = scmp.eq.s32.totalorder %s28, 0
    %p123 = por %p121, %p122
    %s125 = sadd.s32 %s124, 1
    %p128 = scmp.eq.s32.totalorder %s22, 1
    %p129 = scmp.ne.s32.totalorder %s124, %s126
    %p130 = scmp.eq.s32.totalorder %s22, 0
    %p131 = por %p129, %p130
    %p132 = scmp.ne.s32.totalorder %s124, %s126
    %p133 = scmp.eq.s32.totalorder %s27, 1
    %p134 = por %p132, %p133
    %p135 = scmp.ne.s32.totalorder %s126, %s127
    %p136 = scmp.eq.s32.totalorder %s27, 0
    %p137 = por %p135, %p136
    %p138 = scmp.ne.s32.totalorder %s126, %s127
    %p139 = scmp.eq.s32.totalorder %s28, 1
    %p140 = por %p138, %p139
    %p142 = scmp.ne.s32.totalorder %s127, %s141
    %p143 = scmp.eq.s32.totalorder %s28, 0
    %p144 = por %p142, %p143
    %s146 = sadd.s32 %s145, 1
    %p149 = scmp.eq.s32.totalorder %s22, 1
    %p150 = scmp.ne.s32.totalorder %s145, %s147
    %p151 = scmp.eq.s32.totalorder %s22, 0
    %p152 = por %p150, %p151
    %p153 = scmp.ne.s32.totalorder %s145, %s147
    %p154 = scmp.eq.s32.totalorder %s27, 1
    %p155 = por %p153, %p154
    %p156 = scmp.ne.s32.totalorder %s147, %s148
    %p157 = scmp.eq.s32.totalorder %s27, 0
    %p158 = por %p156, %p157
    %p159 = scmp.ne.s32.totalorder %s147, %s148
    %p160 = scmp.eq.s32.totalorder %s28, 1
    %p161 = por %p159, %p160
    %p163 = scmp.ne.s32.totalorder %s148, %s162
    %p164 = scmp.eq.s32.totalorder %s28, 0
    %p165 = por %p163, %p164
    %s167 = sadd.s32 %s166, 1
    %p170 = scmp.eq.s32.totalorder %s22, 1
    %p171 = scmp.ne.s32.totalorder %s166, %s168
    %p172 = scmp.eq.s32.totalorder %s22, 0
    %p173 = por %p171, %p172
    %p174 = scmp.ne.s32.totalorder %s166, %s168
    %p175 = scmp.eq.s32.totalorder %s27, 1
    %p176 = por %p174, %p175
    %p177 = scmp.ne.s32.totalorder %s168, %s169
    %p178 = scmp.eq.s32.totalorder %s27, 0
    %p179 = por %p177, %p178
    %p180 = scmp.ne.s32.totalorder %s168, %s169
    %p181 = scmp.eq.s32.totalorder %s28, 1
    %p182 = por %p180, %p181
    %p184 = scmp.ne.s32.totalorder %s169, %s183
    %p185 = scmp.eq.s32.totalorder %s28, 0
    %p186 = por %p184, %p185
    %s188 = sadd.s32 %s187, 1
    %p191 = scmp.eq.s32.totalorder %s22, 1
    %p192 = scmp.ne.s32.totalorder %s187, %s189
    %p193 = scmp.eq.s32.totalorder %s22, 0
    %p194 = por %p192, %p193
    %p195 = scmp.ne.s32.totalorder %s187, %s189
    %p196 = scmp.eq.s32.totalorder %s27, 1
    %p197 = por %p195, %p196
    %p198 = scmp.ne.s32.totalorder %s189, %s190
    %p199 = scmp.eq.s32.totalorder %s27, 0
    %p200 = por %p198, %p199
    %p201 = scmp.ne.s32.totalorder %s189, %s190
    %p202 = scmp.eq.s32.totalorder %s28, 1
    %p203 = por %p201, %p202
    %p205 = scmp.ne.s32.totalorder %s190, %s204
    %p206 = scmp.eq.s32.totalorder %s28, 0
    %p207 = por %p205, %p206
    %s209 = sadd.s32 %s208, 1
    %p212 = scmp.eq.s32.totalorder %s22, 1
    %p213 = scmp.ne.s32.totalorder %s208, %s210
    %p214 = scmp.eq.s32.totalorder %s22, 0
    %p215 = por %p213, %p214
    %p216 = scmp.ne.s32.totalorder %s208, %s210
    %p217 = scmp.eq.s32.totalorder %s27, 1
    %p218 = por %p216, %p217
    %p219 = scmp.ne.s32.totalorder %s210, %s211
    %p220 = scmp.eq.s32.totalorder %s27, 0
    %p221 = por %p219, %p220
    %p222 = scmp.ne.s32.totalorder %s210, %s211
    %p223 = scmp.eq.s32.totalorder %s28, 1
    %p224 = por %p222, %p223
    %p226 = scmp.ne.s32.totalorder %s211, %s225
    %p227 = scmp.eq.s32.totalorder %s28, 0
    %p228 = por %p226, %p227
    %s230 = sadd.s32 %s229, 1
    %p233 = scmp.eq.s32.totalorder %s22, 1
    %p234 = scmp.ne.s32.totalorder %s229, %s231
    %p235 = scmp.eq.s32.totalorder %s22, 0
    %p236 = por %p234, %p235
    %p237 = scmp.ne.s32.totalorder %s229, %s231
    %p238 = scmp.eq.s32.totalorder %s27, 1
    %p239 = por %p237, %p238
    %p240 = scmp.ne.s32.totalorder %s231, %s232
    %p241 = scmp.eq.s32.totalorder %s27, 0
    %p242 = por %p240, %p241
    %p243 = scmp.ne.s32.totalorder %s231, %s232
    %p244 = scmp.eq.s32.totalorder %s28, 1
    %p245 = por %p243, %p244
    %p247 = scmp.ne.s32.totalorder %s232, %s246
    %p248 = scmp.eq.s32.totalorder %s28, 0
    %p249 = por %p247, %p248
    %s251 = sadd.s32 %s250, 1
    %p254 = scmp.eq.s32.totalorder %s22, 1
    %p255 = scmp.ne.s32.totalorder %s250, %s252
    %p256 = scmp.eq.s32.totalorder %s22, 0
    %p257 = por %p255, %p256
    %p258 = scmp.ne.s32.totalorder %s250, %s252
    %p259 = scmp.eq.s32.totalorder %s27, 1
    %p260 = por %p258, %p259
    %p261 = scmp.ne.s32.totalorder %s252, %s253
    %p262 = scmp.eq.s32.totalorder %s27, 0
    %p263 = por %p261, %p262
    %p264 = scmp.ne.s32.totalorder %s252, %s253
    %p265 = scmp.eq.s32.totalorder %s28, 1
    %p266 = por %p264, %p265
    %p268 = scmp.ne.s32.totalorder %s253, %s267
    %p269 = scmp.eq.s32.totalorder %s28, 0
    %p270 = por %p268, %p269
    %s272 = sadd.s32 %s271, 1
    %p275 = scmp.eq.s32.totalorder %s22, 1
    %p276 = scmp.ne.s32.totalorder %s271, %s273
    %p277 = scmp.eq.s32.totalorder %s22, 0
    %p278 = por %p276, %p277
    %p279 = scmp.ne.s32.totalorder %s271, %s273
    %p280 = scmp.eq.s32.totalorder %s27, 1
    %p281 = por %p279, %p280
    %p282 = scmp.ne.s32.totalorder %s273, %s274
    %p283 = scmp.eq.s32.totalorder %s27, 0
    %p284 = por %p282, %p283
    %p285 = scmp.ne.s32.totalorder %s273, %s274
    %p286 = scmp.eq.s32.totalorder %s28, 1
    %p287 = por %p285, %p286
    %p289 = scmp.ne.s32.totalorder %s274, %s288
    %p290 = scmp.eq.s32.totalorder %s28, 0
    %p291 = por %p289, %p290
    %s293 = sadd.s32 %s292, 1
    %p296 = scmp.eq.s32.totalorder %s22, 1
    %p297 = scmp.ne.s32.totalorder %s292, %s294
    %p298 = scmp.eq.s32.totalorder %s22, 0
    %p299 = por %p297, %p298
    %p300 = scmp.ne.s32.totalorder %s292, %s294
    %p301 = scmp.eq.s32.totalorder %s27, 1
    %p302 = por %p300, %p301
    %p303 = scmp.ne.s32.totalorder %s294, %s295
    %p304 = scmp.eq.s32.totalorder %s27, 0
    %p305 = por %p303, %p304
    %p306 = scmp.ne.s32.totalorder %s294, %s295
    %p307 = scmp.eq.s32.totalorder %s28, 1
    %p308 = por %p306, %p307
    %p310 = scmp.ne.s32.totalorder %s295, %s309
    %p311 = scmp.eq.s32.totalorder %s28, 0
    %p312 = por %p310, %p311
    %s314 = sadd.s32 %s313, 1
    %p317 = scmp.eq.s32.totalorder %s22, 1
    %p318 = scmp.ne.s32.totalorder %s313, %s315
    %p319 = scmp.eq.s32.totalorder %s22, 0
    %p320 = por %p318, %p319
    %p321 = scmp.ne.s32.totalorder %s313, %s315
    %p322 = scmp.eq.s32.totalorder %s27, 1
    %p323 = por %p321, %p322
    %p324 = scmp.ne.s32.totalorder %s315, %s316
    %p325 = scmp.eq.s32.totalorder %s27, 0
    %p326 = por %p324, %p325
    %p327 = scmp.ne.s32.totalorder %s315, %s316
    %p328 = scmp.eq.s32.totalorder %s28, 1
    %p329 = por %p327, %p328
    %p331 = scmp.ne.s32.totalorder %s316, %s330
    %p332 = scmp.eq.s32.totalorder %s28, 0
    %p333 = por %p331, %p332
    %s335 = sadd.s32 %s334, 1
    %p338 = scmp.eq.s32.totalorder %s22, 1
    %p339 = scmp.ne.s32.totalorder %s334, %s336
    %p340 = scmp.eq.s32.totalorder %s22, 0
    %p341 = por %p339, %p340
    %p342 = scmp.ne.s32.totalorder %s334, %s336
    %p343 = scmp.eq.s32.totalorder %s27, 1
    %p344 = por %p342, %p343
    %p345 = scmp.ne.s32.totalorder %s336, %s337
    %p346 = scmp.eq.s32.totalorder %s27, 0
    %p347 = por %p345, %p346
    %p348 = scmp.ne.s32.totalorder %s336, %s337
    %p349 = scmp.eq.s32.totalorder %s28, 1
    %p350 = por %p348, %p349
    %p352 = scmp.ne.s32.totalorder %s337, %s351
    %p353 = scmp.eq.s32.totalorder %s28, 0
    %p354 = por %p352, %p353
    %s356 = sadd.s32 %s355, 1
    %p359 = scmp.eq.s32.totalorder %s22, 1
    %p360 = scmp.ne.s32.totalorder %s355, %s357
    %p361 = scmp.eq.s32.totalorder %s22, 0
    %p362 = por %p360, %p361
    %p363 = scmp.ne.s32.totalorder %s355, %s357
    %p364 = scmp.eq.s32.totalorder %s27, 1
    %p365 = por %p363, %p364
    %p366 = scmp.ne.s32.totalorder %s357, %s358
    %p367 = scmp.eq.s32.totalorder %s27, 0
    %p368 = por %p366, %p367
    %p369 = scmp.ne.s32.totalorder %s357, %s358
    %p370 = scmp.eq.s32.totalorder %s28, 1
    %p371 = por %p369, %p370
    %p373 = scmp.ne.s32.totalorder %s358, %s372
    %p374 = scmp.eq.s32.totalorder %s28, 0
    %p375 = por %p373, %p374
    %s376 = ssub.s32 %s22, %s29
    %p377 = scmp.eq.s32.totalorder %s376, 0
    %s379 = sadd.s32 %s378, 1
    %s380 = scalar_select %p377, %s378, %s379
    %p383 = pneg %p377
    %p384 = scmp.eq.s32.totalorder %s22, 1
    %p385 = por %p383, %p384
    %p386 = scmp.ne.s32.totalorder %s378, %s381
    %p387 = scmp.eq.s32.totalorder %s22, 0
    %p388 = por %p386, %p387
    %p389 = scmp.ne.s32.totalorder %s378, %s381
    %p390 = scmp.eq.s32.totalorder %s27, 1
    %p391 = por %p389, %p390
    %p392 = scmp.ne.s32.totalorder %s381, %s382
    %p393 = scmp.eq.s32.totalorder %s27, 0
    %p394 = por %p392, %p393
    %p395 = scmp.ne.s32.totalorder %s381, %s382
    %p396 = scmp.eq.s32.totalorder %s28, 1
    %p397 = por %p395, %p396
    %p399 = scmp.ne.s32.totalorder %s382, %s398
    %p400 = scmp.eq.s32.totalorder %s28, 0
    %p401 = por %p399, %p400
    %p402 = scmp.le.s32.totalorder 1, %s22
    %p403 = scmp.lt.s32.totalorder %s22, 3
    %p404 = pnand %p402, %p403
    %p405 = pneg %p404
    // Predicated region
    $region9: #{transformer_encoder_forward.2} parent=5 // pred_check
      _
    $region10: #{transformer_encoder_forward.2} parent=5 // pred_check_branch
      %407 = sbr.rel (%p404) target = $region12
    $region11: #{transformer_encoder_forward.2} parent=5 // pred_region
      %s408 = ssub.s32 %s22, 1
      // Predicated region
      $region13: #{transformer_encoder_forward.2} parent=11 // pred_check
        %p409 = pneg %p95
      $region14: #{transformer_encoder_forward.2} parent=11 // pred_check_branch
        %411 = sbr.rel (%p409) target = $region16
      $region15: #{transformer_encoder_forward.2} parent=11 // pred_region
        _
      $region16: #{transformer_encoder_forward.2} parent=11 // pred_fallthru
        _
      // Predicated region
      $region17: #{transformer_encoder_forward.2} parent=11 // pred_check
        %p412 = pneg %p116
      $region18: #{transformer_encoder_forward.2} parent=11 // pred_check_branch
        %414 = sbr.rel (%p412) target = $region20
      $region19: #{transformer_encoder_forward.2} parent=11 // pred_region
        _
      $region20: #{transformer_encoder_forward.2} parent=11 // pred_fallthru
        _
      // Predicated region
      $region21: #{transformer_encoder_forward.2} parent=11 // pred_check
        %p415 = pneg %p137
      $region22: #{transformer_encoder_forward.2} parent=11 // pred_check_branch
        %417 = sbr.rel (%p415) target = $region24
      $region23: #{transformer_encoder_forward.2} parent=11 // pred_region
        _
      $region24: #{transformer_encoder_forward.2} parent=11 // pred_fallthru
        _
      // Predicated region
      $region25: #{transformer_encoder_forward.2} parent=11 // pred_check
        %p418 = pneg %p158
      $region26: #{transformer_encoder_forward.2} parent=11 // pred_check_branch
        %420 = sbr.rel (%p418) target = $region28
      $region27: #{transformer_encoder_forward.2} parent=11 // pred_region
        _
      $region28: #{transformer_encoder_forward.2} parent=11 // pred_fallthru
        _
      // Predicated region
      $region29: #{transformer_encoder_forward.2} parent=11 // pred_check
        %p421 = pneg %p179
      $region30: #{transformer_encoder_forward.2} parent=11 // pred_check_branch
        %423 = sbr.rel (%p421) target = $region32
      $region31: #{transformer_encoder_forward.2} parent=11 // pred_region
        _
      $region32: #{transformer_encoder_forward.2} parent=11 // pred_fallthru
        _
      // Predicated region
      $region33: #{transformer_encoder_forward.2} parent=11 // pred_check
        %p424 = pneg %p200
      $region34: #{transformer_encoder_forward.2} parent=11 // pred_check_branch
        %426 = sbr.rel (%p424) target = $region36
      $region35: #{transformer_encoder_forward.2} parent=11 // pred_region
        _
      $region36: #{transformer_encoder_forward.2} parent=11 // pred_fallthru
        _
      // Predicated region
      $region37: #{transformer_encoder_forward.2} parent=11 // pred_check
        %p427 = pneg %p221
      $region38: #{transformer_encoder_forward.2} parent=11 // pred_check_branch
        %429 = sbr.rel (%p427) target = $region40
      $region39: #{transformer_encoder_forward.2} parent=11 // pred_region
        _
      $region40: #{transformer_encoder_forward.2} parent=11 // pred_fallthru
        _
      // Predicated region
      $region41: #{transformer_encoder_forward.2} parent=11 // pred_check
        %p430 = pneg %p242
      $region42: #{transformer_encoder_forward.2} parent=11 // pred_check_branch
        %432 = sbr.rel (%p430) target = $region44
      $region43: #{transformer_encoder_forward.2} parent=11 // pred_region
        _
      $region44: #{transformer_encoder_forward.2} parent=11 // pred_fallthru
        _
      // Predicated region
      $region45: #{transformer_encoder_forward.2} parent=11 // pred_check
        %p433 = pneg %p263
      $region46: #{transformer_encoder_forward.2} parent=11 // pred_check_branch
        %435 = sbr.rel (%p433) target = $region48
      $region47: #{transformer_encoder_forward.2} parent=11 // pred_region
        _
      $region48: #{transformer_encoder_forward.2} parent=11 // pred_fallthru
        _
      // Predicated region
      $region49: #{transformer_encoder_forward.2} parent=11 // pred_check
        %p436 = pneg %p284
      $region50: #{transformer_encoder_forward.2} parent=11 // pred_check_branch
        %438 = sbr.rel (%p436) target = $region52
      $region51: #{transformer_encoder_forward.2} parent=11 // pred_region
        _
      $region52: #{transformer_encoder_forward.2} parent=11 // pred_fallthru
        _
      // Predicated region
      $region53: #{transformer_encoder_forward.2} parent=11 // pred_check
        %p439 = pneg %p305
      $region54: #{transformer_encoder_forward.2} parent=11 // pred_check_branch
        %441 = sbr.rel (%p439) target = $region56
      $region55: #{transformer_encoder_forward.2} parent=11 // pred_region
        _
      $region56: #{transformer_encoder_forward.2} parent=11 // pred_fallthru
        _
      // Predicated region
      $region57: #{transformer_encoder_forward.2} parent=11 // pred_check
        %p442 = pneg %p326
      $region58: #{transformer_encoder_forward.2} parent=11 // pred_check_branch
        %444 = sbr.rel (%p442) target = $region60
      $region59: #{transformer_encoder_forward.2} parent=11 // pred_region
        _
      $region60: #{transformer_encoder_forward.2} parent=11 // pred_fallthru
        _
      // Predicated region
      $region61: #{transformer_encoder_forward.2} parent=11 // pred_check
        %p445 = pneg %p347
      $region62: #{transformer_encoder_forward.2} parent=11 // pred_check_branch
        %447 = sbr.rel (%p445) target = $region64
      $region63: #{transformer_encoder_forward.2} parent=11 // pred_region
        _
      $region64: #{transformer_encoder_forward.2} parent=11 // pred_fallthru
        _
      // Predicated region
      $region65: #{transformer_encoder_forward.2} parent=11 // pred_check
        %p448 = pneg %p368
      $region66: #{transformer_encoder_forward.2} parent=11 // pred_check_branch
        %450 = sbr.rel (%p448) target = $region68
      $region67: #{transformer_encoder_forward.2} parent=11 // pred_region
        _
      $region68: #{transformer_encoder_forward.2} parent=11 // pred_fallthru
        _
    $region12: #{transformer_encoder_forward.2} parent=5 // pred_fallthru
      _
    %p451 = scmp.lt.s32.totalorder %s22, 2
    // Predicated region
    $region69: #{transformer_encoder_forward.2} parent=5 // pred_check
      %p452 = pneg %p451
    $region70: #{transformer_encoder_forward.2} parent=5 // pred_check_branch
      %454 = sbr.rel (%p452) target = $region72
    $region71: #{transformer_encoder_forward.2} parent=5 // pred_region
      // Predicated region
      $region73: #{transformer_encoder_forward.2} parent=71 // pred_check
        %p455 = pneg %p42
      $region74: #{transformer_encoder_forward.2} parent=71 // pred_check_branch
        %457 = sbr.rel (%p455) target = $region76
      $region75: #{transformer_encoder_forward.2} parent=71 // pred_region
        %p458 = scmp.lt.s32.totalorder %s22, 1
        %s459 = scalar_select %p458, %s22, 1
        %s460 = smul.addr %s459, 16
        %s461 = smul.addr %s460, 8
        %s462 = scalar_lea.vmem %s0, %s461
      $region76: #{transformer_encoder_forward.2} parent=71 // pred_fallthru
        _
      // Predicated region
      $region77: #{transformer_encoder_forward.2} parent=71 // pred_check
        %p463 = pneg %p68
      $region78: #{transformer_encoder_forward.2} parent=71 // pred_check_branch
        %465 = sbr.rel (%p463) target = $region80
      $region79: #{transformer_encoder_forward.2} parent=71 // pred_region
        %p466 = scmp.lt.s32.totalorder %s22, 1
        %s467 = scalar_select %p466, %s22, 1
        %s468 = scalar_lea.vmem %s1, %s467
      $region80: #{transformer_encoder_forward.2} parent=71 // pred_fallthru
        _
    $region72: #{transformer_encoder_forward.2} parent=5 // pred_fallthru
      _
    %p469 = scmp.le.s32.totalorder 1, %s22
    %p470 = scmp.lt.s32.totalorder %s22, 3
    %p471 = pnand %p469, %p470
    %p472 = pneg %p471
    // Predicated region
    $region81: #{transformer_encoder_forward.2} parent=5 // pred_check
      _
    $region82: #{transformer_encoder_forward.2} parent=5 // pred_check_branch
      %474 = sbr.rel (%p471) target = $region84
    $region83: #{transformer_encoder_forward.2} parent=5 // pred_region
      %s475 = ssub.s32 %s22, 1
      %p476 = scmp.lt.s32.totalorder %s27, 1
      %s477 = scalar_select %p476, %s27, 1
      %s478 = smul.addr %s477, 16
      %s479 = smul.addr %s478, 8
      %s480 = scalar_lea.vmem %s0, %s479
      %p481 = pneg %p48
      %p482 = pneg %p45
      %p483 = scmp.lt.s32.totalorder %s27, 1
      %s484 = scalar_select %p483, %s27, 1
      %s485 = scalar_lea.vmem %s1, %s484
      %p486 = pneg %p74
      %p487 = pneg %p71
      %p488 = pneg %p95
      %p489 = pneg %p92
      %p490 = pneg %p116
      %p491 = pneg %p113
      %p492 = pneg %p137
      %p493 = pneg %p134
      %p494 = pneg %p158
      %p495 = pneg %p155
      %p496 = pneg %p179
      %p497 = pneg %p176
      %p498 = pneg %p200
      %p499 = pneg %p197
      %p500 = pneg %p221
      %p501 = pneg %p218
      %p502 = pneg %p242
      %p503 = pneg %p239
      %p504 = pneg %p263
      %p505 = pneg %p260
      %p506 = pneg %p284
      %p507 = pneg %p281
      %p508 = pneg %p305
      %p509 = pneg %p302
      %p510 = pneg %p326
      %p511 = pneg %p323
      %p512 = pneg %p347
      %p513 = pneg %p344
      %p514 = pneg %p368
      %p515 = pneg %p365
      %p516 = pneg %p394
      %p517 = pneg %p391
      %p518 = scmp.lt.s32.totalorder %s27, 1
      %s519 = scalar_select %p518, %s27, 1
      %s520 = smul.addr %s519, 16
      %s521 = smul.addr %s520, 8
      %s522 = scalar_lea.vmem %s16, %s521
      %p523 = scmp.lt.s32.totalorder %s27, 1
      %s524 = scalar_select %p523, %s27, 1
      %s525 = smul.addr %s524, 16
      %s526 = smul.addr %s525, 8
      %s527 = scalar_lea.vmem %s0, %s526
      %p528 = scmp.lt.s32.totalorder %s27, 1
      %s529 = scalar_select %p528, %s27, 1
      %s530 = scalar_lea.vmem %s1, %s529
      %p531 = scmp.lt.s32.totalorder %s27, 1
      %s532 = scalar_select %p531, %s27, 1
      %s533 = smul.addr %s532, 16
      %s534 = smul.addr %s533, 8
      %s535 = scalar_lea.vmem %s16, %s534
      %v537 = vld [vmem:[%s527] sm:$0xff]
      %v538 = vld [vmem:[%s527 + $0x8] sm:$0xff]
      %v539 = vld [vmem:[%s527 + $0x10] sm:$0xff]
      %v540 = vld [vmem:[%s527 + $0x18] sm:$0xff]
      %v541 = vld [vmem:[%s527 + $0x20] sm:$0xff]
      %v542 = vld [vmem:[%s527 + $0x28] sm:$0xff]
      %v543 = vld [vmem:[%s527 + $0x30] sm:$0xff]
      %v544 = vld [vmem:[%s527 + $0x38] sm:$0xff]
      %v545 = vld [vmem:[%s527 + $0x40] sm:$0xff]
      %v546 = vld [vmem:[%s527 + $0x48] sm:$0xff]
      %v547 = vld [vmem:[%s527 + $0x50] sm:$0xff]
      %v548 = vld [vmem:[%s527 + $0x58] sm:$0xff]
      %v549 = vld [vmem:[%s527 + $0x60] sm:$0xff]
      %v550 = vld [vmem:[%s527 + $0x68] sm:$0xff]
      %v551 = vld [vmem:[%s527 + $0x70] sm:$0xff]
      %v552 = vld [vmem:[%s527 + $0x78] sm:$0xff]
      %v553 = vld [vmem:[%s2] sm:$0x1]
      %v554 = vld [vmem:[%s3] sm:$0x1]
      %555 = vadd.xlane.f32.xlu0 %v537
      %v556 = vpop.xlane.xlu0 %555
      %557 = vadd.xlane.f32.xlu0 %v538
      %v558 = vpop.xlane.xlu0 %557
      %559 = vadd.xlane.f32.xlu0 %v539
      %v560 = vpop.xlane.xlu0 %559
      %561 = vadd.xlane.f32.xlu0 %v540
      %v562 = vpop.xlane.xlu0 %561
      %563 = vadd.xlane.f32.xlu0 %v541
      %v564 = vpop.xlane.xlu0 %563
      %565 = vadd.xlane.f32.xlu0 %v542
      %v566 = vpop.xlane.xlu0 %565
      %567 = vadd.xlane.f32.xlu0 %v543
      %v568 = vpop.xlane.xlu0 %567
      %569 = vadd.xlane.f32.xlu0 %v544
      %v570 = vpop.xlane.xlu0 %569
      %571 = vadd.xlane.f32.xlu0 %v545
      %v572 = vpop.xlane.xlu0 %571
      %573 = vadd.xlane.f32.xlu0 %v546
      %v574 = vpop.xlane.xlu0 %573
      %575 = vadd.xlane.f32.xlu0 %v547
      %v576 = vpop.xlane.xlu0 %575
      %577 = vadd.xlane.f32.xlu0 %v548
      %v578 = vpop.xlane.xlu0 %577
      %579 = vadd.xlane.f32.xlu0 %v549
      %v580 = vpop.xlane.xlu0 %579
      %581 = vadd.xlane.f32.xlu0 %v550
      %v582 = vpop.xlane.xlu0 %581
      %583 = vadd.xlane.f32.xlu0 %v551
      %v584 = vpop.xlane.xlu0 %583
      %585 = vadd.xlane.f32.xlu0 %v552
      %v586 = vpop.xlane.xlu0 %585
      %v587 = vrcp.pop 128.0
      %v588 = vmul.f32 %v556, %v587
      %v589 = vmul.f32 %v558, %v587
      %v590 = vmul.f32 %v560, %v587
      %v591 = vmul.f32 %v562, %v587
      %v592 = vmul.f32 %v564, %v587
      %v593 = vmul.f32 %v566, %v587
      %v594 = vmul.f32 %v568, %v587
      %v595 = vmul.f32 %v570, %v587
      %v596 = vmul.f32 %v572, %v587
      %v597 = vmul.f32 %v574, %v587
      %v598 = vmul.f32 %v576, %v587
      %v599 = vmul.f32 %v578, %v587
      %v600 = vmul.f32 %v580, %v587
      %v601 = vmul.f32 %v582, %v587
      %v602 = vmul.f32 %v584, %v587
      %v603 = vmul.f32 %v586, %v587
      %v604 = vsub.f32 %v537, %v588
      %v605 = vsub.f32 %v538, %v589
      %v606 = vsub.f32 %v539, %v590
      %v607 = vsub.f32 %v540, %v591
      %v608 = vsub.f32 %v541, %v592
      %v609 = vsub.f32 %v542, %v593
      %v610 = vsub.f32 %v543, %v594
      %v611 = vsub.f32 %v544, %v595
      %v612 = vsub.f32 %v545, %v596
      %v613 = vsub.f32 %v546, %v597
      %v614 = vsub.f32 %v547, %v598
      %v615 = vsub.f32 %v548, %v599
      %v616 = vsub.f32 %v549, %v600
      %v617 = vsub.f32 %v550, %v601
      %v618 = vsub.f32 %v551, %v602
      %v619 = vsub.f32 %v552, %v603
      %v620 = vmul.f32 %v604, %v604
      %v621 = vmul.f32 %v605, %v605
      %v622 = vmul.f32 %v606, %v606
      %v623 = vmul.f32 %v607, %v607
      %v624 = vmul.f32 %v608, %v608
      %v625 = vmul.f32 %v609, %v609
      %v626 = vmul.f32 %v610, %v610
      %v627 = vmul.f32 %v611, %v611
      %v628 = vmul.f32 %v612, %v612
      %v629 = vmul.f32 %v613, %v613
      %v630 = vmul.f32 %v614, %v614
      %v631 = vmul.f32 %v615, %v615
      %v632 = vmul.f32 %v616, %v616
      %v633 = vmul.f32 %v617, %v617
      %v634 = vmul.f32 %v618, %v618
      %v635 = vmul.f32 %v619, %v619
      %636 = vadd.xlane.f32.xlu0 %v620
      %v637 = vpop.xlane.xlu0 %636
      %638 = vadd.xlane.f32.xlu0 %v621
      %v639 = vpop.xlane.xlu0 %638
      %640 = vadd.xlane.f32.xlu0 %v622
      %v641 = vpop.xlane.xlu0 %640
      %642 = vadd.xlane.f32.xlu0 %v623
      %v643 = vpop.xlane.xlu0 %642
      %644 = vadd.xlane.f32.xlu0 %v624
      %v645 = vpop.xlane.xlu0 %644
      %646 = vadd.xlane.f32.xlu0 %v625
      %v647 = vpop.xlane.xlu0 %646
      %648 = vadd.xlane.f32.xlu0 %v626
      %v649 = vpop.xlane.xlu0 %648
      %650 = vadd.xlane.f32.xlu0 %v627
      %v651 = vpop.xlane.xlu0 %650
      %652 = vadd.xlane.f32.xlu0 %v628
      %v653 = vpop.xlane.xlu0 %652
      %654 = vadd.xlane.f32.xlu0 %v629
      %v655 = vpop.xlane.xlu0 %654
      %656 = vadd.xlane.f32.xlu0 %v630
      %v657 = vpop.xlane.xlu0 %656
      %658 = vadd.xlane.f32.xlu0 %v631
      %v659 = vpop.xlane.xlu0 %658
      %660 = vadd.xlane.f32.xlu0 %v632
      %v661 = vpop.xlane.xlu0 %660
      %662 = vadd.xlane.f32.xlu0 %v633
      %v663 = vpop.xlane.xlu0 %662
      %664 = vadd.xlane.f32.xlu0 %v634
      %v665 = vpop.xlane.xlu0 %664
      %666 = vadd.xlane.f32.xlu0 %v635
      %v667 = vpop.xlane.xlu0 %666
      %v668 = vmul.f32 %v637, %v587
      %v669 = vmul.f32 %v639, %v587
      %v670 = vmul.f32 %v641, %v587
      %v671 = vmul.f32 %v643, %v587
      %v672 = vmul.f32 %v645, %v587
      %v673 = vmul.f32 %v647, %v587
      %v674 = vmul.f32 %v649, %v587
      %v675 = vmul.f32 %v651, %v587
      %v676 = vmul.f32 %v653, %v587
      %v677 = vmul.f32 %v655, %v587
      %v678 = vmul.f32 %v657, %v587
      %v679 = vmul.f32 %v659, %v587
      %v680 = vmul.f32 %v661, %v587
      %v681 = vmul.f32 %v663, %v587
      %v682 = vmul.f32 %v665, %v587
      %v683 = vmul.f32 %v667, %v587
      %v684 = vadd.f32 %v668, 1e-06
      %v685 = vadd.f32 %v669, 1e-06
      %v686 = vadd.f32 %v670, 1e-06
      %v687 = vadd.f32 %v671, 1e-06
      %v688 = vadd.f32 %v672, 1e-06
      %v689 = vadd.f32 %v673, 1e-06
      %v690 = vadd.f32 %v674, 1e-06
      %v691 = vadd.f32 %v675, 1e-06
      %v692 = vadd.f32 %v676, 1e-06
      %v693 = vadd.f32 %v677, 1e-06
      %v694 = vadd.f32 %v678, 1e-06
      %v695 = vadd.f32 %v679, 1e-06
      %v696 = vadd.f32 %v680, 1e-06
      %v697 = vadd.f32 %v681, 1e-06
      %v698 = vadd.f32 %v682, 1e-06
      %v699 = vadd.f32 %v683, 1e-06
      %v700 = vrsqrt.pop %v684
      %v701 = vrsqrt.pop %v685
      %v702 = vrsqrt.pop %v686
      %v703 = vrsqrt.pop %v687
      %v704 = vrsqrt.pop %v688
      %v705 = vrsqrt.pop %v689
      %v706 = vrsqrt.pop %v690
      %v707 = vrsqrt.pop %v691
      %v708 = vrsqrt.pop %v692
      %v709 = vrsqrt.pop %v693
      %v710 = vrsqrt.pop %v694
      %v711 = vrsqrt.pop %v695
      %v712 = vrsqrt.pop %v696
      %v713 = vrsqrt.pop %v697
      %v714 = vrsqrt.pop %v698
      %v715 = vrsqrt.pop %v699
      %v716 = vmul.f32 %v604, %v700
      %v717 = vmul.f32 %v605, %v701
      %v718 = vmul.f32 %v606, %v702
      %v719 = vmul.f32 %v607, %v703
      %v720 = vmul.f32 %v608, %v704
      %v721 = vmul.f32 %v609, %v705
      %v722 = vmul.f32 %v610, %v706
      %v723 = vmul.f32 %v611, %v707
      %v724 = vmul.f32 %v612, %v708
      %v725 = vmul.f32 %v613, %v709
      %v726 = vmul.f32 %v614, %v710
      %v727 = vmul.f32 %v615, %v711
      %v728 = vmul.f32 %v616, %v712
      %v729 = vmul.f32 %v617, %v713
      %v730 = vmul.f32 %v618, %v714
      %v731 = vmul.f32 %v619, %v715
      %v733 = vlaneseq
      %v734 = vshrl.u32 %v733, 7
      %v735 = vsub.s32 0, %v734
      %v736 = vrot.slane %v553, %v735
      %v738 = vmul.f32 %v716, %v736
      %v739 = vmul.f32 %v717, %v736
      %v740 = vmul.f32 %v718, %v736
      %v741 = vmul.f32 %v719, %v736
      %v742 = vmul.f32 %v720, %v736
      %v743 = vmul.f32 %v721, %v736
      %v744 = vmul.f32 %v722, %v736
      %v745 = vmul.f32 %v723, %v736
      %v746 = vmul.f32 %v724, %v736
      %v747 = vmul.f32 %v725, %v736
      %v748 = vmul.f32 %v726, %v736
      %v749 = vmul.f32 %v727, %v736
      %v750 = vmul.f32 %v728, %v736
      %v751 = vmul.f32 %v729, %v736
      %v752 = vmul.f32 %v730, %v736
      %v753 = vmul.f32 %v731, %v736
      %v755 = vlaneseq
      %v756 = vshrl.u32 %v755, 7
      %v757 = vsub.s32 0, %v756
      %v758 = vrot.slane %v554, %v757
      %v760 = vadd.f32 %v738, %v758
      %v761 = vadd.f32 %v739, %v758
      %v762 = vadd.f32 %v740, %v758
      %v763 = vadd.f32 %v741, %v758
      %v764 = vadd.f32 %v742, %v758
      %v765 = vadd.f32 %v743, %v758
      %v766 = vadd.f32 %v744, %v758
      %v767 = vadd.f32 %v745, %v758
      %v768 = vadd.f32 %v746, %v758
      %v769 = vadd.f32 %v747, %v758
      %v770 = vadd.f32 %v748, %v758
      %v771 = vadd.f32 %v749, %v758
      %v772 = vadd.f32 %v750, %v758
      %v773 = vadd.f32 %v751, %v758
      %v774 = vadd.f32 %v752, %v758
      %v775 = vadd.f32 %v753, %v758
      %v776 = vpack.c.bf16 %v761, %v760
      %v777 = vpack.c.bf16 %v763, %v762
      %v778 = vpack.c.bf16 %v765, %v764
      %v779 = vpack.c.bf16 %v767, %v766
      %v780 = vpack.c.bf16 %v769, %v768
      %v781 = vpack.c.bf16 %v771, %v770
      %v782 = vpack.c.bf16 %v773, %v772
      %v783 = vpack.c.bf16 %v775, %v774
      %v784 = vld [vmem:[%s4] sm:$0xff]
      %v785 = vld [vmem:[%s4 + $0x8] sm:$0xf]
      %v786 = vld [vmem:[%s4 + $0xc] sm:$0xff]
      %v787 = vld [vmem:[%s4 + $0x14] sm:$0xf]
      %v788 = vld [vmem:[%s4 + $0x18] sm:$0xff]
      %v789 = vld [vmem:[%s4 + $0x20] sm:$0xf]
      %v790 = vld [vmem:[%s4 + $0x24] sm:$0xff]
      %v791 = vld [vmem:[%s4 + $0x2c] sm:$0xf]
      %v792 = vld [vmem:[%s4 + $0x30] sm:$0xff]
      %v793 = vld [vmem:[%s4 + $0x38] sm:$0xf]
      %v794 = vld [vmem:[%s4 + $0x3c] sm:$0xff]
      %v795 = vld [vmem:[%s4 + $0x44] sm:$0xf]
      %v796 = vld [vmem:[%s4 + $0x48] sm:$0xff]
      %v797 = vld [vmem:[%s4 + $0x50] sm:$0xf]
      %v798 = vld [vmem:[%s4 + $0x54] sm:$0xff]
      %v799 = vld [vmem:[%s4 + $0x5c] sm:$0xf]
      %v800 = vld [vmem:[%s4 + $0x60] sm:$0xff]
      %v801 = vld [vmem:[%s4 + $0x68] sm:$0xf]
      %v802 = vld [vmem:[%s4 + $0x6c] sm:$0xff]
      %v803 = vld [vmem:[%s4 + $0x74] sm:$0xf]
      %v804 = vld [vmem:[%s4 + $0x78] sm:$0xff]
      %v805 = vld [vmem:[%s4 + $0x80] sm:$0xf]
      %v806 = vld [vmem:[%s4 + $0x84] sm:$0xff]
      %v807 = vld [vmem:[%s4 + $0x8c] sm:$0xf]
      %v808 = vld [vmem:[%s4 + $0x90] sm:$0xff]
      %v809 = vld [vmem:[%s4 + $0x98] sm:$0xf]
      %v810 = vld [vmem:[%s4 + $0x9c] sm:$0xff]
      %v811 = vld [vmem:[%s4 + $0xa4] sm:$0xf]
      %v812 = vld [vmem:[%s4 + $0xa8] sm:$0xff]
      %v813 = vld [vmem:[%s4 + $0xb0] sm:$0xf]
      %v814 = vld [vmem:[%s4 + $0xb4] sm:$0xff]
      %v815 = vld [vmem:[%s4 + $0xbc] sm:$0xf]
      %v816 = vld [vmem:[%s5] sm:$0x7]
      %v818 = vlaneseq
      %v819 = vshrl.u32 %v818, 7
      %v820 = vsub.s32 0, %v819
      %v821 = vrot.slane %v816, %v820
      %v822 = vlaneseq
      %v823 = vshrl.u32 %v822, 7
      %v824 = vsub.s32 1, %v823
      %v825 = vrot.slane %v816, %v824
      %v826 = vlaneseq
      %v827 = vshrl.u32 %v826, 7
      %v828 = vsub.s32 2, %v827
      %v829 = vrot.slane %v816, %v828
      %v865 = vunpack.c.l.b16 %v784
      %v866 = vunpack.c.h.b16 %v784
      %v867 = vunpack.c.l.b16 %v785
      %v868 = vunpack.c.l.b16 %v786
      %v869 = vunpack.c.h.b16 %v786
      %v870 = vunpack.c.l.b16 %v787
      %v871 = vunpack.c.l.b16 %v788
      %v872 = vunpack.c.h.b16 %v788
      %v873 = vunpack.c.l.b16 %v789
      %v874 = vunpack.c.l.b16 %v790
      %v875 = vunpack.c.h.b16 %v790
      %v876 = vunpack.c.l.b16 %v791
      %v877 = vunpack.c.l.b16 %v792
      %v878 = vunpack.c.h.b16 %v792
      %v879 = vunpack.c.l.b16 %v793
      %v880 = vunpack.c.l.b16 %v794
      %v881 = vunpack.c.h.b16 %v794
      %v882 = vunpack.c.l.b16 %v795
      %v883 = vunpack.c.l.b16 %v796
      %v884 = vunpack.c.h.b16 %v796
      %v885 = vunpack.c.l.b16 %v797
      %v886 = vunpack.c.l.b16 %v798
      %v887 = vunpack.c.h.b16 %v798
      %v888 = vunpack.c.l.b16 %v799
      %v889 = vunpack.c.l.b16 %v800
      %v890 = vunpack.c.h.b16 %v800
      %v891 = vunpack.c.l.b16 %v801
      %v892 = vunpack.c.l.b16 %v802
      %v893 = vunpack.c.h.b16 %v802
      %v894 = vunpack.c.l.b16 %v803
      %v895 = vunpack.c.l.b16 %v804
      %v896 = vunpack.c.h.b16 %v804
      %v897 = vunpack.c.l.b16 %v805
      %v898 = vunpack.c.l.b16 %v806
      %v899 = vunpack.c.h.b16 %v806
      %v900 = vunpack.c.l.b16 %v807
      %v901 = vunpack.c.l.b16 %v808
      %v902 = vunpack.c.h.b16 %v808
      %v903 = vunpack.c.l.b16 %v809
      %v904 = vunpack.c.l.b16 %v810
      %v905 = vunpack.c.h.b16 %v810
      %v906 = vunpack.c.l.b16 %v811
      %v907 = vunpack.c.l.b16 %v812
      %v908 = vunpack.c.h.b16 %v812
      %v909 = vunpack.c.l.b16 %v813
      %v910 = vunpack.c.l.b16 %v814
      %v911 = vunpack.c.h.b16 %v814
      %v912 = vunpack.c.l.b16 %v815
      %v913 = vpack.c.b16 %v868, %v865
      %v914 = vpack.c.b16 %v869, %v866
      %v915 = vpack.c.b16 %v870, %v867
      %v916 = vpack.c.b16 %v874, %v871
      %v917 = vpack.c.b16 %v875, %v872
      %v918 = vpack.c.b16 %v876, %v873
      %v919 = vpack.c.b16 %v880, %v877
      %v920 = vpack.c.b16 %v881, %v878
      %v921 = vpack.c.b16 %v882, %v879
      %v922 = vpack.c.b16 %v886, %v883
      %v923 = vpack.c.b16 %v887, %v884
      %v924 = vpack.c.b16 %v888, %v885
      %v925 = vpack.c.b16 %v892, %v889
      %v926 = vpack.c.b16 %v893, %v890
      %v927 = vpack.c.b16 %v894, %v891
      %v928 = vpack.c.b16 %v898, %v895
      %v929 = vpack.c.b16 %v899, %v896
      %v930 = vpack.c.b16 %v900, %v897
      %v931 = vpack.c.b16 %v904, %v901
      %v932 = vpack.c.b16 %v905, %v902
      %v933 = vpack.c.b16 %v906, %v903
      %v934 = vpack.c.b16 %v910, %v907
      %v935 = vpack.c.b16 %v911, %v908
      %v936 = vpack.c.b16 %v912, %v909
      %961 = vmatprep.subr.bf16.mxu0 %v914
      %962 = vmatpush1.bf16.msra.mxu0 %v913
      %963 = vmatprep.subr.bf16.mxu0 %v917
      %964 = vmatpush1.bf16.msra.mxu0 %v916
      %965 = vmatprep.subr.bf16.mxu0 %v920
      %966 = vmatpush1.bf16.msra.mxu0 %v919
      %967 = vmatprep.subr.bf16.mxu0 %v923
      %968 = vmatpush1.bf16.msra.mxu0 %v922
      %969 = vmatprep.subr.bf16.mxu0 %v926
      %970 = vmatpush1.bf16.msra.mxu0 %v925
      %971 = vmatprep.subr.bf16.mxu0 %v929
      %972 = vmatpush1.bf16.msra.mxu0 %v928
      %973 = vmatprep.subr.bf16.mxu0 %v932
      %974 = vmatpush1.bf16.msra.mxu0 %v931
      %975 = vmatprep.subr.bf16.mxu0 %v935
      %976 = vmatpush1.bf16.msra.mxu0 %v934
      %977 = vmatprep.subr.bf16.mxu0 0
      %978 = vmatpush1.bf16.msra.mxu0 0
      %979 = vmatprep.subr.bf16.mxu0 0
      %980 = vmatpush1.bf16.msra.mxu0 0
      %981 = vmatprep.subr.bf16.mxu0 0
      %982 = vmatpush1.bf16.msra.mxu0 0
      %983 = vmatprep.subr.bf16.mxu0 0
      %984 = vmatpush1.bf16.msra.mxu0 0
      %985 = vmatprep.subr.bf16.mxu0 0
      %986 = vmatpush1.bf16.msra.mxu0 0
      %987 = vmatprep.subr.bf16.mxu0 0
      %988 = vmatpush1.bf16.msra.mxu0 0
      %989 = vmatprep.subr.bf16.mxu0 0
      %990 = vmatpush1.bf16.msra.mxu0 0
      %991 = vmatprep.subr.bf16.mxu0 0
      %992 = vmatpush1.bf16.msra.mxu0 0
      %993 = vmatprep.mubr.bf16.mxu0 0
      %994 = vmatmul.mubr.bf16.gmra.mrb[0].mxu0 %v776
      %v995 = vpop.f32.mrb[0].mxu0
      %v996 = vadd.f32 %v821, %v995
      %v997 = vpop.f32.mrb[0].mxu0
      %v998 = vadd.f32 %v825, %v997
      %v999 = vpop.f32.mrb[0].mxu0
      %v1000 = vadd.f32 %v821, %v999
      %v1001 = vpop.f32.mrb[0].mxu0
      %v1002 = vadd.f32 %v825, %v1001
      %1003 = vmatprep.mubr.bf16.mxu0 0
      %1004 = vmatmul.mubr.bf16.gmra.mrb[0].mxu0 %v777
      %v1005 = vpop.f32.mrb[0].mxu0
      %v1006 = vadd.f32 %v821, %v1005
      %v1007 = vpop.f32.mrb[0].mxu0
      %v1008 = vadd.f32 %v825, %v1007
      %v1009 = vpop.f32.mrb[0].mxu0
      %v1010 = vadd.f32 %v821, %v1009
      %v1011 = vpop.f32.mrb[0].mxu0
      %v1012 = vadd.f32 %v825, %v1011
      %1013 = vmatprep.mubr.bf16.mxu0 0
      %1014 = vmatmul.mubr.bf16.gmra.mrb[0].mxu0 %v778
      %v1015 = vpop.f32.mrb[0].mxu0
      %v1016 = vadd.f32 %v821, %v1015
      %v1017 = vpop.f32.mrb[0].mxu0
      %v1018 = vadd.f32 %v825, %v1017
      %v1019 = vpop.f32.mrb[0].mxu0
      %v1020 = vadd.f32 %v821, %v1019
      %v1021 = vpop.f32.mrb[0].mxu0
      %v1022 = vadd.f32 %v825, %v1021
      %1023 = vmatprep.mubr.bf16.mxu0 0
      %1024 = vmatmul.mubr.bf16.gmra.mrb[0].mxu0 %v779
      %v1025 = vpop.f32.mrb[0].mxu0
      %v1026 = vadd.f32 %v821, %v1025
      %v1027 = vpop.f32.mrb[0].mxu0
      %v1028 = vadd.f32 %v825, %v1027
      %v1029 = vpop.f32.mrb[0].mxu0
      %v1030 = vadd.f32 %v821, %v1029
      %v1031 = vpop.f32.mrb[0].mxu0
      %v1032 = vadd.f32 %v825, %v1031
      %1033 = vmatprep.mubr.bf16.mxu0 0
      %1034 = vmatmul.mubr.bf16.gmra.mrb[0].mxu0 %v780
      %v1035 = vpop.f32.mrb[0].mxu0
      %v1036 = vadd.f32 %v821, %v1035
      %v1037 = vpop.f32.mrb[0].mxu0
      %v1038 = vadd.f32 %v825, %v1037
      %v1039 = vpop.f32.mrb[0].mxu0
      %v1040 = vadd.f32 %v821, %v1039
      %v1041 = vpop.f32.mrb[0].mxu0
      %v1042 = vadd.f32 %v825, %v1041
      %1043 = vmatprep.mubr.bf16.mxu0 0
      %1044 = vmatmul.mubr.bf16.gmra.mrb[0].mxu0 %v781
      %v1045 = vpop.f32.mrb[0].mxu0
      %v1046 = vadd.f32 %v821, %v1045
      %v1047 = vpop.f32.mrb[0].mxu0
      %v1048 = vadd.f32 %v825, %v1047
      %v1049 = vpop.f32.mrb[0].mxu0
      %v1050 = vadd.f32 %v821, %v1049
      %v1051 = vpop.f32.mrb[0].mxu0
      %v1052 = vadd.f32 %v825, %v1051
      %1053 = vmatprep.mubr.bf16.mxu0 0
      %1054 = vmatmul.mubr.bf16.gmra.mrb[0].mxu0 %v782
      %v1055 = vpop.f32.mrb[0].mxu0
      %v1056 = vadd.f32 %v821, %v1055
      %v1057 = vpop.f32.mrb[0].mxu0
      %v1058 = vadd.f32 %v825, %v1057
      %v1059 = vpop.f32.mrb[0].mxu0
      %v1060 = vadd.f32 %v821, %v1059
      %v1061 = vpop.f32.mrb[0].mxu0
      %v1062 = vadd.f32 %v825, %v1061
      %1063 = vmatprep.mubr.bf16.mxu0 0
      %1064 = vmatmul.mubr.bf16.gmra.mrb[0].mxu0 %v783
      %v1065 = vpop.f32.mrb[0].mxu0
      %v1066 = vadd.f32 %v821, %v1065
      %v1067 = vpop.f32.mrb[0].mxu0
      %v1068 = vadd.f32 %v825, %v1067
      %v1069 = vpop.f32.mrb[0].mxu0
      %v1070 = vadd.f32 %v821, %v1069
      %v1071 = vpop.f32.mrb[0].mxu0
      %v1072 = vadd.f32 %v825, %v1071
      %1073 = vdwg.mxu0
      %1074 = vmatprep.subr.bf16.mxu0 0
      %1075 = vmatpush1.bf16.msra.mxu0 %v915
      %1076 = vmatprep.subr.bf16.mxu0 0
      %1077 = vmatpush1.bf16.msra.mxu0 %v918
      %1078 = vmatprep.subr.bf16.mxu0 0
      %1079 = vmatpush1.bf16.msra.mxu0 %v921
      %1080 = vmatprep.subr.bf16.mxu0 0
      %1081 = vmatpush1.bf16.msra.mxu0 %v924
      %1082 = vmatprep.subr.bf16.mxu0 0
      %1083 = vmatpush1.bf16.msra.mxu0 %v927
      %1084 = vmatprep.subr.bf16.mxu0 0
      %1085 = vmatpush1.bf16.msra.mxu0 %v930
      %1086 = vmatprep.subr.bf16.mxu0 0
      %1087 = vmatpush1.bf16.msra.mxu0 %v933
      %1088 = vmatprep.subr.bf16.mxu0 0
      %1089 = vmatpush1.bf16.msra.mxu0 %v936
      %1090 = vmatprep.subr.bf16.mxu0 0
      %1091 = vmatpush1.bf16.msra.mxu0 0
      %1092 = vmatprep.subr.bf16.mxu0 0
      %1093 = vmatpush1.bf16.msra.mxu0 0
      %1094 = vmatprep.subr.bf16.mxu0 0
      %1095 = vmatpush1.bf16.msra.mxu0 0
      %1096 = vmatprep.subr.bf16.mxu0 0
      %1097 = vmatpush1.bf16.msra.mxu0 0
      %1098 = vmatprep.subr.bf16.mxu0 0
      %1099 = vmatpush1.bf16.msra.mxu0 0
      %1100 = vmatprep.subr.bf16.mxu0 0
      %1101 = vmatpush1.bf16.msra.mxu0 0
      %1102 = vmatprep.subr.bf16.mxu0 0
      %1103 = vmatpush1.bf16.msra.mxu0 0
      %1104 = vmatprep.subr.bf16.mxu0 0
      %1105 = vmatpush1.bf16.msra.mxu0 0
      %1106 = vmatprep.mubr.bf16.mxu0 0
      %1107 = vmatmul.mubr.bf16.gmra.mrb[0].mxu0 %v776
      %v1108 = vpop.f32.mrb[0].mxu0
      %v1109 = vadd.f32 %v829, %v1108
      %v1110 = vpop.f32.mrb[0].mxu0
      %v1111 = vpop.f32.mrb[0].mxu0
      %v1112 = vadd.f32 %v829, %v1111
      %v1113 = vpop.f32.mrb[0].mxu0
      %1114 = vmatprep.mubr.bf16.mxu0 0
      %1115 = vmatmul.mubr.bf16.gmra.mrb[0].mxu0 %v777
      %v1116 = vpop.f32.mrb[0].mxu0
      %v1117 = vadd.f32 %v829, %v1116
      %v1118 = vpop.f32.mrb[0].mxu0
      %v1119 = vpop.f32.mrb[0].mxu0
      %v1120 = vadd.f32 %v829, %v1119
      %v1121 = vpop.f32.mrb[0].mxu0
      %1122 = vmatprep.mubr.bf16.mxu0 0
      %1123 = vmatmul.mubr.bf16.gmra.mrb[0].mxu0 %v778
      %v1124 = vpop.f32.mrb[0].mxu0
      %v1125 = vadd.f32 %v829, %v1124
      %v1126 = vpop.f32.mrb[0].mxu0
      %v1127 = vpop.f32.mrb[0].mxu0
      %v1128 = vadd.f32 %v829, %v1127
      %v1129 = vpop.f32.mrb[0].mxu0
      %1130 = vmatprep.mubr.bf16.mxu0 0
      %1131 = vmatmul.mubr.bf16.gmra.mrb[0].mxu0 %v779
      %v1132 = vpop.f32.mrb[0].mxu0
      %v1133 = vadd.f32 %v829, %v1132
      %v1134 = vpop.f32.mrb[0].mxu0
      %v1135 = vpop.f32.mrb[0].mxu0
      %v1136 = vadd.f32 %v829, %v1135
      %v1137 = vpop.f32.mrb[0].mxu0
      %1138 = vmatprep.mubr.bf16.mxu0 0
      %1139 = vmatmul.mubr.bf16.gmra.mrb[0].mxu0 %v780
      %v1140 = vpop.f32.mrb[0].mxu0
      %v1141 = vadd.f32 %v829, %v1140
      %v1142 = vpop.f32.mrb[0].mxu0
      %v1143 = vpop.f32.mrb[0].mxu0
      %v1144 = vadd.f32 %v829, %v1143
      %v1145 = vpop.f32.mrb[0].mxu0
      %1146 = vmatprep.mubr.bf16.mxu0 0
      %1147 = vmatmul.mubr.bf16.gmra.mrb[0].mxu0 %v781
      %v1148 = vpop.f32.mrb[0].mxu0
      %v1149 = vadd.f32 %v829, %v1148
      %v1150 = vpop.f32.mrb[0].mxu0
      %v1151 = vpop.f32.mrb[0].mxu0
      %v1152 = vadd.f32 %v829, %v1151
      %v1153 = vpop.f32.mrb[0].mxu0
      %1154 = vmatprep.mubr.bf16.mxu0 0
      %1155 = vmatmul.mubr.bf16.gmra.mrb[0].mxu0 %v782
      %v1156 = vpop.f32.mrb[0].mxu0
      %v1157 = vadd.f32 %v829, %v1156
      %v1158 = vpop.f32.mrb[0].mxu0
      %v1159 = vpop.f32.mrb[0].mxu0
      %v1160 = vadd.f32 %v829, %v1159
      %v1161 = vpop.f32.mrb[0].mxu0
      %1162 = vmatprep.mubr.bf16.mxu0 0
      %1163 = vmatmul.mubr.bf16.gmra.mrb[0].mxu0 %v783
      %v1164 = vpop.f32.mrb[0].mxu0
      %v1165 = vadd.f32 %v829, %v1164
      %v1166 = vpop.f32.mrb[0].mxu0
      %v1167 = vpop.f32.mrb[0].mxu0
      %v1168 = vadd.f32 %v829, %v1167
      %v1169 = vpop.f32.mrb[0].mxu0
      %1170 = vdwg.mxu0
      %v1171 = vmul.f32 %v996, 0.17677669
      %v1172 = vmul.f32 %v1000, 0.17677669
      %v1173 = vmul.f32 %v1006, 0.17677669
      %v1174 = vmul.f32 %v1010, 0.17677669
      %v1175 = vmul.f32 %v1016, 0.17677669
      %v1176 = vmul.f32 %v1020, 0.17677669
      %v1177 = vmul.f32 %v1026, 0.17677669
      %v1178 = vmul.f32 %v1030, 0.17677669
      %v1179 = vmul.f32 %v1036, 0.17677669
      %v1180 = vmul.f32 %v1040, 0.17677669
      %v1181 = vmul.f32 %v1046, 0.17677669
      %v1182 = vmul.f32 %v1050, 0.17677669
      %v1183 = vmul.f32 %v1056, 0.17677669
      %v1184 = vmul.f32 %v1060, 0.17677669
      %v1185 = vmul.f32 %v1066, 0.17677669
      %v1186 = vmul.f32 %v1070, 0.17677669
      %v1187 = vld [vmem:[%s530] sm:$0x1]
      %v1188 = vpack.c.bf16 %v1172, %v1171
      %v1189 = vpack.c.bf16 %v1174, %v1173
      %v1190 = vpack.c.bf16 %v1176, %v1175
      %v1191 = vpack.c.bf16 %v1178, %v1177
      %v1192 = vpack.c.bf16 %v1180, %v1179
      %v1193 = vpack.c.bf16 %v1182, %v1181
      %v1194 = vpack.c.bf16 %v1184, %v1183
      %v1195 = vpack.c.bf16 %v1186, %v1185
      %v1196 = vpack.c.bf16 %v1002, %v998
      %v1197 = vpack.c.bf16 %v1012, %v1008
      %v1198 = vpack.c.bf16 %v1022, %v1018
      %v1199 = vpack.c.bf16 %v1032, %v1028
      %v1200 = vpack.c.bf16 %v1042, %v1038
      %v1201 = vpack.c.bf16 %v1052, %v1048
      %v1202 = vpack.c.bf16 %v1062, %v1058
      %v1203 = vpack.c.bf16 %v1072, %v1068
      %v1204 = vpack.c.bf16 %v1112, %v1109
      %v1205 = vpack.c.bf16 %v1120, %v1117
      %v1206 = vpack.c.bf16 %v1128, %v1125
      %v1207 = vpack.c.bf16 %v1136, %v1133
      %v1208 = vpack.c.bf16 %v1144, %v1141
      %v1209 = vpack.c.bf16 %v1152, %v1149
      %v1210 = vpack.c.bf16 %v1160, %v1157
      %v1211 = vpack.c.bf16 %v1168, %v1165
      %v1213 = vlaneseq
      %v1214 = vshrl.u32 %v1213, 7
      %v1215 = vsub.s32 0, %v1214
      %v1216 = vrot.slane %v1187, %v1215
      %vm1218 = vcmask 261120
      %v1220 = vsel %vm1218, %v1188, 0
      %v1223 = vsel %vm1218, %v1189, 0
      %v1226 = vsel %vm1218, %v1190, 0
      %v1229 = vsel %vm1218, %v1191, 0
      %v1232 = vsel %vm1218, %v1192, 0
      %v1235 = vsel %vm1218, %v1193, 0
      %v1238 = vsel %vm1218, %v1194, 0
      %v1241 = vsel %vm1218, %v1195, 0
      %v1244 = vsel %vm1218, %v1196, 0
      %v1247 = vsel %vm1218, %v1197, 0
      %v1250 = vsel %vm1218, %v1198, 0
      %v1253 = vsel %vm1218, %v1199, 0
      %v1256 = vsel %vm1218, %v1200, 0
      %v1259 = vsel %vm1218, %v1201, 0
      %v1262 = vsel %vm1218, %v1202, 0
      %v1265 = vsel %vm1218, %v1203, 0
      %1267 = vmatprep.subr.bf16.mxu0 0
      %1268 = vmatpush1.bf16.xpose.msra.mxu0 %v1244
      %1269 = vmatprep.subr.bf16.mxu0 0
      %1270 = vmatpush1.bf16.xpose.msra.mxu0 %v1247
      %1271 = vmatprep.subr.bf16.mxu0 0
      %1272 = vmatpush1.bf16.xpose.msra.mxu0 %v1250
      %1273 = vmatprep.subr.bf16.mxu0 0
      %1274 = vmatpush1.bf16.xpose.msra.mxu0 %v1253
      %1275 = vmatprep.subr.bf16.mxu0 0
      %1276 = vmatpush1.bf16.xpose.msra.mxu0 %v1256
      %1277 = vmatprep.subr.bf16.mxu0 0
      %1278 = vmatpush1.bf16.xpose.msra.mxu0 %v1259
      %1279 = vmatprep.subr.bf16.mxu0 0
      %1280 = vmatpush1.bf16.xpose.msra.mxu0 %v1262
      %1281 = vmatprep.subr.bf16.mxu0 0
      %1282 = vmatpush1.bf16.xpose.msra.mxu0 %v1265
      %1283 = vmatprep.subr.bf16.mxu0 0
      %1284 = vmatpush1.bf16.xpose.msra.mxu0 0
      %1285 = vmatprep.subr.bf16.mxu0 0
      %1286 = vmatpush1.bf16.xpose.msra.mxu0 0
      %1287 = vmatprep.subr.bf16.mxu0 0
      %1288 = vmatpush1.bf16.xpose.msra.mxu0 0
      %1289 = vmatprep.subr.bf16.mxu0 0
      %1290 = vmatpush1.bf16.xpose.msra.mxu0 0
      %1291 = vmatprep.subr.bf16.mxu0 0
      %1292 = vmatpush1.bf16.xpose.msra.mxu0 0
      %1293 = vmatprep.subr.bf16.mxu0 0
      %1294 = vmatpush1.bf16.xpose.msra.mxu0 0
      %1295 = vmatprep.subr.bf16.mxu0 0
      %1296 = vmatpush1.bf16.xpose.msra.mxu0 0
      %1297 = vmatprep.subr.bf16.mxu0 0
      %1298 = vmatpush1.bf16.xpose.msra.mxu0 0
      %1299 = vmatprep.mubr.bf16.mxu0 0
      %1300 = vmatmul.mubr.bf16.gmra.mrb[0].mxu0 %v1220
      %v1301 = vpop.f32.mrb[0].mxu0
      %v1302 = vadd.f32 %v1216, %v1301
      %v1303 = vpop.f32.mrb[0].mxu0
      %v1304 = vpop.f32.mrb[0].mxu0
      %v1305 = vadd.f32 %v1216, %v1304
      %v1306 = vpop.f32.mrb[0].mxu0
      %1307 = vmatprep.mubr.bf16.mxu0 0
      %1308 = vmatmul.mubr.bf16.gmra.mrb[0].mxu0 %v1223
      %v1309 = vpop.f32.mrb[0].mxu0
      %v1310 = vadd.f32 %v1216, %v1309
      %v1311 = vpop.f32.mrb[0].mxu0
      %v1312 = vpop.f32.mrb[0].mxu0
      %v1313 = vadd.f32 %v1216, %v1312
      %v1314 = vpop.f32.mrb[0].mxu0
      %1315 = vmatprep.mubr.bf16.mxu0 0
      %1316 = vmatmul.mubr.bf16.gmra.mrb[0].mxu0 %v1226
      %v1317 = vpop.f32.mrb[0].mxu0
      %v1318 = vadd.f32 %v1216, %v1317
      %v1319 = vpop.f32.mrb[0].mxu0
      %v1320 = vpop.f32.mrb[0].mxu0
      %v1321 = vadd.f32 %v1216, %v1320
      %v1322 = vpop.f32.mrb[0].mxu0
      %1323 = vmatprep.mubr.bf16.mxu0 0
      %1324 = vmatmul.mubr.bf16.gmra.mrb[0].mxu0 %v1229
      %v1325 = vpop.f32.mrb[0].mxu0
      %v1326 = vadd.f32 %v1216, %v1325
      %v1327 = vpop.f32.mrb[0].mxu0
      %v1328 = vpop.f32.mrb[0].mxu0
      %v1329 = vadd.f32 %v1216, %v1328
      %v1330 = vpop.f32.mrb[0].mxu0
      %1331 = vmatprep.mubr.bf16.mxu0 0
      %1332 = vmatmul.mubr.bf16.gmra.mrb[0].mxu0 %v1232
      %v1333 = vpop.f32.mrb[0].mxu0
      %v1334 = vadd.f32 %v1216, %v1333
      %v1335 = vpop.f32.mrb[0].mxu0
      %v1336 = vpop.f32.mrb[0].mxu0
      %v1337 = vadd.f32 %v1216, %v1336
      %v1338 = vpop.f32.mrb[0].mxu0
      %1339 = vmatprep.mubr.bf16.mxu0 0
      %1340 = vmatmul.mubr.bf16.gmra.mrb[0].mxu0 %v1235
      %v1341 = vpop.f32.mrb[0].mxu0
      %v1342 = vadd.f32 %v1216, %v1341
      %v1343 = vpop.f32.mrb[0].mxu0
      %v1344 = vpop.f32.mrb[0].mxu0
      %v1345 = vadd.f32 %v1216, %v1344
      %v1346 = vpop.f32.mrb[0].mxu0
      %1347 = vmatprep.mubr.bf16.mxu0 0
      %1348 = vmatmul.mubr.bf16.gmra.mrb[0].mxu0 %v1238
      %v1349 = vpop.f32.mrb[0].mxu0
      %v1350 = vadd.f32 %v1216, %v1349
      %v1351 = vpop.f32.mrb[0].mxu0
      %v1352 = vpop.f32.mrb[0].mxu0
      %v1353 = vadd.f32 %v1216, %v1352
      %v1354 = vpop.f32.mrb[0].mxu0
      %1355 = vmatprep.mubr.bf16.mxu0 0
      %1356 = vmatmul.mubr.bf16.gmra.mrb[0].mxu0 %v1241
      %v1357 = vpop.f32.mrb[0].mxu0
      %v1358 = vadd.f32 %v1216, %v1357
      %v1359 = vpop.f32.mrb[0].mxu0
      %v1360 = vpop.f32.mrb[0].mxu0
      %v1361 = vadd.f32 %v1216, %v1360
      %v1362 = vpop.f32.mrb[0].mxu0
      %1363 = vdwg.mxu0
      %1364 = vmax.xlane.f32.xlu0 %v1302
      %v1365 = vpop.xlane.xlu0 %1364
      %1366 = vmax.xlane.f32.xlu0 %v1305
      %v1367 = vpop.xlane.xlu0 %1366
      %1368 = vmax.xlane.f32.xlu0 %v1310
      %v1369 = vpop.xlane.xlu0 %1368
      %1370 = vmax.xlane.f32.xlu0 %v1313
      %v1371 = vpop.xlane.xlu0 %1370
      %1372 = vmax.xlane.f32.xlu0 %v1318
      %v1373 = vpop.xlane.xlu0 %1372
      %1374 = vmax.xlane.f32.xlu0 %v1321
      %v1375 = vpop.xlane.xlu0 %1374
      %1376 = vmax.xlane.f32.xlu0 %v1326
      %v1377 = vpop.xlane.xlu0 %1376
      %1378 = vmax.xlane.f32.xlu0 %v1329
      %v1379 = vpop.xlane.xlu0 %1378
      %1380 = vmax.xlane.f32.xlu0 %v1334
      %v1381 = vpop.xlane.xlu0 %1380
      %1382 = vmax.xlane.f32.xlu0 %v1337
      %v1383 = vpop.xlane.xlu0 %1382
      %1384 = vmax.xlane.f32.xlu0 %v1342
      %v1385 = vpop.xlane.xlu0 %1384
      %1386 = vmax.xlane.f32.xlu0 %v1345
      %v1387 = vpop.xlane.xlu0 %1386
      %1388 = vmax.xlane.f32.xlu0 %v1350
      %v1389 = vpop.xlane.xlu0 %1388
      %1390 = vmax.xlane.f32.xlu0 %v1353
      %v1391 = vpop.xlane.xlu0 %1390
      %1392 = vmax.xlane.f32.xlu0 %v1358
      %v1393 = vpop.xlane.xlu0 %1392
      %1394 = vmax.xlane.f32.xlu0 %v1361
      %v1395 = vpop.xlane.xlu0 %1394
      %v1396 = vsub.f32 %v1302, %v1365
      %v1397 = vsub.f32 %v1305, %v1367
      %v1398 = vsub.f32 %v1310, %v1369
      %v1399 = vsub.f32 %v1313, %v1371
      %v1400 = vsub.f32 %v1318, %v1373
      %v1401 = vsub.f32 %v1321, %v1375
      %v1402 = vsub.f32 %v1326, %v1377
      %v1403 = vsub.f32 %v1329, %v1379
      %v1404 = vsub.f32 %v1334, %v1381
      %v1405 = vsub.f32 %v1337, %v1383
      %v1406 = vsub.f32 %v1342, %v1385
      %v1407 = vsub.f32 %v1345, %v1387
      %v1408 = vsub.f32 %v1350, %v1389
      %v1409 = vsub.f32 %v1353, %v1391
      %v1410 = vsub.f32 %v1358, %v1393
      %v1411 = vsub.f32 %v1361, %v1395
      %v1412 = vmul.f32 %v1396, 1.442695
      %v1413 = vpow.pop %v1412
      %v1414 = vmul.f32 %v1397, 1.442695
      %v1415 = vpow.pop %v1414
      %v1416 = vmul.f32 %v1398, 1.442695
      %v1417 = vpow.pop %v1416
      %v1418 = vmul.f32 %v1399, 1.442695
      %v1419 = vpow.pop %v1418
      %v1420 = vmul.f32 %v1400, 1.442695
      %v1421 = vpow.pop %v1420
      %v1422 = vmul.f32 %v1401, 1.442695
      %v1423 = vpow.pop %v1422
      %v1424 = vmul.f32 %v1402, 1.442695
      %v1425 = vpow.pop %v1424
      %v1426 = vmul.f32 %v1403, 1.442695
      %v1427 = vpow.pop %v1426
      %v1428 = vmul.f32 %v1404, 1.442695
      %v1429 = vpow.pop %v1428
      %v1430 = vmul.f32 %v1405, 1.442695
      %v1431 = vpow.pop %v1430
      %v1432 = vmul.f32 %v1406, 1.442695
      %v1433 = vpow.pop %v1432
      %v1434 = vmul.f32 %v1407, 1.442695
      %v1435 = vpow.pop %v1434
      %v1436 = vmul.f32 %v1408, 1.442695
      %v1437 = vpow.pop %v1436
      %v1438 = vmul.f32 %v1409, 1.442695
      %v1439 = vpow.pop %v1438
      %v1440 = vmul.f32 %v1410, 1.442695
      %v1441 = vpow.pop %v1440
      %v1442 = vmul.f32 %v1411, 1.442695
      %v1443 = vpow.pop %v1442
      %1444 = vadd.xlane.f32.xlu0 %v1413
      %v1445 = vpop.xlane.xlu0 %1444
      %1446 = vadd.xlane.f32.xlu0 %v1415
      %v1447 = vpop.xlane.xlu0 %1446
      %1448 = vadd.xlane.f32.xlu0 %v1417
      %v1449 = vpop.xlane.xlu0 %1448
      %1450 = vadd.xlane.f32.xlu0 %v1419
      %v1451 = vpop.xlane.xlu0 %1450
      %1452 = vadd.xlane.f32.xlu0 %v1421
      %v1453 = vpop.xlane.xlu0 %1452
      %1454 = vadd.xlane.f32.xlu0 %v1423
      %v1455 = vpop.xlane.xlu0 %1454
      %1456 = vadd.xlane.f32.xlu0 %v1425
      %v1457 = vpop.xlane.xlu0 %1456
      %1458 = vadd.xlane.f32.xlu0 %v1427
      %v1459 = vpop.xlane.xlu0 %1458
      %1460 = vadd.xlane.f32.xlu0 %v1429
      %v1461 = vpop.xlane.xlu0 %1460
      %1462 = vadd.xlane.f32.xlu0 %v1431
      %v1463 = vpop.xlane.xlu0 %1462
      %1464 = vadd.xlane.f32.xlu0 %v1433
      %v1465 = vpop.xlane.xlu0 %1464
      %1466 = vadd.xlane.f32.xlu0 %v1435
      %v1467 = vpop.xlane.xlu0 %1466
      %1468 = vadd.xlane.f32.xlu0 %v1437
      %v1469 = vpop.xlane.xlu0 %1468
      %1470 = vadd.xlane.f32.xlu0 %v1439
      %v1471 = vpop.xlane.xlu0 %1470
      %1472 = vadd.xlane.f32.xlu0 %v1441
      %v1473 = vpop.xlane.xlu0 %1472
      %1474 = vadd.xlane.f32.xlu0 %v1443
      %v1475 = vpop.xlane.xlu0 %1474
      %v1476 = vrcp.pop %v1445
      %v1477 = vrcp.pop %v1447
      %v1478 = vrcp.pop %v1449
      %v1479 = vrcp.pop %v1451
      %v1480 = vrcp.pop %v1453
      %v1481 = vrcp.pop %v1455
      %v1482 = vrcp.pop %v1457
      %v1483 = vrcp.pop %v1459
      %v1484 = vrcp.pop %v1461
      %v1485 = vrcp.pop %v1463
      %v1486 = vrcp.pop %v1465
      %v1487 = vrcp.pop %v1467
      %v1488 = vrcp.pop %v1469
      %v1489 = vrcp.pop %v1471
      %v1490 = vrcp.pop %v1473
      %v1491 = vrcp.pop %v1475
      %v1492 = vmul.f32 %v1413, %v1476
      %v1493 = vmul.f32 %v1415, %v1477
      %v1494 = vmul.f32 %v1417, %v1478
      %v1495 = vmul.f32 %v1419, %v1479
      %v1496 = vmul.f32 %v1421, %v1480
      %v1497 = vmul.f32 %v1423, %v1481
      %v1498 = vmul.f32 %v1425, %v1482
      %v1499 = vmul.f32 %v1427, %v1483
      %v1500 = vmul.f32 %v1429, %v1484
      %v1501 = vmul.f32 %v1431, %v1485
      %v1502 = vmul.f32 %v1433, %v1486
      %v1503 = vmul.f32 %v1435, %v1487
      %v1504 = vmul.f32 %v1437, %v1488
      %v1505 = vmul.f32 %v1439, %v1489
      %v1506 = vmul.f32 %v1441, %v1490
      %v1507 = vmul.f32 %v1443, %v1491
      %v1508 = vpack.c.bf16 %v1493, %v1492
      %v1509 = vpack.c.bf16 %v1495, %v1494
      %v1510 = vpack.c.bf16 %v1497, %v1496
      %v1511 = vpack.c.bf16 %v1499, %v1498
      %v1512 = vpack.c.bf16 %v1501, %v1500
      %v1513 = vpack.c.bf16 %v1503, %v1502
      %v1514 = vpack.c.bf16 %v1505, %v1504
      %v1515 = vpack.c.bf16 %v1507, %v1506
      %1516 = vmatprep.subr.bf16.mxu0 0
      %1517 = vmatpush1.bf16.msra.mxu0 %v1204
      %1518 = vmatprep.subr.bf16.mxu0 0
      %1519 = vmatpush1.bf16.msra.mxu0 %v1205
      %1520 = vmatprep.subr.bf16.mxu0 0
      %1521 = vmatpush1.bf16.msra.mxu0 %v1206
      %1522 = vmatprep.subr.bf16.mxu0 0
      %1523 = vmatpush1.bf16.msra.mxu0 %v1207
      %1524 = vmatprep.subr.bf16.mxu0 0
      %1525 = vmatpush1.bf16.msra.mxu0 %v1208
      %1526 = vmatprep.subr.bf16.mxu0 0
      %1527 = vmatpush1.bf16.msra.mxu0 %v1209
      %1528 = vmatprep.subr.bf16.mxu0 0
      %1529 = vmatpush1.bf16.msra.mxu0 %v1210
      %1530 = vmatprep.subr.bf16.mxu0 0
      %1531 = vmatpush1.bf16.msra.mxu0 %v1211
      %1532 = vmatprep.subr.bf16.mxu0 0
      %1533 = vmatpush1.bf16.msra.mxu0 0
      %1534 = vmatprep.subr.bf16.mxu0 0
      %1535 = vmatpush1.bf16.msra.mxu0 0
      %1536 = vmatprep.subr.bf16.mxu0 0
      %1537 = vmatpush1.bf16.msra.mxu0 0
      %1538 = vmatprep.subr.bf16.mxu0 0
      %1539 = vmatpush1.bf16.msra.mxu0 0
      %1540 = vmatprep.subr.bf16.mxu0 0
      %1541 = vmatpush1.bf16.msra.mxu0 0
      %1542 = vmatprep.subr.bf16.mxu0 0
      %1543 = vmatpush1.bf16.msra.mxu0 0
      %1544 = vmatprep.subr.bf16.mxu0 0
      %1545 = vmatpush1.bf16.msra.mxu0 0
      %1546 = vmatprep.subr.bf16.mxu0 0
      %1547 = vmatpush1.bf16.msra.mxu0 0
      %1548 = vmatprep.mubr.bf16.mxu0 0
      %1549 = vmatmul.mubr.bf16.gmra.mrb[0].mxu0 %v1508
      %v1550 = vpop.f32.mrb[0].mxu0
      %v1551 = vadd.f32 0.0, %v1550
      %v1552 = vpop.f32.mrb[0].mxu0
      %v1553 = vpop.f32.mrb[0].mxu0
      %v1554 = vadd.f32 0.0, %v1553
      %v1555 = vpop.f32.mrb[0].mxu0
      %1556 = vmatprep.mubr.bf16.mxu0 0
      %1557 = vmatmul.mubr.bf16.gmra.mrb[0].mxu0 %v1509
      %v1558 = vpop.f32.mrb[0].mxu0
      %v1559 = vadd.f32 0.0, %v1558
      %v1560 = vpop.f32.mrb[0].mxu0
      %v1561 = vpop.f32.mrb[0].mxu0
      %v1562 = vadd.f32 0.0, %v1561
      %v1563 = vpop.f32.mrb[0].mxu0
      %1564 = vmatprep.mubr.bf16.mxu0 0
      %1565 = vmatmul.mubr.bf16.gmra.mrb[0].mxu0 %v1510
      %v1566 = vpop.f32.mrb[0].mxu0
      %v1567 = vadd.f32 0.0, %v1566
      %v1568 = vpop.f32.mrb[0].mxu0
      %v1569 = vpop.f32.mrb[0].mxu0
      %v1570 = vadd.f32 0.0, %v1569
      %v1571 = vpop.f32.mrb[0].mxu0
      %1572 = vmatprep.mubr.bf16.mxu0 0
      %1573 = vmatmul.mubr.bf16.gmra.mrb[0].mxu0 %v1511
      %v1574 = vpop.f32.mrb[0].mxu0
      %v1575 = vadd.f32 0.0, %v1574
      %v1576 = vpop.f32.mrb[0].mxu0
      %v1577 = vpop.f32.mrb[0].mxu0
      %v1578 = vadd.f32 0.0, %v1577
      %v1579 = vpop.f32.mrb[0].mxu0
      %1580 = vmatprep.mubr.bf16.mxu0 0
      %1581 = vmatmul.mubr.bf16.gmra.mrb[0].mxu0 %v1512
      %v1582 = vpop.f32.mrb[0].mxu0
      %v1583 = vadd.f32 0.0, %v1582
      %v1584 = vpop.f32.mrb[0].mxu0
      %v1585 = vpop.f32.mrb[0].mxu0
      %v1586 = vadd.f32 0.0, %v1585
      %v1587 = vpop.f32.mrb[0].mxu0
      %1588 = vmatprep.mubr.bf16.mxu0 0
      %1589 = vmatmul.mubr.bf16.gmra.mrb[0].mxu0 %v1513
      %v1590 = vpop.f32.mrb[0].mxu0
      %v1591 = vadd.f32 0.0, %v1590
      %v1592 = vpop.f32.mrb[0].mxu0
      %v1593 = vpop.f32.mrb[0].mxu0
      %v1594 = vadd.f32 0.0, %v1593
      %v1595 = vpop.f32.mrb[0].mxu0
      %1596 = vmatprep.mubr.bf16.mxu0 0
      %1597 = vmatmul.mubr.bf16.gmra.mrb[0].mxu0 %v1514
      %v1598 = vpop.f32.mrb[0].mxu0
      %v1599 = vadd.f32 0.0, %v1598
      %v1600 = vpop.f32.mrb[0].mxu0
      %v1601 = vpop.f32.mrb[0].mxu0
      %v1602 = vadd.f32 0.0, %v1601
      %v1603 = vpop.f32.mrb[0].mxu0
      %1604 = vmatprep.mubr.bf16.mxu0 0
      %1605 = vmatmul.mubr.bf16.gmra.mrb[0].mxu0 %v1515
      %v1606 = vpop.f32.mrb[0].mxu0
      %v1607 = vadd.f32 0.0, %v1606
      %v1608 = vpop.f32.mrb[0].mxu0
      %v1609 = vpop.f32.mrb[0].mxu0
      %v1610 = vadd.f32 0.0, %v1609
      %v1611 = vpop.f32.mrb[0].mxu0
      %1612 = vdwg.mxu0
      %1621 = vrot.lane.b32.xlu0 %v1188, 96
      %v1622 = vpop.permute.xlu0 %1621
      %1623 = vrot.lane.b32.xlu0 %v1189, 96
      %v1624 = vpop.permute.xlu0 %1623
      %1625 = vrot.lane.b32.xlu0 %v1190, 96
      %v1626 = vpop.permute.xlu0 %1625
      %1627 = vrot.lane.b32.xlu0 %v1191, 96
      %v1628 = vpop.permute.xlu0 %1627
      %1629 = vrot.lane.b32.xlu0 %v1192, 96
      %v1630 = vpop.permute.xlu0 %1629
      %1631 = vrot.lane.b32.xlu0 %v1193, 96
      %v1632 = vpop.permute.xlu0 %1631
      %1633 = vrot.lane.b32.xlu0 %v1194, 96
      %v1634 = vpop.permute.xlu0 %1633
      %1635 = vrot.lane.b32.xlu0 %v1195, 96
      %v1636 = vpop.permute.xlu0 %1635
      %1645 = vrot.lane.b32.xlu0 %v1196, 96
      %v1646 = vpop.permute.xlu0 %1645
      %1647 = vrot.lane.b32.xlu0 %v1197, 96
      %v1648 = vpop.permute.xlu0 %1647
      %1649 = vrot.lane.b32.xlu0 %v1198, 96
      %v1650 = vpop.permute.xlu0 %1649
      %1651 = vrot.lane.b32.xlu0 %v1199, 96
      %v1652 = vpop.permute.xlu0 %1651
      %1653 = vrot.lane.b32.xlu0 %v1200, 96
      %v1654 = vpop.permute.xlu0 %1653
      %1655 = vrot.lane.b32.xlu0 %v1201, 96
      %v1656 = vpop.permute.xlu0 %1655
      %1657 = vrot.lane.b32.xlu0 %v1202, 96
      %v1658 = vpop.permute.xlu0 %1657
      %1659 = vrot.lane.b32.xlu0 %v1203, 96
      %v1660 = vpop.permute.xlu0 %1659
      %v1662 = vsel %vm1218, %v1622, 0
      %v1665 = vsel %vm1218, %v1624, 0
      %v1668 = vsel %vm1218, %v1626, 0
      %v1671 = vsel %vm1218, %v1628, 0
      %v1674 = vsel %vm1218, %v1630, 0
      %v1677 = vsel %vm1218, %v1632, 0
      %v1680 = vsel %vm1218, %v1634, 0
      %v1683 = vsel %vm1218, %v1636, 0
      %v1686 = vsel %vm1218, %v1646, 0
      %v1689 = vsel %vm1218, %v1648, 0
      %v1692 = vsel %vm1218, %v1650, 0
      %v1695 = vsel %vm1218, %v1652, 0
      %v1698 = vsel %vm1218, %v1654, 0
      %v1701 = vsel %vm1218, %v1656, 0
      %v1704 = vsel %vm1218, %v1658, 0
      %v1707 = vsel %vm1218, %v1660, 0
      %1709 = vmatprep.subr.bf16.mxu0 0
      %1710 = vmatpush1.bf16.xpose.msra.mxu0 %v1686
      %1711 = vmatprep.subr.bf16.mxu0 0
      %1712 = vmatpush1.bf16.xpose.msra.mxu0 %v1689
      %1713 = vmatprep.subr.bf16.mxu0 0
      %1714 = vmatpush1.bf16.xpose.msra.mxu0 %v1692
      %1715 = vmatprep.subr.bf16.mxu0 0
      %1716 = vmatpush1.bf16.xpose.msra.mxu0 %v1695
      %1717 = vmatprep.subr.bf16.mxu0 0
      %1718 = vmatpush1.bf16.xpose.msra.mxu0 %v1698
      %1719 = vmatprep.subr.bf16.mxu0 0
      %1720 = vmatpush1.bf16.xpose.msra.mxu0 %v1701
      %1721 = vmatprep.subr.bf16.mxu0 0
      %1722 = vmatpush1.bf16.xpose.msra.mxu0 %v1704
      %1723 = vmatprep.subr.bf16.mxu0 0
      %1724 = vmatpush1.bf16.xpose.msra.mxu0 %v1707
      %1725 = vmatprep.subr.bf16.mxu0 0
      %1726 = vmatpush1.bf16.xpose.msra.mxu0 0
      %1727 = vmatprep.subr.bf16.mxu0 0
      %1728 = vmatpush1.bf16.xpose.msra.mxu0 0
      %1729 = vmatprep.subr.bf16.mxu0 0
      %1730 = vmatpush1.bf16.xpose.msra.mxu0 0
      %1731 = vmatprep.subr.bf16.mxu0 0
      %1732 = vmatpush1.bf16.xpose.msra.mxu0 0
      %1733 = vmatprep.subr.bf16.mxu0 0
      %1734 = vmatpush1.bf16.xpose.msra.mxu0 0
      %1735 = vmatprep.subr.bf16.mxu0 0
      %1736 = vmatpush1.bf16.xpose.msra.mxu0 0
      %1737 = vmatprep.subr.bf16.mxu0 0
      %1738 = vmatpush1.bf16.xpose.msra.mxu0 0
      %1739 = vmatprep.subr.bf16.mxu0 0
      %1740 = vmatpush1.bf16.xpose.msra.mxu0 0
      %1741 = vmatprep.mubr.bf16.mxu0 0
      %1742 = vmatmul.mubr.bf16.gmra.mrb[0].mxu0 %v1662
      %v1743 = vpop.f32.mrb[0].mxu0
      %v1744 = vadd.f32 %v1216, %v1743
      %v1745 = vpop.f32.mrb[0].mxu0
      %v1746 = vpop.f32.mrb[0].mxu0
      %v1747 = vadd.f32 %v1216, %v1746
      %v1748 = vpop.f32.mrb[0].mxu0
      %1749 = vmatprep.mubr.bf16.mxu0 0
      %1750 = vmatmul.mubr.bf16.gmra.mrb[0].mxu0 %v1665
      %v1751 = vpop.f32.mrb[0].mxu0
      %v1752 = vadd.f32 %v1216, %v1751
      %v1753 = vpop.f32.mrb[0].mxu0
      %v1754 = vpop.f32.mrb[0].mxu0
      %v1755 = vadd.f32 %v1216, %v1754
      %v1756 = vpop.f32.mrb[0].mxu0
      %1757 = vmatprep.mubr.bf16.mxu0 0
      %1758 = vmatmul.mubr.bf16.gmra.mrb[0].mxu0 %v1668
      %v1759 = vpop.f32.mrb[0].mxu0
      %v1760 = vadd.f32 %v1216, %v1759
      %v1761 = vpop.f32.mrb[0].mxu0
      %v1762 = vpop.f32.mrb[0].mxu0
      %v1763 = vadd.f32 %v1216, %v1762
      %v1764 = vpop.f32.mrb[0].mxu0
      %1765 = vmatprep.mubr.bf16.mxu0 0
      %1766 = vmatmul.mubr.bf16.gmra.mrb[0].mxu0 %v1671
      %v1767 = vpop.f32.mrb[0].mxu0
      %v1768 = vadd.f32 %v1216, %v1767
      %v1769 = vpop.f32.mrb[0].mxu0
      %v1770 = vpop.f32.mrb[0].mxu0
      %v1771 = vadd.f32 %v1216, %v1770
      %v1772 = vpop.f32.mrb[0].mxu0
      %1773 = vmatprep.mubr.bf16.mxu0 0
      %1774 = vmatmul.mubr.bf16.gmra.mrb[0].mxu0 %v1674
      %v1775 = vpop.f32.mrb[0].mxu0
      %v1776 = vadd.f32 %v1216, %v1775
      %v1777 = vpop.f32.mrb[0].mxu0
      %v1778 = vpop.f32.mrb[0].mxu0
      %v1779 = vadd.f32 %v1216, %v1778
      %v1780 = vpop.f32.mrb[0].mxu0
      %1781 = vmatprep.mubr.bf16.mxu0 0
      %1782 = vmatmul.mubr.bf16.gmra.mrb[0].mxu0 %v1677
      %v1783 = vpop.f32.mrb[0].mxu0
      %v1784 = vadd.f32 %v1216, %v1783
      %v1785 = vpop.f32.mrb[0].mxu0
      %v1786 = vpop.f32.mrb[0].mxu0
      %v1787 = vadd.f32 %v1216, %v1786
      %v1788 = vpop.f32.mrb[0].mxu0
      %1789 = vmatprep.mubr.bf16.mxu0 0
      %1790 = vmatmul.mubr.bf16.gmra.mrb[0].mxu0 %v1680
      %v1791 = vpop.f32.mrb[0].mxu0
      %v1792 = vadd.f32 %v1216, %v1791
      %v1793 = vpop.f32.mrb[0].mxu0
      %v1794 = vpop.f32.mrb[0].mxu0
      %v1795 = vadd.f32 %v1216, %v1794
      %v1796 = vpop.f32.mrb[0].mxu0
      %1797 = vmatprep.mubr.bf16.mxu0 0
      %1798 = vmatmul.mubr.bf16.gmra.mrb[0].mxu0 %v1683
      %v1799 = vpop.f32.mrb[0].mxu0
      %v1800 = vadd.f32 %v1216, %v1799
      %v1801 = vpop.f32.mrb[0].mxu0
      %v1802 = vpop.f32.mrb[0].mxu0
      %v1803 = vadd.f32 %v1216, %v1802
      %v1804 = vpop.f32.mrb[0].mxu0
      %1805 = vdwg.mxu0
      %1806 = vmax.xlane.f32.xlu0 %v1744
      %v1807 = vpop.xlane.xlu0 %1806
      %1808 = vmax.xlane.f32.xlu0 %v1747
      %v1809 = vpop.xlane.xlu0 %1808
      %1810 = vmax.xlane.f32.xlu0 %v1752
      %v1811 = vpop.xlane.xlu0 %1810
      %1812 = vmax.xlane.f32.xlu0 %v1755
      %v1813 = vpop.xlane.xlu0 %1812
      %1814 = vmax.xlane.f32.xlu0 %v1760
      %v1815 = vpop.xlane.xlu0 %1814
      %1816 = vmax.xlane.f32.xlu0 %v1763
      %v1817 = vpop.xlane.xlu0 %1816
      %1818 = vmax.xlane.f32.xlu0 %v1768
      %v1819 = vpop.xlane.xlu0 %1818
      %1820 = vmax.xlane.f32.xlu0 %v1771
      %v1821 = vpop.xlane.xlu0 %1820
      %1822 = vmax.xlane.f32.xlu0 %v1776
      %v1823 = vpop.xlane.xlu0 %1822
      %1824 = vmax.xlane.f32.xlu0 %v1779
      %v1825 = vpop.xlane.xlu0 %1824
      %1826 = vmax.xlane.f32.xlu0 %v1784
      %v1827 = vpop.xlane.xlu0 %1826
      %1828 = vmax.xlane.f32.xlu0 %v1787
      %v1829 = vpop.xlane.xlu0 %1828
      %1830 = vmax.xlane.f32.xlu0 %v1792
      %v1831 = vpop.xlane.xlu0 %1830
      %1832 = vmax.xlane.f32.xlu0 %v1795
      %v1833 = vpop.xlane.xlu0 %1832
      %1834 = vmax.xlane.f32.xlu0 %v1800
      %v1835 = vpop.xlane.xlu0 %1834
      %1836 = vmax.xlane.f32.xlu0 %v1803
      %v1837 = vpop.xlane.xlu0 %1836
      %v1838 = vsub.f32 %v1744, %v1807
      %v1839 = vsub.f32 %v1747, %v1809
      %v1840 = vsub.f32 %v1752, %v1811
      %v1841 = vsub.f32 %v1755, %v1813
      %v1842 = vsub.f32 %v1760, %v1815
      %v1843 = vsub.f32 %v1763, %v1817
      %v1844 = vsub.f32 %v1768, %v1819
      %v1845 = vsub.f32 %v1771, %v1821
      %v1846 = vsub.f32 %v1776, %v1823
      %v1847 = vsub.f32 %v1779, %v1825
      %v1848 = vsub.f32 %v1784, %v1827
      %v1849 = vsub.f32 %v1787, %v1829
      %v1850 = vsub.f32 %v1792, %v1831
      %v1851 = vsub.f32 %v1795, %v1833
      %v1852 = vsub.f32 %v1800, %v1835
      %v1853 = vsub.f32 %v1803, %v1837
      %v1854 = vmul.f32 %v1838, 1.442695
      %v1855 = vpow.pop %v1854
      %v1856 = vmul.f32 %v1839, 1.442695
      %v1857 = vpow.pop %v1856
      %v1858 = vmul.f32 %v1840, 1.442695
      %v1859 = vpow.pop %v1858
      %v1860 = vmul.f32 %v1841, 1.442695
      %v1861 = vpow.pop %v1860
      %v1862 = vmul.f32 %v1842, 1.442695
      %v1863 = vpow.pop %v1862
      %v1864 = vmul.f32 %v1843, 1.442695
      %v1865 = vpow.pop %v1864
      %v1866 = vmul.f32 %v1844, 1.442695
      %v1867 = vpow.pop %v1866
      %v1868 = vmul.f32 %v1845, 1.442695
      %v1869 = vpow.pop %v1868
      %v1870 = vmul.f32 %v1846, 1.442695
      %v1871 = vpow.pop %v1870
      %v1872 = vmul.f32 %v1847, 1.442695
      %v1873 = vpow.pop %v1872
      %v1874 = vmul.f32 %v1848, 1.442695
      %v1875 = vpow.pop %v1874
      %v1876 = vmul.f32 %v1849, 1.442695
      %v1877 = vpow.pop %v1876
      %v1878 = vmul.f32 %v1850, 1.442695
      %v1879 = vpow.pop %v1878
      %v1880 = vmul.f32 %v1851, 1.442695
      %v1881 = vpow.pop %v1880
      %v1882 = vmul.f32 %v1852, 1.442695
      %v1883 = vpow.pop %v1882
      %v1884 = vmul.f32 %v1853, 1.442695
      %v1885 = vpow.pop %v1884
      %1886 = vadd.xlane.f32.xlu0 %v1855
      %v1887 = vpop.xlane.xlu0 %1886
      %1888 = vadd.xlane.f32.xlu0 %v1857
      %v1889 = vpop.xlane.xlu0 %1888
      %1890 = vadd.xlane.f32.xlu0 %v1859
      %v1891 = vpop.xlane.xlu0 %1890
      %1892 = vadd.xlane.f32.xlu0 %v1861
      %v1893 = vpop.xlane.xlu0 %1892
      %1894 = vadd.xlane.f32.xlu0 %v1863
      %v1895 = vpop.xlane.xlu0 %1894
      %1896 = vadd.xlane.f32.xlu0 %v1865
      %v1897 = vpop.xlane.xlu0 %1896
      %1898 = vadd.xlane.f32.xlu0 %v1867
      %v1899 = vpop.xlane.xlu0 %1898
      %1900 = vadd.xlane.f32.xlu0 %v1869
      %v1901 = vpop.xlane.xlu0 %1900
      %1902 = vadd.xlane.f32.xlu0 %v1871
      %v1903 = vpop.xlane.xlu0 %1902
      %1904 = vadd.xlane.f32.xlu0 %v1873
      %v1905 = vpop.xlane.xlu0 %1904
      %1906 = vadd.xlane.f32.xlu0 %v1875
      %v1907 = vpop.xlane.xlu0 %1906
      %1908 = vadd.xlane.f32.xlu0 %v1877
      %v1909 = vpop.xlane.xlu0 %1908
      %1910 = vadd.xlane.f32.xlu0 %v1879
      %v1911 = vpop.xlane.xlu0 %1910
      %1912 = vadd.xlane.f32.xlu0 %v1881
      %v1913 = vpop.xlane.xlu0 %1912
      %1914 = vadd.xlane.f32.xlu0 %v1883
      %v1915 = vpop.xlane.xlu0 %1914
      %1916 = vadd.xlane.f32.xlu0 %v1885
      %v1917 = vpop.xlane.xlu0 %1916
      %v1918 = vrcp.pop %v1887
      %v1919 = vrcp.pop %v1889
      %v1920 = vrcp.pop %v1891
      %v1921 = vrcp.pop %v1893
      %v1922 = vrcp.pop %v1895
      %v1923 = vrcp.pop %v1897
      %v1924 = vrcp.pop %v1899
      %v1925 = vrcp.pop %v1901
      %v1926 = vrcp.pop %v1903
      %v1927 = vrcp.pop %v1905
      %v1928 = vrcp.pop %v1907
      %v1929 = vrcp.pop %v1909
      %v1930 = vrcp.pop %v1911
      %v1931 = vrcp.pop %v1913
      %v1932 = vrcp.pop %v1915
      %v1933 = vrcp.pop %v1917
      %v1934 = vmul.f32 %v1855, %v1918
      %v1935 = vmul.f32 %v1857, %v1919
      %v1936 = vmul.f32 %v1859, %v1920
      %v1937 = vmul.f32 %v1861, %v1921
      %v1938 = vmul.f32 %v1863, %v1922
      %v1939 = vmul.f32 %v1865, %v1923
      %v1940 = vmul.f32 %v1867, %v1924
      %v1941 = vmul.f32 %v1869, %v1925
      %v1942 = vmul.f32 %v1871, %v1926
      %v1943 = vmul.f32 %v1873, %v1927
      %v1944 = vmul.f32 %v1875, %v1928
      %v1945 = vmul.f32 %v1877, %v1929
      %v1946 = vmul.f32 %v1879, %v1930
      %v1947 = vmul.f32 %v1881, %v1931
      %v1948 = vmul.f32 %v1883, %v1932
      %v1949 = vmul.f32 %v1885, %v1933
      %v1950 = vpack.c.bf16 %v1935, %v1934
      %v1951 = vpack.c.bf16 %v1937, %v1936
      %v1952 = vpack.c.bf16 %v1939, %v1938
      %v1953 = vpack.c.bf16 %v1941, %v1940
      %v1954 = vpack.c.bf16 %v1943, %v1942
      %v1955 = vpack.c.bf16 %v1945, %v1944
      %v1956 = vpack.c.bf16 %v1947, %v1946
      %v1957 = vpack.c.bf16 %v1949, %v1948
      %1966 = vrot.lane.b32.xlu0 %v1204, 96
      %v1967 = vpop.permute.xlu0 %1966
      %1968 = vrot.lane.b32.xlu0 %v1205, 96
      %v1969 = vpop.permute.xlu0 %1968
      %1970 = vrot.lane.b32.xlu0 %v1206, 96
      %v1971 = vpop.permute.xlu0 %1970
      %1972 = vrot.lane.b32.xlu0 %v1207, 96
      %v1973 = vpop.permute.xlu0 %1972
      %1974 = vrot.lane.b32.xlu0 %v1208, 96
      %v1975 = vpop.permute.xlu0 %1974
      %1976 = vrot.lane.b32.xlu0 %v1209, 96
      %v1977 = vpop.permute.xlu0 %1976
      %1978 = vrot.lane.b32.xlu0 %v1210, 96
      %v1979 = vpop.permute.xlu0 %1978
      %1980 = vrot.lane.b32.xlu0 %v1211, 96
      %v1981 = vpop.permute.xlu0 %1980
      %1990 = vmatprep.subr.bf16.mxu0 0
      %1991 = vmatpush1.bf16.msra.mxu0 %v1967
      %1992 = vmatprep.subr.bf16.mxu0 0
      %1993 = vmatpush1.bf16.msra.mxu0 %v1969
      %1994 = vmatprep.subr.bf16.mxu0 0
      %1995 = vmatpush1.bf16.msra.mxu0 %v1971
      %1996 = vmatprep.subr.bf16.mxu0 0
      %1997 = vmatpush1.bf16.msra.mxu0 %v1973
      %1998 = vmatprep.subr.bf16.mxu0 0
      %1999 = vmatpush1.bf16.msra.mxu0 %v1975
      %2000 = vmatprep.subr.bf16.mxu0 0
      %2001 = vmatpush1.bf16.msra.mxu0 %v1977
      %2002 = vmatprep.subr.bf16.mxu0 0
      %2003 = vmatpush1.bf16.msra.mxu0 %v1979
      %2004 = vmatprep.subr.bf16.mxu0 0
      %2005 = vmatpush1.bf16.msra.mxu0 %v1981
      %2006 = vmatprep.subr.bf16.mxu0 0
      %2007 = vmatpush1.bf16.msra.mxu0 0
      %2008 = vmatprep.subr.bf16.mxu0 0
      %2009 = vmatpush1.bf16.msra.mxu0 0
      %2010 = vmatprep.subr.bf16.mxu0 0
      %2011 = vmatpush1.bf16.msra.mxu0 0
      %2012 = vmatprep.subr.bf16.mxu0 0
      %2013 = vmatpush1.bf16.msra.mxu0 0
      %2014 = vmatprep.subr.bf16.mxu0 0
      %2015 = vmatpush1.bf16.msra.mxu0 0
      %2016 = vmatprep.subr.bf16.mxu0 0
      %2017 = vmatpush1.bf16.msra.mxu0 0
      %2018 = vmatprep.subr.bf16.mxu0 0
      %2019 = vmatpush1.bf16.msra.mxu0 0
      %2020 = vmatprep.subr.bf16.mxu0 0
      %2021 = vmatpush1.bf16.msra.mxu0 0
      %2022 = vmatprep.mubr.bf16.mxu0 0
      %2023 = vmatmul.mubr.bf16.gmra.mrb[0].mxu0 %v1950
      %v2024 = vpop.f32.mrb[0].mxu0
      %v2025 = vadd.f32 0.0, %v2024
      %v2026 = vpop.f32.mrb[0].mxu0
      %v2027 = vpop.f32.mrb[0].mxu0
      %v2028 = vadd.f32 0.0, %v2027
      %v2029 = vpop.f32.mrb[0].mxu0
      %2030 = vmatprep.mubr.bf16.mxu0 0
      %2031 = vmatmul.mubr.bf16.gmra.mrb[0].mxu0 %v1951
      %v2032 = vpop.f32.mrb[0].mxu0
      %v2033 = vadd.f32 0.0, %v2032
      %v2034 = vpop.f32.mrb[0].mxu0
      %v2035 = vpop.f32.mrb[0].mxu0
      %v2036 = vadd.f32 0.0, %v2035
      %v2037 = vpop.f32.mrb[0].mxu0
      %2038 = vmatprep.mubr.bf16.mxu0 0
      %2039 = vmatmul.mubr.bf16.gmra.mrb[0].mxu0 %v1952
      %v2040 = vpop.f32.mrb[0].mxu0
      %v2041 = vadd.f32 0.0, %v2040
      %v2042 = vpop.f32.mrb[0].mxu0
      %v2043 = vpop.f32.mrb[0].mxu0
      %v2044 = vadd.f32 0.0, %v2043
      %v2045 = vpop.f32.mrb[0].mxu0
      %2046 = vmatprep.mubr.bf16.mxu0 0
      %2047 = vmatmul.mubr.bf16.gmra.mrb[0].mxu0 %v1953
      %v2048 = vpop.f32.mrb[0].mxu0
      %v2049 = vadd.f32 0.0, %v2048
      %v2050 = vpop.f32.mrb[0].mxu0
      %v2051 = vpop.f32.mrb[0].mxu0
      %v2052 = vadd.f32 0.0, %v2051
      %v2053 = vpop.f32.mrb[0].mxu0
      %2054 = vmatprep.mubr.bf16.mxu0 0
      %2055 = vmatmul.mubr.bf16.gmra.mrb[0].mxu0 %v1954
      %v2056 = vpop.f32.mrb[0].mxu0
      %v2057 = vadd.f32 0.0, %v2056
      %v2058 = vpop.f32.mrb[0].mxu0
      %v2059 = vpop.f32.mrb[0].mxu0
      %v2060 = vadd.f32 0.0, %v2059
      %v2061 = vpop.f32.mrb[0].mxu0
      %2062 = vmatprep.mubr.bf16.mxu0 0
      %2063 = vmatmul.mubr.bf16.gmra.mrb[0].mxu0 %v1955
      %v2064 = vpop.f32.mrb[0].mxu0
      %v2065 = vadd.f32 0.0, %v2064
      %v2066 = vpop.f32.mrb[0].mxu0
      %v2067 = vpop.f32.mrb[0].mxu0
      %v2068 = vadd.f32 0.0, %v2067
      %v2069 = vpop.f32.mrb[0].mxu0
      %2070 = vmatprep.mubr.bf16.mxu0 0
      %2071 = vmatmul.mubr.bf16.gmra.mrb[0].mxu0 %v1956
      %v2072 = vpop.f32.mrb[0].mxu0
      %v2073 = vadd.f32 0.0, %v2072
      %v2074 = vpop.f32.mrb[0].mxu0
      %v2075 = vpop.f32.mrb[0].mxu0
      %v2076 = vadd.f32 0.0, %v2075
      %v2077 = vpop.f32.mrb[0].mxu0
      %2078 = vmatprep.mubr.bf16.mxu0 0
      %2079 = vmatmul.mubr.bf16.gmra.mrb[0].mxu0 %v1957
      %v2080 = vpop.f32.mrb[0].mxu0
      %v2081 = vadd.f32 0.0, %v2080
      %v2082 = vpop.f32.mrb[0].mxu0
      %v2083 = vpop.f32.mrb[0].mxu0
      %v2084 = vadd.f32 0.0, %v2083
      %v2085 = vpop.f32.mrb[0].mxu0
      %2086 = vdwg.mxu0
      %2087 = vrot.lane.b32.xlu0 %v1188, 64
      %v2088 = vpop.permute.xlu0 %2087
      %2089 = vrot.lane.b32.xlu0 %v1189, 64
      %v2090 = vpop.permute.xlu0 %2089
      %2091 = vrot.lane.b32.xlu0 %v1190, 64
      %v2092 = vpop.permute.xlu0 %2091
      %2093 = vrot.lane.b32.xlu0 %v1191, 64
      %v2094 = vpop.permute.xlu0 %2093
      %2095 = vrot.lane.b32.xlu0 %v1192, 64
      %v2096 = vpop.permute.xlu0 %2095
      %2097 = vrot.lane.b32.xlu0 %v1193, 64
      %v2098 = vpop.permute.xlu0 %2097
      %2099 = vrot.lane.b32.xlu0 %v1194, 64
      %v2100 = vpop.permute.xlu0 %2099
      %2101 = vrot.lane.b32.xlu0 %v1195, 64
      %v2102 = vpop.permute.xlu0 %2101
      %2103 = vrot.lane.b32.xlu0 %v1196, 64
      %v2104 = vpop.permute.xlu0 %2103
      %2105 = vrot.lane.b32.xlu0 %v1197, 64
      %v2106 = vpop.permute.xlu0 %2105
      %2107 = vrot.lane.b32.xlu0 %v1198, 64
      %v2108 = vpop.permute.xlu0 %2107
      %2109 = vrot.lane.b32.xlu0 %v1199, 64
      %v2110 = vpop.permute.xlu0 %2109
      %2111 = vrot.lane.b32.xlu0 %v1200, 64
      %v2112 = vpop.permute.xlu0 %2111
      %2113 = vrot.lane.b32.xlu0 %v1201, 64
      %v2114 = vpop.permute.xlu0 %2113
      %2115 = vrot.lane.b32.xlu0 %v1202, 64
      %v2116 = vpop.permute.xlu0 %2115
      %2117 = vrot.lane.b32.xlu0 %v1203, 64
      %v2118 = vpop.permute.xlu0 %2117
      %v2120 = vsel %vm1218, %v2088, 0
      %v2123 = vsel %vm1218, %v2090, 0
      %v2126 = vsel %vm1218, %v2092, 0
      %v2129 = vsel %vm1218, %v2094, 0
      %v2132 = vsel %vm1218, %v2096, 0
      %v2135 = vsel %vm1218, %v2098, 0
      %v2138 = vsel %vm1218, %v2100, 0
      %v2141 = vsel %vm1218, %v2102, 0
      %v2144 = vsel %vm1218, %v2104, 0
      %v2147 = vsel %vm1218, %v2106, 0
      %v2150 = vsel %vm1218, %v2108, 0
      %v2153 = vsel %vm1218, %v2110, 0
      %v2156 = vsel %vm1218, %v2112, 0
      %v2159 = vsel %vm1218, %v2114, 0
      %v2162 = vsel %vm1218, %v2116, 0
      %v2165 = vsel %vm1218, %v2118, 0
      %2167 = vmatprep.subr.bf16.mxu0 0
      %2168 = vmatpush1.bf16.xpose.msra.mxu0 %v2144
      %2169 = vmatprep.subr.bf16.mxu0 0
      %2170 = vmatpush1.bf16.xpose.msra.mxu0 %v2147
      %2171 = vmatprep.subr.bf16.mxu0 0
      %2172 = vmatpush1.bf16.xpose.msra.mxu0 %v2150
      %2173 = vmatprep.subr.bf16.mxu0 0
      %2174 = vmatpush1.bf16.xpose.msra.mxu0 %v2153
      %2175 = vmatprep.subr.bf16.mxu0 0
      %2176 = vmatpush1.bf16.xpose.msra.mxu0 %v2156
      %2177 = vmatprep.subr.bf16.mxu0 0
      %2178 = vmatpush1.bf16.xpose.msra.mxu0 %v2159
      %2179 = vmatprep.subr.bf16.mxu0 0
      %2180 = vmatpush1.bf16.xpose.msra.mxu0 %v2162
      %2181 = vmatprep.subr.bf16.mxu0 0
      %2182 = vmatpush1.bf16.xpose.msra.mxu0 %v2165
      %2183 = vmatprep.subr.bf16.mxu0 0
      %2184 = vmatpush1.bf16.xpose.msra.mxu0 0
      %2185 = vmatprep.subr.bf16.mxu0 0
      %2186 = vmatpush1.bf16.xpose.msra.mxu0 0
      %2187 = vmatprep.subr.bf16.mxu0 0
      %2188 = vmatpush1.bf16.xpose.msra.mxu0 0
      %2189 = vmatprep.subr.bf16.mxu0 0
      %2190 = vmatpush1.bf16.xpose.msra.mxu0 0
      %2191 = vmatprep.subr.bf16.mxu0 0
      %2192 = vmatpush1.bf16.xpose.msra.mxu0 0
      %2193 = vmatprep.subr.bf16.mxu0 0
      %2194 = vmatpush1.bf16.xpose.msra.mxu0 0
      %2195 = vmatprep.subr.bf16.mxu0 0
      %2196 = vmatpush1.bf16.xpose.msra.mxu0 0
      %2197 = vmatprep.subr.bf16.mxu0 0
      %2198 = vmatpush1.bf16.xpose.msra.mxu0 0
      %2199 = vmatprep.mubr.bf16.mxu0 0
      %2200 = vmatmul.mubr.bf16.gmra.mrb[0].mxu0 %v2120
      %v2201 = vpop.f32.mrb[0].mxu0
      %v2202 = vadd.f32 %v1216, %v2201
      %v2203 = vpop.f32.mrb[0].mxu0
      %v2204 = vpop.f32.mrb[0].mxu0
      %v2205 = vadd.f32 %v1216, %v2204
      %v2206 = vpop.f32.mrb[0].mxu0
      %2207 = vmatprep.mubr.bf16.mxu0 0
      %2208 = vmatmul.mubr.bf16.gmra.mrb[0].mxu0 %v2123
      %v2209 = vpop.f32.mrb[0].mxu0
      %v2210 = vadd.f32 %v1216, %v2209
      %v2211 = vpop.f32.mrb[0].mxu0
      %v2212 = vpop.f32.mrb[0].mxu0
      %v2213 = vadd.f32 %v1216, %v2212
      %v2214 = vpop.f32.mrb[0].mxu0
      %2215 = vmatprep.mubr.bf16.mxu0 0
      %2216 = vmatmul.mubr.bf16.gmra.mrb[0].mxu0 %v2126
      %v2217 = vpop.f32.mrb[0].mxu0
      %v2218 = vadd.f32 %v1216, %v2217
      %v2219 = vpop.f32.mrb[0].mxu0
      %v2220 = vpop.f32.mrb[0].mxu0
      %v2221 = vadd.f32 %v1216, %v2220
      %v2222 = vpop.f32.mrb[0].mxu0
      %2223 = vmatprep.mubr.bf16.mxu0 0
      %2224 = vmatmul.mubr.bf16.gmra.mrb[0].mxu0 %v2129
      %v2225 = vpop.f32.mrb[0].mxu0
      %v2226 = vadd.f32 %v1216, %v2225
      %v2227 = vpop.f32.mrb[0].mxu0
      %v2228 = vpop.f32.mrb[0].mxu0
      %v2229 = vadd.f32 %v1216, %v2228
      %v2230 = vpop.f32.mrb[0].mxu0
      %2231 = vmatprep.mubr.bf16.mxu0 0
      %2232 = vmatmul.mubr.bf16.gmra.mrb[0].mxu0 %v2132
      %v2233 = vpop.f32.mrb[0].mxu0
      %v2234 = vadd.f32 %v1216, %v2233
      %v2235 = vpop.f32.mrb[0].mxu0
      %v2236 = vpop.f32.mrb[0].mxu0
      %v2237 = vadd.f32 %v1216, %v2236
      %v2238 = vpop.f32.mrb[0].mxu0
      %2239 = vmatprep.mubr.bf16.mxu0 0
      %2240 = vmatmul.mubr.bf16.gmra.mrb[0].mxu0 %v2135
      %v2241 = vpop.f32.mrb[0].mxu0
      %v2242 = vadd.f32 %v1216, %v2241
      %v2243 = vpop.f32.mrb[0].mxu0
      %v2244 = vpop.f32.mrb[0].mxu0
      %v2245 = vadd.f32 %v1216, %v2244
      %v2246 = vpop.f32.mrb[0].mxu0
      %2247 = vmatprep.mubr.bf16.mxu0 0
      %2248 = vmatmul.mubr.bf16.gmra.mrb[0].mxu0 %v2138
      %v2249 = vpop.f32.mrb[0].mxu0
      %v2250 = vadd.f32 %v1216, %v2249
      %v2251 = vpop.f32.mrb[0].mxu0
      %v2252 = vpop.f32.mrb[0].mxu0
      %v2253 = vadd.f32 %v1216, %v2252
      %v2254 = vpop.f32.mrb[0].mxu0
      %2255 = vmatprep.mubr.bf16.mxu0 0
      %2256 = vmatmul.mubr.bf16.gmra.mrb[0].mxu0 %v2141
      %v2257 = vpop.f32.mrb[0].mxu0
      %v2258 = vadd.f32 %v1216, %v2257
      %v2259 = vpop.f32.mrb[0].mxu0
      %v2260 = vpop.f32.mrb[0].mxu0
      %v2261 = vadd.f32 %v1216, %v2260
      %v2262 = vpop.f32.mrb[0].mxu0
      %2263 = vdwg.mxu0
      %2264 = vmax.xlane.f32.xlu0 %v2202
      %v2265 = vpop.xlane.xlu0 %2264
      %2266 = vmax.xlane.f32.xlu0 %v2205
      %v2267 = vpop.xlane.xlu0 %2266
      %2268 = vmax.xlane.f32.xlu0 %v2210
      %v2269 = vpop.xlane.xlu0 %2268
      %2270 = vmax.xlane.f32.xlu0 %v2213
      %v2271 = vpop.xlane.xlu0 %2270
      %2272 = vmax.xlane.f32.xlu0 %v2218
      %v2273 = vpop.xlane.xlu0 %2272
      %2274 = vmax.xlane.f32.xlu0 %v2221
      %v2275 = vpop.xlane.xlu0 %2274
      %2276 = vmax.xlane.f32.xlu0 %v2226
      %v2277 = vpop.xlane.xlu0 %2276
      %2278 = vmax.xlane.f32.xlu0 %v2229
      %v2279 = vpop.xlane.xlu0 %2278
      %2280 = vmax.xlane.f32.xlu0 %v2234
      %v2281 = vpop.xlane.xlu0 %2280
      %2282 = vmax.xlane.f32.xlu0 %v2237
      %v2283 = vpop.xlane.xlu0 %2282
      %2284 = vmax.xlane.f32.xlu0 %v2242
      %v2285 = vpop.xlane.xlu0 %2284
      %2286 = vmax.xlane.f32.xlu0 %v2245
      %v2287 = vpop.xlane.xlu0 %2286
      %2288 = vmax.xlane.f32.xlu0 %v2250
      %v2289 = vpop.xlane.xlu0 %2288
      %2290 = vmax.xlane.f32.xlu0 %v2253
      %v2291 = vpop.xlane.xlu0 %2290
      %2292 = vmax.xlane.f32.xlu0 %v2258
      %v2293 = vpop.xlane.xlu0 %2292
      %2294 = vmax.xlane.f32.xlu0 %v2261
      %v2295 = vpop.xlane.xlu0 %2294
      %v2296 = vsub.f32 %v2202, %v2265
      %v2297 = vsub.f32 %v2205, %v2267
      %v2298 = vsub.f32 %v2210, %v2269
      %v2299 = vsub.f32 %v2213, %v2271
      %v2300 = vsub.f32 %v2218, %v2273
      %v2301 = vsub.f32 %v2221, %v2275
      %v2302 = vsub.f32 %v2226, %v2277
      %v2303 = vsub.f32 %v2229, %v2279
      %v2304 = vsub.f32 %v2234, %v2281
      %v2305 = vsub.f32 %v2237, %v2283
      %v2306 = vsub.f32 %v2242, %v2285
      %v2307 = vsub.f32 %v2245, %v2287
      %v2308 = vsub.f32 %v2250, %v2289
      %v2309 = vsub.f32 %v2253, %v2291
      %v2310 = vsub.f32 %v2258, %v2293
      %v2311 = vsub.f32 %v2261, %v2295
      %v2312 = vmul.f32 %v2296, 1.442695
      %v2313 = vpow.pop %v2312
      %v2314 = vmul.f32 %v2297, 1.442695
      %v2315 = vpow.pop %v2314
      %v2316 = vmul.f32 %v2298, 1.442695
      %v2317 = vpow.pop %v2316
      %v2318 = vmul.f32 %v2299, 1.442695
      %v2319 = vpow.pop %v2318
      %v2320 = vmul.f32 %v2300, 1.442695
      %v2321 = vpow.pop %v2320
      %v2322 = vmul.f32 %v2301, 1.442695
      %v2323 = vpow.pop %v2322
      %v2324 = vmul.f32 %v2302, 1.442695
      %v2325 = vpow.pop %v2324
      %v2326 = vmul.f32 %v2303, 1.442695
      %v2327 = vpow.pop %v2326
      %v2328 = vmul.f32 %v2304, 1.442695
      %v2329 = vpow.pop %v2328
      %v2330 = vmul.f32 %v2305, 1.442695
      %v2331 = vpow.pop %v2330
      %v2332 = vmul.f32 %v2306, 1.442695
      %v2333 = vpow.pop %v2332
      %v2334 = vmul.f32 %v2307, 1.442695
      %v2335 = vpow.pop %v2334
      %v2336 = vmul.f32 %v2308, 1.442695
      %v2337 = vpow.pop %v2336
      %v2338 = vmul.f32 %v2309, 1.442695
      %v2339 = vpow.pop %v2338
      %v2340 = vmul.f32 %v2310, 1.442695
      %v2341 = vpow.pop %v2340
      %v2342 = vmul.f32 %v2311, 1.442695
      %v2343 = vpow.pop %v2342
      %2344 = vadd.xlane.f32.xlu0 %v2313
      %v2345 = vpop.xlane.xlu0 %2344
      %2346 = vadd.xlane.f32.xlu0 %v2315
      %v2347 = vpop.xlane.xlu0 %2346
      %2348 = vadd.xlane.f32.xlu0 %v2317
      %v2349 = vpop.xlane.xlu0 %2348
      %2350 = vadd.xlane.f32.xlu0 %v2319
      %v2351 = vpop.xlane.xlu0 %2350
      %2352 = vadd.xlane.f32.xlu0 %v2321
      %v2353 = vpop.xlane.xlu0 %2352
      %2354 = vadd.xlane.f32.xlu0 %v2323
      %v2355 = vpop.xlane.xlu0 %2354
      %2356 = vadd.xlane.f32.xlu0 %v2325
      %v2357 = vpop.xlane.xlu0 %2356
      %2358 = vadd.xlane.f32.xlu0 %v2327
      %v2359 = vpop.xlane.xlu0 %2358
      %2360 = vadd.xlane.f32.xlu0 %v2329
      %v2361 = vpop.xlane.xlu0 %2360
      %2362 = vadd.xlane.f32.xlu0 %v2331
      %v2363 = vpop.xlane.xlu0 %2362
      %2364 = vadd.xlane.f32.xlu0 %v2333
      %v2365 = vpop.xlane.xlu0 %2364
      %2366 = vadd.xlane.f32.xlu0 %v2335
      %v2367 = vpop.xlane.xlu0 %2366
      %2368 = vadd.xlane.f32.xlu0 %v2337
      %v2369 = vpop.xlane.xlu0 %2368
      %2370 = vadd.xlane.f32.xlu0 %v2339
      %v2371 = vpop.xlane.xlu0 %2370
      %2372 = vadd.xlane.f32.xlu0 %v2341
      %v2373 = vpop.xlane.xlu0 %2372
      %2374 = vadd.xlane.f32.xlu0 %v2343
      %v2375 = vpop.xlane.xlu0 %2374
      %v2376 = vrcp.pop %v2345
      %v2377 = vrcp.pop %v2347
      %v2378 = vrcp.pop %v2349
      %v2379 = vrcp.pop %v2351
      %v2380 = vrcp.pop %v2353
      %v2381 = vrcp.pop %v2355
      %v2382 = vrcp.pop %v2357
      %v2383 = vrcp.pop %v2359
      %v2384 = vrcp.pop %v2361
      %v2385 = vrcp.pop %v2363
      %v2386 = vrcp.pop %v2365
      %v2387 = vrcp.pop %v2367
      %v2388 = vrcp.pop %v2369
      %v2389 = vrcp.pop %v2371
      %v2390 = vrcp.pop %v2373
      %v2391 = vrcp.pop %v2375
      %v2392 = vmul.f32 %v2313, %v2376
      %v2393 = vmul.f32 %v2315, %v2377
      %v2394 = vmul.f32 %v2317, %v2378
      %v2395 = vmul.f32 %v2319, %v2379
      %v2396 = vmul.f32 %v2321, %v2380
      %v2397 = vmul.f32 %v2323, %v2381
      %v2398 = vmul.f32 %v2325, %v2382
      %v2399 = vmul.f32 %v2327, %v2383
      %v2400 = vmul.f32 %v2329, %v2384
      %v2401 = vmul.f32 %v2331, %v2385
      %v2402 = vmul.f32 %v2333, %v2386
      %v2403 = vmul.f32 %v2335, %v2387
      %v2404 = vmul.f32 %v2337, %v2388
      %v2405 = vmul.f32 %v2339, %v2389
      %v2406 = vmul.f32 %v2341, %v2390
      %v2407 = vmul.f32 %v2343, %v2391
      %v2408 = vpack.c.bf16 %v2393, %v2392
      %v2409 = vpack.c.bf16 %v2395, %v2394
      %v2410 = vpack.c.bf16 %v2397, %v2396
      %v2411 = vpack.c.bf16 %v2399, %v2398
      %v2412 = vpack.c.bf16 %v2401, %v2400
      %v2413 = vpack.c.bf16 %v2403, %v2402
      %v2414 = vpack.c.bf16 %v2405, %v2404
      %v2415 = vpack.c.bf16 %v2407, %v2406
      %2416 = vrot.lane.b32.xlu0 %v1204, 64
      %v2417 = vpop.permute.xlu0 %2416
      %2418 = vrot.lane.b32.xlu0 %v1205, 64
      %v2419 = vpop.permute.xlu0 %2418
      %2420 = vrot.lane.b32.xlu0 %v1206, 64
      %v2421 = vpop.permute.xlu0 %2420
      %2422 = vrot.lane.b32.xlu0 %v1207, 64
      %v2423 = vpop.permute.xlu0 %2422
      %2424 = vrot.lane.b32.xlu0 %v1208, 64
      %v2425 = vpop.permute.xlu0 %2424
      %2426 = vrot.lane.b32.xlu0 %v1209, 64
      %v2427 = vpop.permute.xlu0 %2426
      %2428 = vrot.lane.b32.xlu0 %v1210, 64
      %v2429 = vpop.permute.xlu0 %2428
      %2430 = vrot.lane.b32.xlu0 %v1211, 64
      %v2431 = vpop.permute.xlu0 %2430
      %2440 = vmatprep.subr.bf16.mxu0 0
      %2441 = vmatpush1.bf16.msra.mxu0 %v2417
      %2442 = vmatprep.subr.bf16.mxu0 0
      %2443 = vmatpush1.bf16.msra.mxu0 %v2419
      %2444 = vmatprep.subr.bf16.mxu0 0
      %2445 = vmatpush1.bf16.msra.mxu0 %v2421
      %2446 = vmatprep.subr.bf16.mxu0 0
      %2447 = vmatpush1.bf16.msra.mxu0 %v2423
      %2448 = vmatprep.subr.bf16.mxu0 0
      %2449 = vmatpush1.bf16.msra.mxu0 %v2425
      %2450 = vmatprep.subr.bf16.mxu0 0
      %2451 = vmatpush1.bf16.msra.mxu0 %v2427
      %2452 = vmatprep.subr.bf16.mxu0 0
      %2453 = vmatpush1.bf16.msra.mxu0 %v2429
      %2454 = vmatprep.subr.bf16.mxu0 0
      %2455 = vmatpush1.bf16.msra.mxu0 %v2431
      %2456 = vmatprep.subr.bf16.mxu0 0
      %2457 = vmatpush1.bf16.msra.mxu0 0
      %2458 = vmatprep.subr.bf16.mxu0 0
      %2459 = vmatpush1.bf16.msra.mxu0 0
      %2460 = vmatprep.subr.bf16.mxu0 0
      %2461 = vmatpush1.bf16.msra.mxu0 0
      %2462 = vmatprep.subr.bf16.mxu0 0
      %2463 = vmatpush1.bf16.msra.mxu0 0
      %2464 = vmatprep.subr.bf16.mxu0 0
      %2465 = vmatpush1.bf16.msra.mxu0 0
      %2466 = vmatprep.subr.bf16.mxu0 0
      %2467 = vmatpush1.bf16.msra.mxu0 0
      %2468 = vmatprep.subr.bf16.mxu0 0
      %2469 = vmatpush1.bf16.msra.mxu0 0
      %2470 = vmatprep.subr.bf16.mxu0 0
      %2471 = vmatpush1.bf16.msra.mxu0 0
      %2472 = vmatprep.mubr.bf16.mxu0 0
      %2473 = vmatmul.mubr.bf16.gmra.mrb[0].mxu0 %v2408
      %v2474 = vpop.f32.mrb[0].mxu0
      %v2475 = vadd.f32 0.0, %v2474
      %v2476 = vpop.f32.mrb[0].mxu0
      %v2477 = vpop.f32.mrb[0].mxu0
      %v2478 = vadd.f32 0.0, %v2477
      %v2479 = vpop.f32.mrb[0].mxu0
      %2480 = vmatprep.mubr.bf16.mxu0 0
      %2481 = vmatmul.mubr.bf16.gmra.mrb[0].mxu0 %v2409
      %v2482 = vpop.f32.mrb[0].mxu0
      %v2483 = vadd.f32 0.0, %v2482
      %v2484 = vpop.f32.mrb[0].mxu0
      %v2485 = vpop.f32.mrb[0].mxu0
      %v2486 = vadd.f32 0.0, %v2485
      %v2487 = vpop.f32.mrb[0].mxu0
      %2488 = vmatprep.mubr.bf16.mxu0 0
      %2489 = vmatmul.mubr.bf16.gmra.mrb[0].mxu0 %v2410
      %v2490 = vpop.f32.mrb[0].mxu0
      %v2491 = vadd.f32 0.0, %v2490
      %v2492 = vpop.f32.mrb[0].mxu0
      %v2493 = vpop.f32.mrb[0].mxu0
      %v2494 = vadd.f32 0.0, %v2493
      %v2495 = vpop.f32.mrb[0].mxu0
      %2496 = vmatprep.mubr.bf16.mxu0 0
      %2497 = vmatmul.mubr.bf16.gmra.mrb[0].mxu0 %v2411
      %v2498 = vpop.f32.mrb[0].mxu0
      %v2499 = vadd.f32 0.0, %v2498
      %v2500 = vpop.f32.mrb[0].mxu0
      %v2501 = vpop.f32.mrb[0].mxu0
      %v2502 = vadd.f32 0.0, %v2501
      %v2503 = vpop.f32.mrb[0].mxu0
      %2504 = vmatprep.mubr.bf16.mxu0 0
      %2505 = vmatmul.mubr.bf16.gmra.mrb[0].mxu0 %v2412
      %v2506 = vpop.f32.mrb[0].mxu0
      %v2507 = vadd.f32 0.0, %v2506
      %v2508 = vpop.f32.mrb[0].mxu0
      %v2509 = vpop.f32.mrb[0].mxu0
      %v2510 = vadd.f32 0.0, %v2509
      %v2511 = vpop.f32.mrb[0].mxu0
      %2512 = vmatprep.mubr.bf16.mxu0 0
      %2513 = vmatmul.mubr.bf16.gmra.mrb[0].mxu0 %v2413
      %v2514 = vpop.f32.mrb[0].mxu0
      %v2515 = vadd.f32 0.0, %v2514
      %v2516 = vpop.f32.mrb[0].mxu0
      %v2517 = vpop.f32.mrb[0].mxu0
      %v2518 = vadd.f32 0.0, %v2517
      %v2519 = vpop.f32.mrb[0].mxu0
      %2520 = vmatprep.mubr.bf16.mxu0 0
      %2521 = vmatmul.mubr.bf16.gmra.mrb[0].mxu0 %v2414
      %v2522 = vpop.f32.mrb[0].mxu0
      %v2523 = vadd.f32 0.0, %v2522
      %v2524 = vpop.f32.mrb[0].mxu0
      %v2525 = vpop.f32.mrb[0].mxu0
      %v2526 = vadd.f32 0.0, %v2525
      %v2527 = vpop.f32.mrb[0].mxu0
      %2528 = vmatprep.mubr.bf16.mxu0 0
      %2529 = vmatmul.mubr.bf16.gmra.mrb[0].mxu0 %v2415
      %v2530 = vpop.f32.mrb[0].mxu0
      %v2531 = vadd.f32 0.0, %v2530
      %v2532 = vpop.f32.mrb[0].mxu0
      %v2533 = vpop.f32.mrb[0].mxu0
      %v2534 = vadd.f32 0.0, %v2533
      %v2535 = vpop.f32.mrb[0].mxu0
      %2536 = vdwg.mxu0
      %2537 = vrot.lane.b32.xlu0 %v1188, 32
      %v2538 = vpop.permute.xlu0 %2537
      %2539 = vrot.lane.b32.xlu0 %v1189, 32
      %v2540 = vpop.permute.xlu0 %2539
      %2541 = vrot.lane.b32.xlu0 %v1190, 32
      %v2542 = vpop.permute.xlu0 %2541
      %2543 = vrot.lane.b32.xlu0 %v1191, 32
      %v2544 = vpop.permute.xlu0 %2543
      %2545 = vrot.lane.b32.xlu0 %v1192, 32
      %v2546 = vpop.permute.xlu0 %2545
      %2547 = vrot.lane.b32.xlu0 %v1193, 32
      %v2548 = vpop.permute.xlu0 %2547
      %2549 = vrot.lane.b32.xlu0 %v1194, 32
      %v2550 = vpop.permute.xlu0 %2549
      %2551 = vrot.lane.b32.xlu0 %v1195, 32
      %v2552 = vpop.permute.xlu0 %2551
      %2553 = vrot.lane.b32.xlu0 %v1196, 32
      %v2554 = vpop.permute.xlu0 %2553
      %2555 = vrot.lane.b32.xlu0 %v1197, 32
      %v2556 = vpop.permute.xlu0 %2555
      %2557 = vrot.lane.b32.xlu0 %v1198, 32
      %v2558 = vpop.permute.xlu0 %2557
      %2559 = vrot.lane.b32.xlu0 %v1199, 32
      %v2560 = vpop.permute.xlu0 %2559
      %2561 = vrot.lane.b32.xlu0 %v1200, 32
      %v2562 = vpop.permute.xlu0 %2561
      %2563 = vrot.lane.b32.xlu0 %v1201, 32
      %v2564 = vpop.permute.xlu0 %2563
      %2565 = vrot.lane.b32.xlu0 %v1202, 32
      %v2566 = vpop.permute.xlu0 %2565
      %2567 = vrot.lane.b32.xlu0 %v1203, 32
      %v2568 = vpop.permute.xlu0 %2567
      %v2570 = vsel %vm1218, %v2538, 0
      %v2573 = vsel %vm1218, %v2540, 0
      %v2576 = vsel %vm1218, %v2542, 0
      %v2579 = vsel %vm1218, %v2544, 0
      %v2582 = vsel %vm1218, %v2546, 0
      %v2585 = vsel %vm1218, %v2548, 0
      %v2588 = vsel %vm1218, %v2550, 0
      %v2591 = vsel %vm1218, %v2552, 0
      %v2594 = vsel %vm1218, %v2554, 0
      %v2597 = vsel %vm1218, %v2556, 0
      %v2600 = vsel %vm1218, %v2558, 0
      %v2603 = vsel %vm1218, %v2560, 0
      %v2606 = vsel %vm1218, %v2562, 0
      %v2609 = vsel %vm1218, %v2564, 0
      %v2612 = vsel %vm1218, %v2566, 0
      %v2615 = vsel %vm1218, %v2568, 0
      %2617 = vmatprep.subr.bf16.mxu0 0
      %2618 = vmatpush1.bf16.xpose.msra.mxu0 %v2594
      %2619 = vmatprep.subr.bf16.mxu0 0
      %2620 = vmatpush1.bf16.xpose.msra.mxu0 %v2597
      %2621 = vmatprep.subr.bf16.mxu0 0
      %2622 = vmatpush1.bf16.xpose.msra.mxu0 %v2600
      %2623 = vmatprep.subr.bf16.mxu0 0
      %2624 = vmatpush1.bf16.xpose.msra.mxu0 %v2603
      %2625 = vmatprep.subr.bf16.mxu0 0
      %2626 = vmatpush1.bf16.xpose.msra.mxu0 %v2606
      %2627 = vmatprep.subr.bf16.mxu0 0
      %2628 = vmatpush1.bf16.xpose.msra.mxu0 %v2609
      %2629 = vmatprep.subr.bf16.mxu0 0
      %2630 = vmatpush1.bf16.xpose.msra.mxu0 %v2612
      %2631 = vmatprep.subr.bf16.mxu0 0
      %2632 = vmatpush1.bf16.xpose.msra.mxu0 %v2615
      %2633 = vmatprep.subr.bf16.mxu0 0
      %2634 = vmatpush1.bf16.xpose.msra.mxu0 0
      %2635 = vmatprep.subr.bf16.mxu0 0
      %2636 = vmatpush1.bf16.xpose.msra.mxu0 0
      %2637 = vmatprep.subr.bf16.mxu0 0
      %2638 = vmatpush1.bf16.xpose.msra.mxu0 0
      %2639 = vmatprep.subr.bf16.mxu0 0
      %2640 = vmatpush1.bf16.xpose.msra.mxu0 0
      %2641 = vmatprep.subr.bf16.mxu0 0
      %2642 = vmatpush1.bf16.xpose.msra.mxu0 0
      %2643 = vmatprep.subr.bf16.mxu0 0
      %2644 = vmatpush1.bf16.xpose.msra.mxu0 0
      %2645 = vmatprep.subr.bf16.mxu0 0
      %2646 = vmatpush1.bf16.xpose.msra.mxu0 0
      %2647 = vmatprep.subr.bf16.mxu0 0
      %2648 = vmatpush1.bf16.xpose.msra.mxu0 0
      %2649 = vmatprep.mubr.bf16.mxu0 0
      %2650 = vmatmul.mubr.bf16.gmra.mrb[0].mxu0 %v2570
      %v2651 = vpop.f32.mrb[0].mxu0
      %v2652 = vadd.f32 %v1216, %v2651
      %v2653 = vpop.f32.mrb[0].mxu0
      %v2654 = vpop.f32.mrb[0].mxu0
      %v2655 = vadd.f32 %v1216, %v2654
      %v2656 = vpop.f32.mrb[0].mxu0
      %2657 = vmatprep.mubr.bf16.mxu0 0
      %2658 = vmatmul.mubr.bf16.gmra.mrb[0].mxu0 %v2573
      %v2659 = vpop.f32.mrb[0].mxu0
      %v2660 = vadd.f32 %v1216, %v2659
      %v2661 = vpop.f32.mrb[0].mxu0
      %v2662 = vpop.f32.mrb[0].mxu0
      %v2663 = vadd.f32 %v1216, %v2662
      %v2664 = vpop.f32.mrb[0].mxu0
      %2665 = vmatprep.mubr.bf16.mxu0 0
      %2666 = vmatmul.mubr.bf16.gmra.mrb[0].mxu0 %v2576
      %v2667 = vpop.f32.mrb[0].mxu0
      %v2668 = vadd.f32 %v1216, %v2667
      %v2669 = vpop.f32.mrb[0].mxu0
      %v2670 = vpop.f32.mrb[0].mxu0
      %v2671 = vadd.f32 %v1216, %v2670
      %v2672 = vpop.f32.mrb[0].mxu0
      %2673 = vmatprep.mubr.bf16.mxu0 0
      %2674 = vmatmul.mubr.bf16.gmra.mrb[0].mxu0 %v2579
      %v2675 = vpop.f32.mrb[0].mxu0
      %v2676 = vadd.f32 %v1216, %v2675
      %v2677 = vpop.f32.mrb[0].mxu0
      %v2678 = vpop.f32.mrb[0].mxu0
      %v2679 = vadd.f32 %v1216, %v2678
      %v2680 = vpop.f32.mrb[0].mxu0
      %2681 = vmatprep.mubr.bf16.mxu0 0
      %2682 = vmatmul.mubr.bf16.gmra.mrb[0].mxu0 %v2582
      %v2683 = vpop.f32.mrb[0].mxu0
      %v2684 = vadd.f32 %v1216, %v2683
      %v2685 = vpop.f32.mrb[0].mxu0
      %v2686 = vpop.f32.mrb[0].mxu0
      %v2687 = vadd.f32 %v1216, %v2686
      %v2688 = vpop.f32.mrb[0].mxu0
      %2689 = vmatprep.mubr.bf16.mxu0 0
      %2690 = vmatmul.mubr.bf16.gmra.mrb[0].mxu0 %v2585
      %v2691 = vpop.f32.mrb[0].mxu0
      %v2692 = vadd.f32 %v1216, %v2691
      %v2693 = vpop.f32.mrb[0].mxu0
      %v2694 = vpop.f32.mrb[0].mxu0
      %v2695 = vadd.f32 %v1216, %v2694
      %v2696 = vpop.f32.mrb[0].mxu0
      %2697 = vmatprep.mubr.bf16.mxu0 0
      %2698 = vmatmul.mubr.bf16.gmra.mrb[0].mxu0 %v2588
      %v2699 = vpop.f32.mrb[0].mxu0
      %v2700 = vadd.f32 %v1216, %v2699
      %v2701 = vpop.f32.mrb[0].mxu0
      %v2702 = vpop.f32.mrb[0].mxu0
      %v2703 = vadd.f32 %v1216, %v2702
      %v2704 = vpop.f32.mrb[0].mxu0
      %2705 = vmatprep.mubr.bf16.mxu0 0
      %2706 = vmatmul.mubr.bf16.gmra.mrb[0].mxu0 %v2591
      %v2707 = vpop.f32.mrb[0].mxu0
      %v2708 = vadd.f32 %v1216, %v2707
      %v2709 = vpop.f32.mrb[0].mxu0
      %v2710 = vpop.f32.mrb[0].mxu0
      %v2711 = vadd.f32 %v1216, %v2710
      %v2712 = vpop.f32.mrb[0].mxu0
      %2713 = vdwg.mxu0
      %2714 = vmax.xlane.f32.xlu0 %v2652
      %v2715 = vpop.xlane.xlu0 %2714
      %2716 = vmax.xlane.f32.xlu0 %v2655
      %v2717 = vpop.xlane.xlu0 %2716
      %2718 = vmax.xlane.f32.xlu0 %v2660
      %v2719 = vpop.xlane.xlu0 %2718
      %2720 = vmax.xlane.f32.xlu0 %v2663
      %v2721 = vpop.xlane.xlu0 %2720
      %2722 = vmax.xlane.f32.xlu0 %v2668
      %v2723 = vpop.xlane.xlu0 %2722
      %2724 = vmax.xlane.f32.xlu0 %v2671
      %v2725 = vpop.xlane.xlu0 %2724
      %2726 = vmax.xlane.f32.xlu0 %v2676
      %v2727 = vpop.xlane.xlu0 %2726
      %2728 = vmax.xlane.f32.xlu0 %v2679
      %v2729 = vpop.xlane.xlu0 %2728
      %2730 = vmax.xlane.f32.xlu0 %v2684
      %v2731 = vpop.xlane.xlu0 %2730
      %2732 = vmax.xlane.f32.xlu0 %v2687
      %v2733 = vpop.xlane.xlu0 %2732
      %2734 = vmax.xlane.f32.xlu0 %v2692
      %v2735 = vpop.xlane.xlu0 %2734
      %2736 = vmax.xlane.f32.xlu0 %v2695
      %v2737 = vpop.xlane.xlu0 %2736
      %2738 = vmax.xlane.f32.xlu0 %v2700
      %v2739 = vpop.xlane.xlu0 %2738
      %2740 = vmax.xlane.f32.xlu0 %v2703
      %v2741 = vpop.xlane.xlu0 %2740
      %2742 = vmax.xlane.f32.xlu0 %v2708
      %v2743 = vpop.xlane.xlu0 %2742
      %2744 = vmax.xlane.f32.xlu0 %v2711
      %v2745 = vpop.xlane.xlu0 %2744
      %v2746 = vsub.f32 %v2652, %v2715
      %v2747 = vsub.f32 %v2655, %v2717
      %v2748 = vsub.f32 %v2660, %v2719
      %v2749 = vsub.f32 %v2663, %v2721
      %v2750 = vsub.f32 %v2668, %v2723
      %v2751 = vsub.f32 %v2671, %v2725
      %v2752 = vsub.f32 %v2676, %v2727
      %v2753 = vsub.f32 %v2679, %v2729
      %v2754 = vsub.f32 %v2684, %v2731
      %v2755 = vsub.f32 %v2687, %v2733
      %v2756 = vsub.f32 %v2692, %v2735
      %v2757 = vsub.f32 %v2695, %v2737
      %v2758 = vsub.f32 %v2700, %v2739
      %v2759 = vsub.f32 %v2703, %v2741
      %v2760 = vsub.f32 %v2708, %v2743
      %v2761 = vsub.f32 %v2711, %v2745
      %v2762 = vmul.f32 %v2746, 1.442695
      %v2763 = vpow.pop %v2762
      %v2764 = vmul.f32 %v2747, 1.442695
      %v2765 = vpow.pop %v2764
      %v2766 = vmul.f32 %v2748, 1.442695
      %v2767 = vpow.pop %v2766
      %v2768 = vmul.f32 %v2749, 1.442695
      %v2769 = vpow.pop %v2768
      %v2770 = vmul.f32 %v2750, 1.442695
      %v2771 = vpow.pop %v2770
      %v2772 = vmul.f32 %v2751, 1.442695
      %v2773 = vpow.pop %v2772
      %v2774 = vmul.f32 %v2752, 1.442695
      %v2775 = vpow.pop %v2774
      %v2776 = vmul.f32 %v2753, 1.442695
      %v2777 = vpow.pop %v2776
      %v2778 = vmul.f32 %v2754, 1.442695
      %v2779 = vpow.pop %v2778
      %v2780 = vmul.f32 %v2755, 1.442695
      %v2781 = vpow.pop %v2780
      %v2782 = vmul.f32 %v2756, 1.442695
      %v2783 = vpow.pop %v2782
      %v2784 = vmul.f32 %v2757, 1.442695
      %v2785 = vpow.pop %v2784
      %v2786 = vmul.f32 %v2758, 1.442695
      %v2787 = vpow.pop %v2786
      %v2788 = vmul.f32 %v2759, 1.442695
      %v2789 = vpow.pop %v2788
      %v2790 = vmul.f32 %v2760, 1.442695
      %v2791 = vpow.pop %v2790
      %v2792 = vmul.f32 %v2761, 1.442695
      %v2793 = vpow.pop %v2792
      %2794 = vadd.xlane.f32.xlu0 %v2763
      %v2795 = vpop.xlane.xlu0 %2794
      %2796 = vadd.xlane.f32.xlu0 %v2765
      %v2797 = vpop.xlane.xlu0 %2796
      %2798 = vadd.xlane.f32.xlu0 %v2767
      %v2799 = vpop.xlane.xlu0 %2798
      %2800 = vadd.xlane.f32.xlu0 %v2769
      %v2801 = vpop.xlane.xlu0 %2800
      %2802 = vadd.xlane.f32.xlu0 %v2771
      %v2803 = vpop.xlane.xlu0 %2802
      %2804 = vadd.xlane.f32.xlu0 %v2773
      %v2805 = vpop.xlane.xlu0 %2804
      %2806 = vadd.xlane.f32.xlu0 %v2775
      %v2807 = vpop.xlane.xlu0 %2806
      %2808 = vadd.xlane.f32.xlu0 %v2777
      %v2809 = vpop.xlane.xlu0 %2808
      %2810 = vadd.xlane.f32.xlu0 %v2779
      %v2811 = vpop.xlane.xlu0 %2810
      %2812 = vadd.xlane.f32.xlu0 %v2781
      %v2813 = vpop.xlane.xlu0 %2812
      %2814 = vadd.xlane.f32.xlu0 %v2783
      %v2815 = vpop.xlane.xlu0 %2814
      %2816 = vadd.xlane.f32.xlu0 %v2785
      %v2817 = vpop.xlane.xlu0 %2816
      %2818 = vadd.xlane.f32.xlu0 %v2787
      %v2819 = vpop.xlane.xlu0 %2818
      %2820 = vadd.xlane.f32.xlu0 %v2789
      %v2821 = vpop.xlane.xlu0 %2820
      %2822 = vadd.xlane.f32.xlu0 %v2791
      %v2823 = vpop.xlane.xlu0 %2822
      %2824 = vadd.xlane.f32.xlu0 %v2793
      %v2825 = vpop.xlane.xlu0 %2824
      %v2826 = vrcp.pop %v2795
      %v2827 = vrcp.pop %v2797
      %v2828 = vrcp.pop %v2799
      %v2829 = vrcp.pop %v2801
      %v2830 = vrcp.pop %v2803
      %v2831 = vrcp.pop %v2805
      %v2832 = vrcp.pop %v2807
      %v2833 = vrcp.pop %v2809
      %v2834 = vrcp.pop %v2811
      %v2835 = vrcp.pop %v2813
      %v2836 = vrcp.pop %v2815
      %v2837 = vrcp.pop %v2817
      %v2838 = vrcp.pop %v2819
      %v2839 = vrcp.pop %v2821
      %v2840 = vrcp.pop %v2823
      %v2841 = vrcp.pop %v2825
      %v2842 = vmul.f32 %v2763, %v2826
      %v2843 = vmul.f32 %v2765, %v2827
      %v2844 = vmul.f32 %v2767, %v2828
      %v2845 = vmul.f32 %v2769, %v2829
      %v2846 = vmul.f32 %v2771, %v2830
      %v2847 = vmul.f32 %v2773, %v2831
      %v2848 = vmul.f32 %v2775, %v2832
      %v2849 = vmul.f32 %v2777, %v2833
      %v2850 = vmul.f32 %v2779, %v2834
      %v2851 = vmul.f32 %v2781, %v2835
      %v2852 = vmul.f32 %v2783, %v2836
      %v2853 = vmul.f32 %v2785, %v2837
      %v2854 = vmul.f32 %v2787, %v2838
      %v2855 = vmul.f32 %v2789, %v2839
      %v2856 = vmul.f32 %v2791, %v2840
      %v2857 = vmul.f32 %v2793, %v2841
      %v2858 = vpack.c.bf16 %v2843, %v2842
      %v2859 = vpack.c.bf16 %v2845, %v2844
      %v2860 = vpack.c.bf16 %v2847, %v2846
      %v2861 = vpack.c.bf16 %v2849, %v2848
      %v2862 = vpack.c.bf16 %v2851, %v2850
      %v2863 = vpack.c.bf16 %v2853, %v2852
      %v2864 = vpack.c.bf16 %v2855, %v2854
      %v2865 = vpack.c.bf16 %v2857, %v2856
      %2866 = vrot.lane.b32.xlu0 %v1204, 32
      %v2867 = vpop.permute.xlu0 %2866
      %2868 = vrot.lane.b32.xlu0 %v1205, 32
      %v2869 = vpop.permute.xlu0 %2868
      %2870 = vrot.lane.b32.xlu0 %v1206, 32
      %v2871 = vpop.permute.xlu0 %2870
      %2872 = vrot.lane.b32.xlu0 %v1207, 32
      %v2873 = vpop.permute.xlu0 %2872
      %2874 = vrot.lane.b32.xlu0 %v1208, 32
      %v2875 = vpop.permute.xlu0 %2874
      %2876 = vrot.lane.b32.xlu0 %v1209, 32
      %v2877 = vpop.permute.xlu0 %2876
      %2878 = vrot.lane.b32.xlu0 %v1210, 32
      %v2879 = vpop.permute.xlu0 %2878
      %2880 = vrot.lane.b32.xlu0 %v1211, 32
      %v2881 = vpop.permute.xlu0 %2880
      %2890 = vmatprep.subr.bf16.mxu0 0
      %2891 = vmatpush1.bf16.msra.mxu0 %v2867
      %2892 = vmatprep.subr.bf16.mxu0 0
      %2893 = vmatpush1.bf16.msra.mxu0 %v2869
      %2894 = vmatprep.subr.bf16.mxu0 0
      %2895 = vmatpush1.bf16.msra.mxu0 %v2871
      %2896 = vmatprep.subr.bf16.mxu0 0
      %2897 = vmatpush1.bf16.msra.mxu0 %v2873
      %2898 = vmatprep.subr.bf16.mxu0 0
      %2899 = vmatpush1.bf16.msra.mxu0 %v2875
      %2900 = vmatprep.subr.bf16.mxu0 0
      %2901 = vmatpush1.bf16.msra.mxu0 %v2877
      %2902 = vmatprep.subr.bf16.mxu0 0
      %2903 = vmatpush1.bf16.msra.mxu0 %v2879
      %2904 = vmatprep.subr.bf16.mxu0 0
      %2905 = vmatpush1.bf16.msra.mxu0 %v2881
      %2906 = vmatprep.subr.bf16.mxu0 0
      %2907 = vmatpush1.bf16.msra.mxu0 0
      %2908 = vmatprep.subr.bf16.mxu0 0
      %2909 = vmatpush1.bf16.msra.mxu0 0
      %2910 = vmatprep.subr.bf16.mxu0 0
      %2911 = vmatpush1.bf16.msra.mxu0 0
      %2912 = vmatprep.subr.bf16.mxu0 0
      %2913 = vmatpush1.bf16.msra.mxu0 0
      %2914 = vmatprep.subr.bf16.mxu0 0
      %2915 = vmatpush1.bf16.msra.mxu0 0
      %2916 = vmatprep.subr.bf16.mxu0 0
      %2917 = vmatpush1.bf16.msra.mxu0 0
      %2918 = vmatprep.subr.bf16.mxu0 0
      %2919 = vmatpush1.bf16.msra.mxu0 0
      %2920 = vmatprep.subr.bf16.mxu0 0
      %2921 = vmatpush1.bf16.msra.mxu0 0
      %2922 = vmatprep.mubr.bf16.mxu0 0
      %2923 = vmatmul.mubr.bf16.gmra.mrb[0].mxu0 %v2858
      %v2924 = vpop.f32.mrb[0].mxu0
      %v2925 = vadd.f32 0.0, %v2924
      %v2926 = vpop.f32.mrb[0].mxu0
      %v2927 = vpop.f32.mrb[0].mxu0
      %v2928 = vadd.f32 0.0, %v2927
      %v2929 = vpop.f32.mrb[0].mxu0
      %2930 = vmatprep.mubr.bf16.mxu0 0
      %2931 = vmatmul.mubr.bf16.gmra.mrb[0].mxu0 %v2859
      %v2932 = vpop.f32.mrb[0].mxu0
      %v2933 = vadd.f32 0.0, %v2932
      %v2934 = vpop.f32.mrb[0].mxu0
      %v2935 = vpop.f32.mrb[0].mxu0
      %v2936 = vadd.f32 0.0, %v2935
      %v2937 = vpop.f32.mrb[0].mxu0
      %2938 = vmatprep.mubr.bf16.mxu0 0
      %2939 = vmatmul.mubr.bf16.gmra.mrb[0].mxu0 %v2860
      %v2940 = vpop.f32.mrb[0].mxu0
      %v2941 = vadd.f32 0.0, %v2940
      %v2942 = vpop.f32.mrb[0].mxu0
      %v2943 = vpop.f32.mrb[0].mxu0
      %v2944 = vadd.f32 0.0, %v2943
      %v2945 = vpop.f32.mrb[0].mxu0
      %2946 = vmatprep.mubr.bf16.mxu0 0
      %2947 = vmatmul.mubr.bf16.gmra.mrb[0].mxu0 %v2861
      %v2948 = vpop.f32.mrb[0].mxu0
      %v2949 = vadd.f32 0.0, %v2948
      %v2950 = vpop.f32.mrb[0].mxu0
      %v2951 = vpop.f32.mrb[0].mxu0
      %v2952 = vadd.f32 0.0, %v2951
      %v2953 = vpop.f32.mrb[0].mxu0
      %2954 = vmatprep.mubr.bf16.mxu0 0
      %2955 = vmatmul.mubr.bf16.gmra.mrb[0].mxu0 %v2862
      %v2956 = vpop.f32.mrb[0].mxu0
      %v2957 = vadd.f32 0.0, %v2956
      %v2958 = vpop.f32.mrb[0].mxu0
      %v2959 = vpop.f32.mrb[0].mxu0
      %v2960 = vadd.f32 0.0, %v2959
      %v2961 = vpop.f32.mrb[0].mxu0
      %2962 = vmatprep.mubr.bf16.mxu0 0
      %2963 = vmatmul.mubr.bf16.gmra.mrb[0].mxu0 %v2863
      %v2964 = vpop.f32.mrb[0].mxu0
      %v2965 = vadd.f32 0.0, %v2964
      %v2966 = vpop.f32.mrb[0].mxu0
      %v2967 = vpop.f32.mrb[0].mxu0
      %v2968 = vadd.f32 0.0, %v2967
      %v2969 = vpop.f32.mrb[0].mxu0
      %2970 = vmatprep.mubr.bf16.mxu0 0
      %2971 = vmatmul.mubr.bf16.gmra.mrb[0].mxu0 %v2864
      %v2972 = vpop.f32.mrb[0].mxu0
      %v2973 = vadd.f32 0.0, %v2972
      %v2974 = vpop.f32.mrb[0].mxu0
      %v2975 = vpop.f32.mrb[0].mxu0
      %v2976 = vadd.f32 0.0, %v2975
      %v2977 = vpop.f32.mrb[0].mxu0
      %2978 = vmatprep.mubr.bf16.mxu0 0
      %2979 = vmatmul.mubr.bf16.gmra.mrb[0].mxu0 %v2865
      %v2980 = vpop.f32.mrb[0].mxu0
      %v2981 = vadd.f32 0.0, %v2980
      %v2982 = vpop.f32.mrb[0].mxu0
      %v2983 = vpop.f32.mrb[0].mxu0
      %v2984 = vadd.f32 0.0, %v2983
      %v2985 = vpop.f32.mrb[0].mxu0
      %2986 = vdwg.mxu0
      %3003 = vrot.lane.b32.xlu0 %v2025, 32
      %v3004 = vpop.permute.xlu0 %3003
      %3005 = vrot.lane.b32.xlu0 %v2028, 32
      %v3006 = vpop.permute.xlu0 %3005
      %3007 = vrot.lane.b32.xlu0 %v2033, 32
      %v3008 = vpop.permute.xlu0 %3007
      %3009 = vrot.lane.b32.xlu0 %v2036, 32
      %v3010 = vpop.permute.xlu0 %3009
      %3011 = vrot.lane.b32.xlu0 %v2041, 32
      %v3012 = vpop.permute.xlu0 %3011
      %3013 = vrot.lane.b32.xlu0 %v2044, 32
      %v3014 = vpop.permute.xlu0 %3013
      %3015 = vrot.lane.b32.xlu0 %v2049, 32
      %v3016 = vpop.permute.xlu0 %3015
      %3017 = vrot.lane.b32.xlu0 %v2052, 32
      %v3018 = vpop.permute.xlu0 %3017
      %3019 = vrot.lane.b32.xlu0 %v2057, 32
      %v3020 = vpop.permute.xlu0 %3019
      %3021 = vrot.lane.b32.xlu0 %v2060, 32
      %v3022 = vpop.permute.xlu0 %3021
      %3023 = vrot.lane.b32.xlu0 %v2065, 32
      %v3024 = vpop.permute.xlu0 %3023
      %3025 = vrot.lane.b32.xlu0 %v2068, 32
      %v3026 = vpop.permute.xlu0 %3025
      %3027 = vrot.lane.b32.xlu0 %v2073, 32
      %v3028 = vpop.permute.xlu0 %3027
      %3029 = vrot.lane.b32.xlu0 %v2076, 32
      %v3030 = vpop.permute.xlu0 %3029
      %3031 = vrot.lane.b32.xlu0 %v2081, 32
      %v3032 = vpop.permute.xlu0 %3031
      %3033 = vrot.lane.b32.xlu0 %v2084, 32
      %v3034 = vpop.permute.xlu0 %3033
      %3067 = vrot.lane.b32.xlu0 %v2475, 64
      %v3068 = vpop.permute.xlu0 %3067
      %3069 = vrot.lane.b32.xlu0 %v2478, 64
      %v3070 = vpop.permute.xlu0 %3069
      %3071 = vrot.lane.b32.xlu0 %v2483, 64
      %v3072 = vpop.permute.xlu0 %3071
      %3073 = vrot.lane.b32.xlu0 %v2486, 64
      %v3074 = vpop.permute.xlu0 %3073
      %3075 = vrot.lane.b32.xlu0 %v2491, 64
      %v3076 = vpop.permute.xlu0 %3075
      %3077 = vrot.lane.b32.xlu0 %v2494, 64
      %v3078 = vpop.permute.xlu0 %3077
      %3079 = vrot.lane.b32.xlu0 %v2499, 64
      %v3080 = vpop.permute.xlu0 %3079
      %3081 = vrot.lane.b32.xlu0 %v2502, 64
      %v3082 = vpop.permute.xlu0 %3081
      %3083 = vrot.lane.b32.xlu0 %v2507, 64
      %v3084 = vpop.permute.xlu0 %3083
      %3085 = vrot.lane.b32.xlu0 %v2510, 64
      %v3086 = vpop.permute.xlu0 %3085
      %3087 = vrot.lane.b32.xlu0 %v2515, 64
      %v3088 = vpop.permute.xlu0 %3087
      %3089 = vrot.lane.b32.xlu0 %v2518, 64
      %v3090 = vpop.permute.xlu0 %3089
      %3091 = vrot.lane.b32.xlu0 %v2523, 64
      %v3092 = vpop.permute.xlu0 %3091
      %3093 = vrot.lane.b32.xlu0 %v2526, 64
      %v3094 = vpop.permute.xlu0 %3093
      %3095 = vrot.lane.b32.xlu0 %v2531, 64
      %v3096 = vpop.permute.xlu0 %3095
      %3097 = vrot.lane.b32.xlu0 %v2534, 64
      %v3098 = vpop.permute.xlu0 %3097
      %3131 = vrot.lane.b32.xlu0 %v2925, 96
      %v3132 = vpop.permute.xlu0 %3131
      %3133 = vrot.lane.b32.xlu0 %v2928, 96
      %v3134 = vpop.permute.xlu0 %3133
      %3135 = vrot.lane.b32.xlu0 %v2933, 96
      %v3136 = vpop.permute.xlu0 %3135
      %3137 = vrot.lane.b32.xlu0 %v2936, 96
      %v3138 = vpop.permute.xlu0 %3137
      %3139 = vrot.lane.b32.xlu0 %v2941, 96
      %v3140 = vpop.permute.xlu0 %3139
      %3141 = vrot.lane.b32.xlu0 %v2944, 96
      %v3142 = vpop.permute.xlu0 %3141
      %3143 = vrot.lane.b32.xlu0 %v2949, 96
      %v3144 = vpop.permute.xlu0 %3143
      %3145 = vrot.lane.b32.xlu0 %v2952, 96
      %v3146 = vpop.permute.xlu0 %3145
      %3147 = vrot.lane.b32.xlu0 %v2957, 96
      %v3148 = vpop.permute.xlu0 %3147
      %3149 = vrot.lane.b32.xlu0 %v2960, 96
      %v3150 = vpop.permute.xlu0 %3149
      %3151 = vrot.lane.b32.xlu0 %v2965, 96
      %v3152 = vpop.permute.xlu0 %3151
      %3153 = vrot.lane.b32.xlu0 %v2968, 96
      %v3154 = vpop.permute.xlu0 %3153
      %3155 = vrot.lane.b32.xlu0 %v2973, 96
      %v3156 = vpop.permute.xlu0 %3155
      %3157 = vrot.lane.b32.xlu0 %v2976, 96
      %v3158 = vpop.permute.xlu0 %3157
      %3159 = vrot.lane.b32.xlu0 %v2981, 96
      %v3160 = vpop.permute.xlu0 %3159
      %3161 = vrot.lane.b32.xlu0 %v2984, 96
      %v3162 = vpop.permute.xlu0 %3161
      %v3179 = vsel %vm1218, %v1551, %v3004
      %v3180 = vsel %vm1218, %v1554, %v3006
      %v3181 = vsel %vm1218, %v1559, %v3008
      %v3182 = vsel %vm1218, %v1562, %v3010
      %v3183 = vsel %vm1218, %v1567, %v3012
      %v3184 = vsel %vm1218, %v1570, %v3014
      %v3185 = vsel %vm1218, %v1575, %v3016
      %v3186 = vsel %vm1218, %v1578, %v3018
      %v3187 = vsel %vm1218, %v1583, %v3020
      %v3188 = vsel %vm1218, %v1586, %v3022
      %v3189 = vsel %vm1218, %v1591, %v3024
      %v3190 = vsel %vm1218, %v1594, %v3026
      %v3191 = vsel %vm1218, %v1599, %v3028
      %v3192 = vsel %vm1218, %v1602, %v3030
      %v3193 = vsel %vm1218, %v1607, %v3032
      %v3194 = vsel %vm1218, %v1610, %v3034
      %vm3195 = vcmask 523264
      %v3196 = vsel %vm3195, %v3179, %v3068
      %v3197 = vsel %vm3195, %v3180, %v3070
      %v3198 = vsel %vm3195, %v3181, %v3072
      %v3199 = vsel %vm3195, %v3182, %v3074
      %v3200 = vsel %vm3195, %v3183, %v3076
      %v3201 = vsel %vm3195, %v3184, %v3078
      %v3202 = vsel %vm3195, %v3185, %v3080
      %v3203 = vsel %vm3195, %v3186, %v3082
      %v3204 = vsel %vm3195, %v3187, %v3084
      %v3205 = vsel %vm3195, %v3188, %v3086
      %v3206 = vsel %vm3195, %v3189, %v3088
      %v3207 = vsel %vm3195, %v3190, %v3090
      %v3208 = vsel %vm3195, %v3191, %v3092
      %v3209 = vsel %vm3195, %v3192, %v3094
      %v3210 = vsel %vm3195, %v3193, %v3096
      %v3211 = vsel %vm3195, %v3194, %v3098
      %vm3212 = vcmask 785408
      %v3213 = vsel %vm3212, %v3196, %v3132
      %v3214 = vsel %vm3212, %v3197, %v3134
      %v3215 = vsel %vm3212, %v3198, %v3136
      %v3216 = vsel %vm3212, %v3199, %v3138
      %v3217 = vsel %vm3212, %v3200, %v3140
      %v3218 = vsel %vm3212, %v3201, %v3142
      %v3219 = vsel %vm3212, %v3202, %v3144
      %v3220 = vsel %vm3212, %v3203, %v3146
      %v3221 = vsel %vm3212, %v3204, %v3148
      %v3222 = vsel %vm3212, %v3205, %v3150
      %v3223 = vsel %vm3212, %v3206, %v3152
      %v3224 = vsel %vm3212, %v3207, %v3154
      %v3225 = vsel %vm3212, %v3208, %v3156
      %v3226 = vsel %vm3212, %v3209, %v3158
      %v3227 = vsel %vm3212, %v3210, %v3160
      %v3228 = vsel %vm3212, %v3211, %v3162
      %v3229 = vpack.c.bf16 %v3214, %v3213
      %v3230 = vpack.c.bf16 %v3216, %v3215
      %v3231 = vpack.c.bf16 %v3218, %v3217
      %v3232 = vpack.c.bf16 %v3220, %v3219
      %v3233 = vpack.c.bf16 %v3222, %v3221
      %v3234 = vpack.c.bf16 %v3224, %v3223
      %v3235 = vpack.c.bf16 %v3226, %v3225
      %v3236 = vpack.c.bf16 %v3228, %v3227
      %v3237 = vld [vmem:[%s6] sm:$0xf]
      %v3238 = vld [vmem:[%s6 + $0x4] sm:$0xf]
      %v3239 = vld [vmem:[%s6 + $0x8] sm:$0xf]
      %v3240 = vld [vmem:[%s6 + $0xc] sm:$0xf]
      %v3241 = vld [vmem:[%s6 + $0x10] sm:$0xf]
      %v3242 = vld [vmem:[%s6 + $0x14] sm:$0xf]
      %v3243 = vld [vmem:[%s6 + $0x18] sm:$0xf]
      %v3244 = vld [vmem:[%s6 + $0x1c] sm:$0xf]
      %v3245 = vld [vmem:[%s6 + $0x20] sm:$0xf]
      %v3246 = vld [vmem:[%s6 + $0x24] sm:$0xf]
      %v3247 = vld [vmem:[%s6 + $0x28] sm:$0xf]
      %v3248 = vld [vmem:[%s6 + $0x2c] sm:$0xf]
      %v3249 = vld [vmem:[%s6 + $0x30] sm:$0xf]
      %v3250 = vld [vmem:[%s6 + $0x34] sm:$0xf]
      %v3251 = vld [vmem:[%s6 + $0x38] sm:$0xf]
      %v3252 = vld [vmem:[%s6 + $0x3c] sm:$0xf]
      %v3253 = vld [vmem:[%s7] sm:$0x1]
      %v3255 = vlaneseq
      %v3256 = vshrl.u32 %v3255, 7
      %v3257 = vsub.s32 0, %v3256
      %v3258 = vrot.slane %v3253, %v3257
      %v3276 = vunpack.c.l.b16 %v3237
      %v3277 = vunpack.c.l.b16 %v3238
      %v3278 = vunpack.c.l.b16 %v3239
      %v3279 = vunpack.c.l.b16 %v3240
      %v3280 = vunpack.c.l.b16 %v3241
      %v3281 = vunpack.c.l.b16 %v3242
      %v3282 = vunpack.c.l.b16 %v3243
      %v3283 = vunpack.c.l.b16 %v3244
      %v3284 = vunpack.c.l.b16 %v3245
      %v3285 = vunpack.c.l.b16 %v3246
      %v3286 = vunpack.c.l.b16 %v3247
      %v3287 = vunpack.c.l.b16 %v3248
      %v3288 = vunpack.c.l.b16 %v3249
      %v3289 = vunpack.c.l.b16 %v3250
      %v3290 = vunpack.c.l.b16 %v3251
      %v3291 = vunpack.c.l.b16 %v3252
      %v3292 = vpack.c.b16 %v3277, %v3276
      %v3293 = vpack.c.b16 %v3279, %v3278
      %v3294 = vpack.c.b16 %v3281, %v3280
      %v3295 = vpack.c.b16 %v3283, %v3282
      %v3296 = vpack.c.b16 %v3285, %v3284
      %v3297 = vpack.c.b16 %v3287, %v3286
      %v3298 = vpack.c.b16 %v3289, %v3288
      %v3299 = vpack.c.b16 %v3291, %v3290
      %3308 = vmatprep.subr.bf16.mxu0 0
      %3309 = vmatpush1.bf16.msra.mxu0 %v3292
      %3310 = vmatprep.subr.bf16.mxu0 0
      %3311 = vmatpush1.bf16.msra.mxu0 %v3293
      %3312 = vmatprep.subr.bf16.mxu0 0
      %3313 = vmatpush1.bf16.msra.mxu0 %v3294
      %3314 = vmatprep.subr.bf16.mxu0 0
      %3315 = vmatpush1.bf16.msra.mxu0 %v3295
      %3316 = vmatprep.subr.bf16.mxu0 0
      %3317 = vmatpush1.bf16.msra.mxu0 %v3296
      %3318 = vmatprep.subr.bf16.mxu0 0
      %3319 = vmatpush1.bf16.msra.mxu0 %v3297
      %3320 = vmatprep.subr.bf16.mxu0 0
      %3321 = vmatpush1.bf16.msra.mxu0 %v3298
      %3322 = vmatprep.subr.bf16.mxu0 0
      %3323 = vmatpush1.bf16.msra.mxu0 %v3299
      %3324 = vmatprep.subr.bf16.mxu0 0
      %3325 = vmatpush1.bf16.msra.mxu0 0
      %3326 = vmatprep.subr.bf16.mxu0 0
      %3327 = vmatpush1.bf16.msra.mxu0 0
      %3328 = vmatprep.subr.bf16.mxu0 0
      %3329 = vmatpush1.bf16.msra.mxu0 0
      %3330 = vmatprep.subr.bf16.mxu0 0
      %3331 = vmatpush1.bf16.msra.mxu0 0
      %3332 = vmatprep.subr.bf16.mxu0 0
      %3333 = vmatpush1.bf16.msra.mxu0 0
      %3334 = vmatprep.subr.bf16.mxu0 0
      %3335 = vmatpush1.bf16.msra.mxu0 0
      %3336 = vmatprep.subr.bf16.mxu0 0
      %3337 = vmatpush1.bf16.msra.mxu0 0
      %3338 = vmatprep.subr.bf16.mxu0 0
      %3339 = vmatpush1.bf16.msra.mxu0 0
      %3340 = vmatprep.mubr.bf16.mxu0 0
      %3341 = vmatmul.mubr.bf16.gmra.mrb[0].mxu0 %v3229
      %v3342 = vpop.f32.mrb[0].mxu0
      %v3343 = vadd.f32 %v3258, %v3342
      %v3344 = vpop.f32.mrb[0].mxu0
      %v3345 = vpop.f32.mrb[0].mxu0
      %v3346 = vadd.f32 %v3258, %v3345
      %v3347 = vpop.f32.mrb[0].mxu0
      %3348 = vmatprep.mubr.bf16.mxu0 0
      %3349 = vmatmul.mubr.bf16.gmra.mrb[0].mxu0 %v3230
      %v3350 = vpop.f32.mrb[0].mxu0
      %v3351 = vadd.f32 %v3258, %v3350
      %v3352 = vpop.f32.mrb[0].mxu0
      %v3353 = vpop.f32.mrb[0].mxu0
      %v3354 = vadd.f32 %v3258, %v3353
      %v3355 = vpop.f32.mrb[0].mxu0
      %3356 = vmatprep.mubr.bf16.mxu0 0
      %3357 = vmatmul.mubr.bf16.gmra.mrb[0].mxu0 %v3231
      %v3358 = vpop.f32.mrb[0].mxu0
      %v3359 = vadd.f32 %v3258, %v3358
      %v3360 = vpop.f32.mrb[0].mxu0
      %v3361 = vpop.f32.mrb[0].mxu0
      %v3362 = vadd.f32 %v3258, %v3361
      %v3363 = vpop.f32.mrb[0].mxu0
      %3364 = vmatprep.mubr.bf16.mxu0 0
      %3365 = vmatmul.mubr.bf16.gmra.mrb[0].mxu0 %v3232
      %v3366 = vpop.f32.mrb[0].mxu0
      %v3367 = vadd.f32 %v3258, %v3366
      %v3368 = vpop.f32.mrb[0].mxu0
      %v3369 = vpop.f32.mrb[0].mxu0
      %v3370 = vadd.f32 %v3258, %v3369
      %v3371 = vpop.f32.mrb[0].mxu0
      %3372 = vmatprep.mubr.bf16.mxu0 0
      %3373 = vmatmul.mubr.bf16.gmra.mrb[0].mxu0 %v3233
      %v3374 = vpop.f32.mrb[0].mxu0
      %v3375 = vadd.f32 %v3258, %v3374
      %v3376 = vpop.f32.mrb[0].mxu0
      %v3377 = vpop.f32.mrb[0].mxu0
      %v3378 = vadd.f32 %v3258, %v3377
      %v3379 = vpop.f32.mrb[0].mxu0
      %3380 = vmatprep.mubr.bf16.mxu0 0
      %3381 = vmatmul.mubr.bf16.gmra.mrb[0].mxu0 %v3234
      %v3382 = vpop.f32.mrb[0].mxu0
      %v3383 = vadd.f32 %v3258, %v3382
      %v3384 = vpop.f32.mrb[0].mxu0
      %v3385 = vpop.f32.mrb[0].mxu0
      %v3386 = vadd.f32 %v3258, %v3385
      %v3387 = vpop.f32.mrb[0].mxu0
      %3388 = vmatprep.mubr.bf16.mxu0 0
      %3389 = vmatmul.mubr.bf16.gmra.mrb[0].mxu0 %v3235
      %v3390 = vpop.f32.mrb[0].mxu0
      %v3391 = vadd.f32 %v3258, %v3390
      %v3392 = vpop.f32.mrb[0].mxu0
      %v3393 = vpop.f32.mrb[0].mxu0
      %v3394 = vadd.f32 %v3258, %v3393
      %v3395 = vpop.f32.mrb[0].mxu0
      %3396 = vmatprep.mubr.bf16.mxu0 0
      %3397 = vmatmul.mubr.bf16.gmra.mrb[0].mxu0 %v3236
      %v3398 = vpop.f32.mrb[0].mxu0
      %v3399 = vadd.f32 %v3258, %v3398
      %v3400 = vpop.f32.mrb[0].mxu0
      %v3401 = vpop.f32.mrb[0].mxu0
      %v3402 = vadd.f32 %v3258, %v3401
      %v3403 = vpop.f32.mrb[0].mxu0
      %3404 = vdwg.mxu0
      %v3405 = vadd.f32 %v537, %v3343
      %v3406 = vadd.f32 %v538, %v3346
      %v3407 = vadd.f32 %v539, %v3351
      %v3408 = vadd.f32 %v540, %v3354
      %v3409 = vadd.f32 %v541, %v3359
      %v3410 = vadd.f32 %v542, %v3362
      %v3411 = vadd.f32 %v543, %v3367
      %v3412 = vadd.f32 %v544, %v3370
      %v3413 = vadd.f32 %v545, %v3375
      %v3414 = vadd.f32 %v546, %v3378
      %v3415 = vadd.f32 %v547, %v3383
      %v3416 = vadd.f32 %v548, %v3386
      %v3417 = vadd.f32 %v549, %v3391
      %v3418 = vadd.f32 %v550, %v3394
      %v3419 = vadd.f32 %v551, %v3399
      %v3420 = vadd.f32 %v552, %v3402
      %3421 = vadd.xlane.f32.xlu0 %v3405
      %v3422 = vpop.xlane.xlu0 %3421
      %3423 = vadd.xlane.f32.xlu0 %v3406
      %v3424 = vpop.xlane.xlu0 %3423
      %3425 = vadd.xlane.f32.xlu0 %v3407
      %v3426 = vpop.xlane.xlu0 %3425
      %3427 = vadd.xlane.f32.xlu0 %v3408
      %v3428 = vpop.xlane.xlu0 %3427
      %3429 = vadd.xlane.f32.xlu0 %v3409
      %v3430 = vpop.xlane.xlu0 %3429
      %3431 = vadd.xlane.f32.xlu0 %v3410
      %v3432 = vpop.xlane.xlu0 %3431
      %3433 = vadd.xlane.f32.xlu0 %v3411
      %v3434 = vpop.xlane.xlu0 %3433
      %3435 = vadd.xlane.f32.xlu0 %v3412
      %v3436 = vpop.xlane.xlu0 %3435
      %3437 = vadd.xlane.f32.xlu0 %v3413
      %v3438 = vpop.xlane.xlu0 %3437
      %3439 = vadd.xlane.f32.xlu0 %v3414
      %v3440 = vpop.xlane.xlu0 %3439
      %3441 = vadd.xlane.f32.xlu0 %v3415
      %v3442 = vpop.xlane.xlu0 %3441
      %3443 = vadd.xlane.f32.xlu0 %v3416
      %v3444 = vpop.xlane.xlu0 %3443
      %3445 = vadd.xlane.f32.xlu0 %v3417
      %v3446 = vpop.xlane.xlu0 %3445
      %3447 = vadd.xlane.f32.xlu0 %v3418
      %v3448 = vpop.xlane.xlu0 %3447
      %3449 = vadd.xlane.f32.xlu0 %v3419
      %v3450 = vpop.xlane.xlu0 %3449
      %3451 = vadd.xlane.f32.xlu0 %v3420
      %v3452 = vpop.xlane.xlu0 %3451
      %v3453 = vmul.f32 %v3422, %v587
      %v3454 = vmul.f32 %v3424, %v587
      %v3455 = vmul.f32 %v3426, %v587
      %v3456 = vmul.f32 %v3428, %v587
      %v3457 = vmul.f32 %v3430, %v587
      %v3458 = vmul.f32 %v3432, %v587
      %v3459 = vmul.f32 %v3434, %v587
      %v3460 = vmul.f32 %v3436, %v587
      %v3461 = vmul.f32 %v3438, %v587
      %v3462 = vmul.f32 %v3440, %v587
      %v3463 = vmul.f32 %v3442, %v587
      %v3464 = vmul.f32 %v3444, %v587
      %v3465 = vmul.f32 %v3446, %v587
      %v3466 = vmul.f32 %v3448, %v587
      %v3467 = vmul.f32 %v3450, %v587
      %v3468 = vmul.f32 %v3452, %v587
      %v3469 = vsub.f32 %v3405, %v3453
      %v3470 = vsub.f32 %v3406, %v3454
      %v3471 = vsub.f32 %v3407, %v3455
      %v3472 = vsub.f32 %v3408, %v3456
      %v3473 = vsub.f32 %v3409, %v3457
      %v3474 = vsub.f32 %v3410, %v3458
      %v3475 = vsub.f32 %v3411, %v3459
      %v3476 = vsub.f32 %v3412, %v3460
      %v3477 = vsub.f32 %v3413, %v3461
      %v3478 = vsub.f32 %v3414, %v3462
      %v3479 = vsub.f32 %v3415, %v3463
      %v3480 = vsub.f32 %v3416, %v3464
      %v3481 = vsub.f32 %v3417, %v3465
      %v3482 = vsub.f32 %v3418, %v3466
      %v3483 = vsub.f32 %v3419, %v3467
      %v3484 = vsub.f32 %v3420, %v3468
      %v3485 = vmul.f32 %v3469, %v3469
      %v3486 = vmul.f32 %v3470, %v3470
      %v3487 = vmul.f32 %v3471, %v3471
      %v3488 = vmul.f32 %v3472, %v3472
      %v3489 = vmul.f32 %v3473, %v3473
      %v3490 = vmul.f32 %v3474, %v3474
      %v3491 = vmul.f32 %v3475, %v3475
      %v3492 = vmul.f32 %v3476, %v3476
      %v3493 = vmul.f32 %v3477, %v3477
      %v3494 = vmul.f32 %v3478, %v3478
      %v3495 = vmul.f32 %v3479, %v3479
      %v3496 = vmul.f32 %v3480, %v3480
      %v3497 = vmul.f32 %v3481, %v3481
      %v3498 = vmul.f32 %v3482, %v3482
      %v3499 = vmul.f32 %v3483, %v3483
      %v3500 = vmul.f32 %v3484, %v3484
      %3501 = vadd.xlane.f32.xlu0 %v3485
      %v3502 = vpop.xlane.xlu0 %3501
      %3503 = vadd.xlane.f32.xlu0 %v3486
      %v3504 = vpop.xlane.xlu0 %3503
      %3505 = vadd.xlane.f32.xlu0 %v3487
      %v3506 = vpop.xlane.xlu0 %3505
      %3507 = vadd.xlane.f32.xlu0 %v3488
      %v3508 = vpop.xlane.xlu0 %3507
      %3509 = vadd.xlane.f32.xlu0 %v3489
      %v3510 = vpop.xlane.xlu0 %3509
      %3511 = vadd.xlane.f32.xlu0 %v3490
      %v3512 = vpop.xlane.xlu0 %3511
      %3513 = vadd.xlane.f32.xlu0 %v3491
      %v3514 = vpop.xlane.xlu0 %3513
      %3515 = vadd.xlane.f32.xlu0 %v3492
      %v3516 = vpop.xlane.xlu0 %3515
      %3517 = vadd.xlane.f32.xlu0 %v3493
      %v3518 = vpop.xlane.xlu0 %3517
      %3519 = vadd.xlane.f32.xlu0 %v3494
      %v3520 = vpop.xlane.xlu0 %3519
      %3521 = vadd.xlane.f32.xlu0 %v3495
      %v3522 = vpop.xlane.xlu0 %3521
      %3523 = vadd.xlane.f32.xlu0 %v3496
      %v3524 = vpop.xlane.xlu0 %3523
      %3525 = vadd.xlane.f32.xlu0 %v3497
      %v3526 = vpop.xlane.xlu0 %3525
      %3527 = vadd.xlane.f32.xlu0 %v3498
      %v3528 = vpop.xlane.xlu0 %3527
      %3529 = vadd.xlane.f32.xlu0 %v3499
      %v3530 = vpop.xlane.xlu0 %3529
      %3531 = vadd.xlane.f32.xlu0 %v3500
      %v3532 = vpop.xlane.xlu0 %3531
      %v3533 = vmul.f32 %v3502, %v587
      %v3534 = vmul.f32 %v3504, %v587
      %v3535 = vmul.f32 %v3506, %v587
      %v3536 = vmul.f32 %v3508, %v587
      %v3537 = vmul.f32 %v3510, %v587
      %v3538 = vmul.f32 %v3512, %v587
      %v3539 = vmul.f32 %v3514, %v587
      %v3540 = vmul.f32 %v3516, %v587
      %v3541 = vmul.f32 %v3518, %v587
      %v3542 = vmul.f32 %v3520, %v587
      %v3543 = vmul.f32 %v3522, %v587
      %v3544 = vmul.f32 %v3524, %v587
      %v3545 = vmul.f32 %v3526, %v587
      %v3546 = vmul.f32 %v3528, %v587
      %v3547 = vmul.f32 %v3530, %v587
      %v3548 = vmul.f32 %v3532, %v587
      %v3549 = vadd.f32 %v3533, 1e-06
      %v3550 = vadd.f32 %v3534, 1e-06
      %v3551 = vadd.f32 %v3535, 1e-06
      %v3552 = vadd.f32 %v3536, 1e-06
      %v3553 = vadd.f32 %v3537, 1e-06
      %v3554 = vadd.f32 %v3538, 1e-06
      %v3555 = vadd.f32 %v3539, 1e-06
      %v3556 = vadd.f32 %v3540, 1e-06
      %v3557 = vadd.f32 %v3541, 1e-06
      %v3558 = vadd.f32 %v3542, 1e-06
      %v3559 = vadd.f32 %v3543, 1e-06
      %v3560 = vadd.f32 %v3544, 1e-06
      %v3561 = vadd.f32 %v3545, 1e-06
      %v3562 = vadd.f32 %v3546, 1e-06
      %v3563 = vadd.f32 %v3547, 1e-06
      %v3564 = vadd.f32 %v3548, 1e-06
      %v3565 = vrsqrt.pop %v3549
      %v3566 = vrsqrt.pop %v3550
      %v3567 = vrsqrt.pop %v3551
      %v3568 = vrsqrt.pop %v3552
      %v3569 = vrsqrt.pop %v3553
      %v3570 = vrsqrt.pop %v3554
      %v3571 = vrsqrt.pop %v3555
      %v3572 = vrsqrt.pop %v3556
      %v3573 = vrsqrt.pop %v3557
      %v3574 = vrsqrt.pop %v3558
      %v3575 = vrsqrt.pop %v3559
      %v3576 = vrsqrt.pop %v3560
      %v3577 = vrsqrt.pop %v3561
      %v3578 = vrsqrt.pop %v3562
      %v3579 = vrsqrt.pop %v3563
      %v3580 = vrsqrt.pop %v3564
      %v3581 = vmul.f32 %v3469, %v3565
      %v3582 = vmul.f32 %v3470, %v3566
      %v3583 = vmul.f32 %v3471, %v3567
      %v3584 = vmul.f32 %v3472, %v3568
      %v3585 = vmul.f32 %v3473, %v3569
      %v3586 = vmul.f32 %v3474, %v3570
      %v3587 = vmul.f32 %v3475, %v3571
      %v3588 = vmul.f32 %v3476, %v3572
      %v3589 = vmul.f32 %v3477, %v3573
      %v3590 = vmul.f32 %v3478, %v3574
      %v3591 = vmul.f32 %v3479, %v3575
      %v3592 = vmul.f32 %v3480, %v3576
      %v3593 = vmul.f32 %v3481, %v3577
      %v3594 = vmul.f32 %v3482, %v3578
      %v3595 = vmul.f32 %v3483, %v3579
      %v3596 = vmul.f32 %v3484, %v3580
      %v3597 = vmul.f32 %v3581, %v736
      %v3598 = vmul.f32 %v3582, %v736
      %v3599 = vmul.f32 %v3583, %v736
      %v3600 = vmul.f32 %v3584, %v736
      %v3601 = vmul.f32 %v3585, %v736
      %v3602 = vmul.f32 %v3586, %v736
      %v3603 = vmul.f32 %v3587, %v736
      %v3604 = vmul.f32 %v3588, %v736
      %v3605 = vmul.f32 %v3589, %v736
      %v3606 = vmul.f32 %v3590, %v736
      %v3607 = vmul.f32 %v3591, %v736
      %v3608 = vmul.f32 %v3592, %v736
      %v3609 = vmul.f32 %v3593, %v736
      %v3610 = vmul.f32 %v3594, %v736
      %v3611 = vmul.f32 %v3595, %v736
      %v3612 = vmul.f32 %v3596, %v736
      %v3613 = vadd.f32 %v3597, %v758
      %v3614 = vadd.f32 %v3598, %v758
      %v3615 = vadd.f32 %v3599, %v758
      %v3616 = vadd.f32 %v3600, %v758
      %v3617 = vadd.f32 %v3601, %v758
      %v3618 = vadd.f32 %v3602, %v758
      %v3619 = vadd.f32 %v3603, %v758
      %v3620 = vadd.f32 %v3604, %v758
      %v3621 = vadd.f32 %v3605, %v758
      %v3622 = vadd.f32 %v3606, %v758
      %v3623 = vadd.f32 %v3607, %v758
      %v3624 = vadd.f32 %v3608, %v758
      %v3625 = vadd.f32 %v3609, %v758
      %v3626 = vadd.f32 %v3610, %v758
      %v3627 = vadd.f32 %v3611, %v758
      %v3628 = vadd.f32 %v3612, %v758
      %v3629 = vld [vmem:[%s8] sm:$0x1]
      %v3630 = vld [vmem:[%s9] sm:$0x1]
      %3631 = vadd.xlane.f32.xlu0 %v3613
      %v3632 = vpop.xlane.xlu0 %3631
      %3633 = vadd.xlane.f32.xlu0 %v3614
      %v3634 = vpop.xlane.xlu0 %3633
      %3635 = vadd.xlane.f32.xlu0 %v3615
      %v3636 = vpop.xlane.xlu0 %3635
      %3637 = vadd.xlane.f32.xlu0 %v3616
      %v3638 = vpop.xlane.xlu0 %3637
      %3639 = vadd.xlane.f32.xlu0 %v3617
      %v3640 = vpop.xlane.xlu0 %3639
      %3641 = vadd.xlane.f32.xlu0 %v3618
      %v3642 = vpop.xlane.xlu0 %3641
      %3643 = vadd.xlane.f32.xlu0 %v3619
      %v3644 = vpop.xlane.xlu0 %3643
      %3645 = vadd.xlane.f32.xlu0 %v3620
      %v3646 = vpop.xlane.xlu0 %3645
      %3647 = vadd.xlane.f32.xlu0 %v3621
      %v3648 = vpop.xlane.xlu0 %3647
      %3649 = vadd.xlane.f32.xlu0 %v3622
      %v3650 = vpop.xlane.xlu0 %3649
      %3651 = vadd.xlane.f32.xlu0 %v3623
      %v3652 = vpop.xlane.xlu0 %3651
      %3653 = vadd.xlane.f32.xlu0 %v3624
      %v3654 = vpop.xlane.xlu0 %3653
      %3655 = vadd.xlane.f32.xlu0 %v3625
      %v3656 = vpop.xlane.xlu0 %3655
      %3657 = vadd.xlane.f32.xlu0 %v3626
      %v3658 = vpop.xlane.xlu0 %3657
      %3659 = vadd.xlane.f32.xlu0 %v3627
      %v3660 = vpop.xlane.xlu0 %3659
      %3661 = vadd.xlane.f32.xlu0 %v3628
      %v3662 = vpop.xlane.xlu0 %3661
      %v3663 = vmul.f32 %v3632, %v587
      %v3664 = vmul.f32 %v3634, %v587
      %v3665 = vmul.f32 %v3636, %v587
      %v3666 = vmul.f32 %v3638, %v587
      %v3667 = vmul.f32 %v3640, %v587
      %v3668 = vmul.f32 %v3642, %v587
      %v3669 = vmul.f32 %v3644, %v587
      %v3670 = vmul.f32 %v3646, %v587
      %v3671 = vmul.f32 %v3648, %v587
      %v3672 = vmul.f32 %v3650, %v587
      %v3673 = vmul.f32 %v3652, %v587
      %v3674 = vmul.f32 %v3654, %v587
      %v3675 = vmul.f32 %v3656, %v587
      %v3676 = vmul.f32 %v3658, %v587
      %v3677 = vmul.f32 %v3660, %v587
      %v3678 = vmul.f32 %v3662, %v587
      %v3679 = vsub.f32 %v3613, %v3663
      %v3680 = vsub.f32 %v3614, %v3664
      %v3681 = vsub.f32 %v3615, %v3665
      %v3682 = vsub.f32 %v3616, %v3666
      %v3683 = vsub.f32 %v3617, %v3667
      %v3684 = vsub.f32 %v3618, %v3668
      %v3685 = vsub.f32 %v3619, %v3669
      %v3686 = vsub.f32 %v3620, %v3670
      %v3687 = vsub.f32 %v3621, %v3671
      %v3688 = vsub.f32 %v3622, %v3672
      %v3689 = vsub.f32 %v3623, %v3673
      %v3690 = vsub.f32 %v3624, %v3674
      %v3691 = vsub.f32 %v3625, %v3675
      %v3692 = vsub.f32 %v3626, %v3676
      %v3693 = vsub.f32 %v3627, %v3677
      %v3694 = vsub.f32 %v3628, %v3678
      %v3695 = vmul.f32 %v3679, %v3679
      %v3696 = vmul.f32 %v3680, %v3680
      %v3697 = vmul.f32 %v3681, %v3681
      %v3698 = vmul.f32 %v3682, %v3682
      %v3699 = vmul.f32 %v3683, %v3683
      %v3700 = vmul.f32 %v3684, %v3684
      %v3701 = vmul.f32 %v3685, %v3685
      %v3702 = vmul.f32 %v3686, %v3686
      %v3703 = vmul.f32 %v3687, %v3687
      %v3704 = vmul.f32 %v3688, %v3688
      %v3705 = vmul.f32 %v3689, %v3689
      %v3706 = vmul.f32 %v3690, %v3690
      %v3707 = vmul.f32 %v3691, %v3691
      %v3708 = vmul.f32 %v3692, %v3692
      %v3709 = vmul.f32 %v3693, %v3693
      %v3710 = vmul.f32 %v3694, %v3694
      %3711 = vadd.xlane.f32.xlu0 %v3695
      %v3712 = vpop.xlane.xlu0 %3711
      %3713 = vadd.xlane.f32.xlu0 %v3696
      %v3714 = vpop.xlane.xlu0 %3713
      %3715 = vadd.xlane.f32.xlu0 %v3697
      %v3716 = vpop.xlane.xlu0 %3715
      %3717 = vadd.xlane.f32.xlu0 %v3698
      %v3718 = vpop.xlane.xlu0 %3717
      %3719 = vadd.xlane.f32.xlu0 %v3699
      %v3720 = vpop.xlane.xlu0 %3719
      %3721 = vadd.xlane.f32.xlu0 %v3700
      %v3722 = vpop.xlane.xlu0 %3721
      %3723 = vadd.xlane.f32.xlu0 %v3701
      %v3724 = vpop.xlane.xlu0 %3723
      %3725 = vadd.xlane.f32.xlu0 %v3702
      %v3726 = vpop.xlane.xlu0 %3725
      %3727 = vadd.xlane.f32.xlu0 %v3703
      %v3728 = vpop.xlane.xlu0 %3727
      %3729 = vadd.xlane.f32.xlu0 %v3704
      %v3730 = vpop.xlane.xlu0 %3729
      %3731 = vadd.xlane.f32.xlu0 %v3705
      %v3732 = vpop.xlane.xlu0 %3731
      %3733 = vadd.xlane.f32.xlu0 %v3706
      %v3734 = vpop.xlane.xlu0 %3733
      %3735 = vadd.xlane.f32.xlu0 %v3707
      %v3736 = vpop.xlane.xlu0 %3735
      %3737 = vadd.xlane.f32.xlu0 %v3708
      %v3738 = vpop.xlane.xlu0 %3737
      %3739 = vadd.xlane.f32.xlu0 %v3709
      %v3740 = vpop.xlane.xlu0 %3739
      %3741 = vadd.xlane.f32.xlu0 %v3710
      %v3742 = vpop.xlane.xlu0 %3741
      %v3743 = vmul.f32 %v3712, %v587
      %v3744 = vmul.f32 %v3714, %v587
      %v3745 = vmul.f32 %v3716, %v587
      %v3746 = vmul.f32 %v3718, %v587
      %v3747 = vmul.f32 %v3720, %v587
      %v3748 = vmul.f32 %v3722, %v587
      %v3749 = vmul.f32 %v3724, %v587
      %v3750 = vmul.f32 %v3726, %v587
      %v3751 = vmul.f32 %v3728, %v587
      %v3752 = vmul.f32 %v3730, %v587
      %v3753 = vmul.f32 %v3732, %v587
      %v3754 = vmul.f32 %v3734, %v587
      %v3755 = vmul.f32 %v3736, %v587
      %v3756 = vmul.f32 %v3738, %v587
      %v3757 = vmul.f32 %v3740, %v587
      %v3758 = vmul.f32 %v3742, %v587
      %v3759 = vadd.f32 %v3743, 1e-06
      %v3760 = vadd.f32 %v3744, 1e-06
      %v3761 = vadd.f32 %v3745, 1e-06
      %v3762 = vadd.f32 %v3746, 1e-06
      %v3763 = vadd.f32 %v3747, 1e-06
      %v3764 = vadd.f32 %v3748, 1e-06
      %v3765 = vadd.f32 %v3749, 1e-06
      %v3766 = vadd.f32 %v3750, 1e-06
      %v3767 = vadd.f32 %v3751, 1e-06
      %v3768 = vadd.f32 %v3752, 1e-06
      %v3769 = vadd.f32 %v3753, 1e-06
      %v3770 = vadd.f32 %v3754, 1e-06
      %v3771 = vadd.f32 %v3755, 1e-06
      %v3772 = vadd.f32 %v3756, 1e-06
      %v3773 = vadd.f32 %v3757, 1e-06
      %v3774 = vadd.f32 %v3758, 1e-06
      %v3775 = vrsqrt.pop %v3759
      %v3776 = vrsqrt.pop %v3760
      %v3777 = vrsqrt.pop %v3761
      %v3778 = vrsqrt.pop %v3762
      %v3779 = vrsqrt.pop %v3763
      %v3780 = vrsqrt.pop %v3764
      %v3781 = vrsqrt.pop %v3765
      %v3782 = vrsqrt.pop %v3766
      %v3783 = vrsqrt.pop %v3767
      %v3784 = vrsqrt.pop %v3768
      %v3785 = vrsqrt.pop %v3769
      %v3786 = vrsqrt.pop %v3770
      %v3787 = vrsqrt.pop %v3771
      %v3788 = vrsqrt.pop %v3772
      %v3789 = vrsqrt.pop %v3773
      %v3790 = vrsqrt.pop %v3774
      %v3791 = vmul.f32 %v3679, %v3775
      %v3792 = vmul.f32 %v3680, %v3776
      %v3793 = vmul.f32 %v3681, %v3777
      %v3794 = vmul.f32 %v3682, %v3778
      %v3795 = vmul.f32 %v3683, %v3779
      %v3796 = vmul.f32 %v3684, %v3780
      %v3797 = vmul.f32 %v3685, %v3781
      %v3798 = vmul.f32 %v3686, %v3782
      %v3799 = vmul.f32 %v3687, %v3783
      %v3800 = vmul.f32 %v3688, %v3784
      %v3801 = vmul.f32 %v3689, %v3785
      %v3802 = vmul.f32 %v3690, %v3786
      %v3803 = vmul.f32 %v3691, %v3787
      %v3804 = vmul.f32 %v3692, %v3788
      %v3805 = vmul.f32 %v3693, %v3789
      %v3806 = vmul.f32 %v3694, %v3790
      %v3808 = vlaneseq
      %v3809 = vshrl.u32 %v3808, 7
      %v3810 = vsub.s32 0, %v3809
      %v3811 = vrot.slane %v3629, %v3810
      %v3813 = vmul.f32 %v3791, %v3811
      %v3814 = vmul.f32 %v3792, %v3811
      %v3815 = vmul.f32 %v3793, %v3811
      %v3816 = vmul.f32 %v3794, %v3811
      %v3817 = vmul.f32 %v3795, %v3811
      %v3818 = vmul.f32 %v3796, %v3811
      %v3819 = vmul.f32 %v3797, %v3811
      %v3820 = vmul.f32 %v3798, %v3811
      %v3821 = vmul.f32 %v3799, %v3811
      %v3822 = vmul.f32 %v3800, %v3811
      %v3823 = vmul.f32 %v3801, %v3811
      %v3824 = vmul.f32 %v3802, %v3811
      %v3825 = vmul.f32 %v3803, %v3811
      %v3826 = vmul.f32 %v3804, %v3811
      %v3827 = vmul.f32 %v3805, %v3811
      %v3828 = vmul.f32 %v3806, %v3811
      %v3830 = vlaneseq
      %v3831 = vshrl.u32 %v3830, 7
      %v3832 = vsub.s32 0, %v3831
      %v3833 = vrot.slane %v3630, %v3832
      %v3835 = vadd.f32 %v3813, %v3833
      %v3836 = vadd.f32 %v3814, %v3833
      %v3837 = vadd.f32 %v3815, %v3833
      %v3838 = vadd.f32 %v3816, %v3833
      %v3839 = vadd.f32 %v3817, %v3833
      %v3840 = vadd.f32 %v3818, %v3833
      %v3841 = vadd.f32 %v3819, %v3833
      %v3842 = vadd.f32 %v3820, %v3833
      %v3843 = vadd.f32 %v3821, %v3833
      %v3844 = vadd.f32 %v3822, %v3833
      %v3845 = vadd.f32 %v3823, %v3833
      %v3846 = vadd.f32 %v3824, %v3833
      %v3847 = vadd.f32 %v3825, %v3833
      %v3848 = vadd.f32 %v3826, %v3833
      %v3849 = vadd.f32 %v3827, %v3833
      %v3850 = vadd.f32 %v3828, %v3833
      %v3851 = vpack.c.bf16 %v3836, %v3835
      %v3852 = vpack.c.bf16 %v3838, %v3837
      %v3853 = vpack.c.bf16 %v3840, %v3839
      %v3854 = vpack.c.bf16 %v3842, %v3841
      %v3855 = vpack.c.bf16 %v3844, %v3843
      %v3856 = vpack.c.bf16 %v3846, %v3845
      %v3857 = vpack.c.bf16 %v3848, %v3847
      %v3858 = vpack.c.bf16 %v3850, %v3849
      %v3859 = vld [vmem:[%s10] sm:$0xff]
      %v3860 = vld [vmem:[%s10 + $0x8] sm:$0xff]
      %v3861 = vld [vmem:[%s10 + $0x10] sm:$0xff]
      %v3862 = vld [vmem:[%s10 + $0x18] sm:$0xff]
      %v3863 = vld [vmem:[%s10 + $0x20] sm:$0xff]
      %v3864 = vld [vmem:[%s10 + $0x28] sm:$0xff]
      %v3865 = vld [vmem:[%s10 + $0x30] sm:$0xff]
      %v3866 = vld [vmem:[%s10 + $0x38] sm:$0xff]
      %v3867 = vld [vmem:[%s10 + $0x40] sm:$0xff]
      %v3868 = vld [vmem:[%s10 + $0x48] sm:$0xff]
      %v3869 = vld [vmem:[%s10 + $0x50] sm:$0xff]
      %v3870 = vld [vmem:[%s10 + $0x58] sm:$0xff]
      %v3871 = vld [vmem:[%s10 + $0x60] sm:$0xff]
      %v3872 = vld [vmem:[%s10 + $0x68] sm:$0xff]
      %v3873 = vld [vmem:[%s10 + $0x70] sm:$0xff]
      %v3874 = vld [vmem:[%s10 + $0x78] sm:$0xff]
      %v3875 = vld [vmem:[%s11] sm:$0x3]
      %v3877 = vlaneseq
      %v3878 = vshrl.u32 %v3877, 7
      %v3879 = vsub.s32 0, %v3878
      %v3880 = vrot.slane %v3875, %v3879
      %v3881 = vlaneseq
      %v3882 = vshrl.u32 %v3881, 7
      %v3883 = vsub.s32 1, %v3882
      %v3884 = vrot.slane %v3875, %v3883
      %v3903 = vunpack.c.l.b16 %v3859
      %v3904 = vunpack.c.h.b16 %v3859
      %v3905 = vunpack.c.l.b16 %v3860
      %v3906 = vunpack.c.h.b16 %v3860
      %v3907 = vunpack.c.l.b16 %v3861
      %v3908 = vunpack.c.h.b16 %v3861
      %v3909 = vunpack.c.l.b16 %v3862
      %v3910 = vunpack.c.h.b16 %v3862
      %v3911 = vunpack.c.l.b16 %v3863
      %v3912 = vunpack.c.h.b16 %v3863
      %v3913 = vunpack.c.l.b16 %v3864
      %v3914 = vunpack.c.h.b16 %v3864
      %v3915 = vunpack.c.l.b16 %v3865
      %v3916 = vunpack.c.h.b16 %v3865
      %v3917 = vunpack.c.l.b16 %v3866
      %v3918 = vunpack.c.h.b16 %v3866
      %v3919 = vunpack.c.l.b16 %v3867
      %v3920 = vunpack.c.h.b16 %v3867
      %v3921 = vunpack.c.l.b16 %v3868
      %v3922 = vunpack.c.h.b16 %v3868
      %v3923 = vunpack.c.l.b16 %v3869
      %v3924 = vunpack.c.h.b16 %v3869
      %v3925 = vunpack.c.l.b16 %v3870
      %v3926 = vunpack.c.h.b16 %v3870
      %v3927 = vunpack.c.l.b16 %v3871
      %v3928 = vunpack.c.h.b16 %v3871
      %v3929 = vunpack.c.l.b16 %v3872
      %v3930 = vunpack.c.h.b16 %v3872
      %v3931 = vunpack.c.l.b16 %v3873
      %v3932 = vunpack.c.h.b16 %v3873
      %v3933 = vunpack.c.l.b16 %v3874
      %v3934 = vunpack.c.h.b16 %v3874
      %v3935 = vpack.c.b16 %v3905, %v3903
      %v3936 = vpack.c.b16 %v3906, %v3904
      %v3937 = vpack.c.b16 %v3909, %v3907
      %v3938 = vpack.c.b16 %v3910, %v3908
      %v3939 = vpack.c.b16 %v3913, %v3911
      %v3940 = vpack.c.b16 %v3914, %v3912
      %v3941 = vpack.c.b16 %v3917, %v3915
      %v3942 = vpack.c.b16 %v3918, %v3916
      %v3943 = vpack.c.b16 %v3921, %v3919
      %v3944 = vpack.c.b16 %v3922, %v3920
      %v3945 = vpack.c.b16 %v3925, %v3923
      %v3946 = vpack.c.b16 %v3926, %v3924
      %v3947 = vpack.c.b16 %v3929, %v3927
      %v3948 = vpack.c.b16 %v3930, %v3928
      %v3949 = vpack.c.b16 %v3933, %v3931
      %v3950 = vpack.c.b16 %v3934, %v3932
      %3967 = vmatprep.subr.bf16.mxu0 %v3936
      %3968 = vmatpush1.bf16.msra.mxu0 %v3935
      %3969 = vmatprep.subr.bf16.mxu0 %v3938
      %3970 = vmatpush1.bf16.msra.mxu0 %v3937
      %3971 = vmatprep.subr.bf16.mxu0 %v3940
      %3972 = vmatpush1.bf16.msra.mxu0 %v3939
      %3973 = vmatprep.subr.bf16.mxu0 %v3942
      %3974 = vmatpush1.bf16.msra.mxu0 %v3941
      %3975 = vmatprep.subr.bf16.mxu0 %v3944
      %3976 = vmatpush1.bf16.msra.mxu0 %v3943
      %3977 = vmatprep.subr.bf16.mxu0 %v3946
      %3978 = vmatpush1.bf16.msra.mxu0 %v3945
      %3979 = vmatprep.subr.bf16.mxu0 %v3948
      %3980 = vmatpush1.bf16.msra.mxu0 %v3947
      %3981 = vmatprep.subr.bf16.mxu0 %v3950
      %3982 = vmatpush1.bf16.msra.mxu0 %v3949
      %3983 = vmatprep.subr.bf16.mxu0 0
      %3984 = vmatpush1.bf16.msra.mxu0 0
      %3985 = vmatprep.subr.bf16.mxu0 0
      %3986 = vmatpush1.bf16.msra.mxu0 0
      %3987 = vmatprep.subr.bf16.mxu0 0
      %3988 = vmatpush1.bf16.msra.mxu0 0
      %3989 = vmatprep.subr.bf16.mxu0 0
      %3990 = vmatpush1.bf16.msra.mxu0 0
      %3991 = vmatprep.subr.bf16.mxu0 0
      %3992 = vmatpush1.bf16.msra.mxu0 0
      %3993 = vmatprep.subr.bf16.mxu0 0
      %3994 = vmatpush1.bf16.msra.mxu0 0
      %3995 = vmatprep.subr.bf16.mxu0 0
      %3996 = vmatpush1.bf16.msra.mxu0 0
      %3997 = vmatprep.subr.bf16.mxu0 0
      %3998 = vmatpush1.bf16.msra.mxu0 0
      %3999 = vmatprep.mubr.bf16.mxu0 0
      %4000 = vmatmul.mubr.bf16.gmra.mrb[0].mxu0 %v3851
      %v4001 = vpop.f32.mrb[0].mxu0
      %v4002 = vadd.f32 %v3880, %v4001
      %v4003 = vpop.f32.mrb[0].mxu0
      %v4004 = vadd.f32 %v3884, %v4003
      %v4005 = vpop.f32.mrb[0].mxu0
      %v4006 = vadd.f32 %v3880, %v4005
      %v4007 = vpop.f32.mrb[0].mxu0
      %v4008 = vadd.f32 %v3884, %v4007
      %4009 = vmatprep.mubr.bf16.mxu0 0
      %4010 = vmatmul.mubr.bf16.gmra.mrb[0].mxu0 %v3852
      %v4011 = vpop.f32.mrb[0].mxu0
      %v4012 = vadd.f32 %v3880, %v4011
      %v4013 = vpop.f32.mrb[0].mxu0
      %v4014 = vadd.f32 %v3884, %v4013
      %v4015 = vpop.f32.mrb[0].mxu0
      %v4016 = vadd.f32 %v3880, %v4015
      %v4017 = vpop.f32.mrb[0].mxu0
      %v4018 = vadd.f32 %v3884, %v4017
      %4019 = vmatprep.mubr.bf16.mxu0 0
      %4020 = vmatmul.mubr.bf16.gmra.mrb[0].mxu0 %v3853
      %v4021 = vpop.f32.mrb[0].mxu0
      %v4022 = vadd.f32 %v3880, %v4021
      %v4023 = vpop.f32.mrb[0].mxu0
      %v4024 = vadd.f32 %v3884, %v4023
      %v4025 = vpop.f32.mrb[0].mxu0
      %v4026 = vadd.f32 %v3880, %v4025
      %v4027 = vpop.f32.mrb[0].mxu0
      %v4028 = vadd.f32 %v3884, %v4027
      %4029 = vmatprep.mubr.bf16.mxu0 0
      %4030 = vmatmul.mubr.bf16.gmra.mrb[0].mxu0 %v3854
      %v4031 = vpop.f32.mrb[0].mxu0
      %v4032 = vadd.f32 %v3880, %v4031
      %v4033 = vpop.f32.mrb[0].mxu0
      %v4034 = vadd.f32 %v3884, %v4033
      %v4035 = vpop.f32.mrb[0].mxu0
      %v4036 = vadd.f32 %v3880, %v4035
      %v4037 = vpop.f32.mrb[0].mxu0
      %v4038 = vadd.f32 %v3884, %v4037
      %4039 = vmatprep.mubr.bf16.mxu0 0
      %4040 = vmatmul.mubr.bf16.gmra.mrb[0].mxu0 %v3855
      %v4041 = vpop.f32.mrb[0].mxu0
      %v4042 = vadd.f32 %v3880, %v4041
      %v4043 = vpop.f32.mrb[0].mxu0
      %v4044 = vadd.f32 %v3884, %v4043
      %v4045 = vpop.f32.mrb[0].mxu0
      %v4046 = vadd.f32 %v3880, %v4045
      %v4047 = vpop.f32.mrb[0].mxu0
      %v4048 = vadd.f32 %v3884, %v4047
      %4049 = vmatprep.mubr.bf16.mxu0 0
      %4050 = vmatmul.mubr.bf16.gmra.mrb[0].mxu0 %v3856
      %v4051 = vpop.f32.mrb[0].mxu0
      %v4052 = vadd.f32 %v3880, %v4051
      %v4053 = vpop.f32.mrb[0].mxu0
      %v4054 = vadd.f32 %v3884, %v4053
      %v4055 = vpop.f32.mrb[0].mxu0
      %v4056 = vadd.f32 %v3880, %v4055
      %v4057 = vpop.f32.mrb[0].mxu0
      %v4058 = vadd.f32 %v3884, %v4057
      %4059 = vmatprep.mubr.bf16.mxu0 0
      %4060 = vmatmul.mubr.bf16.gmra.mrb[0].mxu0 %v3857
      %v4061 = vpop.f32.mrb[0].mxu0
      %v4062 = vadd.f32 %v3880, %v4061
      %v4063 = vpop.f32.mrb[0].mxu0
      %v4064 = vadd.f32 %v3884, %v4063
      %v4065 = vpop.f32.mrb[0].mxu0
      %v4066 = vadd.f32 %v3880, %v4065
      %v4067 = vpop.f32.mrb[0].mxu0
      %v4068 = vadd.f32 %v3884, %v4067
      %4069 = vmatprep.mubr.bf16.mxu0 0
      %4070 = vmatmul.mubr.bf16.gmra.mrb[0].mxu0 %v3858
      %v4071 = vpop.f32.mrb[0].mxu0
      %v4072 = vadd.f32 %v3880, %v4071
      %v4073 = vpop.f32.mrb[0].mxu0
      %v4074 = vadd.f32 %v3884, %v4073
      %v4075 = vpop.f32.mrb[0].mxu0
      %v4076 = vadd.f32 %v3880, %v4075
      %v4077 = vpop.f32.mrb[0].mxu0
      %v4078 = vadd.f32 %v3884, %v4077
      %4079 = vdwg.mxu0
      %v4080 = vmax.f32 %v4002, 0.0
      %v4081 = vmax.f32 %v4004, 0.0
      %v4082 = vmax.f32 %v4006, 0.0
      %v4083 = vmax.f32 %v4008, 0.0
      %v4084 = vmax.f32 %v4012, 0.0
      %v4085 = vmax.f32 %v4014, 0.0
      %v4086 = vmax.f32 %v4016, 0.0
      %v4087 = vmax.f32 %v4018, 0.0
      %v4088 = vmax.f32 %v4022, 0.0
      %v4089 = vmax.f32 %v4024, 0.0
      %v4090 = vmax.f32 %v4026, 0.0
      %v4091 = vmax.f32 %v4028, 0.0
      %v4092 = vmax.f32 %v4032, 0.0
      %v4093 = vmax.f32 %v4034, 0.0
      %v4094 = vmax.f32 %v4036, 0.0
      %v4095 = vmax.f32 %v4038, 0.0
      %v4096 = vmax.f32 %v4042, 0.0
      %v4097 = vmax.f32 %v4044, 0.0
      %v4098 = vmax.f32 %v4046, 0.0
      %v4099 = vmax.f32 %v4048, 0.0
      %v4100 = vmax.f32 %v4052, 0.0
      %v4101 = vmax.f32 %v4054, 0.0
      %v4102 = vmax.f32 %v4056, 0.0
      %v4103 = vmax.f32 %v4058, 0.0
      %v4104 = vmax.f32 %v4062, 0.0
      %v4105 = vmax.f32 %v4064, 0.0
      %v4106 = vmax.f32 %v4066, 0.0
      %v4107 = vmax.f32 %v4068, 0.0
      %v4108 = vmax.f32 %v4072, 0.0
      %v4109 = vmax.f32 %v4074, 0.0
      %v4110 = vmax.f32 %v4076, 0.0
      %v4111 = vmax.f32 %v4078, 0.0
      %v4112 = vpack.c.bf16 %v4082, %v4080
      %v4113 = vpack.c.bf16 %v4083, %v4081
      %v4114 = vpack.c.bf16 %v4086, %v4084
      %v4115 = vpack.c.bf16 %v4087, %v4085
      %v4116 = vpack.c.bf16 %v4090, %v4088
      %v4117 = vpack.c.bf16 %v4091, %v4089
      %v4118 = vpack.c.bf16 %v4094, %v4092
      %v4119 = vpack.c.bf16 %v4095, %v4093
      %v4120 = vpack.c.bf16 %v4098, %v4096
      %v4121 = vpack.c.bf16 %v4099, %v4097
      %v4122 = vpack.c.bf16 %v4102, %v4100
      %v4123 = vpack.c.bf16 %v4103, %v4101
      %v4124 = vpack.c.bf16 %v4106, %v4104
      %v4125 = vpack.c.bf16 %v4107, %v4105
      %v4126 = vpack.c.bf16 %v4110, %v4108
      %v4127 = vpack.c.bf16 %v4111, %v4109
      %v4128 = vld [vmem:[%s12] sm:$0xf]
      %v4129 = vld [vmem:[%s12 + $0x4] sm:$0xf]
      %v4130 = vld [vmem:[%s12 + $0x8] sm:$0xf]
      %v4131 = vld [vmem:[%s12 + $0xc] sm:$0xf]
      %v4132 = vld [vmem:[%s12 + $0x10] sm:$0xf]
      %v4133 = vld [vmem:[%s12 + $0x14] sm:$0xf]
      %v4134 = vld [vmem:[%s12 + $0x18] sm:$0xf]
      %v4135 = vld [vmem:[%s12 + $0x1c] sm:$0xf]
      %v4136 = vld [vmem:[%s12 + $0x20] sm:$0xf]
      %v4137 = vld [vmem:[%s12 + $0x24] sm:$0xf]
      %v4138 = vld [vmem:[%s12 + $0x28] sm:$0xf]
      %v4139 = vld [vmem:[%s12 + $0x2c] sm:$0xf]
      %v4140 = vld [vmem:[%s12 + $0x30] sm:$0xf]
      %v4141 = vld [vmem:[%s12 + $0x34] sm:$0xf]
      %v4142 = vld [vmem:[%s12 + $0x38] sm:$0xf]
      %v4143 = vld [vmem:[%s12 + $0x3c] sm:$0xf]
      %v4144 = vld [vmem:[%s12 + $0x40] sm:$0xf]
      %v4145 = vld [vmem:[%s12 + $0x44] sm:$0xf]
      %v4146 = vld [vmem:[%s12 + $0x48] sm:$0xf]
      %v4147 = vld [vmem:[%s12 + $0x4c] sm:$0xf]
      %v4148 = vld [vmem:[%s12 + $0x50] sm:$0xf]
      %v4149 = vld [vmem:[%s12 + $0x54] sm:$0xf]
      %v4150 = vld [vmem:[%s12 + $0x58] sm:$0xf]
      %v4151 = vld [vmem:[%s12 + $0x5c] sm:$0xf]
      %v4152 = vld [vmem:[%s12 + $0x60] sm:$0xf]
      %v4153 = vld [vmem:[%s12 + $0x64] sm:$0xf]
      %v4154 = vld [vmem:[%s12 + $0x68] sm:$0xf]
      %v4155 = vld [vmem:[%s12 + $0x6c] sm:$0xf]
      %v4156 = vld [vmem:[%s12 + $0x70] sm:$0xf]
      %v4157 = vld [vmem:[%s12 + $0x74] sm:$0xf]
      %v4158 = vld [vmem:[%s12 + $0x78] sm:$0xf]
      %v4159 = vld [vmem:[%s12 + $0x7c] sm:$0xf]
      %v4160 = vld [vmem:[%s13] sm:$0x1]
      %v4162 = vlaneseq
      %v4163 = vshrl.u32 %v4162, 7
      %v4164 = vsub.s32 0, %v4163
      %v4165 = vrot.slane %v4160, %v4164
      %v4199 = vunpack.c.l.b16 %v4128
      %v4200 = vunpack.c.l.b16 %v4129
      %v4201 = vunpack.c.l.b16 %v4130
      %v4202 = vunpack.c.l.b16 %v4131
      %v4203 = vunpack.c.l.b16 %v4132
      %v4204 = vunpack.c.l.b16 %v4133
      %v4205 = vunpack.c.l.b16 %v4134
      %v4206 = vunpack.c.l.b16 %v4135
      %v4207 = vunpack.c.l.b16 %v4136
      %v4208 = vunpack.c.l.b16 %v4137
      %v4209 = vunpack.c.l.b16 %v4138
      %v4210 = vunpack.c.l.b16 %v4139
      %v4211 = vunpack.c.l.b16 %v4140
      %v4212 = vunpack.c.l.b16 %v4141
      %v4213 = vunpack.c.l.b16 %v4142
      %v4214 = vunpack.c.l.b16 %v4143
      %v4215 = vunpack.c.l.b16 %v4144
      %v4216 = vunpack.c.l.b16 %v4145
      %v4217 = vunpack.c.l.b16 %v4146
      %v4218 = vunpack.c.l.b16 %v4147
      %v4219 = vunpack.c.l.b16 %v4148
      %v4220 = vunpack.c.l.b16 %v4149
      %v4221 = vunpack.c.l.b16 %v4150
      %v4222 = vunpack.c.l.b16 %v4151
      %v4223 = vunpack.c.l.b16 %v4152
      %v4224 = vunpack.c.l.b16 %v4153
      %v4225 = vunpack.c.l.b16 %v4154
      %v4226 = vunpack.c.l.b16 %v4155
      %v4227 = vunpack.c.l.b16 %v4156
      %v4228 = vunpack.c.l.b16 %v4157
      %v4229 = vunpack.c.l.b16 %v4158
      %v4230 = vunpack.c.l.b16 %v4159
      %v4231 = vpack.c.b16 %v4200, %v4199
      %v4232 = vpack.c.b16 %v4202, %v4201
      %v4233 = vpack.c.b16 %v4204, %v4203
      %v4234 = vpack.c.b16 %v4206, %v4205
      %v4235 = vpack.c.b16 %v4208, %v4207
      %v4236 = vpack.c.b16 %v4210, %v4209
      %v4237 = vpack.c.b16 %v4212, %v4211
      %v4238 = vpack.c.b16 %v4214, %v4213
      %v4239 = vpack.c.b16 %v4216, %v4215
      %v4240 = vpack.c.b16 %v4218, %v4217
      %v4241 = vpack.c.b16 %v4220, %v4219
      %v4242 = vpack.c.b16 %v4222, %v4221
      %v4243 = vpack.c.b16 %v4224, %v4223
      %v4244 = vpack.c.b16 %v4226, %v4225
      %v4245 = vpack.c.b16 %v4228, %v4227
      %v4246 = vpack.c.b16 %v4230, %v4229
      %4263 = vmatprep.subr.bf16.mxu0 0
      %4264 = vmatpush1.bf16.msra.mxu0 %v4231
      %4265 = vmatprep.subr.bf16.mxu0 0
      %4266 = vmatpush1.bf16.msra.mxu0 %v4232
      %4267 = vmatprep.subr.bf16.mxu0 0
      %4268 = vmatpush1.bf16.msra.mxu0 %v4233
      %4269 = vmatprep.subr.bf16.mxu0 0
      %4270 = vmatpush1.bf16.msra.mxu0 %v4234
      %4271 = vmatprep.subr.bf16.mxu0 0
      %4272 = vmatpush1.bf16.msra.mxu0 %v4235
      %4273 = vmatprep.subr.bf16.mxu0 0
      %4274 = vmatpush1.bf16.msra.mxu0 %v4236
      %4275 = vmatprep.subr.bf16.mxu0 0
      %4276 = vmatpush1.bf16.msra.mxu0 %v4237
      %4277 = vmatprep.subr.bf16.mxu0 0
      %4278 = vmatpush1.bf16.msra.mxu0 %v4238
      %4279 = vmatprep.subr.bf16.mxu0 0
      %4280 = vmatpush1.bf16.msra.mxu0 %v4239
      %4281 = vmatprep.subr.bf16.mxu0 0
      %4282 = vmatpush1.bf16.msra.mxu0 %v4240
      %4283 = vmatprep.subr.bf16.mxu0 0
      %4284 = vmatpush1.bf16.msra.mxu0 %v4241
      %4285 = vmatprep.subr.bf16.mxu0 0
      %4286 = vmatpush1.bf16.msra.mxu0 %v4242
      %4287 = vmatprep.subr.bf16.mxu0 0
      %4288 = vmatpush1.bf16.msra.mxu0 %v4243
      %4289 = vmatprep.subr.bf16.mxu0 0
      %4290 = vmatpush1.bf16.msra.mxu0 %v4244
      %4291 = vmatprep.subr.bf16.mxu0 0
      %4292 = vmatpush1.bf16.msra.mxu0 %v4245
      %4293 = vmatprep.subr.bf16.mxu0 0
      %4294 = vmatpush1.bf16.msra.mxu0 %v4246
      %4295 = vmatprep.mubr.bf16.mxu0 %v4113
      %4296 = vmatmul.mubr.bf16.gmra.mrb[0].mxu0 %v4112
      %v4297 = vpop.f32.mrb[0].mxu0
      %v4298 = vadd.f32 %v4165, %v4297
      %v4299 = vpop.f32.mrb[0].mxu0
      %v4300 = vpop.f32.mrb[0].mxu0
      %v4301 = vadd.f32 %v4165, %v4300
      %v4302 = vpop.f32.mrb[0].mxu0
      %4303 = vmatprep.mubr.bf16.mxu0 %v4115
      %4304 = vmatmul.mubr.bf16.gmra.mrb[0].mxu0 %v4114
      %v4305 = vpop.f32.mrb[0].mxu0
      %v4306 = vadd.f32 %v4165, %v4305
      %v4307 = vpop.f32.mrb[0].mxu0
      %v4308 = vpop.f32.mrb[0].mxu0
      %v4309 = vadd.f32 %v4165, %v4308
      %v4310 = vpop.f32.mrb[0].mxu0
      %4311 = vmatprep.mubr.bf16.mxu0 %v4117
      %4312 = vmatmul.mubr.bf16.gmra.mrb[0].mxu0 %v4116
      %v4313 = vpop.f32.mrb[0].mxu0
      %v4314 = vadd.f32 %v4165, %v4313
      %v4315 = vpop.f32.mrb[0].mxu0
      %v4316 = vpop.f32.mrb[0].mxu0
      %v4317 = vadd.f32 %v4165, %v4316
      %v4318 = vpop.f32.mrb[0].mxu0
      %4319 = vmatprep.mubr.bf16.mxu0 %v4119
      %4320 = vmatmul.mubr.bf16.gmra.mrb[0].mxu0 %v4118
      %v4321 = vpop.f32.mrb[0].mxu0
      %v4322 = vadd.f32 %v4165, %v4321
      %v4323 = vpop.f32.mrb[0].mxu0
      %v4324 = vpop.f32.mrb[0].mxu0
      %v4325 = vadd.f32 %v4165, %v4324
      %v4326 = vpop.f32.mrb[0].mxu0
      %4327 = vmatprep.mubr.bf16.mxu0 %v4121
      %4328 = vmatmul.mubr.bf16.gmra.mrb[0].mxu0 %v4120
      %v4329 = vpop.f32.mrb[0].mxu0
      %v4330 = vadd.f32 %v4165, %v4329
      %v4331 = vpop.f32.mrb[0].mxu0
      %v4332 = vpop.f32.mrb[0].mxu0
      %v4333 = vadd.f32 %v4165, %v4332
      %v4334 = vpop.f32.mrb[0].mxu0
      %4335 = vmatprep.mubr.bf16.mxu0 %v4123
      %4336 = vmatmul.mubr.bf16.gmra.mrb[0].mxu0 %v4122
      %v4337 = vpop.f32.mrb[0].mxu0
      %v4338 = vadd.f32 %v4165, %v4337
      %v4339 = vpop.f32.mrb[0].mxu0
      %v4340 = vpop.f32.mrb[0].mxu0
      %v4341 = vadd.f32 %v4165, %v4340
      %v4342 = vpop.f32.mrb[0].mxu0
      %4343 = vmatprep.mubr.bf16.mxu0 %v4125
      %4344 = vmatmul.mubr.bf16.gmra.mrb[0].mxu0 %v4124
      %v4345 = vpop.f32.mrb[0].mxu0
      %v4346 = vadd.f32 %v4165, %v4345
      %v4347 = vpop.f32.mrb[0].mxu0
      %v4348 = vpop.f32.mrb[0].mxu0
      %v4349 = vadd.f32 %v4165, %v4348
      %v4350 = vpop.f32.mrb[0].mxu0
      %4351 = vmatprep.mubr.bf16.mxu0 %v4127
      %4352 = vmatmul.mubr.bf16.gmra.mrb[0].mxu0 %v4126
      %v4353 = vpop.f32.mrb[0].mxu0
      %v4354 = vadd.f32 %v4165, %v4353
      %v4355 = vpop.f32.mrb[0].mxu0
      %v4356 = vpop.f32.mrb[0].mxu0
      %v4357 = vadd.f32 %v4165, %v4356
      %v4358 = vpop.f32.mrb[0].mxu0
      %4359 = vdwg.mxu0
      %v4360 = vadd.f32 %v4298, %v3613
      %v4361 = vadd.f32 %v4301, %v3614
      %v4362 = vadd.f32 %v4306, %v3615
      %v4363 = vadd.f32 %v4309, %v3616
      %v4364 = vadd.f32 %v4314, %v3617
      %v4365 = vadd.f32 %v4317, %v3618
      %v4366 = vadd.f32 %v4322, %v3619
      %v4367 = vadd.f32 %v4325, %v3620
      %v4368 = vadd.f32 %v4330, %v3621
      %v4369 = vadd.f32 %v4333, %v3622
      %v4370 = vadd.f32 %v4338, %v3623
      %v4371 = vadd.f32 %v4341, %v3624
      %v4372 = vadd.f32 %v4346, %v3625
      %v4373 = vadd.f32 %v4349, %v3626
      %v4374 = vadd.f32 %v4354, %v3627
      %v4375 = vadd.f32 %v4357, %v3628
      %v4376 = vadd.f32 %v4360, %v3405
      %v4377 = vadd.f32 %v4361, %v3406
      %v4378 = vadd.f32 %v4362, %v3407
      %v4379 = vadd.f32 %v4363, %v3408
      %v4380 = vadd.f32 %v4364, %v3409
      %v4381 = vadd.f32 %v4365, %v3410
      %v4382 = vadd.f32 %v4366, %v3411
      %v4383 = vadd.f32 %v4367, %v3412
      %v4384 = vadd.f32 %v4368, %v3413
      %v4385 = vadd.f32 %v4369, %v3414
      %v4386 = vadd.f32 %v4370, %v3415
      %v4387 = vadd.f32 %v4371, %v3416
      %v4388 = vadd.f32 %v4372, %v3417
      %v4389 = vadd.f32 %v4373, %v3418
      %v4390 = vadd.f32 %v4374, %v3419
      %v4391 = vadd.f32 %v4375, %v3420
      %4392 = vst [vmem:[%s535] sm:$0xff] %v4376
      %4393 = vst [vmem:[%s535 + $0x8] sm:$0xff] %v4377
      %4394 = vst [vmem:[%s535 + $0x10] sm:$0xff] %v4378
      %4395 = vst [vmem:[%s535 + $0x18] sm:$0xff] %v4379
      %4396 = vst [vmem:[%s535 + $0x20] sm:$0xff] %v4380
      %4397 = vst [vmem:[%s535 + $0x28] sm:$0xff] %v4381
      %4398 = vst [vmem:[%s535 + $0x30] sm:$0xff] %v4382
      %4399 = vst [vmem:[%s535 + $0x38] sm:$0xff] %v4383
      %4400 = vst [vmem:[%s535 + $0x40] sm:$0xff] %v4384
      %4401 = vst [vmem:[%s535 + $0x48] sm:$0xff] %v4385
      %4402 = vst [vmem:[%s535 + $0x50] sm:$0xff] %v4386
      %4403 = vst [vmem:[%s535 + $0x58] sm:$0xff] %v4387
      %4404 = vst [vmem:[%s535 + $0x60] sm:$0xff] %v4388
      %4405 = vst [vmem:[%s535 + $0x68] sm:$0xff] %v4389
      %4406 = vst [vmem:[%s535 + $0x70] sm:$0xff] %v4390
      %4407 = vst [vmem:[%s535 + $0x78] sm:$0xff] %v4391
      %p4408 = scmp.lt.s32.totalorder %s27, 1
      %s4409 = scalar_select %p4408, %s27, 1
      %s4410 = smul.addr %s4409, 16
      %s4411 = smul.addr %s4410, 8
      %s4412 = scalar_lea.vmem %s16, %s4411
      // Predicated region
      $region85: #{transformer_encoder_forward.2} parent=83 // pred_check
        %p4413 = pneg %p391
      $region86: #{transformer_encoder_forward.2} parent=83 // pred_check_branch
        %4415 = sbr.rel (%p4413) target = $region88
      $region87: #{transformer_encoder_forward.2} parent=83 // pred_region
        _
      $region88: #{transformer_encoder_forward.2} parent=83 // pred_fallthru
        _
    $region84: #{transformer_encoder_forward.2} parent=5 // pred_fallthru
      _
    %p4416 = scmp.le.s32.totalorder 2, %s22
    // Predicated region
    $region89: #{transformer_encoder_forward.2} parent=5 // pred_check
      %p4417 = pneg %p4416
    $region90: #{transformer_encoder_forward.2} parent=5 // pred_check_branch
      %4419 = sbr.rel (%p4417) target = $region92
    $region91: #{transformer_encoder_forward.2} parent=5 // pred_region
      %s4420 = ssub.s32 %s22, 2
      // Predicated region
      $region93: #{transformer_encoder_forward.2} parent=91 // pred_check
        %p4421 = pneg %p397
      $region94: #{transformer_encoder_forward.2} parent=91 // pred_check_branch
        %4423 = sbr.rel (%p4421) target = $region96
      $region95: #{transformer_encoder_forward.2} parent=91 // pred_region
        %p4424 = scmp.lt.s32.totalorder %s28, 1
        %s4425 = scalar_select %p4424, %s28, 1
        %s4426 = smul.addr %s4425, 16
        %s4427 = smul.addr %s4426, 8
        %s4428 = scalar_lea.vmem %s16, %s4427
      $region96: #{transformer_encoder_forward.2} parent=91 // pred_fallthru
        _
    $region92: #{transformer_encoder_forward.2} parent=5 // pred_fallthru
      _
  $region6: #{transformer_encoder_forward.2} parent=0 // loop_footer
    %s26 = sadd.s32 1, %s22
  $region7: #{transformer_encoder_forward.2} parent=0 // loop_footer_branch
    %21 = sbr.rel target = $region3
  $region8: #{transformer_encoder_forward.2} parent=0 // loop_exit
    _

// kernel: transformer_encoder_forward.3
$region0: #{transformer_encoder_forward.3}
  #allocation0 [shape = 'u32[]', space=smem, size = 0x4, offset = 0x4, fixed_abs, tag = 'smem constant byte address 0x4 - core index']
  #allocation1 [shape = 'u32[144,128]{1,0:T(1,128)}', space=vmem, size = 0x12000, scoped, tag = 'internal scratch']
  %s0 = inlined_call_operand.vmem [shape: f32[2,128,128], index: 0, kind: input, shape index: {}]
  %s1 = inlined_call_operand.vmem [shape: f32[2,1,128], index: 1, kind: input, shape index: {}]
  %s2 = inlined_call_operand.vmem [shape: f32[1,128], index: 2, kind: input, shape index: {}]
  %s3 = inlined_call_operand.vmem [shape: f32[1,128], index: 3, kind: input, shape index: {}]
  %s4 = inlined_call_operand.vmem [shape: bf16[128,384], index: 4, kind: input, shape index: {}]
  %s5 = inlined_call_operand.vmem [shape: f32[1,384], index: 5, kind: input, shape index: {}]
  %s6 = inlined_call_operand.vmem [shape: bf16[128,128], index: 6, kind: input, shape index: {}]
  %s7 = inlined_call_operand.vmem [shape: f32[1,128], index: 7, kind: input, shape index: {}]
  %s8 = inlined_call_operand.vmem [shape: f32[1,128], index: 8, kind: input, shape index: {}]
  %s9 = inlined_call_operand.vmem [shape: f32[1,128], index: 9, kind: input, shape index: {}]
  %s10 = inlined_call_operand.vmem [shape: bf16[128,256], index: 10, kind: input, shape index: {}]
  %s11 = inlined_call_operand.vmem [shape: f32[1,256], index: 11, kind: input, shape index: {}]
  %s12 = inlined_call_operand.vmem [shape: bf16[256,128], index: 12, kind: input, shape index: {}]
  %s13 = inlined_call_operand.vmem [shape: f32[1,128], index: 13, kind: input, shape index: {}]
  %s14 = inlined_call_operand.vmem [shape: f32[1,128], index: 14, kind: input, shape index: {}]
  %s15 = inlined_call_operand.vmem [shape: f32[1,128], index: 15, kind: input, shape index: {}]
  %s16 = inlined_call_operand.vmem [shape: f32[2,128,128], index: 16, kind: output, shape index: {}]
  %s17 = sld [smem:[#allocation0]]
  $region97: #{transformer_encoder_forward.3} parent=0
    _
  %s19 = ssub.s32 1, %s17
  %s20 = scalar_select 0, %s19, %s17
  loop: start=0, step=1, limit=4
  $region2: #{transformer_encoder_forward.3} parent=0 // loop_pre_header
    _
  $region3: #{transformer_encoder_forward.3} parent=0 // loop_header
    %s22 = sphi 0, %s26
    %p23 = scmp.ge.s32.totalorder %s22, 4
    %s32 = sphi 0, %s34
    %s35 = sphi 0, %s32
    %s36 = sphi 0, %s35
    %s52 = sphi 0, %s36
    %s58 = sphi 0, %s60
    %s61 = sphi 0, %s58
    %s62 = sphi 0, %s61
    %s78 = sphi 0, %s62
    %s82 = sphi 0, %s82
    %s84 = sphi 0, %s82
    %s85 = sphi 0, %s84
    %s99 = sphi 0, %s85
    %s103 = sphi 0, %s103
    %s105 = sphi 0, %s103
    %s106 = sphi 0, %s105
    %s120 = sphi 0, %s106
    %s124 = sphi 0, %s124
    %s126 = sphi 0, %s124
    %s127 = sphi 0, %s126
    %s141 = sphi 0, %s127
    %s145 = sphi 0, %s145
    %s147 = sphi 0, %s145
    %s148 = sphi 0, %s147
    %s162 = sphi 0, %s148
    %s166 = sphi 0, %s166
    %s168 = sphi 0, %s166
    %s169 = sphi 0, %s168
    %s183 = sphi 0, %s169
    %s187 = sphi 0, %s187
    %s189 = sphi 0, %s187
    %s190 = sphi 0, %s189
    %s204 = sphi 0, %s190
    %s208 = sphi 0, %s208
    %s210 = sphi 0, %s208
    %s211 = sphi 0, %s210
    %s225 = sphi 0, %s211
    %s229 = sphi 0, %s229
    %s231 = sphi 0, %s229
    %s232 = sphi 0, %s231
    %s246 = sphi 0, %s232
    %s250 = sphi 0, %s250
    %s252 = sphi 0, %s250
    %s253 = sphi 0, %s252
    %s267 = sphi 0, %s253
    %s271 = sphi 0, %s271
    %s273 = sphi 0, %s271
    %s274 = sphi 0, %s273
    %s288 = sphi 0, %s274
    %s292 = sphi 0, %s292
    %s294 = sphi 0, %s292
    %s295 = sphi 0, %s294
    %s309 = sphi 0, %s295
    %s313 = sphi 0, %s313
    %s315 = sphi 0, %s313
    %s316 = sphi 0, %s315
    %s330 = sphi 0, %s316
    %s334 = sphi 0, %s334
    %s336 = sphi 0, %s334
    %s337 = sphi 0, %s336
    %s351 = sphi 0, %s337
    %s355 = sphi 0, %s355
    %s357 = sphi 0, %s355
    %s358 = sphi 0, %s357
    %s372 = sphi 0, %s358
    %s378 = sphi 0, %s380
    %s381 = sphi 0, %s378
    %s382 = sphi 0, %s381
    %s398 = sphi 0, %s382
  $region4: #{transformer_encoder_forward.3} parent=0 // loop_header_branch
    %25 = sbr.rel (%p23) target = $region8
  $region5: #{transformer_encoder_forward.3} parent=0 // loop_body
    %s27 = ssub.s32 %s22, 1
    %s28 = ssub.s32 %s22, 2
    %s29 = sadd.s32 %s22, 1
    %s30 = ssub.s32 %s22, %s29
    %p31 = scmp.eq.s32.totalorder %s30, 0
    %s33 = sadd.s32 %s32, 1
    %s34 = scalar_select %p31, %s32, %s33
    %p37 = pneg %p31
    %p38 = scmp.eq.s32.totalorder %s22, 1
    %p39 = por %p37, %p38
    %p40 = scmp.ne.s32.totalorder %s32, %s35
    %p41 = scmp.eq.s32.totalorder %s22, 0
    %p42 = por %p40, %p41
    %p43 = scmp.ne.s32.totalorder %s32, %s35
    %p44 = scmp.eq.s32.totalorder %s27, 1
    %p45 = por %p43, %p44
    %p46 = scmp.ne.s32.totalorder %s35, %s36
    %p47 = scmp.eq.s32.totalorder %s27, 0
    %p48 = por %p46, %p47
    %p49 = scmp.ne.s32.totalorder %s35, %s36
    %p50 = scmp.eq.s32.totalorder %s28, 1
    %p51 = por %p49, %p50
    %p53 = scmp.ne.s32.totalorder %s36, %s52
    %p54 = scmp.eq.s32.totalorder %s28, 0
    %p55 = por %p53, %p54
    %s56 = ssub.s32 %s22, %s29
    %p57 = scmp.eq.s32.totalorder %s56, 0
    %s59 = sadd.s32 %s58, 1
    %s60 = scalar_select %p57, %s58, %s59
    %p63 = pneg %p57
    %p64 = scmp.eq.s32.totalorder %s22, 1
    %p65 = por %p63, %p64
    %p66 = scmp.ne.s32.totalorder %s58, %s61
    %p67 = scmp.eq.s32.totalorder %s22, 0
    %p68 = por %p66, %p67
    %p69 = scmp.ne.s32.totalorder %s58, %s61
    %p70 = scmp.eq.s32.totalorder %s27, 1
    %p71 = por %p69, %p70
    %p72 = scmp.ne.s32.totalorder %s61, %s62
    %p73 = scmp.eq.s32.totalorder %s27, 0
    %p74 = por %p72, %p73
    %p75 = scmp.ne.s32.totalorder %s61, %s62
    %p76 = scmp.eq.s32.totalorder %s28, 1
    %p77 = por %p75, %p76
    %p79 = scmp.ne.s32.totalorder %s62, %s78
    %p80 = scmp.eq.s32.totalorder %s28, 0
    %p81 = por %p79, %p80
    %s83 = sadd.s32 %s82, 1
    %p86 = scmp.eq.s32.totalorder %s22, 1
    %p87 = scmp.ne.s32.totalorder %s82, %s84
    %p88 = scmp.eq.s32.totalorder %s22, 0
    %p89 = por %p87, %p88
    %p90 = scmp.ne.s32.totalorder %s82, %s84
    %p91 = scmp.eq.s32.totalorder %s27, 1
    %p92 = por %p90, %p91
    %p93 = scmp.ne.s32.totalorder %s84, %s85
    %p94 = scmp.eq.s32.totalorder %s27, 0
    %p95 = por %p93, %p94
    %p96 = scmp.ne.s32.totalorder %s84, %s85
    %p97 = scmp.eq.s32.totalorder %s28, 1
    %p98 = por %p96, %p97
    %p100 = scmp.ne.s32.totalorder %s85, %s99
    %p101 = scmp.eq.s32.totalorder %s28, 0
    %p102 = por %p100, %p101
    %s104 = sadd.s32 %s103, 1
    %p107 = scmp.eq.s32.totalorder %s22, 1
    %p108 = scmp.ne.s32.totalorder %s103, %s105
    %p109 = scmp.eq.s32.totalorder %s22, 0
    %p110 = por %p108, %p109
    %p111 = scmp.ne.s32.totalorder %s103, %s105
    %p112 = scmp.eq.s32.totalorder %s27, 1
    %p113 = por %p111, %p112
    %p114 = scmp.ne.s32.totalorder %s105, %s106
    %p115 = scmp.eq.s32.totalorder %s27, 0
    %p116 = por %p114, %p115
    %p117 = scmp.ne.s32.totalorder %s105, %s106
    %p118 = scmp.eq.s32.totalorder %s28, 1
    %p119 = por %p117, %p118
    %p121 = scmp.ne.s32.totalorder %s106, %s120
    %p122 = scmp.eq.s32.totalorder %s28, 0
    %p123 = por %p121, %p122
    %s125 = sadd.s32 %s124, 1
    %p128 = scmp.eq.s32.totalorder %s22, 1
    %p129 = scmp.ne.s32.totalorder %s124, %s126
    %p130 = scmp.eq.s32.totalorder %s22, 0
    %p131 = por %p129, %p130
    %p132 = scmp.ne.s32.totalorder %s124, %s126
    %p133 = scmp.eq.s32.totalorder %s27, 1
    %p134 = por %p132, %p133
    %p135 = scmp.ne.s32.totalorder %s126, %s127
    %p136 = scmp.eq.s32.totalorder %s27, 0
    %p137 = por %p135, %p136
    %p138 = scmp.ne.s32.totalorder %s126, %s127
    %p139 = scmp.eq.s32.totalorder %s28, 1
    %p140 = por %p138, %p139
    %p142 = scmp.ne.s32.totalorder %s127, %s141
    %p143 = scmp.eq.s32.totalorder %s28, 0
    %p144 = por %p142, %p143
    %s146 = sadd.s32 %s145, 1
    %p149 = scmp.eq.s32.totalorder %s22, 1
    %p150 = scmp.ne.s32.totalorder %s145, %s147
    %p151 = scmp.eq.s32.totalorder %s22, 0
    %p152 = por %p150, %p151
    %p153 = scmp.ne.s32.totalorder %s145, %s147
    %p154 = scmp.eq.s32.totalorder %s27, 1
    %p155 = por %p153, %p154
    %p156 = scmp.ne.s32.totalorder %s147, %s148
    %p157 = scmp.eq.s32.totalorder %s27, 0
    %p158 = por %p156, %p157
    %p159 = scmp.ne.s32.totalorder %s147, %s148
    %p160 = scmp.eq.s32.totalorder %s28, 1
    %p161 = por %p159, %p160
    %p163 = scmp.ne.s32.totalorder %s148, %s162
    %p164 = scmp.eq.s32.totalorder %s28, 0
    %p165 = por %p163, %p164
    %s167 = sadd.s32 %s166, 1
    %p170 = scmp.eq.s32.totalorder %s22, 1
    %p171 = scmp.ne.s32.totalorder %s166, %s168
    %p172 = scmp.eq.s32.totalorder %s22, 0
    %p173 = por %p171, %p172
    %p174 = scmp.ne.s32.totalorder %s166, %s168
    %p175 = scmp.eq.s32.totalorder %s27, 1
    %p176 = por %p174, %p175
    %p177 = scmp.ne.s32.totalorder %s168, %s169
    %p178 = scmp.eq.s32.totalorder %s27, 0
    %p179 = por %p177, %p178
    %p180 = scmp.ne.s32.totalorder %s168, %s169
    %p181 = scmp.eq.s32.totalorder %s28, 1
    %p182 = por %p180, %p181
    %p184 = scmp.ne.s32.totalorder %s169, %s183
    %p185 = scmp.eq.s32.totalorder %s28, 0
    %p186 = por %p184, %p185
    %s188 = sadd.s32 %s187, 1
    %p191 = scmp.eq.s32.totalorder %s22, 1
    %p192 = scmp.ne.s32.totalorder %s187, %s189
    %p193 = scmp.eq.s32.totalorder %s22, 0
    %p194 = por %p192, %p193
    %p195 = scmp.ne.s32.totalorder %s187, %s189
    %p196 = scmp.eq.s32.totalorder %s27, 1
    %p197 = por %p195, %p196
    %p198 = scmp.ne.s32.totalorder %s189, %s190
    %p199 = scmp.eq.s32.totalorder %s27, 0
    %p200 = por %p198, %p199
    %p201 = scmp.ne.s32.totalorder %s189, %s190
    %p202 = scmp.eq.s32.totalorder %s28, 1
    %p203 = por %p201, %p202
    %p205 = scmp.ne.s32.totalorder %s190, %s204
    %p206 = scmp.eq.s32.totalorder %s28, 0
    %p207 = por %p205, %p206
    %s209 = sadd.s32 %s208, 1
    %p212 = scmp.eq.s32.totalorder %s22, 1
    %p213 = scmp.ne.s32.totalorder %s208, %s210
    %p214 = scmp.eq.s32.totalorder %s22, 0
    %p215 = por %p213, %p214
    %p216 = scmp.ne.s32.totalorder %s208, %s210
    %p217 = scmp.eq.s32.totalorder %s27, 1
    %p218 = por %p216, %p217
    %p219 = scmp.ne.s32.totalorder %s210, %s211
    %p220 = scmp.eq.s32.totalorder %s27, 0
    %p221 = por %p219, %p220
    %p222 = scmp.ne.s32.totalorder %s210, %s211
    %p223 = scmp.eq.s32.totalorder %s28, 1
    %p224 = por %p222, %p223
    %p226 = scmp.ne.s32.totalorder %s211, %s225
    %p227 = scmp.eq.s32.totalorder %s28, 0
    %p228 = por %p226, %p227
    %s230 = sadd.s32 %s229, 1
    %p233 = scmp.eq.s32.totalorder %s22, 1
    %p234 = scmp.ne.s32.totalorder %s229, %s231
    %p235 = scmp.eq.s32.totalorder %s22, 0
    %p236 = por %p234, %p235
    %p237 = scmp.ne.s32.totalorder %s229, %s231
    %p238 = scmp.eq.s32.totalorder %s27, 1
    %p239 = por %p237, %p238
    %p240 = scmp.ne.s32.totalorder %s231, %s232
    %p241 = scmp.eq.s32.totalorder %s27, 0
    %p242 = por %p240, %p241
    %p243 = scmp.ne.s32.totalorder %s231, %s232
    %p244 = scmp.eq.s32.totalorder %s28, 1
    %p245 = por %p243, %p244
    %p247 = scmp.ne.s32.totalorder %s232, %s246
    %p248 = scmp.eq.s32.totalorder %s28, 0
    %p249 = por %p247, %p248
    %s251 = sadd.s32 %s250, 1
    %p254 = scmp.eq.s32.totalorder %s22, 1
    %p255 = scmp.ne.s32.totalorder %s250, %s252
    %p256 = scmp.eq.s32.totalorder %s22, 0
    %p257 = por %p255, %p256
    %p258 = scmp.ne.s32.totalorder %s250, %s252
    %p259 = scmp.eq.s32.totalorder %s27, 1
    %p260 = por %p258, %p259
    %p261 = scmp.ne.s32.totalorder %s252, %s253
    %p262 = scmp.eq.s32.totalorder %s27, 0
    %p263 = por %p261, %p262
    %p264 = scmp.ne.s32.totalorder %s252, %s253
    %p265 = scmp.eq.s32.totalorder %s28, 1
    %p266 = por %p264, %p265
    %p268 = scmp.ne.s32.totalorder %s253, %s267
    %p269 = scmp.eq.s32.totalorder %s28, 0
    %p270 = por %p268, %p269
    %s272 = sadd.s32 %s271, 1
    %p275 = scmp.eq.s32.totalorder %s22, 1
    %p276 = scmp.ne.s32.totalorder %s271, %s273
    %p277 = scmp.eq.s32.totalorder %s22, 0
    %p278 = por %p276, %p277
    %p279 = scmp.ne.s32.totalorder %s271, %s273
    %p280 = scmp.eq.s32.totalorder %s27, 1
    %p281 = por %p279, %p280
    %p282 = scmp.ne.s32.totalorder %s273, %s274
    %p283 = scmp.eq.s32.totalorder %s27, 0
    %p284 = por %p282, %p283
    %p285 = scmp.ne.s32.totalorder %s273, %s274
    %p286 = scmp.eq.s32.totalorder %s28, 1
    %p287 = por %p285, %p286
    %p289 = scmp.ne.s32.totalorder %s274, %s288
    %p290 = scmp.eq.s32.totalorder %s28, 0
    %p291 = por %p289, %p290
    %s293 = sadd.s32 %s292, 1
    %p296 = scmp.eq.s32.totalorder %s22, 1
    %p297 = scmp.ne.s32.totalorder %s292, %s294
    %p298 = scmp.eq.s32.totalorder %s22, 0
    %p299 = por %p297, %p298
    %p300 = scmp.ne.s32.totalorder %s292, %s294
    %p301 = scmp.eq.s32.totalorder %s27, 1
    %p302 = por %p300, %p301
    %p303 = scmp.ne.s32.totalorder %s294, %s295
    %p304 = scmp.eq.s32.totalorder %s27, 0
    %p305 = por %p303, %p304
    %p306 = scmp.ne.s32.totalorder %s294, %s295
    %p307 = scmp.eq.s32.totalorder %s28, 1
    %p308 = por %p306, %p307
    %p310 = scmp.ne.s32.totalorder %s295, %s309
    %p311 = scmp.eq.s32.totalorder %s28, 0
    %p312 = por %p310, %p311
    %s314 = sadd.s32 %s313, 1
    %p317 = scmp.eq.s32.totalorder %s22, 1
    %p318 = scmp.ne.s32.totalorder %s313, %s315
    %p319 = scmp.eq.s32.totalorder %s22, 0
    %p320 = por %p318, %p319
    %p321 = scmp.ne.s32.totalorder %s313, %s315
    %p322 = scmp.eq.s32.totalorder %s27, 1
    %p323 = por %p321, %p322
    %p324 = scmp.ne.s32.totalorder %s315, %s316
    %p325 = scmp.eq.s32.totalorder %s27, 0
    %p326 = por %p324, %p325
    %p327 = scmp.ne.s32.totalorder %s315, %s316
    %p328 = scmp.eq.s32.totalorder %s28, 1
    %p329 = por %p327, %p328
    %p331 = scmp.ne.s32.totalorder %s316, %s330
    %p332 = scmp.eq.s32.totalorder %s28, 0
    %p333 = por %p331, %p332
    %s335 = sadd.s32 %s334, 1
    %p338 = scmp.eq.s32.totalorder %s22, 1
    %p339 = scmp.ne.s32.totalorder %s334, %s336
    %p340 = scmp.eq.s32.totalorder %s22, 0
    %p341 = por %p339, %p340
    %p342 = scmp.ne.s32.totalorder %s334, %s336
    %p343 = scmp.eq.s32.totalorder %s27, 1
    %p344 = por %p342, %p343
    %p345 = scmp.ne.s32.totalorder %s336, %s337
    %p346 = scmp.eq.s32.totalorder %s27, 0
    %p347 = por %p345, %p346
    %p348 = scmp.ne.s32.totalorder %s336, %s337
    %p349 = scmp.eq.s32.totalorder %s28, 1
    %p350 = por %p348, %p349
    %p352 = scmp.ne.s32.totalorder %s337, %s351
    %p353 = scmp.eq.s32.totalorder %s28, 0
    %p354 = por %p352, %p353
    %s356 = sadd.s32 %s355, 1
    %p359 = scmp.eq.s32.totalorder %s22, 1
    %p360 = scmp.ne.s32.totalorder %s355, %s357
    %p361 = scmp.eq.s32.totalorder %s22, 0
    %p362 = por %p360, %p361
    %p363 = scmp.ne.s32.totalorder %s355, %s357
    %p364 = scmp.eq.s32.totalorder %s27, 1
    %p365 = por %p363, %p364
    %p366 = scmp.ne.s32.totalorder %s357, %s358
    %p367 = scmp.eq.s32.totalorder %s27, 0
    %p368 = por %p366, %p367
    %p369 = scmp.ne.s32.totalorder %s357, %s358
    %p370 = scmp.eq.s32.totalorder %s28, 1
    %p371 = por %p369, %p370
    %p373 = scmp.ne.s32.totalorder %s358, %s372
    %p374 = scmp.eq.s32.totalorder %s28, 0
    %p375 = por %p373, %p374
    %s376 = ssub.s32 %s22, %s29
    %p377 = scmp.eq.s32.totalorder %s376, 0
    %s379 = sadd.s32 %s378, 1
    %s380 = scalar_select %p377, %s378, %s379
    %p383 = pneg %p377
    %p384 = scmp.eq.s32.totalorder %s22, 1
    %p385 = por %p383, %p384
    %p386 = scmp.ne.s32.totalorder %s378, %s381
    %p387 = scmp.eq.s32.totalorder %s22, 0
    %p388 = por %p386, %p387
    %p389 = scmp.ne.s32.totalorder %s378, %s381
    %p390 = scmp.eq.s32.totalorder %s27, 1
    %p391 = por %p389, %p390
    %p392 = scmp.ne.s32.totalorder %s381, %s382
    %p393 = scmp.eq.s32.totalorder %s27, 0
    %p394 = por %p392, %p393
    %p395 = scmp.ne.s32.totalorder %s381, %s382
    %p396 = scmp.eq.s32.totalorder %s28, 1
    %p397 = por %p395, %p396
    %p399 = scmp.ne.s32.totalorder %s382, %s398
    %p400 = scmp.eq.s32.totalorder %s28, 0
    %p401 = por %p399, %p400
    %p402 = scmp.le.s32.totalorder 1, %s22
    %p403 = scmp.lt.s32.totalorder %s22, 3
    %p404 = pnand %p402, %p403
    %p405 = pneg %p404
    // Predicated region
    $region9: #{transformer_encoder_forward.3} parent=5 // pred_check
      _
    $region10: #{transformer_encoder_forward.3} parent=5 // pred_check_branch
      %407 = sbr.rel (%p404) target = $region12
    $region11: #{transformer_encoder_forward.3} parent=5 // pred_region
      %s408 = ssub.s32 %s22, 1
      // Predicated region
      $region13: #{transformer_encoder_forward.3} parent=11 // pred_check
        %p409 = pneg %p95
      $region14: #{transformer_encoder_forward.3} parent=11 // pred_check_branch
        %411 = sbr.rel (%p409) target = $region16
      $region15: #{transformer_encoder_forward.3} parent=11 // pred_region
        _
      $region16: #{transformer_encoder_forward.3} parent=11 // pred_fallthru
        _
      // Predicated region
      $region17: #{transformer_encoder_forward.3} parent=11 // pred_check
        %p412 = pneg %p116
      $region18: #{transformer_encoder_forward.3} parent=11 // pred_check_branch
        %414 = sbr.rel (%p412) target = $region20
      $region19: #{transformer_encoder_forward.3} parent=11 // pred_region
        _
      $region20: #{transformer_encoder_forward.3} parent=11 // pred_fallthru
        _
      // Predicated region
      $region21: #{transformer_encoder_forward.3} parent=11 // pred_check
        %p415 = pneg %p137
      $region22: #{transformer_encoder_forward.3} parent=11 // pred_check_branch
        %417 = sbr.rel (%p415) target = $region24
      $region23: #{transformer_encoder_forward.3} parent=11 // pred_region
        _
      $region24: #{transformer_encoder_forward.3} parent=11 // pred_fallthru
        _
      // Predicated region
      $region25: #{transformer_encoder_forward.3} parent=11 // pred_check
        %p418 = pneg %p158
      $region26: #{transformer_encoder_forward.3} parent=11 // pred_check_branch
        %420 = sbr.rel (%p418) target = $region28
      $region27: #{transformer_encoder_forward.3} parent=11 // pred_region
        _
      $region28: #{transformer_encoder_forward.3} parent=11 // pred_fallthru
        _
      // Predicated region
      $region29: #{transformer_encoder_forward.3} parent=11 // pred_check
        %p421 = pneg %p179
      $region30: #{transformer_encoder_forward.3} parent=11 // pred_check_branch
        %423 = sbr.rel (%p421) target = $region32
      $region31: #{transformer_encoder_forward.3} parent=11 // pred_region
        _
      $region32: #{transformer_encoder_forward.3} parent=11 // pred_fallthru
        _
      // Predicated region
      $region33: #{transformer_encoder_forward.3} parent=11 // pred_check
        %p424 = pneg %p200
      $region34: #{transformer_encoder_forward.3} parent=11 // pred_check_branch
        %426 = sbr.rel (%p424) target = $region36
      $region35: #{transformer_encoder_forward.3} parent=11 // pred_region
        _
      $region36: #{transformer_encoder_forward.3} parent=11 // pred_fallthru
        _
      // Predicated region
      $region37: #{transformer_encoder_forward.3} parent=11 // pred_check
        %p427 = pneg %p221
      $region38: #{transformer_encoder_forward.3} parent=11 // pred_check_branch
        %429 = sbr.rel (%p427) target = $region40
      $region39: #{transformer_encoder_forward.3} parent=11 // pred_region
        _
      $region40: #{transformer_encoder_forward.3} parent=11 // pred_fallthru
        _
      // Predicated region
      $region41: #{transformer_encoder_forward.3} parent=11 // pred_check
        %p430 = pneg %p242
      $region42: #{transformer_encoder_forward.3} parent=11 // pred_check_branch
        %432 = sbr.rel (%p430) target = $region44
      $region43: #{transformer_encoder_forward.3} parent=11 // pred_region
        _
      $region44: #{transformer_encoder_forward.3} parent=11 // pred_fallthru
        _
      // Predicated region
      $region45: #{transformer_encoder_forward.3} parent=11 // pred_check
        %p433 = pneg %p263
      $region46: #{transformer_encoder_forward.3} parent=11 // pred_check_branch
        %435 = sbr.rel (%p433) target = $region48
      $region47: #{transformer_encoder_forward.3} parent=11 // pred_region
        _
      $region48: #{transformer_encoder_forward.3} parent=11 // pred_fallthru
        _
      // Predicated region
      $region49: #{transformer_encoder_forward.3} parent=11 // pred_check
        %p436 = pneg %p284
      $region50: #{transformer_encoder_forward.3} parent=11 // pred_check_branch
        %438 = sbr.rel (%p436) target = $region52
      $region51: #{transformer_encoder_forward.3} parent=11 // pred_region
        _
      $region52: #{transformer_encoder_forward.3} parent=11 // pred_fallthru
        _
      // Predicated region
      $region53: #{transformer_encoder_forward.3} parent=11 // pred_check
        %p439 = pneg %p305
      $region54: #{transformer_encoder_forward.3} parent=11 // pred_check_branch
        %441 = sbr.rel (%p439) target = $region56
      $region55: #{transformer_encoder_forward.3} parent=11 // pred_region
        _
      $region56: #{transformer_encoder_forward.3} parent=11 // pred_fallthru
        _
      // Predicated region
      $region57: #{transformer_encoder_forward.3} parent=11 // pred_check
        %p442 = pneg %p326
      $region58: #{transformer_encoder_forward.3} parent=11 // pred_check_branch
        %444 = sbr.rel (%p442) target = $region60
      $region59: #{transformer_encoder_forward.3} parent=11 // pred_region
        _
      $region60: #{transformer_encoder_forward.3} parent=11 // pred_fallthru
        _
      // Predicated region
      $region61: #{transformer_encoder_forward.3} parent=11 // pred_check
        %p445 = pneg %p347
      $region62: #{transformer_encoder_forward.3} parent=11 // pred_check_branch
        %447 = sbr.rel (%p445) target = $region64
      $region63: #{transformer_encoder_forward.3} parent=11 // pred_region
        _
      $region64: #{transformer_encoder_forward.3} parent=11 // pred_fallthru
        _
      // Predicated region
      $region65: #{transformer_encoder_forward.3} parent=11 // pred_check
        %p448 = pneg %p368
      $region66: #{transformer_encoder_forward.3} parent=11 // pred_check_branch
        %450 = sbr.rel (%p448) target = $region68
      $region67: #{transformer_encoder_forward.3} parent=11 // pred_region
        _
      $region68: #{transformer_encoder_forward.3} parent=11 // pred_fallthru
        _
    $region12: #{transformer_encoder_forward.3} parent=5 // pred_fallthru
      _
    %p451 = scmp.lt.s32.totalorder %s22, 2
    // Predicated region
    $region69: #{transformer_encoder_forward.3} parent=5 // pred_check
      %p452 = pneg %p451
    $region70: #{transformer_encoder_forward.3} parent=5 // pred_check_branch
      %454 = sbr.rel (%p452) target = $region72
    $region71: #{transformer_encoder_forward.3} parent=5 // pred_region
      // Predicated region
      $region73: #{transformer_encoder_forward.3} parent=71 // pred_check
        %p455 = pneg %p42
      $region74: #{transformer_encoder_forward.3} parent=71 // pred_check_branch
        %457 = sbr.rel (%p455) target = $region76
      $region75: #{transformer_encoder_forward.3} parent=71 // pred_region
        %p458 = scmp.lt.s32.totalorder %s22, 1
        %s459 = scalar_select %p458, %s22, 1
        %s460 = smul.addr %s459, 16
        %s461 = smul.addr %s460, 8
        %s462 = scalar_lea.vmem %s0, %s461
      $region76: #{transformer_encoder_forward.3} parent=71 // pred_fallthru
        _
      // Predicated region
      $region77: #{transformer_encoder_forward.3} parent=71 // pred_check
        %p463 = pneg %p68
      $region78: #{transformer_encoder_forward.3} parent=71 // pred_check_branch
        %465 = sbr.rel (%p463) target = $region80
      $region79: #{transformer_encoder_forward.3} parent=71 // pred_region
        %p466 = scmp.lt.s32.totalorder %s22, 1
        %s467 = scalar_select %p466, %s22, 1
        %s468 = scalar_lea.vmem %s1, %s467
      $region80: #{transformer_encoder_forward.3} parent=71 // pred_fallthru
        _
    $region72: #{transformer_encoder_forward.3} parent=5 // pred_fallthru
      _
    %p469 = scmp.le.s32.totalorder 1, %s22
    %p470 = scmp.lt.s32.totalorder %s22, 3
    %p471 = pnand %p469, %p470
    %p472 = pneg %p471
    // Predicated region
    $region81: #{transformer_encoder_forward.3} parent=5 // pred_check
      _
    $region82: #{transformer_encoder_forward.3} parent=5 // pred_check_branch
      %474 = sbr.rel (%p471) target = $region84
    $region83: #{transformer_encoder_forward.3} parent=5 // pred_region
      %s475 = ssub.s32 %s22, 1
      %p476 = scmp.lt.s32.totalorder %s27, 1
      %s477 = scalar_select %p476, %s27, 1
      %s478 = smul.addr %s477, 16
      %s479 = smul.addr %s478, 8
      %s480 = scalar_lea.vmem %s0, %s479
      %p481 = pneg %p48
      %p482 = pneg %p45
      %p483 = scmp.lt.s32.totalorder %s27, 1
      %s484 = scalar_select %p483, %s27, 1
      %s485 = scalar_lea.vmem %s1, %s484
      %p486 = pneg %p74
      %p487 = pneg %p71
      %p488 = pneg %p95
      %p489 = pneg %p92
      %p490 = pneg %p116
      %p491 = pneg %p113
      %p492 = pneg %p137
      %p493 = pneg %p134
      %p494 = pneg %p158
      %p495 = pneg %p155
      %p496 = pneg %p179
      %p497 = pneg %p176
      %p498 = pneg %p200
      %p499 = pneg %p197
      %p500 = pneg %p221
      %p501 = pneg %p218
      %p502 = pneg %p242
      %p503 = pneg %p239
      %p504 = pneg %p263
      %p505 = pneg %p260
      %p506 = pneg %p284
      %p507 = pneg %p281
      %p508 = pneg %p305
      %p509 = pneg %p302
      %p510 = pneg %p326
      %p511 = pneg %p323
      %p512 = pneg %p347
      %p513 = pneg %p344
      %p514 = pneg %p368
      %p515 = pneg %p365
      %p516 = pneg %p394
      %p517 = pneg %p391
      %p518 = scmp.lt.s32.totalorder %s27, 1
      %s519 = scalar_select %p518, %s27, 1
      %s520 = smul.addr %s519, 16
      %s521 = smul.addr %s520, 8
      %s522 = scalar_lea.vmem %s16, %s521
      %p523 = scmp.lt.s32.totalorder %s27, 1
      %s524 = scalar_select %p523, %s27, 1
      %s525 = smul.addr %s524, 16
      %s526 = smul.addr %s525, 8
      %s527 = scalar_lea.vmem %s0, %s526
      %p528 = scmp.lt.s32.totalorder %s27, 1
      %s529 = scalar_select %p528, %s27, 1
      %s530 = scalar_lea.vmem %s1, %s529
      %p531 = scmp.lt.s32.totalorder %s27, 1
      %s532 = scalar_select %p531, %s27, 1
      %s533 = smul.addr %s532, 16
      %s534 = smul.addr %s533, 8
      %s535 = scalar_lea.vmem %s16, %s534
      %v537 = vld [vmem:[%s527] sm:$0xff]
      %v538 = vld [vmem:[%s527 + $0x8] sm:$0xff]
      %v539 = vld [vmem:[%s527 + $0x10] sm:$0xff]
      %v540 = vld [vmem:[%s527 + $0x18] sm:$0xff]
      %v541 = vld [vmem:[%s527 + $0x20] sm:$0xff]
      %v542 = vld [vmem:[%s527 + $0x28] sm:$0xff]
      %v543 = vld [vmem:[%s527 + $0x30] sm:$0xff]
      %v544 = vld [vmem:[%s527 + $0x38] sm:$0xff]
      %v545 = vld [vmem:[%s527 + $0x40] sm:$0xff]
      %v546 = vld [vmem:[%s527 + $0x48] sm:$0xff]
      %v547 = vld [vmem:[%s527 + $0x50] sm:$0xff]
      %v548 = vld [vmem:[%s527 + $0x58] sm:$0xff]
      %v549 = vld [vmem:[%s527 + $0x60] sm:$0xff]
      %v550 = vld [vmem:[%s527 + $0x68] sm:$0xff]
      %v551 = vld [vmem:[%s527 + $0x70] sm:$0xff]
      %v552 = vld [vmem:[%s527 + $0x78] sm:$0xff]
      %v553 = vld [vmem:[%s2] sm:$0x1]
      %v554 = vld [vmem:[%s3] sm:$0x1]
      %555 = vadd.xlane.f32.xlu0 %v537
      %v556 = vpop.xlane.xlu0 %555
      %557 = vadd.xlane.f32.xlu0 %v538
      %v558 = vpop.xlane.xlu0 %557
      %559 = vadd.xlane.f32.xlu0 %v539
      %v560 = vpop.xlane.xlu0 %559
      %561 = vadd.xlane.f32.xlu0 %v540
      %v562 = vpop.xlane.xlu0 %561
      %563 = vadd.xlane.f32.xlu0 %v541
      %v564 = vpop.xlane.xlu0 %563
      %565 = vadd.xlane.f32.xlu0 %v542
      %v566 = vpop.xlane.xlu0 %565
      %567 = vadd.xlane.f32.xlu0 %v543
      %v568 = vpop.xlane.xlu0 %567
      %569 = vadd.xlane.f32.xlu0 %v544
      %v570 = vpop.xlane.xlu0 %569
      %571 = vadd.xlane.f32.xlu0 %v545
      %v572 = vpop.xlane.xlu0 %571
      %573 = vadd.xlane.f32.xlu0 %v546
      %v574 = vpop.xlane.xlu0 %573
      %575 = vadd.xlane.f32.xlu0 %v547
      %v576 = vpop.xlane.xlu0 %575
      %577 = vadd.xlane.f32.xlu0 %v548
      %v578 = vpop.xlane.xlu0 %577
      %579 = vadd.xlane.f32.xlu0 %v549
      %v580 = vpop.xlane.xlu0 %579
      %581 = vadd.xlane.f32.xlu0 %v550
      %v582 = vpop.xlane.xlu0 %581
      %583 = vadd.xlane.f32.xlu0 %v551
      %v584 = vpop.xlane.xlu0 %583
      %585 = vadd.xlane.f32.xlu0 %v552
      %v586 = vpop.xlane.xlu0 %585
      %v587 = vrcp.pop 128.0
      %v588 = vmul.f32 %v556, %v587
      %v589 = vmul.f32 %v558, %v587
      %v590 = vmul.f32 %v560, %v587
      %v591 = vmul.f32 %v562, %v587
      %v592 = vmul.f32 %v564, %v587
      %v593 = vmul.f32 %v566, %v587
      %v594 = vmul.f32 %v568, %v587
      %v595 = vmul.f32 %v570, %v587
      %v596 = vmul.f32 %v572, %v587
      %v597 = vmul.f32 %v574, %v587
      %v598 = vmul.f32 %v576, %v587
      %v599 = vmul.f32 %v578, %v587
      %v600 = vmul.f32 %v580, %v587
      %v601 = vmul.f32 %v582, %v587
      %v602 = vmul.f32 %v584, %v587
      %v603 = vmul.f32 %v586, %v587
      %v604 = vsub.f32 %v537, %v588
      %v605 = vsub.f32 %v538, %v589
      %v606 = vsub.f32 %v539, %v590
      %v607 = vsub.f32 %v540, %v591
      %v608 = vsub.f32 %v541, %v592
      %v609 = vsub.f32 %v542, %v593
      %v610 = vsub.f32 %v543, %v594
      %v611 = vsub.f32 %v544, %v595
      %v612 = vsub.f32 %v545, %v596
      %v613 = vsub.f32 %v546, %v597
      %v614 = vsub.f32 %v547, %v598
      %v615 = vsub.f32 %v548, %v599
      %v616 = vsub.f32 %v549, %v600
      %v617 = vsub.f32 %v550, %v601
      %v618 = vsub.f32 %v551, %v602
      %v619 = vsub.f32 %v552, %v603
      %v620 = vmul.f32 %v604, %v604
      %v621 = vmul.f32 %v605, %v605
      %v622 = vmul.f32 %v606, %v606
      %v623 = vmul.f32 %v607, %v607
      %v624 = vmul.f32 %v608, %v608
      %v625 = vmul.f32 %v609, %v609
      %v626 = vmul.f32 %v610, %v610
      %v627 = vmul.f32 %v611, %v611
      %v628 = vmul.f32 %v612, %v612
      %v629 = vmul.f32 %v613, %v613
      %v630 = vmul.f32 %v614, %v614
      %v631 = vmul.f32 %v615, %v615
      %v632 = vmul.f32 %v616, %v616
      %v633 = vmul.f32 %v617, %v617
      %v634 = vmul.f32 %v618, %v618
      %v635 = vmul.f32 %v619, %v619
      %636 = vadd.xlane.f32.xlu0 %v620
      %v637 = vpop.xlane.xlu0 %636
      %638 = vadd.xlane.f32.xlu0 %v621
      %v639 = vpop.xlane.xlu0 %638
      %640 = vadd.xlane.f32.xlu0 %v622
      %v641 = vpop.xlane.xlu0 %640
      %642 = vadd.xlane.f32.xlu0 %v623
      %v643 = vpop.xlane.xlu0 %642
      %644 = vadd.xlane.f32.xlu0 %v624
      %v645 = vpop.xlane.xlu0 %644
      %646 = vadd.xlane.f32.xlu0 %v625
      %v647 = vpop.xlane.xlu0 %646
      %648 = vadd.xlane.f32.xlu0 %v626
      %v649 = vpop.xlane.xlu0 %648
      %650 = vadd.xlane.f32.xlu0 %v627
      %v651 = vpop.xlane.xlu0 %650
      %652 = vadd.xlane.f32.xlu0 %v628
      %v653 = vpop.xlane.xlu0 %652
      %654 = vadd.xlane.f32.xlu0 %v629
      %v655 = vpop.xlane.xlu0 %654
      %656 = vadd.xlane.f32.xlu0 %v630
      %v657 = vpop.xlane.xlu0 %656
      %658 = vadd.xlane.f32.xlu0 %v631
      %v659 = vpop.xlane.xlu0 %658
      %660 = vadd.xlane.f32.xlu0 %v632
      %v661 = vpop.xlane.xlu0 %660
      %662 = vadd.xlane.f32.xlu0 %v633
      %v663 = vpop.xlane.xlu0 %662
      %664 = vadd.xlane.f32.xlu0 %v634
      %v665 = vpop.xlane.xlu0 %664
      %666 = vadd.xlane.f32.xlu0 %v635
      %v667 = vpop.xlane.xlu0 %666
      %v668 = vmul.f32 %v637, %v587
      %v669 = vmul.f32 %v639, %v587
      %v670 = vmul.f32 %v641, %v587
      %v671 = vmul.f32 %v643, %v587
      %v672 = vmul.f32 %v645, %v587
      %v673 = vmul.f32 %v647, %v587
      %v674 = vmul.f32 %v649, %v587
      %v675 = vmul.f32 %v651, %v587
      %v676 = vmul.f32 %v653, %v587
      %v677 = vmul.f32 %v655, %v587
      %v678 = vmul.f32 %v657, %v587
      %v679 = vmul.f32 %v659, %v587
      %v680 = vmul.f32 %v661, %v587
      %v681 = vmul.f32 %v663, %v587
      %v682 = vmul.f32 %v665, %v587
      %v683 = vmul.f32 %v667, %v587
      %v684 = vadd.f32 %v668, 1e-06
      %v685 = vadd.f32 %v669, 1e-06
      %v686 = vadd.f32 %v670, 1e-06
      %v687 = vadd.f32 %v671, 1e-06
      %v688 = vadd.f32 %v672, 1e-06
      %v689 = vadd.f32 %v673, 1e-06
      %v690 = vadd.f32 %v674, 1e-06
      %v691 = vadd.f32 %v675, 1e-06
      %v692 = vadd.f32 %v676, 1e-06
      %v693 = vadd.f32 %v677, 1e-06
      %v694 = vadd.f32 %v678, 1e-06
      %v695 = vadd.f32 %v679, 1e-06
      %v696 = vadd.f32 %v680, 1e-06
      %v697 = vadd.f32 %v681, 1e-06
      %v698 = vadd.f32 %v682, 1e-06
      %v699 = vadd.f32 %v683, 1e-06
      %v700 = vrsqrt.pop %v684
      %v701 = vrsqrt.pop %v685
      %v702 = vrsqrt.pop %v686
      %v703 = vrsqrt.pop %v687
      %v704 = vrsqrt.pop %v688
      %v705 = vrsqrt.pop %v689
      %v706 = vrsqrt.pop %v690
      %v707 = vrsqrt.pop %v691
      %v708 = vrsqrt.pop %v692
      %v709 = vrsqrt.pop %v693
      %v710 = vrsqrt.pop %v694
      %v711 = vrsqrt.pop %v695
      %v712 = vrsqrt.pop %v696
      %v713 = vrsqrt.pop %v697
      %v714 = vrsqrt.pop %v698
      %v715 = vrsqrt.pop %v699
      %v716 = vmul.f32 %v604, %v700
      %v717 = vmul.f32 %v605, %v701
      %v718 = vmul.f32 %v606, %v702
      %v719 = vmul.f32 %v607, %v703
      %v720 = vmul.f32 %v608, %v704
      %v721 = vmul.f32 %v609, %v705
      %v722 = vmul.f32 %v610, %v706
      %v723 = vmul.f32 %v611, %v707
      %v724 = vmul.f32 %v612, %v708
      %v725 = vmul.f32 %v613, %v709
      %v726 = vmul.f32 %v614, %v710
      %v727 = vmul.f32 %v615, %v711
      %v728 = vmul.f32 %v616, %v712
      %v729 = vmul.f32 %v617, %v713
      %v730 = vmul.f32 %v618, %v714
      %v731 = vmul.f32 %v619, %v715
      %v733 = vlaneseq
      %v734 = vshrl.u32 %v733, 7
      %v735 = vsub.s32 0, %v734
      %v736 = vrot.slane %v553, %v735
      %v738 = vmul.f32 %v716, %v736
      %v739 = vmul.f32 %v717, %v736
      %v740 = vmul.f32 %v718, %v736
      %v741 = vmul.f32 %v719, %v736
      %v742 = vmul.f32 %v720, %v736
      %v743 = vmul.f32 %v721, %v736
      %v744 = vmul.f32 %v722, %v736
      %v745 = vmul.f32 %v723, %v736
      %v746 = vmul.f32 %v724, %v736
      %v747 = vmul.f32 %v725, %v736
      %v748 = vmul.f32 %v726, %v736
      %v749 = vmul.f32 %v727, %v736
      %v750 = vmul.f32 %v728, %v736
      %v751 = vmul.f32 %v729, %v736
      %v752 = vmul.f32 %v730, %v736
      %v753 = vmul.f32 %v731, %v736
      %v755 = vlaneseq
      %v756 = vshrl.u32 %v755, 7
      %v757 = vsub.s32 0, %v756
      %v758 = vrot.slane %v554, %v757
      %v760 = vadd.f32 %v738, %v758
      %v761 = vadd.f32 %v739, %v758
      %v762 = vadd.f32 %v740, %v758
      %v763 = vadd.f32 %v741, %v758
      %v764 = vadd.f32 %v742, %v758
      %v765 = vadd.f32 %v743, %v758
      %v766 = vadd.f32 %v744, %v758
      %v767 = vadd.f32 %v745, %v758
      %v768 = vadd.f32 %v746, %v758
      %v769 = vadd.f32 %v747, %v758
      %v770 = vadd.f32 %v748, %v758
      %v771 = vadd.f32 %v749, %v758
      %v772 = vadd.f32 %v750, %v758
      %v773 = vadd.f32 %v751, %v758
      %v774 = vadd.f32 %v752, %v758
      %v775 = vadd.f32 %v753, %v758
      %v776 = vpack.c.bf16 %v761, %v760
      %v777 = vpack.c.bf16 %v763, %v762
      %v778 = vpack.c.bf16 %v765, %v764
      %v779 = vpack.c.bf16 %v767, %v766
      %v780 = vpack.c.bf16 %v769, %v768
      %v781 = vpack.c.bf16 %v771, %v770
      %v782 = vpack.c.bf16 %v773, %v772
      %v783 = vpack.c.bf16 %v775, %v774
      %v784 = vld [vmem:[%s4] sm:$0xff]
      %v785 = vld [vmem:[%s4 + $0x8] sm:$0xf]
      %v786 = vld [vmem:[%s4 + $0xc] sm:$0xff]
      %v787 = vld [vmem:[%s4 + $0x14] sm:$0xf]
      %v788 = vld [vmem:[%s4 + $0x18] sm:$0xff]
      %v789 = vld [vmem:[%s4 + $0x20] sm:$0xf]
      %v790 = vld [vmem:[%s4 + $0x24] sm:$0xff]
      %v791 = vld [vmem:[%s4 + $0x2c] sm:$0xf]
      %v792 = vld [vmem:[%s4 + $0x30] sm:$0xff]
      %v793 = vld [vmem:[%s4 + $0x38] sm:$0xf]
      %v794 = vld [vmem:[%s4 + $0x3c] sm:$0xff]
      %v795 = vld [vmem:[%s4 + $0x44] sm:$0xf]
      %v796 = vld [vmem:[%s4 + $0x48] sm:$0xff]
      %v797 = vld [vmem:[%s4 + $0x50] sm:$0xf]
      %v798 = vld [vmem:[%s4 + $0x54] sm:$0xff]
      %v799 = vld [vmem:[%s4 + $0x5c] sm:$0xf]
      %v800 = vld [vmem:[%s4 + $0x60] sm:$0xff]
      %v801 = vld [vmem:[%s4 + $0x68] sm:$0xf]
      %v802 = vld [vmem:[%s4 + $0x6c] sm:$0xff]
      %v803 = vld [vmem:[%s4 + $0x74] sm:$0xf]
      %v804 = vld [vmem:[%s4 + $0x78] sm:$0xff]
      %v805 = vld [vmem:[%s4 + $0x80] sm:$0xf]
      %v806 = vld [vmem:[%s4 + $0x84] sm:$0xff]
      %v807 = vld [vmem:[%s4 + $0x8c] sm:$0xf]
      %v808 = vld [vmem:[%s4 + $0x90] sm:$0xff]
      %v809 = vld [vmem:[%s4 + $0x98] sm:$0xf]
      %v810 = vld [vmem:[%s4 + $0x9c] sm:$0xff]
      %v811 = vld [vmem:[%s4 + $0xa4] sm:$0xf]
      %v812 = vld [vmem:[%s4 + $0xa8] sm:$0xff]
      %v813 = vld [vmem:[%s4 + $0xb0] sm:$0xf]
      %v814 = vld [vmem:[%s4 + $0xb4] sm:$0xff]
      %v815 = vld [vmem:[%s4 + $0xbc] sm:$0xf]
      %v816 = vld [vmem:[%s5] sm:$0x7]
      %v818 = vlaneseq
      %v819 = vshrl.u32 %v818, 7
      %v820 = vsub.s32 0, %v819
      %v821 = vrot.slane %v816, %v820
      %v822 = vlaneseq
      %v823 = vshrl.u32 %v822, 7
      %v824 = vsub.s32 1, %v823
      %v825 = vrot.slane %v816, %v824
      %v826 = vlaneseq
      %v827 = vshrl.u32 %v826, 7
      %v828 = vsub.s32 2, %v827
      %v829 = vrot.slane %v816, %v828
      %v865 = vunpack.c.l.b16 %v784
      %v866 = vunpack.c.h.b16 %v784
      %v867 = vunpack.c.l.b16 %v785
      %v868 = vunpack.c.l.b16 %v786
      %v869 = vunpack.c.h.b16 %v786
      %v870 = vunpack.c.l.b16 %v787
      %v871 = vunpack.c.l.b16 %v788
      %v872 = vunpack.c.h.b16 %v788
      %v873 = vunpack.c.l.b16 %v789
      %v874 = vunpack.c.l.b16 %v790
      %v875 = vunpack.c.h.b16 %v790
      %v876 = vunpack.c.l.b16 %v791
      %v877 = vunpack.c.l.b16 %v792
      %v878 = vunpack.c.h.b16 %v792
      %v879 = vunpack.c.l.b16 %v793
      %v880 = vunpack.c.l.b16 %v794
      %v881 = vunpack.c.h.b16 %v794
      %v882 = vunpack.c.l.b16 %v795
      %v883 = vunpack.c.l.b16 %v796
      %v884 = vunpack.c.h.b16 %v796
      %v885 = vunpack.c.l.b16 %v797
      %v886 = vunpack.c.l.b16 %v798
      %v887 = vunpack.c.h.b16 %v798
      %v888 = vunpack.c.l.b16 %v799
      %v889 = vunpack.c.l.b16 %v800
      %v890 = vunpack.c.h.b16 %v800
      %v891 = vunpack.c.l.b16 %v801
      %v892 = vunpack.c.l.b16 %v802
      %v893 = vunpack.c.h.b16 %v802
      %v894 = vunpack.c.l.b16 %v803
      %v895 = vunpack.c.l.b16 %v804
      %v896 = vunpack.c.h.b16 %v804
      %v897 = vunpack.c.l.b16 %v805
      %v898 = vunpack.c.l.b16 %v806
      %v899 = vunpack.c.h.b16 %v806
      %v900 = vunpack.c.l.b16 %v807
      %v901 = vunpack.c.l.b16 %v808
      %v902 = vunpack.c.h.b16 %v808
      %v903 = vunpack.c.l.b16 %v809
      %v904 = vunpack.c.l.b16 %v810
      %v905 = vunpack.c.h.b16 %v810
      %v906 = vunpack.c.l.b16 %v811
      %v907 = vunpack.c.l.b16 %v812
      %v908 = vunpack.c.h.b16 %v812
      %v909 = vunpack.c.l.b16 %v813
      %v910 = vunpack.c.l.b16 %v814
      %v911 = vunpack.c.h.b16 %v814
      %v912 = vunpack.c.l.b16 %v815
      %v913 = vpack.c.b16 %v868, %v865
      %v914 = vpack.c.b16 %v869, %v866
      %v915 = vpack.c.b16 %v870, %v867
      %v916 = vpack.c.b16 %v874, %v871
      %v917 = vpack.c.b16 %v875, %v872
      %v918 = vpack.c.b16 %v876, %v873
      %v919 = vpack.c.b16 %v880, %v877
      %v920 = vpack.c.b16 %v881, %v878
      %v921 = vpack.c.b16 %v882, %v879
      %v922 = vpack.c.b16 %v886, %v883
      %v923 = vpack.c.b16 %v887, %v884
      %v924 = vpack.c.b16 %v888, %v885
      %v925 = vpack.c.b16 %v892, %v889
      %v926 = vpack.c.b16 %v893, %v890
      %v927 = vpack.c.b16 %v894, %v891
      %v928 = vpack.c.b16 %v898, %v895
      %v929 = vpack.c.b16 %v899, %v896
      %v930 = vpack.c.b16 %v900, %v897
      %v931 = vpack.c.b16 %v904, %v901
      %v932 = vpack.c.b16 %v905, %v902
      %v933 = vpack.c.b16 %v906, %v903
      %v934 = vpack.c.b16 %v910, %v907
      %v935 = vpack.c.b16 %v911, %v908
      %v936 = vpack.c.b16 %v912, %v909
      %961 = vmatprep.subr.bf16.mxu0 %v914
      %962 = vmatpush1.bf16.msra.mxu0 %v913
      %963 = vmatprep.subr.bf16.mxu0 %v917
      %964 = vmatpush1.bf16.msra.mxu0 %v916
      %965 = vmatprep.subr.bf16.mxu0 %v920
      %966 = vmatpush1.bf16.msra.mxu0 %v919
      %967 = vmatprep.subr.bf16.mxu0 %v923
      %968 = vmatpush1.bf16.msra.mxu0 %v922
      %969 = vmatprep.subr.bf16.mxu0 %v926
      %970 = vmatpush1.bf16.msra.mxu0 %v925
      %971 = vmatprep.subr.bf16.mxu0 %v929
      %972 = vmatpush1.bf16.msra.mxu0 %v928
      %973 = vmatprep.subr.bf16.mxu0 %v932
      %974 = vmatpush1.bf16.msra.mxu0 %v931
      %975 = vmatprep.subr.bf16.mxu0 %v935
      %976 = vmatpush1.bf16.msra.mxu0 %v934
      %977 = vmatprep.subr.bf16.mxu0 0
      %978 = vmatpush1.bf16.msra.mxu0 0
      %979 = vmatprep.subr.bf16.mxu0 0
      %980 = vmatpush1.bf16.msra.mxu0 0
      %981 = vmatprep.subr.bf16.mxu0 0
      %982 = vmatpush1.bf16.msra.mxu0 0
      %983 = vmatprep.subr.bf16.mxu0 0
      %984 = vmatpush1.bf16.msra.mxu0 0
      %985 = vmatprep.subr.bf16.mxu0 0
      %986 = vmatpush1.bf16.msra.mxu0 0
      %987 = vmatprep.subr.bf16.mxu0 0
      %988 = vmatpush1.bf16.msra.mxu0 0
      %989 = vmatprep.subr.bf16.mxu0 0
      %990 = vmatpush1.bf16.msra.mxu0 0
      %991 = vmatprep.subr.bf16.mxu0 0
      %992 = vmatpush1.bf16.msra.mxu0 0
      %993 = vmatprep.mubr.bf16.mxu0 0
      %994 = vmatmul.mubr.bf16.gmra.mrb[0].mxu0 %v776
      %v995 = vpop.f32.mrb[0].mxu0
      %v996 = vadd.f32 %v821, %v995
      %v997 = vpop.f32.mrb[0].mxu0
      %v998 = vadd.f32 %v825, %v997
      %v999 = vpop.f32.mrb[0].mxu0
      %v1000 = vadd.f32 %v821, %v999
      %v1001 = vpop.f32.mrb[0].mxu0
      %v1002 = vadd.f32 %v825, %v1001
      %1003 = vmatprep.mubr.bf16.mxu0 0
      %1004 = vmatmul.mubr.bf16.gmra.mrb[0].mxu0 %v777
      %v1005 = vpop.f32.mrb[0].mxu0
      %v1006 = vadd.f32 %v821, %v1005
      %v1007 = vpop.f32.mrb[0].mxu0
      %v1008 = vadd.f32 %v825, %v1007
      %v1009 = vpop.f32.mrb[0].mxu0
      %v1010 = vadd.f32 %v821, %v1009
      %v1011 = vpop.f32.mrb[0].mxu0
      %v1012 = vadd.f32 %v825, %v1011
      %1013 = vmatprep.mubr.bf16.mxu0 0
      %1014 = vmatmul.mubr.bf16.gmra.mrb[0].mxu0 %v778
      %v1015 = vpop.f32.mrb[0].mxu0
      %v1016 = vadd.f32 %v821, %v1015
      %v1017 = vpop.f32.mrb[0].mxu0
      %v1018 = vadd.f32 %v825, %v1017
      %v1019 = vpop.f32.mrb[0].mxu0
      %v1020 = vadd.f32 %v821, %v1019
      %v1021 = vpop.f32.mrb[0].mxu0
      %v1022 = vadd.f32 %v825, %v1021
      %1023 = vmatprep.mubr.bf16.mxu0 0
      %1024 = vmatmul.mubr.bf16.gmra.mrb[0].mxu0 %v779
      %v1025 = vpop.f32.mrb[0].mxu0
      %v1026 = vadd.f32 %v821, %v1025
      %v1027 = vpop.f32.mrb[0].mxu0
      %v1028 = vadd.f32 %v825, %v1027
      %v1029 = vpop.f32.mrb[0].mxu0
      %v1030 = vadd.f32 %v821, %v1029
      %v1031 = vpop.f32.mrb[0].mxu0
      %v1032 = vadd.f32 %v825, %v1031
      %1033 = vmatprep.mubr.bf16.mxu0 0
      %1034 = vmatmul.mubr.bf16.gmra.mrb[0].mxu0 %v780
      %v1035 = vpop.f32.mrb[0].mxu0
      %v1036 = vadd.f32 %v821, %v1035
      %v1037 = vpop.f32.mrb[0].mxu0
      %v1038 = vadd.f32 %v825, %v1037
      %v1039 = vpop.f32.mrb[0].mxu0
      %v1040 = vadd.f32 %v821, %v1039
      %v1041 = vpop.f32.mrb[0].mxu0
      %v1042 = vadd.f32 %v825, %v1041
      %1043 = vmatprep.mubr.bf16.mxu0 0
      %1044 = vmatmul.mubr.bf16.gmra.mrb[0].mxu0 %v781
      %v1045 = vpop.f32.mrb[0].mxu0
      %v1046 = vadd.f32 %v821, %v1045
      %v1047 = vpop.f32.mrb[0].mxu0
      %v1048 = vadd.f32 %v825, %v1047
      %v1049 = vpop.f32.mrb[0].mxu0
      %v1050 = vadd.f32 %v821, %v1049
      %v1051 = vpop.f32.mrb[0].mxu0
      %v1052 = vadd.f32 %v825, %v1051
      %1053 = vmatprep.mubr.bf16.mxu0 0
      %1054 = vmatmul.mubr.bf16.gmra.mrb[0].mxu0 %v782
      %v1055 = vpop.f32.mrb[0].mxu0
      %v1056 = vadd.f32 %v821, %v1055
      %v1057 = vpop.f32.mrb[0].mxu0
      %v1058 = vadd.f32 %v825, %v1057
      %v1059 = vpop.f32.mrb[0].mxu0
      %v1060 = vadd.f32 %v821, %v1059
      %v1061 = vpop.f32.mrb[0].mxu0
      %v1062 = vadd.f32 %v825, %v1061
      %1063 = vmatprep.mubr.bf16.mxu0 0
      %1064 = vmatmul.mubr.bf16.gmra.mrb[0].mxu0 %v783
      %v1065 = vpop.f32.mrb[0].mxu0
      %v1066 = vadd.f32 %v821, %v1065
      %v1067 = vpop.f32.mrb[0].mxu0
      %v1068 = vadd.f32 %v825, %v1067
      %v1069 = vpop.f32.mrb[0].mxu0
      %v1070 = vadd.f32 %v821, %v1069
      %v1071 = vpop.f32.mrb[0].mxu0
      %v1072 = vadd.f32 %v825, %v1071
      %1073 = vdwg.mxu0
      %1074 = vmatprep.subr.bf16.mxu0 0
      %1075 = vmatpush1.bf16.msra.mxu0 %v915
      %1076 = vmatprep.subr.bf16.mxu0 0
      %1077 = vmatpush1.bf16.msra.mxu0 %v918
      %1078 = vmatprep.subr.bf16.mxu0 0
      %1079 = vmatpush1.bf16.msra.mxu0 %v921
      %1080 = vmatprep.subr.bf16.mxu0 0
      %1081 = vmatpush1.bf16.msra.mxu0 %v924
      %1082 = vmatprep.subr.bf16.mxu0 0
      %1083 = vmatpush1.bf16.msra.mxu0 %v927
      %1084 = vmatprep.subr.bf16.mxu0 0
      %1085 = vmatpush1.bf16.msra.mxu0 %v930
      %1086 = vmatprep.subr.bf16.mxu0 0
      %1087 = vmatpush1.bf16.msra.mxu0 %v933
      %1088 = vmatprep.subr.bf16.mxu0 0
      %1089 = vmatpush1.bf16.msra.mxu0 %v936
      %1090 = vmatprep.subr.bf16.mxu0 0
      %1091 = vmatpush1.bf16.msra.mxu0 0
      %1092 = vmatprep.subr.bf16.mxu0 0
      %1093 = vmatpush1.bf16.msra.mxu0 0
      %1094 = vmatprep.subr.bf16.mxu0 0
      %1095 = vmatpush1.bf16.msra.mxu0 0
      %1096 = vmatprep.subr.bf16.mxu0 0
      %1097 = vmatpush1.bf16.msra.mxu0 0
      %1098 = vmatprep.subr.bf16.mxu0 0
      %1099 = vmatpush1.bf16.msra.mxu0 0
      %1100 = vmatprep.subr.bf16.mxu0 0
      %1101 = vmatpush1.bf16.msra.mxu0 0
      %1102 = vmatprep.subr.bf16.mxu0 0
      %1103 = vmatpush1.bf16.msra.mxu0 0
      %1104 = vmatprep.subr.bf16.mxu0 0
      %1105 = vmatpush1.bf16.msra.mxu0 0
      %1106 = vmatprep.mubr.bf16.mxu0 0
      %1107 = vmatmul.mubr.bf16.gmra.mrb[0].mxu0 %v776
      %v1108 = vpop.f32.mrb[0].mxu0
      %v1109 = vadd.f32 %v829, %v1108
      %v1110 = vpop.f32.mrb[0].mxu0
      %v1111 = vpop.f32.mrb[0].mxu0
      %v1112 = vadd.f32 %v829, %v1111
      %v1113 = vpop.f32.mrb[0].mxu0
      %1114 = vmatprep.mubr.bf16.mxu0 0
      %1115 = vmatmul.mubr.bf16.gmra.mrb[0].mxu0 %v777
      %v1116 = vpop.f32.mrb[0].mxu0
      %v1117 = vadd.f32 %v829, %v1116
      %v1118 = vpop.f32.mrb[0].mxu0
      %v1119 = vpop.f32.mrb[0].mxu0
      %v1120 = vadd.f32 %v829, %v1119
      %v1121 = vpop.f32.mrb[0].mxu0
      %1122 = vmatprep.mubr.bf16.mxu0 0
      %1123 = vmatmul.mubr.bf16.gmra.mrb[0].mxu0 %v778
      %v1124 = vpop.f32.mrb[0].mxu0
      %v1125 = vadd.f32 %v829, %v1124
      %v1126 = vpop.f32.mrb[0].mxu0
      %v1127 = vpop.f32.mrb[0].mxu0
      %v1128 = vadd.f32 %v829, %v1127
      %v1129 = vpop.f32.mrb[0].mxu0
      %1130 = vmatprep.mubr.bf16.mxu0 0
      %1131 = vmatmul.mubr.bf16.gmra.mrb[0].mxu0 %v779
      %v1132 = vpop.f32.mrb[0].mxu0
      %v1133 = vadd.f32 %v829, %v1132
      %v1134 = vpop.f32.mrb[0].mxu0
      %v1135 = vpop.f32.mrb[0].mxu0
      %v1136 = vadd.f32 %v829, %v1135
      %v1137 = vpop.f32.mrb[0].mxu0
      %1138 = vmatprep.mubr.bf16.mxu0 0
      %1139 = vmatmul.mubr.bf16.gmra.mrb[0].mxu0 %v780
      %v1140 = vpop.f32.mrb[0].mxu0
      %v1141 = vadd.f32 %v829, %v1140
      %v1142 = vpop.f32.mrb[0].mxu0
      %v1143 = vpop.f32.mrb[0].mxu0
      %v1144 = vadd.f32 %v829, %v1143
      %v1145 = vpop.f32.mrb[0].mxu0
      %1146 = vmatprep.mubr.bf16.mxu0 0
      %1147 = vmatmul.mubr.bf16.gmra.mrb[0].mxu0 %v781
      %v1148 = vpop.f32.mrb[0].mxu0
      %v1149 = vadd.f32 %v829, %v1148
      %v1150 = vpop.f32.mrb[0].mxu0
      %v1151 = vpop.f32.mrb[0].mxu0
      %v1152 = vadd.f32 %v829, %v1151
      %v1153 = vpop.f32.mrb[0].mxu0
      %1154 = vmatprep.mubr.bf16.mxu0 0
      %1155 = vmatmul.mubr.bf16.gmra.mrb[0].mxu0 %v782
      %v1156 = vpop.f32.mrb[0].mxu0
      %v1157 = vadd.f32 %v829, %v1156
      %v1158 = vpop.f32.mrb[0].mxu0
      %v1159 = vpop.f32.mrb[0].mxu0
      %v1160 = vadd.f32 %v829, %v1159
      %v1161 = vpop.f32.mrb[0].mxu0
      %1162 = vmatprep.mubr.bf16.mxu0 0
      %1163 = vmatmul.mubr.bf16.gmra.mrb[0].mxu0 %v783
      %v1164 = vpop.f32.mrb[0].mxu0
      %v1165 = vadd.f32 %v829, %v1164
      %v1166 = vpop.f32.mrb[0].mxu0
      %v1167 = vpop.f32.mrb[0].mxu0
      %v1168 = vadd.f32 %v829, %v1167
      %v1169 = vpop.f32.mrb[0].mxu0
      %1170 = vdwg.mxu0
      %v1171 = vmul.f32 %v996, 0.17677669
      %v1172 = vmul.f32 %v1000, 0.17677669
      %v1173 = vmul.f32 %v1006, 0.17677669
      %v1174 = vmul.f32 %v1010, 0.17677669
      %v1175 = vmul.f32 %v1016, 0.17677669
      %v1176 = vmul.f32 %v1020, 0.17677669
      %v1177 = vmul.f32 %v1026, 0.17677669
      %v1178 = vmul.f32 %v1030, 0.17677669
      %v1179 = vmul.f32 %v1036, 0.17677669
      %v1180 = vmul.f32 %v1040, 0.17677669
      %v1181 = vmul.f32 %v1046, 0.17677669
      %v1182 = vmul.f32 %v1050, 0.17677669
      %v1183 = vmul.f32 %v1056, 0.17677669
      %v1184 = vmul.f32 %v1060, 0.17677669
      %v1185 = vmul.f32 %v1066, 0.17677669
      %v1186 = vmul.f32 %v1070, 0.17677669
      %v1187 = vld [vmem:[%s530] sm:$0x1]
      %v1188 = vpack.c.bf16 %v1172, %v1171
      %v1189 = vpack.c.bf16 %v1174, %v1173
      %v1190 = vpack.c.bf16 %v1176, %v1175
      %v1191 = vpack.c.bf16 %v1178, %v1177
      %v1192 = vpack.c.bf16 %v1180, %v1179
      %v1193 = vpack.c.bf16 %v1182, %v1181
      %v1194 = vpack.c.bf16 %v1184, %v1183
      %v1195 = vpack.c.bf16 %v1186, %v1185
      %v1196 = vpack.c.bf16 %v1002, %v998
      %v1197 = vpack.c.bf16 %v1012, %v1008
      %v1198 = vpack.c.bf16 %v1022, %v1018
      %v1199 = vpack.c.bf16 %v1032, %v1028
      %v1200 = vpack.c.bf16 %v1042, %v1038
      %v1201 = vpack.c.bf16 %v1052, %v1048
      %v1202 = vpack.c.bf16 %v1062, %v1058
      %v1203 = vpack.c.bf16 %v1072, %v1068
      %v1204 = vpack.c.bf16 %v1112, %v1109
      %v1205 = vpack.c.bf16 %v1120, %v1117
      %v1206 = vpack.c.bf16 %v1128, %v1125
      %v1207 = vpack.c.bf16 %v1136, %v1133
      %v1208 = vpack.c.bf16 %v1144, %v1141
      %v1209 = vpack.c.bf16 %v1152, %v1149
      %v1210 = vpack.c.bf16 %v1160, %v1157
      %v1211 = vpack.c.bf16 %v1168, %v1165
      %v1213 = vlaneseq
      %v1214 = vshrl.u32 %v1213, 7
      %v1215 = vsub.s32 0, %v1214
      %v1216 = vrot.slane %v1187, %v1215
      %vm1218 = vcmask 261120
      %v1220 = vsel %vm1218, %v1188, 0
      %v1223 = vsel %vm1218, %v1189, 0
      %v1226 = vsel %vm1218, %v1190, 0
      %v1229 = vsel %vm1218, %v1191, 0
      %v1232 = vsel %vm1218, %v1192, 0
      %v1235 = vsel %vm1218, %v1193, 0
      %v1238 = vsel %vm1218, %v1194, 0
      %v1241 = vsel %vm1218, %v1195, 0
      %v1244 = vsel %vm1218, %v1196, 0
      %v1247 = vsel %vm1218, %v1197, 0
      %v1250 = vsel %vm1218, %v1198, 0
      %v1253 = vsel %vm1218, %v1199, 0
      %v1256 = vsel %vm1218, %v1200, 0
      %v1259 = vsel %vm1218, %v1201, 0
      %v1262 = vsel %vm1218, %v1202, 0
      %v1265 = vsel %vm1218, %v1203, 0
      %1267 = vmatprep.subr.bf16.mxu0 0
      %1268 = vmatpush1.bf16.xpose.msra.mxu0 %v1244
      %1269 = vmatprep.subr.bf16.mxu0 0
      %1270 = vmatpush1.bf16.xpose.msra.mxu0 %v1247
      %1271 = vmatprep.subr.bf16.mxu0 0
      %1272 = vmatpush1.bf16.xpose.msra.mxu0 %v1250
      %1273 = vmatprep.subr.bf16.mxu0 0
      %1274 = vmatpush1.bf16.xpose.msra.mxu0 %v1253
      %1275 = vmatprep.subr.bf16.mxu0 0
      %1276 = vmatpush1.bf16.xpose.msra.mxu0 %v1256
      %1277 = vmatprep.subr.bf16.mxu0 0
      %1278 = vmatpush1.bf16.xpose.msra.mxu0 %v1259
      %1279 = vmatprep.subr.bf16.mxu0 0
      %1280 = vmatpush1.bf16.xpose.msra.mxu0 %v1262
      %1281 = vmatprep.subr.bf16.mxu0 0
      %1282 = vmatpush1.bf16.xpose.msra.mxu0 %v1265
      %1283 = vmatprep.subr.bf16.mxu0 0
      %1284 = vmatpush1.bf16.xpose.msra.mxu0 0
      %1285 = vmatprep.subr.bf16.mxu0 0
      %1286 = vmatpush1.bf16.xpose.msra.mxu0 0
      %1287 = vmatprep.subr.bf16.mxu0 0
      %1288 = vmatpush1.bf16.xpose.msra.mxu0 0
      %1289 = vmatprep.subr.bf16.mxu0 0
      %1290 = vmatpush1.bf16.xpose.msra.mxu0 0
      %1291 = vmatprep.subr.bf16.mxu0 0
      %1292 = vmatpush1.bf16.xpose.msra.mxu0 0
      %1293 = vmatprep.subr.bf16.mxu0 0
      %1294 = vmatpush1.bf16.xpose.msra.mxu0 0
      %1295 = vmatprep.subr.bf16.mxu0 0
      %1296 = vmatpush1.bf16.xpose.msra.mxu0 0
      %1297 = vmatprep.subr.bf16.mxu0 0
      %1298 = vmatpush1.bf16.xpose.msra.mxu0 0
      %1299 = vmatprep.mubr.bf16.mxu0 0
      %1300 = vmatmul.mubr.bf16.gmra.mrb[0].mxu0 %v1220
      %v1301 = vpop.f32.mrb[0].mxu0
      %v1302 = vadd.f32 %v1216, %v1301
      %v1303 = vpop.f32.mrb[0].mxu0
      %v1304 = vpop.f32.mrb[0].mxu0
      %v1305 = vadd.f32 %v1216, %v1304
      %v1306 = vpop.f32.mrb[0].mxu0
      %1307 = vmatprep.mubr.bf16.mxu0 0
      %1308 = vmatmul.mubr.bf16.gmra.mrb[0].mxu0 %v1223
      %v1309 = vpop.f32.mrb[0].mxu0
      %v1310 = vadd.f32 %v1216, %v1309
      %v1311 = vpop.f32.mrb[0].mxu0
      %v1312 = vpop.f32.mrb[0].mxu0
      %v1313 = vadd.f32 %v1216, %v1312
      %v1314 = vpop.f32.mrb[0].mxu0
      %1315 = vmatprep.mubr.bf16.mxu0 0
      %1316 = vmatmul.mubr.bf16.gmra.mrb[0].mxu0 %v1226
      %v1317 = vpop.f32.mrb[0].mxu0
      %v1318 = vadd.f32 %v1216, %v1317
      %v1319 = vpop.f32.mrb[0].mxu0
      %v1320 = vpop.f32.mrb[0].mxu0
      %v1321 = vadd.f32 %v1216, %v1320
      %v1322 = vpop.f32.mrb[0].mxu0
      %1323 = vmatprep.mubr.bf16.mxu0 0
      %1324 = vmatmul.mubr.bf16.gmra.mrb[0].mxu0 %v1229
      %v1325 = vpop.f32.mrb[0].mxu0
      %v1326 = vadd.f32 %v1216, %v1325
      %v1327 = vpop.f32.mrb[0].mxu0
      %v1328 = vpop.f32.mrb[0].mxu0
      %v1329 = vadd.f32 %v1216, %v1328
      %v1330 = vpop.f32.mrb[0].mxu0
      %1331 = vmatprep.mubr.bf16.mxu0 0
      %1332 = vmatmul.mubr.bf16.gmra.mrb[0].mxu0 %v1232
      %v1333 = vpop.f32.mrb[0].mxu0
      %v1334 = vadd.f32 %v1216, %v1333
      %v1335 = vpop.f32.mrb[0].mxu0
      %v1336 = vpop.f32.mrb[0].mxu0
      %v1337 = vadd.f32 %v1216, %v1336
      %v1338 = vpop.f32.mrb[0].mxu0
      %1339 = vmatprep.mubr.bf16.mxu0 0
      %1340 = vmatmul.mubr.bf16.gmra.mrb[0].mxu0 %v1235
      %v1341 = vpop.f32.mrb[0].mxu0
      %v1342 = vadd.f32 %v1216, %v1341
      %v1343 = vpop.f32.mrb[0].mxu0
      %v1344 = vpop.f32.mrb[0].mxu0
      %v1345 = vadd.f32 %v1216, %v1344
      %v1346 = vpop.f32.mrb[0].mxu0
      %1347 = vmatprep.mubr.bf16.mxu0 0
      %1348 = vmatmul.mubr.bf16.gmra.mrb[0].mxu0 %v1238
      %v1349 = vpop.f32.mrb[0].mxu0
      %v1350 = vadd.f32 %v1216, %v1349
      %v1351 = vpop.f32.mrb[0].mxu0
      %v1352 = vpop.f32.mrb[0].mxu0
      %v1353 = vadd.f32 %v1216, %v1352
      %v1354 = vpop.f32.mrb[0].mxu0
      %1355 = vmatprep.mubr.bf16.mxu0 0
      %1356 = vmatmul.mubr.bf16.gmra.mrb[0].mxu0 %v1241
      %v1357 = vpop.f32.mrb[0].mxu0
      %v1358 = vadd.f32 %v1216, %v1357
      %v1359 = vpop.f32.mrb[0].mxu0
      %v1360 = vpop.f32.mrb[0].mxu0
      %v1361 = vadd.f32 %v1216, %v1360
      %v1362 = vpop.f32.mrb[0].mxu0
      %1363 = vdwg.mxu0
      %1364 = vmax.xlane.f32.xlu0 %v1302
      %v1365 = vpop.xlane.xlu0 %1364
      %1366 = vmax.xlane.f32.xlu0 %v1305
      %v1367 = vpop.xlane.xlu0 %1366
      %1368 = vmax.xlane.f32.xlu0 %v1310
      %v1369 = vpop.xlane.xlu0 %1368
      %1370 = vmax.xlane.f32.xlu0 %v1313
      %v1371 = vpop.xlane.xlu0 %1370
      %1372 = vmax.xlane.f32.xlu0 %v1318
      %v1373 = vpop.xlane.xlu0 %1372
      %1374 = vmax.xlane.f32.xlu0 %v1321
      %v1375 = vpop.xlane.xlu0 %1374
      %1376 = vmax.xlane.f32.xlu0 %v1326
      %v1377 = vpop.xlane.xlu0 %1376
      %1378 = vmax.xlane.f32.xlu0 %v1329
      %v1379 = vpop.xlane.xlu0 %1378
      %1380 = vmax.xlane.f32.xlu0 %v1334
      %v1381 = vpop.xlane.xlu0 %1380
      %1382 = vmax.xlane.f32.xlu0 %v1337
      %v1383 = vpop.xlane.xlu0 %1382
      %1384 = vmax.xlane.f32.xlu0 %v1342
      %v1385 = vpop.xlane.xlu0 %1384
      %1386 = vmax.xlane.f32.xlu0 %v1345
      %v1387 = vpop.xlane.xlu0 %1386
      %1388 = vmax.xlane.f32.xlu0 %v1350
      %v1389 = vpop.xlane.xlu0 %1388
      %1390 = vmax.xlane.f32.xlu0 %v1353
      %v1391 = vpop.xlane.xlu0 %1390
      %1392 = vmax.xlane.f32.xlu0 %v1358
      %v1393 = vpop.xlane.xlu0 %1392
      %1394 = vmax.xlane.f32.xlu0 %v1361
      %v1395 = vpop.xlane.xlu0 %1394
      %v1396 = vsub.f32 %v1302, %v1365
      %v1397 = vsub.f32 %v1305, %v1367
      %v1398 = vsub.f32 %v1310, %v1369
      %v1399 = vsub.f32 %v1313, %v1371
      %v1400 = vsub.f32 %v1318, %v1373
      %v1401 = vsub.f32 %v1321, %v1375
      %v1402 = vsub.f32 %v1326, %v1377
      %v1403 = vsub.f32 %v1329, %v1379
      %v1404 = vsub.f32 %v1334, %v1381
      %v1405 = vsub.f32 %v1337, %v1383
      %v1406 = vsub.f32 %v1342, %v1385
      %v1407 = vsub.f32 %v1345, %v1387
      %v1408 = vsub.f32 %v1350, %v1389
      %v1409 = vsub.f32 %v1353, %v1391
      %v1410 = vsub.f32 %v1358, %v1393
      %v1411 = vsub.f32 %v1361, %v1395
      %v1412 = vmul.f32 %v1396, 1.442695
      %v1413 = vpow.pop %v1412
      %v1414 = vmul.f32 %v1397, 1.442695
      %v1415 = vpow.pop %v1414
      %v1416 = vmul.f32 %v1398, 1.442695
      %v1417 = vpow.pop %v1416
      %v1418 = vmul.f32 %v1399, 1.442695
      %v1419 = vpow.pop %v1418
      %v1420 = vmul.f32 %v1400, 1.442695
      %v1421 = vpow.pop %v1420
      %v1422 = vmul.f32 %v1401, 1.442695
      %v1423 = vpow.pop %v1422
      %v1424 = vmul.f32 %v1402, 1.442695
      %v1425 = vpow.pop %v1424
      %v1426 = vmul.f32 %v1403, 1.442695
      %v1427 = vpow.pop %v1426
      %v1428 = vmul.f32 %v1404, 1.442695
      %v1429 = vpow.pop %v1428
      %v1430 = vmul.f32 %v1405, 1.442695
      %v1431 = vpow.pop %v1430
      %v1432 = vmul.f32 %v1406, 1.442695
      %v1433 = vpow.pop %v1432
      %v1434 = vmul.f32 %v1407, 1.442695
      %v1435 = vpow.pop %v1434
      %v1436 = vmul.f32 %v1408, 1.442695
      %v1437 = vpow.pop %v1436
      %v1438 = vmul.f32 %v1409, 1.442695
      %v1439 = vpow.pop %v1438
      %v1440 = vmul.f32 %v1410, 1.442695
      %v1441 = vpow.pop %v1440
      %v1442 = vmul.f32 %v1411, 1.442695
      %v1443 = vpow.pop %v1442
      %1444 = vadd.xlane.f32.xlu0 %v1413
      %v1445 = vpop.xlane.xlu0 %1444
      %1446 = vadd.xlane.f32.xlu0 %v1415
      %v1447 = vpop.xlane.xlu0 %1446
      %1448 = vadd.xlane.f32.xlu0 %v1417
      %v1449 = vpop.xlane.xlu0 %1448
      %1450 = vadd.xlane.f32.xlu0 %v1419
      %v1451 = vpop.xlane.xlu0 %1450
      %1452 = vadd.xlane.f32.xlu0 %v1421
      %v1453 = vpop.xlane.xlu0 %1452
      %1454 = vadd.xlane.f32.xlu0 %v1423
      %v1455 = vpop.xlane.xlu0 %1454
      %1456 = vadd.xlane.f32.xlu0 %v1425
      %v1457 = vpop.xlane.xlu0 %1456
      %1458 = vadd.xlane.f32.xlu0 %v1427
      %v1459 = vpop.xlane.xlu0 %1458
      %1460 = vadd.xlane.f32.xlu0 %v1429
      %v1461 = vpop.xlane.xlu0 %1460
      %1462 = vadd.xlane.f32.xlu0 %v1431
      %v1463 = vpop.xlane.xlu0 %1462
      %1464 = vadd.xlane.f32.xlu0 %v1433
      %v1465 = vpop.xlane.xlu0 %1464
      %1466 = vadd.xlane.f32.xlu0 %v1435
      %v1467 = vpop.xlane.xlu0 %1466
      %1468 = vadd.xlane.f32.xlu0 %v1437
      %v1469 = vpop.xlane.xlu0 %1468
      %1470 = vadd.xlane.f32.xlu0 %v1439
      %v1471 = vpop.xlane.xlu0 %1470
      %1472 = vadd.xlane.f32.xlu0 %v1441
      %v1473 = vpop.xlane.xlu0 %1472
      %1474 = vadd.xlane.f32.xlu0 %v1443
      %v1475 = vpop.xlane.xlu0 %1474
      %v1476 = vrcp.pop %v1445
      %v1477 = vrcp.pop %v1447
      %v1478 = vrcp.pop %v1449
      %v1479 = vrcp.pop %v1451
      %v1480 = vrcp.pop %v1453
      %v1481 = vrcp.pop %v1455
      %v1482 = vrcp.pop %v1457
      %v1483 = vrcp.pop %v1459
      %v1484 = vrcp.pop %v1461
      %v1485 = vrcp.pop %v1463
      %v1486 = vrcp.pop %v1465
      %v1487 = vrcp.pop %v1467
      %v1488 = vrcp.pop %v1469
      %v1489 = vrcp.pop %v1471
      %v1490 = vrcp.pop %v1473
      %v1491 = vrcp.pop %v1475
      %v1492 = vmul.f32 %v1413, %v1476
      %v1493 = vmul.f32 %v1415, %v1477
      %v1494 = vmul.f32 %v1417, %v1478
      %v1495 = vmul.f32 %v1419, %v1479
      %v1496 = vmul.f32 %v1421, %v1480
      %v1497 = vmul.f32 %v1423, %v1481
      %v1498 = vmul.f32 %v1425, %v1482
      %v1499 = vmul.f32 %v1427, %v1483
      %v1500 = vmul.f32 %v1429, %v1484
      %v1501 = vmul.f32 %v1431, %v1485
      %v1502 = vmul.f32 %v1433, %v1486
      %v1503 = vmul.f32 %v1435, %v1487
      %v1504 = vmul.f32 %v1437, %v1488
      %v1505 = vmul.f32 %v1439, %v1489
      %v1506 = vmul.f32 %v1441, %v1490
      %v1507 = vmul.f32 %v1443, %v1491
      %v1508 = vpack.c.bf16 %v1493, %v1492
      %v1509 = vpack.c.bf16 %v1495, %v1494
      %v1510 = vpack.c.bf16 %v1497, %v1496
      %v1511 = vpack.c.bf16 %v1499, %v1498
      %v1512 = vpack.c.bf16 %v1501, %v1500
      %v1513 = vpack.c.bf16 %v1503, %v1502
      %v1514 = vpack.c.bf16 %v1505, %v1504
      %v1515 = vpack.c.bf16 %v1507, %v1506
      %1516 = vmatprep.subr.bf16.mxu0 0
      %1517 = vmatpush1.bf16.msra.mxu0 %v1204
      %1518 = vmatprep.subr.bf16.mxu0 0
      %1519 = vmatpush1.bf16.msra.mxu0 %v1205
      %1520 = vmatprep.subr.bf16.mxu0 0
      %1521 = vmatpush1.bf16.msra.mxu0 %v1206
      %1522 = vmatprep.subr.bf16.mxu0 0
      %1523 = vmatpush1.bf16.msra.mxu0 %v1207
      %1524 = vmatprep.subr.bf16.mxu0 0
      %1525 = vmatpush1.bf16.msra.mxu0 %v1208
      %1526 = vmatprep.subr.bf16.mxu0 0
      %1527 = vmatpush1.bf16.msra.mxu0 %v1209
      %1528 = vmatprep.subr.bf16.mxu0 0
      %1529 = vmatpush1.bf16.msra.mxu0 %v1210
      %1530 = vmatprep.subr.bf16.mxu0 0
      %1531 = vmatpush1.bf16.msra.mxu0 %v1211
      %1532 = vmatprep.subr.bf16.mxu0 0
      %1533 = vmatpush1.bf16.msra.mxu0 0
      %1534 = vmatprep.subr.bf16.mxu0 0
      %1535 = vmatpush1.bf16.msra.mxu0 0
      %1536 = vmatprep.subr.bf16.mxu0 0
      %1537 = vmatpush1.bf16.msra.mxu0 0
      %1538 = vmatprep.subr.bf16.mxu0 0
      %1539 = vmatpush1.bf16.msra.mxu0 0
      %1540 = vmatprep.subr.bf16.mxu0 0
      %1541 = vmatpush1.bf16.msra.mxu0 0
      %1542 = vmatprep.subr.bf16.mxu0 0
      %1543 = vmatpush1.bf16.msra.mxu0 0
      %1544 = vmatprep.subr.bf16.mxu0 0
      %1545 = vmatpush1.bf16.msra.mxu0 0
      %1546 = vmatprep.subr.bf16.mxu0 0
      %1547 = vmatpush1.bf16.msra.mxu0 0
      %1548 = vmatprep.mubr.bf16.mxu0 0
      %1549 = vmatmul.mubr.bf16.gmra.mrb[0].mxu0 %v1508
      %v1550 = vpop.f32.mrb[0].mxu0
      %v1551 = vadd.f32 0.0, %v1550
      %v1552 = vpop.f32.mrb[0].mxu0
      %v1553 = vpop.f32.mrb[0].mxu0
      %v1554 = vadd.f32 0.0, %v1553
      %v1555 = vpop.f32.mrb[0].mxu0
      %1556 = vmatprep.mubr.bf16.mxu0 0
      %1557 = vmatmul.mubr.bf16.gmra.mrb[0].mxu0 %v1509
      %v1558 = vpop.f32.mrb[0].mxu0
      %v1559 = vadd.f32 0.0, %v1558
      %v1560 = vpop.f32.mrb[0].mxu0
      %v1561 = vpop.f32.mrb[0].mxu0
      %v1562 = vadd.f32 0.0, %v1561
      %v1563 = vpop.f32.mrb[0].mxu0
      %1564 = vmatprep.mubr.bf16.mxu0 0
      %1565 = vmatmul.mubr.bf16.gmra.mrb[0].mxu0 %v1510
      %v1566 = vpop.f32.mrb[0].mxu0
      %v1567 = vadd.f32 0.0, %v1566
      %v1568 = vpop.f32.mrb[0].mxu0
      %v1569 = vpop.f32.mrb[0].mxu0
      %v1570 = vadd.f32 0.0, %v1569
      %v1571 = vpop.f32.mrb[0].mxu0
      %1572 = vmatprep.mubr.bf16.mxu0 0
      %1573 = vmatmul.mubr.bf16.gmra.mrb[0].mxu0 %v1511
      %v1574 = vpop.f32.mrb[0].mxu0
      %v1575 = vadd.f32 0.0, %v1574
      %v1576 = vpop.f32.mrb[0].mxu0
      %v1577 = vpop.f32.mrb[0].mxu0
      %v1578 = vadd.f32 0.0, %v1577
      %v1579 = vpop.f32.mrb[0].mxu0
      %1580 = vmatprep.mubr.bf16.mxu0 0
      %1581 = vmatmul.mubr.bf16.gmra.mrb[0].mxu0 %v1512
      %v1582 = vpop.f32.mrb[0].mxu0
      %v1583 = vadd.f32 0.0, %v1582
      %v1584 = vpop.f32.mrb[0].mxu0
      %v1585 = vpop.f32.mrb[0].mxu0
      %v1586 = vadd.f32 0.0, %v1585
      %v1587 = vpop.f32.mrb[0].mxu0
      %1588 = vmatprep.mubr.bf16.mxu0 0
      %1589 = vmatmul.mubr.bf16.gmra.mrb[0].mxu0 %v1513
      %v1590 = vpop.f32.mrb[0].mxu0
      %v1591 = vadd.f32 0.0, %v1590
      %v1592 = vpop.f32.mrb[0].mxu0
      %v1593 = vpop.f32.mrb[0].mxu0
      %v1594 = vadd.f32 0.0, %v1593
      %v1595 = vpop.f32.mrb[0].mxu0
      %1596 = vmatprep.mubr.bf16.mxu0 0
      %1597 = vmatmul.mubr.bf16.gmra.mrb[0].mxu0 %v1514
      %v1598 = vpop.f32.mrb[0].mxu0
      %v1599 = vadd.f32 0.0, %v1598
      %v1600 = vpop.f32.mrb[0].mxu0
      %v1601 = vpop.f32.mrb[0].mxu0
      %v1602 = vadd.f32 0.0, %v1601
      %v1603 = vpop.f32.mrb[0].mxu0
      %1604 = vmatprep.mubr.bf16.mxu0 0
      %1605 = vmatmul.mubr.bf16.gmra.mrb[0].mxu0 %v1515
      %v1606 = vpop.f32.mrb[0].mxu0
      %v1607 = vadd.f32 0.0, %v1606
      %v1608 = vpop.f32.mrb[0].mxu0
      %v1609 = vpop.f32.mrb[0].mxu0
      %v1610 = vadd.f32 0.0, %v1609
      %v1611 = vpop.f32.mrb[0].mxu0
      %1612 = vdwg.mxu0
      %1621 = vrot.lane.b32.xlu0 %v1188, 96
      %v1622 = vpop.permute.xlu0 %1621
      %1623 = vrot.lane.b32.xlu0 %v1189, 96
      %v1624 = vpop.permute.xlu0 %1623
      %1625 = vrot.lane.b32.xlu0 %v1190, 96
      %v1626 = vpop.permute.xlu0 %1625
      %1627 = vrot.lane.b32.xlu0 %v1191, 96
      %v1628 = vpop.permute.xlu0 %1627
      %1629 = vrot.lane.b32.xlu0 %v1192, 96
      %v1630 = vpop.permute.xlu0 %1629
      %1631 = vrot.lane.b32.xlu0 %v1193, 96
      %v1632 = vpop.permute.xlu0 %1631
      %1633 = vrot.lane.b32.xlu0 %v1194, 96
      %v1634 = vpop.permute.xlu0 %1633
      %1635 = vrot.lane.b32.xlu0 %v1195, 96
      %v1636 = vpop.permute.xlu0 %1635
      %1645 = vrot.lane.b32.xlu0 %v1196, 96
      %v1646 = vpop.permute.xlu0 %1645
      %1647 = vrot.lane.b32.xlu0 %v1197, 96
      %v1648 = vpop.permute.xlu0 %1647
      %1649 = vrot.lane.b32.xlu0 %v1198, 96
      %v1650 = vpop.permute.xlu0 %1649
      %1651 = vrot.lane.b32.xlu0 %v1199, 96
      %v1652 = vpop.permute.xlu0 %1651
      %1653 = vrot.lane.b32.xlu0 %v1200, 96
      %v1654 = vpop.permute.xlu0 %1653
      %1655 = vrot.lane.b32.xlu0 %v1201, 96
      %v1656 = vpop.permute.xlu0 %1655
      %1657 = vrot.lane.b32.xlu0 %v1202, 96
      %v1658 = vpop.permute.xlu0 %1657
      %1659 = vrot.lane.b32.xlu0 %v1203, 96
      %v1660 = vpop.permute.xlu0 %1659
      %v1662 = vsel %vm1218, %v1622, 0
      %v1665 = vsel %vm1218, %v1624, 0
      %v1668 = vsel %vm1218, %v1626, 0
      %v1671 = vsel %vm1218, %v1628, 0
      %v1674 = vsel %vm1218, %v1630, 0
      %v1677 = vsel %vm1218, %v1632, 0
      %v1680 = vsel %vm1218, %v1634, 0
      %v1683 = vsel %vm1218, %v1636, 0
      %v1686 = vsel %vm1218, %v1646, 0
      %v1689 = vsel %vm1218, %v1648, 0
      %v1692 = vsel %vm1218, %v1650, 0
      %v1695 = vsel %vm1218, %v1652, 0
      %v1698 = vsel %vm1218, %v1654, 0
      %v1701 = vsel %vm1218, %v1656, 0
      %v1704 = vsel %vm1218, %v1658, 0
      %v1707 = vsel %vm1218, %v1660, 0
      %1709 = vmatprep.subr.bf16.mxu0 0
      %1710 = vmatpush1.bf16.xpose.msra.mxu0 %v1686
      %1711 = vmatprep.subr.bf16.mxu0 0
      %1712 = vmatpush1.bf16.xpose.msra.mxu0 %v1689
      %1713 = vmatprep.subr.bf16.mxu0 0
      %1714 = vmatpush1.bf16.xpose.msra.mxu0 %v1692
      %1715 = vmatprep.subr.bf16.mxu0 0
      %1716 = vmatpush1.bf16.xpose.msra.mxu0 %v1695
      %1717 = vmatprep.subr.bf16.mxu0 0
      %1718 = vmatpush1.bf16.xpose.msra.mxu0 %v1698
      %1719 = vmatprep.subr.bf16.mxu0 0
      %1720 = vmatpush1.bf16.xpose.msra.mxu0 %v1701
      %1721 = vmatprep.subr.bf16.mxu0 0
      %1722 = vmatpush1.bf16.xpose.msra.mxu0 %v1704
      %1723 = vmatprep.subr.bf16.mxu0 0
      %1724 = vmatpush1.bf16.xpose.msra.mxu0 %v1707
      %1725 = vmatprep.subr.bf16.mxu0 0
      %1726 = vmatpush1.bf16.xpose.msra.mxu0 0
      %1727 = vmatprep.subr.bf16.mxu0 0
      %1728 = vmatpush1.bf16.xpose.msra.mxu0 0
      %1729 = vmatprep.subr.bf16.mxu0 0
      %1730 = vmatpush1.bf16.xpose.msra.mxu0 0
      %1731 = vmatprep.subr.bf16.mxu0 0
      %1732 = vmatpush1.bf16.xpose.msra.mxu0 0
      %1733 = vmatprep.subr.bf16.mxu0 0
      %1734 = vmatpush1.bf16.xpose.msra.mxu0 0
      %1735 = vmatprep.subr.bf16.mxu0 0
      %1736 = vmatpush1.bf16.xpose.msra.mxu0 0
      %1737 = vmatprep.subr.bf16.mxu0 0
      %1738 = vmatpush1.bf16.xpose.msra.mxu0 0
      %1739 = vmatprep.subr.bf16.mxu0 0
      %1740 = vmatpush1.bf16.xpose.msra.mxu0 0
      %1741 = vmatprep.mubr.bf16.mxu0 0
      %1742 = vmatmul.mubr.bf16.gmra.mrb[0].mxu0 %v1662
      %v1743 = vpop.f32.mrb[0].mxu0
      %v1744 = vadd.f32 %v1216, %v1743
      %v1745 = vpop.f32.mrb[0].mxu0
      %v1746 = vpop.f32.mrb[0].mxu0
      %v1747 = vadd.f32 %v1216, %v1746
      %v1748 = vpop.f32.mrb[0].mxu0
      %1749 = vmatprep.mubr.bf16.mxu0 0
      %1750 = vmatmul.mubr.bf16.gmra.mrb[0].mxu0 %v1665
      %v1751 = vpop.f32.mrb[0].mxu0
      %v1752 = vadd.f32 %v1216, %v1751
      %v1753 = vpop.f32.mrb[0].mxu0
      %v1754 = vpop.f32.mrb[0].mxu0
      %v1755 = vadd.f32 %v1216, %v1754
      %v1756 = vpop.f32.mrb[0].mxu0
      %1757 = vmatprep.mubr.bf16.mxu0 0
      %1758 = vmatmul.mubr.bf16.gmra.mrb[0].mxu0 %v1668
      %v1759 = vpop.f32.mrb[0].mxu0
      %v1760 = vadd.f32 %v1216, %v1759
      %v1761 = vpop.f32.mrb[0].mxu0
      %v1762 = vpop.f32.mrb[0].mxu0
      %v1763 = vadd.f32 %v1216, %v1762
      %v1764 = vpop.f32.mrb[0].mxu0
      %1765 = vmatprep.mubr.bf16.mxu0 0
      %1766 = vmatmul.mubr.bf16.gmra.mrb[0].mxu0 %v1671
      %v1767 = vpop.f32.mrb[0].mxu0
      %v1768 = vadd.f32 %v1216, %v1767
      %v1769 = vpop.f32.mrb[0].mxu0
      %v1770 = vpop.f32.mrb[0].mxu0
      %v1771 = vadd.f32 %v1216, %v1770
      %v1772 = vpop.f32.mrb[0].mxu0
      %1773 = vmatprep.mubr.bf16.mxu0 0
      %1774 = vmatmul.mubr.bf16.gmra.mrb[0].mxu0 %v1674
      %v1775 = vpop.f32.mrb[0].mxu0
      %v1776 = vadd.f32 %v1216, %v1775
      %v1777 = vpop.f32.mrb[0].mxu0
      %v1778 = vpop.f32.mrb[0].mxu0
      %v1779 = vadd.f32 %v1216, %v1778
      %v1780 = vpop.f32.mrb[0].mxu0
      %1781 = vmatprep.mubr.bf16.mxu0 0
      %1782 = vmatmul.mubr.bf16.gmra.mrb[0].mxu0 %v1677
      %v1783 = vpop.f32.mrb[0].mxu0
      %v1784 = vadd.f32 %v1216, %v1783
      %v1785 = vpop.f32.mrb[0].mxu0
      %v1786 = vpop.f32.mrb[0].mxu0
      %v1787 = vadd.f32 %v1216, %v1786
      %v1788 = vpop.f32.mrb[0].mxu0
      %1789 = vmatprep.mubr.bf16.mxu0 0
      %1790 = vmatmul.mubr.bf16.gmra.mrb[0].mxu0 %v1680
      %v1791 = vpop.f32.mrb[0].mxu0
      %v1792 = vadd.f32 %v1216, %v1791
      %v1793 = vpop.f32.mrb[0].mxu0
      %v1794 = vpop.f32.mrb[0].mxu0
      %v1795 = vadd.f32 %v1216, %v1794
      %v1796 = vpop.f32.mrb[0].mxu0
      %1797 = vmatprep.mubr.bf16.mxu0 0
      %1798 = vmatmul.mubr.bf16.gmra.mrb[0].mxu0 %v1683
      %v1799 = vpop.f32.mrb[0].mxu0
      %v1800 = vadd.f32 %v1216, %v1799
      %v1801 = vpop.f32.mrb[0].mxu0
      %v1802 = vpop.f32.mrb[0].mxu0
      %v1803 = vadd.f32 %v1216, %v1802
      %v1804 = vpop.f32.mrb[0].mxu0
      %1805 = vdwg.mxu0
      %1806 = vmax.xlane.f32.xlu0 %v1744
      %v1807 = vpop.xlane.xlu0 %1806
      %1808 = vmax.xlane.f32.xlu0 %v1747
      %v1809 = vpop.xlane.xlu0 %1808
      %1810 = vmax.xlane.f32.xlu0 %v1752
      %v1811 = vpop.xlane.xlu0 %1810
      %1812 = vmax.xlane.f32.xlu0 %v1755
      %v1813 = vpop.xlane.xlu0 %1812
      %1814 = vmax.xlane.f32.xlu0 %v1760
      %v1815 = vpop.xlane.xlu0 %1814
      %1816 = vmax.xlane.f32.xlu0 %v1763
      %v1817 = vpop.xlane.xlu0 %1816
      %1818 = vmax.xlane.f32.xlu0 %v1768
      %v1819 = vpop.xlane.xlu0 %1818
      %1820 = vmax.xlane.f32.xlu0 %v1771
      %v1821 = vpop.xlane.xlu0 %1820
      %1822 = vmax.xlane.f32.xlu0 %v1776
      %v1823 = vpop.xlane.xlu0 %1822
      %1824 = vmax.xlane.f32.xlu0 %v1779
      %v1825 = vpop.xlane.xlu0 %1824
      %1826 = vmax.xlane.f32.xlu0 %v1784
      %v1827 = vpop.xlane.xlu0 %1826
      %1828 = vmax.xlane.f32.xlu0 %v1787
      %v1829 = vpop.xlane.xlu0 %1828
      %1830 = vmax.xlane.f32.xlu0 %v1792
      %v1831 = vpop.xlane.xlu0 %1830
      %1832 = vmax.xlane.f32.xlu0 %v1795
      %v1833 = vpop.xlane.xlu0 %1832
      %1834 = vmax.xlane.f32.xlu0 %v1800
      %v1835 = vpop.xlane.xlu0 %1834
      %1836 = vmax.xlane.f32.xlu0 %v1803
      %v1837 = vpop.xlane.xlu0 %1836
      %v1838 = vsub.f32 %v1744, %v1807
      %v1839 = vsub.f32 %v1747, %v1809
      %v1840 = vsub.f32 %v1752, %v1811
      %v1841 = vsub.f32 %v1755, %v1813
      %v1842 = vsub.f32 %v1760, %v1815
      %v1843 = vsub.f32 %v1763, %v1817
      %v1844 = vsub.f32 %v1768, %v1819
      %v1845 = vsub.f32 %v1771, %v1821
      %v1846 = vsub.f32 %v1776, %v1823
      %v1847 = vsub.f32 %v1779, %v1825
      %v1848 = vsub.f32 %v1784, %v1827
      %v1849 = vsub.f32 %v1787, %v1829
      %v1850 = vsub.f32 %v1792, %v1831
      %v1851 = vsub.f32 %v1795, %v1833
      %v1852 = vsub.f32 %v1800, %v1835
      %v1853 = vsub.f32 %v1803, %v1837
      %v1854 = vmul.f32 %v1838, 1.442695
      %v1855 = vpow.pop %v1854
      %v1856 = vmul.f32 %v1839, 1.442695
      %v1857 = vpow.pop %v1856
      %v1858 = vmul.f32 %v1840, 1.442695
      %v1859 = vpow.pop %v1858
      %v1860 = vmul.f32 %v1841, 1.442695
      %v1861 = vpow.pop %v1860
      %v1862 = vmul.f32 %v1842, 1.442695
      %v1863 = vpow.pop %v1862
      %v1864 = vmul.f32 %v1843, 1.442695
      %v1865 = vpow.pop %v1864
      %v1866 = vmul.f32 %v1844, 1.442695
      %v1867 = vpow.pop %v1866
      %v1868 = vmul.f32 %v1845, 1.442695
      %v1869 = vpow.pop %v1868
      %v1870 = vmul.f32 %v1846, 1.442695
      %v1871 = vpow.pop %v1870
      %v1872 = vmul.f32 %v1847, 1.442695
      %v1873 = vpow.pop %v1872
      %v1874 = vmul.f32 %v1848, 1.442695
      %v1875 = vpow.pop %v1874
      %v1876 = vmul.f32 %v1849, 1.442695
      %v1877 = vpow.pop %v1876
      %v1878 = vmul.f32 %v1850, 1.442695
      %v1879 = vpow.pop %v1878
      %v1880 = vmul.f32 %v1851, 1.442695
      %v1881 = vpow.pop %v1880
      %v1882 = vmul.f32 %v1852, 1.442695
      %v1883 = vpow.pop %v1882
      %v1884 = vmul.f32 %v1853, 1.442695
      %v1885 = vpow.pop %v1884
      %1886 = vadd.xlane.f32.xlu0 %v1855
      %v1887 = vpop.xlane.xlu0 %1886
      %1888 = vadd.xlane.f32.xlu0 %v1857
      %v1889 = vpop.xlane.xlu0 %1888
      %1890 = vadd.xlane.f32.xlu0 %v1859
      %v1891 = vpop.xlane.xlu0 %1890
      %1892 = vadd.xlane.f32.xlu0 %v1861
      %v1893 = vpop.xlane.xlu0 %1892
      %1894 = vadd.xlane.f32.xlu0 %v1863
      %v1895 = vpop.xlane.xlu0 %1894
      %1896 = vadd.xlane.f32.xlu0 %v1865
      %v1897 = vpop.xlane.xlu0 %1896
      %1898 = vadd.xlane.f32.xlu0 %v1867
      %v1899 = vpop.xlane.xlu0 %1898
      %1900 = vadd.xlane.f32.xlu0 %v1869
      %v1901 = vpop.xlane.xlu0 %1900
      %1902 = vadd.xlane.f32.xlu0 %v1871
      %v1903 = vpop.xlane.xlu0 %1902
      %1904 = vadd.xlane.f32.xlu0 %v1873
      %v1905 = vpop.xlane.xlu0 %1904
      %1906 = vadd.xlane.f32.xlu0 %v1875
      %v1907 = vpop.xlane.xlu0 %1906
      %1908 = vadd.xlane.f32.xlu0 %v1877
      %v1909 = vpop.xlane.xlu0 %1908
      %1910 = vadd.xlane.f32.xlu0 %v1879
      %v1911 = vpop.xlane.xlu0 %1910
      %1912 = vadd.xlane.f32.xlu0 %v1881
      %v1913 = vpop.xlane.xlu0 %1912
      %1914 = vadd.xlane.f32.xlu0 %v1883
      %v1915 = vpop.xlane.xlu0 %1914
      %1916 = vadd.xlane.f32.xlu0 %v1885
      %v1917 = vpop.xlane.xlu0 %1916
      %v1918 = vrcp.pop %v1887
      %v1919 = vrcp.pop %v1889
      %v1920 = vrcp.pop %v1891
      %v1921 = vrcp.pop %v1893
      %v1922 = vrcp.pop %v1895
      %v1923 = vrcp.pop %v1897
      %v1924 = vrcp.pop %v1899
      %v1925 = vrcp.pop %v1901
      %v1926 = vrcp.pop %v1903
      %v1927 = vrcp.pop %v1905
      %v1928 = vrcp.pop %v1907
      %v1929 = vrcp.pop %v1909
      %v1930 = vrcp.pop %v1911
      %v1931 = vrcp.pop %v1913
      %v1932 = vrcp.pop %v1915
      %v1933 = vrcp.pop %v1917
      %v1934 = vmul.f32 %v1855, %v1918
      %v1935 = vmul.f32 %v1857, %v1919
      %v1936 = vmul.f32 %v1859, %v1920
      %v1937 = vmul.f32 %v1861, %v1921
      %v1938 = vmul.f32 %v1863, %v1922
      %v1939 = vmul.f32 %v1865, %v1923
      %v1940 = vmul.f32 %v1867, %v1924
      %v1941 = vmul.f32 %v1869, %v1925
      %v1942 = vmul.f32 %v1871, %v1926
      %v1943 = vmul.f32 %v1873, %v1927
      %v1944 = vmul.f32 %v1875, %v1928
      %v1945 = vmul.f32 %v1877, %v1929
      %v1946 = vmul.f32 %v1879, %v1930
      %v1947 = vmul.f32 %v1881, %v1931
      %v1948 = vmul.f32 %v1883, %v1932
      %v1949 = vmul.f32 %v1885, %v1933
      %v1950 = vpack.c.bf16 %v1935, %v1934
      %v1951 = vpack.c.bf16 %v1937, %v1936
      %v1952 = vpack.c.bf16 %v1939, %v1938
      %v1953 = vpack.c.bf16 %v1941, %v1940
      %v1954 = vpack.c.bf16 %v1943, %v1942
      %v1955 = vpack.c.bf16 %v1945, %v1944
      %v1956 = vpack.c.bf16 %v1947, %v1946
      %v1957 = vpack.c.bf16 %v1949, %v1948
      %1966 = vrot.lane.b32.xlu0 %v1204, 96
      %v1967 = vpop.permute.xlu0 %1966
      %1968 = vrot.lane.b32.xlu0 %v1205, 96
      %v1969 = vpop.permute.xlu0 %1968
      %1970 = vrot.lane.b32.xlu0 %v1206, 96
      %v1971 = vpop.permute.xlu0 %1970
      %1972 = vrot.lane.b32.xlu0 %v1207, 96
      %v1973 = vpop.permute.xlu0 %1972
      %1974 = vrot.lane.b32.xlu0 %v1208, 96
      %v1975 = vpop.permute.xlu0 %1974
      %1976 = vrot.lane.b32.xlu0 %v1209, 96
      %v1977 = vpop.permute.xlu0 %1976
      %1978 = vrot.lane.b32.xlu0 %v1210, 96
      %v1979 = vpop.permute.xlu0 %1978
      %1980 = vrot.lane.b32.xlu0 %v1211, 96
      %v1981 = vpop.permute.xlu0 %1980
      %1990 = vmatprep.subr.bf16.mxu0 0
      %1991 = vmatpush1.bf16.msra.mxu0 %v1967
      %1992 = vmatprep.subr.bf16.mxu0 0
      %1993 = vmatpush1.bf16.msra.mxu0 %v1969
      %1994 = vmatprep.subr.bf16.mxu0 0
      %1995 = vmatpush1.bf16.msra.mxu0 %v1971
      %1996 = vmatprep.subr.bf16.mxu0 0
      %1997 = vmatpush1.bf16.msra.mxu0 %v1973
      %1998 = vmatprep.subr.bf16.mxu0 0
      %1999 = vmatpush1.bf16.msra.mxu0 %v1975
      %2000 = vmatprep.subr.bf16.mxu0 0
      %2001 = vmatpush1.bf16.msra.mxu0 %v1977
      %2002 = vmatprep.subr.bf16.mxu0 0
      %2003 = vmatpush1.bf16.msra.mxu0 %v1979
      %2004 = vmatprep.subr.bf16.mxu0 0
      %2005 = vmatpush1.bf16.msra.mxu0 %v1981
      %2006 = vmatprep.subr.bf16.mxu0 0
      %2007 = vmatpush1.bf16.msra.mxu0 0
      %2008 = vmatprep.subr.bf16.mxu0 0
      %2009 = vmatpush1.bf16.msra.mxu0 0
      %2010 = vmatprep.subr.bf16.mxu0 0
      %2011 = vmatpush1.bf16.msra.mxu0 0
      %2012 = vmatprep.subr.bf16.mxu0 0
      %2013 = vmatpush1.bf16.msra.mxu0 0
      %2014 = vmatprep.subr.bf16.mxu0 0
      %2015 = vmatpush1.bf16.msra.mxu0 0
      %2016 = vmatprep.subr.bf16.mxu0 0
      %2017 = vmatpush1.bf16.msra.mxu0 0
      %2018 = vmatprep.subr.bf16.mxu0 0
      %2019 = vmatpush1.bf16.msra.mxu0 0
      %2020 = vmatprep.subr.bf16.mxu0 0
      %2021 = vmatpush1.bf16.msra.mxu0 0
      %2022 = vmatprep.mubr.bf16.mxu0 0
      %2023 = vmatmul.mubr.bf16.gmra.mrb[0].mxu0 %v1950
      %v2024 = vpop.f32.mrb[0].mxu0
      %v2025 = vadd.f32 0.0, %v2024
      %v2026 = vpop.f32.mrb[0].mxu0
      %v2027 = vpop.f32.mrb[0].mxu0
      %v2028 = vadd.f32 0.0, %v2027
      %v2029 = vpop.f32.mrb[0].mxu0
      %2030 = vmatprep.mubr.bf16.mxu0 0
      %2031 = vmatmul.mubr.bf16.gmra.mrb[0].mxu0 %v1951
      %v2032 = vpop.f32.mrb[0].mxu0
      %v2033 = vadd.f32 0.0, %v2032
      %v2034 = vpop.f32.mrb[0].mxu0
      %v2035 = vpop.f32.mrb[0].mxu0
      %v2036 = vadd.f32 0.0, %v2035
      %v2037 = vpop.f32.mrb[0].mxu0
      %2038 = vmatprep.mubr.bf16.mxu0 0
      %2039 = vmatmul.mubr.bf16.gmra.mrb[0].mxu0 %v1952
      %v2040 = vpop.f32.mrb[0].mxu0
      %v2041 = vadd.f32 0.0, %v2040
      %v2042 = vpop.f32.mrb[0].mxu0
      %v2043 = vpop.f32.mrb[0].mxu0
      %v2044 = vadd.f32 0.0, %v2043
      %v2045 = vpop.f32.mrb[0].mxu0
      %2046 = vmatprep.mubr.bf16.mxu0 0
      %2047 = vmatmul.mubr.bf16.gmra.mrb[0].mxu0 %v1953
      %v2048 = vpop.f32.mrb[0].mxu0
      %v2049 = vadd.f32 0.0, %v2048
      %v2050 = vpop.f32.mrb[0].mxu0
      %v2051 = vpop.f32.mrb[0].mxu0
      %v2052 = vadd.f32 0.0, %v2051
      %v2053 = vpop.f32.mrb[0].mxu0
      %2054 = vmatprep.mubr.bf16.mxu0 0
      %2055 = vmatmul.mubr.bf16.gmra.mrb[0].mxu0 %v1954
      %v2056 = vpop.f32.mrb[0].mxu0
      %v2057 = vadd.f32 0.0, %v2056
      %v2058 = vpop.f32.mrb[0].mxu0
      %v2059 = vpop.f32.mrb[0].mxu0
      %v2060 = vadd.f32 0.0, %v2059
      %v2061 = vpop.f32.mrb[0].mxu0
      %2062 = vmatprep.mubr.bf16.mxu0 0
      %2063 = vmatmul.mubr.bf16.gmra.mrb[0].mxu0 %v1955
      %v2064 = vpop.f32.mrb[0].mxu0
      %v2065 = vadd.f32 0.0, %v2064
      %v2066 = vpop.f32.mrb[0].mxu0
      %v2067 = vpop.f32.mrb[0].mxu0
      %v2068 = vadd.f32 0.0, %v2067
      %v2069 = vpop.f32.mrb[0].mxu0
      %2070 = vmatprep.mubr.bf16.mxu0 0
      %2071 = vmatmul.mubr.bf16.gmra.mrb[0].mxu0 %v1956
      %v2072 = vpop.f32.mrb[0].mxu0
      %v2073 = vadd.f32 0.0, %v2072
      %v2074 = vpop.f32.mrb[0].mxu0
      %v2075 = vpop.f32.mrb[0].mxu0
      %v2076 = vadd.f32 0.0, %v2075
      %v2077 = vpop.f32.mrb[0].mxu0
      %2078 = vmatprep.mubr.bf16.mxu0 0
      %2079 = vmatmul.mubr.bf16.gmra.mrb[0].mxu0 %v1957
      %v2080 = vpop.f32.mrb[0].mxu0
      %v2081 = vadd.f32 0.0, %v2080
      %v2082 = vpop.f32.mrb[0].mxu0
      %v2083 = vpop.f32.mrb[0].mxu0
      %v2084 = vadd.f32 0.0, %v2083
      %v2085 = vpop.f32.mrb[0].mxu0
      %2086 = vdwg.mxu0
      %2087 = vrot.lane.b32.xlu0 %v1188, 64
      %v2088 = vpop.permute.xlu0 %2087
      %2089 = vrot.lane.b32.xlu0 %v1189, 64
      %v2090 = vpop.permute.xlu0 %2089
      %2091 = vrot.lane.b32.xlu0 %v1190, 64
      %v2092 = vpop.permute.xlu0 %2091
      %2093 = vrot.lane.b32.xlu0 %v1191, 64
      %v2094 = vpop.permute.xlu0 %2093
      %2095 = vrot.lane.b32.xlu0 %v1192, 64
      %v2096 = vpop.permute.xlu0 %2095
      %2097 = vrot.lane.b32.xlu0 %v1193, 64
      %v2098 = vpop.permute.xlu0 %2097
      %2099 = vrot.lane.b32.xlu0 %v1194, 64
      %v2100 = vpop.permute.xlu0 %2099
      %2101 = vrot.lane.b32.xlu0 %v1195, 64
      %v2102 = vpop.permute.xlu0 %2101
      %2103 = vrot.lane.b32.xlu0 %v1196, 64
      %v2104 = vpop.permute.xlu0 %2103
      %2105 = vrot.lane.b32.xlu0 %v1197, 64
      %v2106 = vpop.permute.xlu0 %2105
      %2107 = vrot.lane.b32.xlu0 %v1198, 64
      %v2108 = vpop.permute.xlu0 %2107
      %2109 = vrot.lane.b32.xlu0 %v1199, 64
      %v2110 = vpop.permute.xlu0 %2109
      %2111 = vrot.lane.b32.xlu0 %v1200, 64
      %v2112 = vpop.permute.xlu0 %2111
      %2113 = vrot.lane.b32.xlu0 %v1201, 64
      %v2114 = vpop.permute.xlu0 %2113
      %2115 = vrot.lane.b32.xlu0 %v1202, 64
      %v2116 = vpop.permute.xlu0 %2115
      %2117 = vrot.lane.b32.xlu0 %v1203, 64
      %v2118 = vpop.permute.xlu0 %2117
      %v2120 = vsel %vm1218, %v2088, 0
      %v2123 = vsel %vm1218, %v2090, 0
      %v2126 = vsel %vm1218, %v2092, 0
      %v2129 = vsel %vm1218, %v2094, 0
      %v2132 = vsel %vm1218, %v2096, 0
      %v2135 = vsel %vm1218, %v2098, 0
      %v2138 = vsel %vm1218, %v2100, 0
      %v2141 = vsel %vm1218, %v2102, 0
      %v2144 = vsel %vm1218, %v2104, 0
      %v2147 = vsel %vm1218, %v2106, 0
      %v2150 = vsel %vm1218, %v2108, 0
      %v2153 = vsel %vm1218, %v2110, 0
      %v2156 = vsel %vm1218, %v2112, 0
      %v2159 = vsel %vm1218, %v2114, 0
      %v2162 = vsel %vm1218, %v2116, 0
      %v2165 = vsel %vm1218, %v2118, 0
      %2167 = vmatprep.subr.bf16.mxu0 0
      %2168 = vmatpush1.bf16.xpose.msra.mxu0 %v2144
      %2169 = vmatprep.subr.bf16.mxu0 0
      %2170 = vmatpush1.bf16.xpose.msra.mxu0 %v2147
      %2171 = vmatprep.subr.bf16.mxu0 0
      %2172 = vmatpush1.bf16.xpose.msra.mxu0 %v2150
      %2173 = vmatprep.subr.bf16.mxu0 0
      %2174 = vmatpush1.bf16.xpose.msra.mxu0 %v2153
      %2175 = vmatprep.subr.bf16.mxu0 0
      %2176 = vmatpush1.bf16.xpose.msra.mxu0 %v2156
      %2177 = vmatprep.subr.bf16.mxu0 0
      %2178 = vmatpush1.bf16.xpose.msra.mxu0 %v2159
      %2179 = vmatprep.subr.bf16.mxu0 0
      %2180 = vmatpush1.bf16.xpose.msra.mxu0 %v2162
      %2181 = vmatprep.subr.bf16.mxu0 0
      %2182 = vmatpush1.bf16.xpose.msra.mxu0 %v2165
      %2183 = vmatprep.subr.bf16.mxu0 0
      %2184 = vmatpush1.bf16.xpose.msra.mxu0 0
      %2185 = vmatprep.subr.bf16.mxu0 0
      %2186 = vmatpush1.bf16.xpose.msra.mxu0 0
      %2187 = vmatprep.subr.bf16.mxu0 0
      %2188 = vmatpush1.bf16.xpose.msra.mxu0 0
      %2189 = vmatprep.subr.bf16.mxu0 0
      %2190 = vmatpush1.bf16.xpose.msra.mxu0 0
      %2191 = vmatprep.subr.bf16.mxu0 0
      %2192 = vmatpush1.bf16.xpose.msra.mxu0 0
      %2193 = vmatprep.subr.bf16.mxu0 0
      %2194 = vmatpush1.bf16.xpose.msra.mxu0 0
      %2195 = vmatprep.subr.bf16.mxu0 0
      %2196 = vmatpush1.bf16.xpose.msra.mxu0 0
      %2197 = vmatprep.subr.bf16.mxu0 0
      %2198 = vmatpush1.bf16.xpose.msra.mxu0 0
      %2199 = vmatprep.mubr.bf16.mxu0 0
      %2200 = vmatmul.mubr.bf16.gmra.mrb[0].mxu0 %v2120
      %v2201 = vpop.f32.mrb[0].mxu0
      %v2202 = vadd.f32 %v1216, %v2201
      %v2203 = vpop.f32.mrb[0].mxu0
      %v2204 = vpop.f32.mrb[0].mxu0
      %v2205 = vadd.f32 %v1216, %v2204
      %v2206 = vpop.f32.mrb[0].mxu0
      %2207 = vmatprep.mubr.bf16.mxu0 0
      %2208 = vmatmul.mubr.bf16.gmra.mrb[0].mxu0 %v2123
      %v2209 = vpop.f32.mrb[0].mxu0
      %v2210 = vadd.f32 %v1216, %v2209
      %v2211 = vpop.f32.mrb[0].mxu0
      %v2212 = vpop.f32.mrb[0].mxu0
      %v2213 = vadd.f32 %v1216, %v2212
      %v2214 = vpop.f32.mrb[0].mxu0
      %2215 = vmatprep.mubr.bf16.mxu0 0
      %2216 = vmatmul.mubr.bf16.gmra.mrb[0].mxu0 %v2126
      %v2217 = vpop.f32.mrb[0].mxu0
      %v2218 = vadd.f32 %v1216, %v2217
      %v2219 = vpop.f32.mrb[0].mxu0
      %v2220 = vpop.f32.mrb[0].mxu0
      %v2221 = vadd.f32 %v1216, %v2220
      %v2222 = vpop.f32.mrb[0].mxu0
      %2223 = vmatprep.mubr.bf16.mxu0 0
      %2224 = vmatmul.mubr.bf16.gmra.mrb[0].mxu0 %v2129
      %v2225 = vpop.f32.mrb[0].mxu0
      %v2226 = vadd.f32 %v1216, %v2225
      %v2227 = vpop.f32.mrb[0].mxu0
      %v2228 = vpop.f32.mrb[0].mxu0
      %v2229 = vadd.f32 %v1216, %v2228
      %v2230 = vpop.f32.mrb[0].mxu0
      %2231 = vmatprep.mubr.bf16.mxu0 0
      %2232 = vmatmul.mubr.bf16.gmra.mrb[0].mxu0 %v2132
      %v2233 = vpop.f32.mrb[0].mxu0
      %v2234 = vadd.f32 %v1216, %v2233
      %v2235 = vpop.f32.mrb[0].mxu0
      %v2236 = vpop.f32.mrb[0].mxu0
      %v2237 = vadd.f32 %v1216, %v2236
      %v2238 = vpop.f32.mrb[0].mxu0
      %2239 = vmatprep.mubr.bf16.mxu0 0
      %2240 = vmatmul.mubr.bf16.gmra.mrb[0].mxu0 %v2135
      %v2241 = vpop.f32.mrb[0].mxu0
      %v2242 = vadd.f32 %v1216, %v2241
      %v2243 = vpop.f32.mrb[0].mxu0
      %v2244 = vpop.f32.mrb[0].mxu0
      %v2245 = vadd.f32 %v1216, %v2244
      %v2246 = vpop.f32.mrb[0].mxu0
      %2247 = vmatprep.mubr.bf16.mxu0 0
      %2248 = vmatmul.mubr.bf16.gmra.mrb[0].mxu0 %v2138
      %v2249 = vpop.f32.mrb[0].mxu0
      %v2250 = vadd.f32 %v1216, %v2249
      %v2251 = vpop.f32.mrb[0].mxu0
      %v2252 = vpop.f32.mrb[0].mxu0
      %v2253 = vadd.f32 %v1216, %v2252
      %v2254 = vpop.f32.mrb[0].mxu0
      %2255 = vmatprep.mubr.bf16.mxu0 0
      %2256 = vmatmul.mubr.bf16.gmra.mrb[0].mxu0 %v2141
      %v2257 = vpop.f32.mrb[0].mxu0
      %v2258 = vadd.f32 %v1216, %v2257
      %v2259 = vpop.f32.mrb[0].mxu0
      %v2260 = vpop.f32.mrb[0].mxu0
      %v2261 = vadd.f32 %v1216, %v2260
      %v2262 = vpop.f32.mrb[0].mxu0
      %2263 = vdwg.mxu0
      %2264 = vmax.xlane.f32.xlu0 %v2202
      %v2265 = vpop.xlane.xlu0 %2264
      %2266 = vmax.xlane.f32.xlu0 %v2205
      %v2267 = vpop.xlane.xlu0 %2266
      %2268 = vmax.xlane.f32.xlu0 %v2210
      %v2269 = vpop.xlane.xlu0 %2268
      %2270 = vmax.xlane.f32.xlu0 %v2213
      %v2271 = vpop.xlane.xlu0 %2270
      %2272 = vmax.xlane.f32.xlu0 %v2218
      %v2273 = vpop.xlane.xlu0 %2272
      %2274 = vmax.xlane.f32.xlu0 %v2221
      %v2275 = vpop.xlane.xlu0 %2274
      %2276 = vmax.xlane.f32.xlu0 %v2226
      %v2277 = vpop.xlane.xlu0 %2276
      %2278 = vmax.xlane.f32.xlu0 %v2229
      %v2279 = vpop.xlane.xlu0 %2278
      %2280 = vmax.xlane.f32.xlu0 %v2234
      %v2281 = vpop.xlane.xlu0 %2280
      %2282 = vmax.xlane.f32.xlu0 %v2237
      %v2283 = vpop.xlane.xlu0 %2282
      %2284 = vmax.xlane.f32.xlu0 %v2242
      %v2285 = vpop.xlane.xlu0 %2284
      %2286 = vmax.xlane.f32.xlu0 %v2245
      %v2287 = vpop.xlane.xlu0 %2286
      %2288 = vmax.xlane.f32.xlu0 %v2250
      %v2289 = vpop.xlane.xlu0 %2288
      %2290 = vmax.xlane.f32.xlu0 %v2253
      %v2291 = vpop.xlane.xlu0 %2290
      %2292 = vmax.xlane.f32.xlu0 %v2258
      %v2293 = vpop.xlane.xlu0 %2292
      %2294 = vmax.xlane.f32.xlu0 %v2261
      %v2295 = vpop.xlane.xlu0 %2294
      %v2296 = vsub.f32 %v2202, %v2265
      %v2297 = vsub.f32 %v2205, %v2267
      %v2298 = vsub.f32 %v2210, %v2269
      %v2299 = vsub.f32 %v2213, %v2271
      %v2300 = vsub.f32 %v2218, %v2273
      %v2301 = vsub.f32 %v2221, %v2275
      %v2302 = vsub.f32 %v2226, %v2277
      %v2303 = vsub.f32 %v2229, %v2279
      %v2304 = vsub.f32 %v2234, %v2281
      %v2305 = vsub.f32 %v2237, %v2283
      %v2306 = vsub.f32 %v2242, %v2285
      %v2307 = vsub.f32 %v2245, %v2287
      %v2308 = vsub.f32 %v2250, %v2289
      %v2309 = vsub.f32 %v2253, %v2291
      %v2310 = vsub.f32 %v2258, %v2293
      %v2311 = vsub.f32 %v2261, %v2295
      %v2312 = vmul.f32 %v2296, 1.442695
      %v2313 = vpow.pop %v2312
      %v2314 = vmul.f32 %v2297, 1.442695
      %v2315 = vpow.pop %v2314
      %v2316 = vmul.f32 %v2298, 1.442695
      %v2317 = vpow.pop %v2316
      %v2318 = vmul.f32 %v2299, 1.442695
      %v2319 = vpow.pop %v2318
      %v2320 = vmul.f32 %v2300, 1.442695
      %v2321 = vpow.pop %v2320
      %v2322 = vmul.f32 %v2301, 1.442695
      %v2323 = vpow.pop %v2322
      %v2324 = vmul.f32 %v2302, 1.442695
      %v2325 = vpow.pop %v2324
      %v2326 = vmul.f32 %v2303, 1.442695
      %v2327 = vpow.pop %v2326
      %v2328 = vmul.f32 %v2304, 1.442695
      %v2329 = vpow.pop %v2328
      %v2330 = vmul.f32 %v2305, 1.442695
      %v2331 = vpow.pop %v2330
      %v2332 = vmul.f32 %v2306, 1.442695
      %v2333 = vpow.pop %v2332
      %v2334 = vmul.f32 %v2307, 1.442695
      %v2335 = vpow.pop %v2334
      %v2336 = vmul.f32 %v2308, 1.442695
      %v2337 = vpow.pop %v2336
      %v2338 = vmul.f32 %v2309, 1.442695
      %v2339 = vpow.pop %v2338
      %v2340 = vmul.f32 %v2310, 1.442695
      %v2341 = vpow.pop %v2340
      %v2342 = vmul.f32 %v2311, 1.442695
      %v2343 = vpow.pop %v2342
      %2344 = vadd.xlane.f32.xlu0 %v2313
      %v2345 = vpop.xlane.xlu0 %2344
      %2346 = vadd.xlane.f32.xlu0 %v2315
      %v2347 = vpop.xlane.xlu0 %2346
      %2348 = vadd.xlane.f32.xlu0 %v2317
      %v2349 = vpop.xlane.xlu0 %2348
      %2350 = vadd.xlane.f32.xlu0 %v2319
      %v2351 = vpop.xlane.xlu0 %2350
      %2352 = vadd.xlane.f32.xlu0 %v2321
      %v2353 = vpop.xlane.xlu0 %2352
      %2354 = vadd.xlane.f32.xlu0 %v2323
      %v2355 = vpop.xlane.xlu0 %2354
      %2356 = vadd.xlane.f32.xlu0 %v2325
      %v2357 = vpop.xlane.xlu0 %2356
      %2358 = vadd.xlane.f32.xlu0 %v2327
      %v2359 = vpop.xlane.xlu0 %2358
      %2360 = vadd.xlane.f32.xlu0 %v2329
      %v2361 = vpop.xlane.xlu0 %2360
      %2362 = vadd.xlane.f32.xlu0 %v2331
      %v2363 = vpop.xlane.xlu0 %2362
      %2364 = vadd.xlane.f32.xlu0 %v2333
      %v2365 = vpop.xlane.xlu0 %2364
      %2366 = vadd.xlane.f32.xlu0 %v2335
      %v2367 = vpop.xlane.xlu0 %2366
      %2368 = vadd.xlane.f32.xlu0 %v2337
      %v2369 = vpop.xlane.xlu0 %2368
      %2370 = vadd.xlane.f32.xlu0 %v2339
      %v2371 = vpop.xlane.xlu0 %2370
      %2372 = vadd.xlane.f32.xlu0 %v2341
      %v2373 = vpop.xlane.xlu0 %2372
      %2374 = vadd.xlane.f32.xlu0 %v2343
      %v2375 = vpop.xlane.xlu0 %2374
      %v2376 = vrcp.pop %v2345
      %v2377 = vrcp.pop %v2347
      %v2378 = vrcp.pop %v2349
      %v2379 = vrcp.pop %v2351
      %v2380 = vrcp.pop %v2353
      %v2381 = vrcp.pop %v2355
      %v2382 = vrcp.pop %v2357
      %v2383 = vrcp.pop %v2359
      %v2384 = vrcp.pop %v2361
      %v2385 = vrcp.pop %v2363
      %v2386 = vrcp.pop %v2365
      %v2387 = vrcp.pop %v2367
      %v2388 = vrcp.pop %v2369
      %v2389 = vrcp.pop %v2371
      %v2390 = vrcp.pop %v2373
      %v2391 = vrcp.pop %v2375
      %v2392 = vmul.f32 %v2313, %v2376
      %v2393 = vmul.f32 %v2315, %v2377
      %v2394 = vmul.f32 %v2317, %v2378
      %v2395 = vmul.f32 %v2319, %v2379
      %v2396 = vmul.f32 %v2321, %v2380
      %v2397 = vmul.f32 %v2323, %v2381
      %v2398 = vmul.f32 %v2325, %v2382
      %v2399 = vmul.f32 %v2327, %v2383
      %v2400 = vmul.f32 %v2329, %v2384
      %v2401 = vmul.f32 %v2331, %v2385
      %v2402 = vmul.f32 %v2333, %v2386
      %v2403 = vmul.f32 %v2335, %v2387
      %v2404 = vmul.f32 %v2337, %v2388
      %v2405 = vmul.f32 %v2339, %v2389
      %v2406 = vmul.f32 %v2341, %v2390
      %v2407 = vmul.f32 %v2343, %v2391
      %v2408 = vpack.c.bf16 %v2393, %v2392
      %v2409 = vpack.c.bf16 %v2395, %v2394
      %v2410 = vpack.c.bf16 %v2397, %v2396
      %v2411 = vpack.c.bf16 %v2399, %v2398
      %v2412 = vpack.c.bf16 %v2401, %v2400
      %v2413 = vpack.c.bf16 %v2403, %v2402
      %v2414 = vpack.c.bf16 %v2405, %v2404
      %v2415 = vpack.c.bf16 %v2407, %v2406
      %2416 = vrot.lane.b32.xlu0 %v1204, 64
      %v2417 = vpop.permute.xlu0 %2416
      %2418 = vrot.lane.b32.xlu0 %v1205, 64
      %v2419 = vpop.permute.xlu0 %2418
      %2420 = vrot.lane.b32.xlu0 %v1206, 64
      %v2421 = vpop.permute.xlu0 %2420
      %2422 = vrot.lane.b32.xlu0 %v1207, 64
      %v2423 = vpop.permute.xlu0 %2422
      %2424 = vrot.lane.b32.xlu0 %v1208, 64
      %v2425 = vpop.permute.xlu0 %2424
      %2426 = vrot.lane.b32.xlu0 %v1209, 64
      %v2427 = vpop.permute.xlu0 %2426
      %2428 = vrot.lane.b32.xlu0 %v1210, 64
      %v2429 = vpop.permute.xlu0 %2428
      %2430 = vrot.lane.b32.xlu0 %v1211, 64
      %v2431 = vpop.permute.xlu0 %2430
      %2440 = vmatprep.subr.bf16.mxu0 0
      %2441 = vmatpush1.bf16.msra.mxu0 %v2417
      %2442 = vmatprep.subr.bf16.mxu0 0
      %2443 = vmatpush1.bf16.msra.mxu0 %v2419
      %2444 = vmatprep.subr.bf16.mxu0 0
      %2445 = vmatpush1.bf16.msra.mxu0 %v2421
      %2446 = vmatprep.subr.bf16.mxu0 0
      %2447 = vmatpush1.bf16.msra.mxu0 %v2423
      %2448 = vmatprep.subr.bf16.mxu0 0
      %2449 = vmatpush1.bf16.msra.mxu0 %v2425
      %2450 = vmatprep.subr.bf16.mxu0 0
      %2451 = vmatpush1.bf16.msra.mxu0 %v2427
      %2452 = vmatprep.subr.bf16.mxu0 0
      %2453 = vmatpush1.bf16.msra.mxu0 %v2429
      %2454 = vmatprep.subr.bf16.mxu0 0
      %2455 = vmatpush1.bf16.msra.mxu0 %v2431
      %2456 = vmatprep.subr.bf16.mxu0 0
      %2457 = vmatpush1.bf16.msra.mxu0 0
      %2458 = vmatprep.subr.bf16.mxu0 0
      %2459 = vmatpush1.bf16.msra.mxu0 0
      %2460 = vmatprep.subr.bf16.mxu0 0
      %2461 = vmatpush1.bf16.msra.mxu0 0
      %2462 = vmatprep.subr.bf16.mxu0 0
      %2463 = vmatpush1.bf16.msra.mxu0 0
      %2464 = vmatprep.subr.bf16.mxu0 0
      %2465 = vmatpush1.bf16.msra.mxu0 0
      %2466 = vmatprep.subr.bf16.mxu0 0
      %2467 = vmatpush1.bf16.msra.mxu0 0
      %2468 = vmatprep.subr.bf16.mxu0 0
      %2469 = vmatpush1.bf16.msra.mxu0 0
      %2470 = vmatprep.subr.bf16.mxu0 0
      %2471 = vmatpush1.bf16.msra.mxu0 0
      %2472 = vmatprep.mubr.bf16.mxu0 0
      %2473 = vmatmul.mubr.bf16.gmra.mrb[0].mxu0 %v2408
      %v2474 = vpop.f32.mrb[0].mxu0
      %v2475 = vadd.f32 0.0, %v2474
      %v2476 = vpop.f32.mrb[0].mxu0
      %v2477 = vpop.f32.mrb[0].mxu0
      %v2478 = vadd.f32 0.0, %v2477
      %v2479 = vpop.f32.mrb[0].mxu0
      %2480 = vmatprep.mubr.bf16.mxu0 0
      %2481 = vmatmul.mubr.bf16.gmra.mrb[0].mxu0 %v2409
      %v2482 = vpop.f32.mrb[0].mxu0
      %v2483 = vadd.f32 0.0, %v2482
      %v2484 = vpop.f32.mrb[0].mxu0
      %v2485 = vpop.f32.mrb[0].mxu0
      %v2486 = vadd.f32 0.0, %v2485
      %v2487 = vpop.f32.mrb[0].mxu0
      %2488 = vmatprep.mubr.bf16.mxu0 0
      %2489 = vmatmul.mubr.bf16.gmra.mrb[0].mxu0 %v2410
      %v2490 = vpop.f32.mrb[0].mxu0
      %v2491 = vadd.f32 0.0, %v2490
      %v2492 = vpop.f32.mrb[0].mxu0
      %v2493 = vpop.f32.mrb[0].mxu0
      %v2494 = vadd.f32 0.0, %v2493
      %v2495 = vpop.f32.mrb[0].mxu0
      %2496 = vmatprep.mubr.bf16.mxu0 0
      %2497 = vmatmul.mubr.bf16.gmra.mrb[0].mxu0 %v2411
      %v2498 = vpop.f32.mrb[0].mxu0
      %v2499 = vadd.f32 0.0, %v2498
      %v2500 = vpop.f32.mrb[0].mxu0
      %v2501 = vpop.f32.mrb[0].mxu0
      %v2502 = vadd.f32 0.0, %v2501
      %v2503 = vpop.f32.mrb[0].mxu0
      %2504 = vmatprep.mubr.bf16.mxu0 0
      %2505 = vmatmul.mubr.bf16.gmra.mrb[0].mxu0 %v2412
      %v2506 = vpop.f32.mrb[0].mxu0
      %v2507 = vadd.f32 0.0, %v2506
      %v2508 = vpop.f32.mrb[0].mxu0
      %v2509 = vpop.f32.mrb[0].mxu0
      %v2510 = vadd.f32 0.0, %v2509
      %v2511 = vpop.f32.mrb[0].mxu0
      %2512 = vmatprep.mubr.bf16.mxu0 0
      %2513 = vmatmul.mubr.bf16.gmra.mrb[0].mxu0 %v2413
      %v2514 = vpop.f32.mrb[0].mxu0
      %v2515 = vadd.f32 0.0, %v2514
      %v2516 = vpop.f32.mrb[0].mxu0
      %v2517 = vpop.f32.mrb[0].mxu0
      %v2518 = vadd.f32 0.0, %v2517
      %v2519 = vpop.f32.mrb[0].mxu0
      %2520 = vmatprep.mubr.bf16.mxu0 0
      %2521 = vmatmul.mubr.bf16.gmra.mrb[0].mxu0 %v2414
      %v2522 = vpop.f32.mrb[0].mxu0
      %v2523 = vadd.f32 0.0, %v2522
      %v2524 = vpop.f32.mrb[0].mxu0
      %v2525 = vpop.f32.mrb[0].mxu0
      %v2526 = vadd.f32 0.0, %v2525
      %v2527 = vpop.f32.mrb[0].mxu0
      %2528 = vmatprep.mubr.bf16.mxu0 0
      %2529 = vmatmul.mubr.bf16.gmra.mrb[0].mxu0 %v2415
      %v2530 = vpop.f32.mrb[0].mxu0
      %v2531 = vadd.f32 0.0, %v2530
      %v2532 = vpop.f32.mrb[0].mxu0
      %v2533 = vpop.f32.mrb[0].mxu0
      %v2534 = vadd.f32 0.0, %v2533
      %v2535 = vpop.f32.mrb[0].mxu0
      %2536 = vdwg.mxu0
      %2537 = vrot.lane.b32.xlu0 %v1188, 32
      %v2538 = vpop.permute.xlu0 %2537
      %2539 = vrot.lane.b32.xlu0 %v1189, 32
      %v2540 = vpop.permute.xlu0 %2539
      %2541 = vrot.lane.b32.xlu0 %v1190, 32
      %v2542 = vpop.permute.xlu0 %2541
      %2543 = vrot.lane.b32.xlu0 %v1191, 32
      %v2544 = vpop.permute.xlu0 %2543
      %2545 = vrot.lane.b32.xlu0 %v1192, 32
      %v2546 = vpop.permute.xlu0 %2545
      %2547 = vrot.lane.b32.xlu0 %v1193, 32
      %v2548 = vpop.permute.xlu0 %2547
      %2549 = vrot.lane.b32.xlu0 %v1194, 32
      %v2550 = vpop.permute.xlu0 %2549
      %2551 = vrot.lane.b32.xlu0 %v1195, 32
      %v2552 = vpop.permute.xlu0 %2551
      %2553 = vrot.lane.b32.xlu0 %v1196, 32
      %v2554 = vpop.permute.xlu0 %2553
      %2555 = vrot.lane.b32.xlu0 %v1197, 32
      %v2556 = vpop.permute.xlu0 %2555
      %2557 = vrot.lane.b32.xlu0 %v1198, 32
      %v2558 = vpop.permute.xlu0 %2557
      %2559 = vrot.lane.b32.xlu0 %v1199, 32
      %v2560 = vpop.permute.xlu0 %2559
      %2561 = vrot.lane.b32.xlu0 %v1200, 32
      %v2562 = vpop.permute.xlu0 %2561
      %2563 = vrot.lane.b32.xlu0 %v1201, 32
      %v2564 = vpop.permute.xlu0 %2563
      %2565 = vrot.lane.b32.xlu0 %v1202, 32
      %v2566 = vpop.permute.xlu0 %2565
      %2567 = vrot.lane.b32.xlu0 %v1203, 32
      %v2568 = vpop.permute.xlu0 %2567
      %v2570 = vsel %vm1218, %v2538, 0
      %v2573 = vsel %vm1218, %v2540, 0
      %v2576 = vsel %vm1218, %v2542, 0
      %v2579 = vsel %vm1218, %v2544, 0
      %v2582 = vsel %vm1218, %v2546, 0
      %v2585 = vsel %vm1218, %v2548, 0
      %v2588 = vsel %vm1218, %v2550, 0
      %v2591 = vsel %vm1218, %v2552, 0
      %v2594 = vsel %vm1218, %v2554, 0
      %v2597 = vsel %vm1218, %v2556, 0
      %v2600 = vsel %vm1218, %v2558, 0
      %v2603 = vsel %vm1218, %v2560, 0
      %v2606 = vsel %vm1218, %v2562, 0
      %v2609 = vsel %vm1218, %v2564, 0
      %v2612 = vsel %vm1218, %v2566, 0
      %v2615 = vsel %vm1218, %v2568, 0
      %2617 = vmatprep.subr.bf16.mxu0 0
      %2618 = vmatpush1.bf16.xpose.msra.mxu0 %v2594
      %2619 = vmatprep.subr.bf16.mxu0 0
      %2620 = vmatpush1.bf16.xpose.msra.mxu0 %v2597
      %2621 = vmatprep.subr.bf16.mxu0 0
      %2622 = vmatpush1.bf16.xpose.msra.mxu0 %v2600
      %2623 = vmatprep.subr.bf16.mxu0 0
      %2624 = vmatpush1.bf16.xpose.msra.mxu0 %v2603
      %2625 = vmatprep.subr.bf16.mxu0 0
      %2626 = vmatpush1.bf16.xpose.msra.mxu0 %v2606
      %2627 = vmatprep.subr.bf16.mxu0 0
      %2628 = vmatpush1.bf16.xpose.msra.mxu0 %v2609
      %2629 = vmatprep.subr.bf16.mxu0 0
      %2630 = vmatpush1.bf16.xpose.msra.mxu0 %v2612
      %2631 = vmatprep.subr.bf16.mxu0 0
      %2632 = vmatpush1.bf16.xpose.msra.mxu0 %v2615
      %2633 = vmatprep.subr.bf16.mxu0 0
      %2634 = vmatpush1.bf16.xpose.msra.mxu0 0
      %2635 = vmatprep.subr.bf16.mxu0 0
      %2636 = vmatpush1.bf16.xpose.msra.mxu0 0
      %2637 = vmatprep.subr.bf16.mxu0 0
      %2638 = vmatpush1.bf16.xpose.msra.mxu0 0
      %2639 = vmatprep.subr.bf16.mxu0 0
      %2640 = vmatpush1.bf16.xpose.msra.mxu0 0
      %2641 = vmatprep.subr.bf16.mxu0 0
      %2642 = vmatpush1.bf16.xpose.msra.mxu0 0
      %2643 = vmatprep.subr.bf16.mxu0 0
      %2644 = vmatpush1.bf16.xpose.msra.mxu0 0
      %2645 = vmatprep.subr.bf16.mxu0 0
      %2646 = vmatpush1.bf16.xpose.msra.mxu0 0
      %2647 = vmatprep.subr.bf16.mxu0 0
      %2648 = vmatpush1.bf16.xpose.msra.mxu0 0
      %2649 = vmatprep.mubr.bf16.mxu0 0
      %2650 = vmatmul.mubr.bf16.gmra.mrb[0].mxu0 %v2570
      %v2651 = vpop.f32.mrb[0].mxu0
      %v2652 = vadd.f32 %v1216, %v2651
      %v2653 = vpop.f32.mrb[0].mxu0
      %v2654 = vpop.f32.mrb[0].mxu0
      %v2655 = vadd.f32 %v1216, %v2654
      %v2656 = vpop.f32.mrb[0].mxu0
      %2657 = vmatprep.mubr.bf16.mxu0 0
      %2658 = vmatmul.mubr.bf16.gmra.mrb[0].mxu0 %v2573
      %v2659 = vpop.f32.mrb[0].mxu0
      %v2660 = vadd.f32 %v1216, %v2659
      %v2661 = vpop.f32.mrb[0].mxu0
      %v2662 = vpop.f32.mrb[0].mxu0
      %v2663 = vadd.f32 %v1216, %v2662
      %v2664 = vpop.f32.mrb[0].mxu0
      %2665 = vmatprep.mubr.bf16.mxu0 0
      %2666 = vmatmul.mubr.bf16.gmra.mrb[0].mxu0 %v2576
      %v2667 = vpop.f32.mrb[0].mxu0
      %v2668 = vadd.f32 %v1216, %v2667
      %v2669 = vpop.f32.mrb[0].mxu0
      %v2670 = vpop.f32.mrb[0].mxu0
      %v2671 = vadd.f32 %v1216, %v2670
      %v2672 = vpop.f32.mrb[0].mxu0
      %2673 = vmatprep.mubr.bf16.mxu0 0
      %2674 = vmatmul.mubr.bf16.gmra.mrb[0].mxu0 %v2579
      %v2675 = vpop.f32.mrb[0].mxu0
      %v2676 = vadd.f32 %v1216, %v2675
      %v2677 = vpop.f32.mrb[0].mxu0
      %v2678 = vpop.f32.mrb[0].mxu0
      %v2679 = vadd.f32 %v1216, %v2678
      %v2680 = vpop.f32.mrb[0].mxu0
      %2681 = vmatprep.mubr.bf16.mxu0 0
      %2682 = vmatmul.mubr.bf16.gmra.mrb[0].mxu0 %v2582
      %v2683 = vpop.f32.mrb[0].mxu0
      %v2684 = vadd.f32 %v1216, %v2683
      %v2685 = vpop.f32.mrb[0].mxu0
      %v2686 = vpop.f32.mrb[0].mxu0
      %v2687 = vadd.f32 %v1216, %v2686
      %v2688 = vpop.f32.mrb[0].mxu0
      %2689 = vmatprep.mubr.bf16.mxu0 0
      %2690 = vmatmul.mubr.bf16.gmra.mrb[0].mxu0 %v2585
      %v2691 = vpop.f32.mrb[0].mxu0
      %v2692 = vadd.f32 %v1216, %v2691
      %v2693 = vpop.f32.mrb[0].mxu0
      %v2694 = vpop.f32.mrb[0].mxu0
      %v2695 = vadd.f32 %v1216, %v2694
      %v2696 = vpop.f32.mrb[0].mxu0
      %2697 = vmatprep.mubr.bf16.mxu0 0
      %2698 = vmatmul.mubr.bf16.gmra.mrb[0].mxu0 %v2588
      %v2699 = vpop.f32.mrb[0].mxu0
      %v2700 = vadd.f32 %v1216, %v2699
      %v2701 = vpop.f32.mrb[0].mxu0
      %v2702 = vpop.f32.mrb[0].mxu0
      %v2703 = vadd.f32 %v1216, %v2702
      %v2704 = vpop.f32.mrb[0].mxu0
      %2705 = vmatprep.mubr.bf16.mxu0 0
      %2706 = vmatmul.mubr.bf16.gmra.mrb[0].mxu0 %v2591
      %v2707 = vpop.f32.mrb[0].mxu0
      %v2708 = vadd.f32 %v1216, %v2707
      %v2709 = vpop.f32.mrb[0].mxu0
      %v2710 = vpop.f32.mrb[0].mxu0
      %v2711 = vadd.f32 %v1216, %v2710
      %v2712 = vpop.f32.mrb[0].mxu0
      %2713 = vdwg.mxu0
      %2714 = vmax.xlane.f32.xlu0 %v2652
      %v2715 = vpop.xlane.xlu0 %2714
      %2716 = vmax.xlane.f32.xlu0 %v2655
      %v2717 = vpop.xlane.xlu0 %2716
      %2718 = vmax.xlane.f32.xlu0 %v2660
      %v2719 = vpop.xlane.xlu0 %2718
      %2720 = vmax.xlane.f32.xlu0 %v2663
      %v2721 = vpop.xlane.xlu0 %2720
      %2722 = vmax.xlane.f32.xlu0 %v2668
      %v2723 = vpop.xlane.xlu0 %2722
      %2724 = vmax.xlane.f32.xlu0 %v2671
      %v2725 = vpop.xlane.xlu0 %2724
      %2726 = vmax.xlane.f32.xlu0 %v2676
      %v2727 = vpop.xlane.xlu0 %2726
      %2728 = vmax.xlane.f32.xlu0 %v2679
      %v2729 = vpop.xlane.xlu0 %2728
      %2730 = vmax.xlane.f32.xlu0 %v2684
      %v2731 = vpop.xlane.xlu0 %2730
      %2732 = vmax.xlane.f32.xlu0 %v2687
      %v2733 = vpop.xlane.xlu0 %2732
      %2734 = vmax.xlane.f32.xlu0 %v2692
      %v2735 = vpop.xlane.xlu0 %2734
      %2736 = vmax.xlane.f32.xlu0 %v2695
      %v2737 = vpop.xlane.xlu0 %2736
      %2738 = vmax.xlane.f32.xlu0 %v2700
      %v2739 = vpop.xlane.xlu0 %2738
      %2740 = vmax.xlane.f32.xlu0 %v2703
      %v2741 = vpop.xlane.xlu0 %2740
      %2742 = vmax.xlane.f32.xlu0 %v2708
      %v2743 = vpop.xlane.xlu0 %2742
      %2744 = vmax.xlane.f32.xlu0 %v2711
      %v2745 = vpop.xlane.xlu0 %2744
      %v2746 = vsub.f32 %v2652, %v2715
      %v2747 = vsub.f32 %v2655, %v2717
      %v2748 = vsub.f32 %v2660, %v2719
      %v2749 = vsub.f32 %v2663, %v2721
      %v2750 = vsub.f32 %v2668, %v2723
      %v2751 = vsub.f32 %v2671, %v2725
      %v2752 = vsub.f32 %v2676, %v2727
      %v2753 = vsub.f32 %v2679, %v2729
      %v2754 = vsub.f32 %v2684, %v2731
      %v2755 = vsub.f32 %v2687, %v2733
      %v2756 = vsub.f32 %v2692, %v2735
      %v2757 = vsub.f32 %v2695, %v2737
      %v2758 = vsub.f32 %v2700, %v2739
      %v2759 = vsub.f32 %v2703, %v2741
      %v2760 = vsub.f32 %v2708, %v2743
      %v2761 = vsub.f32 %v2711, %v2745
      %v2762 = vmul.f32 %v2746, 1.442695
      %v2763 = vpow.pop %v2762
      %v2764 = vmul.f32 %v2747, 1.442695
      %v2765 = vpow.pop %v2764
      %v2766 = vmul.f32 %v2748, 1.442695
      %v2767 = vpow.pop %v2766
      %v2768 = vmul.f32 %v2749, 1.442695
      %v2769 = vpow.pop %v2768
      %v2770 = vmul.f32 %v2750, 1.442695
      %v2771 = vpow.pop %v2770
      %v2772 = vmul.f32 %v2751, 1.442695
      %v2773 = vpow.pop %v2772
      %v2774 = vmul.f32 %v2752, 1.442695
      %v2775 = vpow.pop %v2774
      %v2776 = vmul.f32 %v2753, 1.442695
      %v2777 = vpow.pop %v2776
      %v2778 = vmul.f32 %v2754, 1.442695
      %v2779 = vpow.pop %v2778
      %v2780 = vmul.f32 %v2755, 1.442695
      %v2781 = vpow.pop %v2780
      %v2782 = vmul.f32 %v2756, 1.442695
      %v2783 = vpow.pop %v2782
      %v2784 = vmul.f32 %v2757, 1.442695
      %v2785 = vpow.pop %v2784
      %v2786 = vmul.f32 %v2758, 1.442695
      %v2787 = vpow.pop %v2786
      %v2788 = vmul.f32 %v2759, 1.442695
      %v2789 = vpow.pop %v2788
      %v2790 = vmul.f32 %v2760, 1.442695
      %v2791 = vpow.pop %v2790
      %v2792 = vmul.f32 %v2761, 1.442695
      %v2793 = vpow.pop %v2792
      %2794 = vadd.xlane.f32.xlu0 %v2763
      %v2795 = vpop.xlane.xlu0 %2794
      %2796 = vadd.xlane.f32.xlu0 %v2765
      %v2797 = vpop.xlane.xlu0 %2796
      %2798 = vadd.xlane.f32.xlu0 %v2767
      %v2799 = vpop.xlane.xlu0 %2798
      %2800 = vadd.xlane.f32.xlu0 %v2769
      %v2801 = vpop.xlane.xlu0 %2800
      %2802 = vadd.xlane.f32.xlu0 %v2771
      %v2803 = vpop.xlane.xlu0 %2802
      %2804 = vadd.xlane.f32.xlu0 %v2773
      %v2805 = vpop.xlane.xlu0 %2804
      %2806 = vadd.xlane.f32.xlu0 %v2775
      %v2807 = vpop.xlane.xlu0 %2806
      %2808 = vadd.xlane.f32.xlu0 %v2777
      %v2809 = vpop.xlane.xlu0 %2808
      %2810 = vadd.xlane.f32.xlu0 %v2779
      %v2811 = vpop.xlane.xlu0 %2810
      %2812 = vadd.xlane.f32.xlu0 %v2781
      %v2813 = vpop.xlane.xlu0 %2812
      %2814 = vadd.xlane.f32.xlu0 %v2783
      %v2815 = vpop.xlane.xlu0 %2814
      %2816 = vadd.xlane.f32.xlu0 %v2785
      %v2817 = vpop.xlane.xlu0 %2816
      %2818 = vadd.xlane.f32.xlu0 %v2787
      %v2819 = vpop.xlane.xlu0 %2818
      %2820 = vadd.xlane.f32.xlu0 %v2789
      %v2821 = vpop.xlane.xlu0 %2820
      %2822 = vadd.xlane.f32.xlu0 %v2791
      %v2823 = vpop.xlane.xlu0 %2822
      %2824 = vadd.xlane.f32.xlu0 %v2793
      %v2825 = vpop.xlane.xlu0 %2824
      %v2826 = vrcp.pop %v2795
      %v2827 = vrcp.pop %v2797
      %v2828 = vrcp.pop %v2799
      %v2829 = vrcp.pop %v2801
      %v2830 = vrcp.pop %v2803
      %v2831 = vrcp.pop %v2805
      %v2832 = vrcp.pop %v2807
      %v2833 = vrcp.pop %v2809
      %v2834 = vrcp.pop %v2811
      %v2835 = vrcp.pop %v2813
      %v2836 = vrcp.pop %v2815
      %v2837 = vrcp.pop %v2817
      %v2838 = vrcp.pop %v2819
      %v2839 = vrcp.pop %v2821
      %v2840 = vrcp.pop %v2823
      %v2841 = vrcp.pop %v2825
      %v2842 = vmul.f32 %v2763, %v2826
      %v2843 = vmul.f32 %v2765, %v2827
      %v2844 = vmul.f32 %v2767, %v2828
      %v2845 = vmul.f32 %v2769, %v2829
      %v2846 = vmul.f32 %v2771, %v2830
      %v2847 = vmul.f32 %v2773, %v2831
      %v2848 = vmul.f32 %v2775, %v2832
      %v2849 = vmul.f32 %v2777, %v2833
      %v2850 = vmul.f32 %v2779, %v2834
      %v2851 = vmul.f32 %v2781, %v2835
      %v2852 = vmul.f32 %v2783, %v2836
      %v2853 = vmul.f32 %v2785, %v2837
      %v2854 = vmul.f32 %v2787, %v2838
      %v2855 = vmul.f32 %v2789, %v2839
      %v2856 = vmul.f32 %v2791, %v2840
      %v2857 = vmul.f32 %v2793, %v2841
      %v2858 = vpack.c.bf16 %v2843, %v2842
      %v2859 = vpack.c.bf16 %v2845, %v2844
      %v2860 = vpack.c.bf16 %v2847, %v2846
      %v2861 = vpack.c.bf16 %v2849, %v2848
      %v2862 = vpack.c.bf16 %v2851, %v2850
      %v2863 = vpack.c.bf16 %v2853, %v2852
      %v2864 = vpack.c.bf16 %v2855, %v2854
      %v2865 = vpack.c.bf16 %v2857, %v2856
      %2866 = vrot.lane.b32.xlu0 %v1204, 32
      %v2867 = vpop.permute.xlu0 %2866
      %2868 = vrot.lane.b32.xlu0 %v1205, 32
      %v2869 = vpop.permute.xlu0 %2868
      %2870 = vrot.lane.b32.xlu0 %v1206, 32
      %v2871 = vpop.permute.xlu0 %2870
      %2872 = vrot.lane.b32.xlu0 %v1207, 32
      %v2873 = vpop.permute.xlu0 %2872
      %2874 = vrot.lane.b32.xlu0 %v1208, 32
      %v2875 = vpop.permute.xlu0 %2874
      %2876 = vrot.lane.b32.xlu0 %v1209, 32
      %v2877 = vpop.permute.xlu0 %2876
      %2878 = vrot.lane.b32.xlu0 %v1210, 32
      %v2879 = vpop.permute.xlu0 %2878
      %2880 = vrot.lane.b32.xlu0 %v1211, 32
      %v2881 = vpop.permute.xlu0 %2880
      %2890 = vmatprep.subr.bf16.mxu0 0
      %2891 = vmatpush1.bf16.msra.mxu0 %v2867
      %2892 = vmatprep.subr.bf16.mxu0 0
      %2893 = vmatpush1.bf16.msra.mxu0 %v2869
      %2894 = vmatprep.subr.bf16.mxu0 0
      %2895 = vmatpush1.bf16.msra.mxu0 %v2871
      %2896 = vmatprep.subr.bf16.mxu0 0
      %2897 = vmatpush1.bf16.msra.mxu0 %v2873
      %2898 = vmatprep.subr.bf16.mxu0 0
      %2899 = vmatpush1.bf16.msra.mxu0 %v2875
      %2900 = vmatprep.subr.bf16.mxu0 0
      %2901 = vmatpush1.bf16.msra.mxu0 %v2877
      %2902 = vmatprep.subr.bf16.mxu0 0
      %2903 = vmatpush1.bf16.msra.mxu0 %v2879
      %2904 = vmatprep.subr.bf16.mxu0 0
      %2905 = vmatpush1.bf16.msra.mxu0 %v2881
      %2906 = vmatprep.subr.bf16.mxu0 0
      %2907 = vmatpush1.bf16.msra.mxu0 0
      %2908 = vmatprep.subr.bf16.mxu0 0
      %2909 = vmatpush1.bf16.msra.mxu0 0
      %2910 = vmatprep.subr.bf16.mxu0 0
      %2911 = vmatpush1.bf16.msra.mxu0 0
      %2912 = vmatprep.subr.bf16.mxu0 0
      %2913 = vmatpush1.bf16.msra.mxu0 0
      %2914 = vmatprep.subr.bf16.mxu0 0
      %2915 = vmatpush1.bf16.msra.mxu0 0
      %2916 = vmatprep.subr.bf16.mxu0 0
      %2917 = vmatpush1.bf16.msra.mxu0 0
      %2918 = vmatprep.subr.bf16.mxu0 0
      %2919 = vmatpush1.bf16.msra.mxu0 0
      %2920 = vmatprep.subr.bf16.mxu0 0
      %2921 = vmatpush1.bf16.msra.mxu0 0
      %2922 = vmatprep.mubr.bf16.mxu0 0
      %2923 = vmatmul.mubr.bf16.gmra.mrb[0].mxu0 %v2858
      %v2924 = vpop.f32.mrb[0].mxu0
      %v2925 = vadd.f32 0.0, %v2924
      %v2926 = vpop.f32.mrb[0].mxu0
      %v2927 = vpop.f32.mrb[0].mxu0
      %v2928 = vadd.f32 0.0, %v2927
      %v2929 = vpop.f32.mrb[0].mxu0
      %2930 = vmatprep.mubr.bf16.mxu0 0
      %2931 = vmatmul.mubr.bf16.gmra.mrb[0].mxu0 %v2859
      %v2932 = vpop.f32.mrb[0].mxu0
      %v2933 = vadd.f32 0.0, %v2932
      %v2934 = vpop.f32.mrb[0].mxu0
      %v2935 = vpop.f32.mrb[0].mxu0
      %v2936 = vadd.f32 0.0, %v2935
      %v2937 = vpop.f32.mrb[0].mxu0
      %2938 = vmatprep.mubr.bf16.mxu0 0
      %2939 = vmatmul.mubr.bf16.gmra.mrb[0].mxu0 %v2860
      %v2940 = vpop.f32.mrb[0].mxu0
      %v2941 = vadd.f32 0.0, %v2940
      %v2942 = vpop.f32.mrb[0].mxu0
      %v2943 = vpop.f32.mrb[0].mxu0
      %v2944 = vadd.f32 0.0, %v2943
      %v2945 = vpop.f32.mrb[0].mxu0
      %2946 = vmatprep.mubr.bf16.mxu0 0
      %2947 = vmatmul.mubr.bf16.gmra.mrb[0].mxu0 %v2861
      %v2948 = vpop.f32.mrb[0].mxu0
      %v2949 = vadd.f32 0.0, %v2948
      %v2950 = vpop.f32.mrb[0].mxu0
      %v2951 = vpop.f32.mrb[0].mxu0
      %v2952 = vadd.f32 0.0, %v2951
      %v2953 = vpop.f32.mrb[0].mxu0
      %2954 = vmatprep.mubr.bf16.mxu0 0
      %2955 = vmatmul.mubr.bf16.gmra.mrb[0].mxu0 %v2862
      %v2956 = vpop.f32.mrb[0].mxu0
      %v2957 = vadd.f32 0.0, %v2956
      %v2958 = vpop.f32.mrb[0].mxu0
      %v2959 = vpop.f32.mrb[0].mxu0
      %v2960 = vadd.f32 0.0, %v2959
      %v2961 = vpop.f32.mrb[0].mxu0
      %2962 = vmatprep.mubr.bf16.mxu0 0
      %2963 = vmatmul.mubr.bf16.gmra.mrb[0].mxu0 %v2863
      %v2964 = vpop.f32.mrb[0].mxu0
      %v2965 = vadd.f32 0.0, %v2964
      %v2966 = vpop.f32.mrb[0].mxu0
      %v2967 = vpop.f32.mrb[0].mxu0
      %v2968 = vadd.f32 0.0, %v2967
      %v2969 = vpop.f32.mrb[0].mxu0
      %2970 = vmatprep.mubr.bf16.mxu0 0
      %2971 = vmatmul.mubr.bf16.gmra.mrb[0].mxu0 %v2864
      %v2972 = vpop.f32.mrb[0].mxu0
      %v2973 = vadd.f32 0.0, %v2972
      %v2974 = vpop.f32.mrb[0].mxu0
      %v2975 = vpop.f32.mrb[0].mxu0
      %v2976 = vadd.f32 0.0, %v2975
      %v2977 = vpop.f32.mrb[0].mxu0
      %2978 = vmatprep.mubr.bf16.mxu0 0
      %2979 = vmatmul.mubr.bf16.gmra.mrb[0].mxu0 %v2865
      %v2980 = vpop.f32.mrb[0].mxu0
      %v2981 = vadd.f32 0.0, %v2980
      %v2982 = vpop.f32.mrb[0].mxu0
      %v2983 = vpop.f32.mrb[0].mxu0
      %v2984 = vadd.f32 0.0, %v2983
      %v2985 = vpop.f32.mrb[0].mxu0
      %2986 = vdwg.mxu0
      %3003 = vrot.lane.b32.xlu0 %v2025, 32
      %v3004 = vpop.permute.xlu0 %3003
      %3005 = vrot.lane.b32.xlu0 %v2028, 32
      %v3006 = vpop.permute.xlu0 %3005
      %3007 = vrot.lane.b32.xlu0 %v2033, 32
      %v3008 = vpop.permute.xlu0 %3007
      %3009 = vrot.lane.b32.xlu0 %v2036, 32
      %v3010 = vpop.permute.xlu0 %3009
      %3011 = vrot.lane.b32.xlu0 %v2041, 32
      %v3012 = vpop.permute.xlu0 %3011
      %3013 = vrot.lane.b32.xlu0 %v2044, 32
      %v3014 = vpop.permute.xlu0 %3013
      %3015 = vrot.lane.b32.xlu0 %v2049, 32
      %v3016 = vpop.permute.xlu0 %3015
      %3017 = vrot.lane.b32.xlu0 %v2052, 32
      %v3018 = vpop.permute.xlu0 %3017
      %3019 = vrot.lane.b32.xlu0 %v2057, 32
      %v3020 = vpop.permute.xlu0 %3019
      %3021 = vrot.lane.b32.xlu0 %v2060, 32
      %v3022 = vpop.permute.xlu0 %3021
      %3023 = vrot.lane.b32.xlu0 %v2065, 32
      %v3024 = vpop.permute.xlu0 %3023
      %3025 = vrot.lane.b32.xlu0 %v2068, 32
      %v3026 = vpop.permute.xlu0 %3025
      %3027 = vrot.lane.b32.xlu0 %v2073, 32
      %v3028 = vpop.permute.xlu0 %3027
      %3029 = vrot.lane.b32.xlu0 %v2076, 32
      %v3030 = vpop.permute.xlu0 %3029
      %3031 = vrot.lane.b32.xlu0 %v2081, 32
      %v3032 = vpop.permute.xlu0 %3031
      %3033 = vrot.lane.b32.xlu0 %v2084, 32
      %v3034 = vpop.permute.xlu0 %3033
      %3067 = vrot.lane.b32.xlu0 %v2475, 64
      %v3068 = vpop.permute.xlu0 %3067
      %3069 = vrot.lane.b32.xlu0 %v2478, 64
      %v3070 = vpop.permute.xlu0 %3069
      %3071 = vrot.lane.b32.xlu0 %v2483, 64
      %v3072 = vpop.permute.xlu0 %3071
      %3073 = vrot.lane.b32.xlu0 %v2486, 64
      %v3074 = vpop.permute.xlu0 %3073
      %3075 = vrot.lane.b32.xlu0 %v2491, 64
      %v3076 = vpop.permute.xlu0 %3075
      %3077 = vrot.lane.b32.xlu0 %v2494, 64
      %v3078 = vpop.permute.xlu0 %3077
      %3079 = vrot.lane.b32.xlu0 %v2499, 64
      %v3080 = vpop.permute.xlu0 %3079
      %3081 = vrot.lane.b32.xlu0 %v2502, 64
      %v3082 = vpop.permute.xlu0 %3081
      %3083 = vrot.lane.b32.xlu0 %v2507, 64
      %v3084 = vpop.permute.xlu0 %3083
      %3085 = vrot.lane.b32.xlu0 %v2510, 64
      %v3086 = vpop.permute.xlu0 %3085
      %3087 = vrot.lane.b32.xlu0 %v2515, 64
      %v3088 = vpop.permute.xlu0 %3087
      %3089 = vrot.lane.b32.xlu0 %v2518, 64
      %v3090 = vpop.permute.xlu0 %3089
      %3091 = vrot.lane.b32.xlu0 %v2523, 64
      %v3092 = vpop.permute.xlu0 %3091
      %3093 = vrot.lane.b32.xlu0 %v2526, 64
      %v3094 = vpop.permute.xlu0 %3093
      %3095 = vrot.lane.b32.xlu0 %v2531, 64
      %v3096 = vpop.permute.xlu0 %3095
      %3097 = vrot.lane.b32.xlu0 %v2534, 64
      %v3098 = vpop.permute.xlu0 %3097
      %3131 = vrot.lane.b32.xlu0 %v2925, 96
      %v3132 = vpop.permute.xlu0 %3131
      %3133 = vrot.lane.b32.xlu0 %v2928, 96
      %v3134 = vpop.permute.xlu0 %3133
      %3135 = vrot.lane.b32.xlu0 %v2933, 96
      %v3136 = vpop.permute.xlu0 %3135
      %3137 = vrot.lane.b32.xlu0 %v2936, 96
      %v3138 = vpop.permute.xlu0 %3137
      %3139 = vrot.lane.b32.xlu0 %v2941, 96
      %v3140 = vpop.permute.xlu0 %3139
      %3141 = vrot.lane.b32.xlu0 %v2944, 96
      %v3142 = vpop.permute.xlu0 %3141
      %3143 = vrot.lane.b32.xlu0 %v2949, 96
      %v3144 = vpop.permute.xlu0 %3143
      %3145 = vrot.lane.b32.xlu0 %v2952, 96
      %v3146 = vpop.permute.xlu0 %3145
      %3147 = vrot.lane.b32.xlu0 %v2957, 96
      %v3148 = vpop.permute.xlu0 %3147
      %3149 = vrot.lane.b32.xlu0 %v2960, 96
      %v3150 = vpop.permute.xlu0 %3149
      %3151 = vrot.lane.b32.xlu0 %v2965, 96
      %v3152 = vpop.permute.xlu0 %3151
      %3153 = vrot.lane.b32.xlu0 %v2968, 96
      %v3154 = vpop.permute.xlu0 %3153
      %3155 = vrot.lane.b32.xlu0 %v2973, 96
      %v3156 = vpop.permute.xlu0 %3155
      %3157 = vrot.lane.b32.xlu0 %v2976, 96
      %v3158 = vpop.permute.xlu0 %3157
      %3159 = vrot.lane.b32.xlu0 %v2981, 96
      %v3160 = vpop.permute.xlu0 %3159
      %3161 = vrot.lane.b32.xlu0 %v2984, 96
      %v3162 = vpop.permute.xlu0 %3161
      %v3179 = vsel %vm1218, %v1551, %v3004
      %v3180 = vsel %vm1218, %v1554, %v3006
      %v3181 = vsel %vm1218, %v1559, %v3008
      %v3182 = vsel %vm1218, %v1562, %v3010
      %v3183 = vsel %vm1218, %v1567, %v3012
      %v3184 = vsel %vm1218, %v1570, %v3014
      %v3185 = vsel %vm1218, %v1575, %v3016
      %v3186 = vsel %vm1218, %v1578, %v3018
      %v3187 = vsel %vm1218, %v1583, %v3020
      %v3188 = vsel %vm1218, %v1586, %v3022
      %v3189 = vsel %vm1218, %v1591, %v3024
      %v3190 = vsel %vm1218, %v1594, %v3026
      %v3191 = vsel %vm1218, %v1599, %v3028
      %v3192 = vsel %vm1218, %v1602, %v3030
      %v3193 = vsel %vm1218, %v1607, %v3032
      %v3194 = vsel %vm1218, %v1610, %v3034
      %vm3195 = vcmask 523264
      %v3196 = vsel %vm3195, %v3179, %v3068
      %v3197 = vsel %vm3195, %v3180, %v3070
      %v3198 = vsel %vm3195, %v3181, %v3072
      %v3199 = vsel %vm3195, %v3182, %v3074
      %v3200 = vsel %vm3195, %v3183, %v3076
      %v3201 = vsel %vm3195, %v3184, %v3078
      %v3202 = vsel %vm3195, %v3185, %v3080
      %v3203 = vsel %vm3195, %v3186, %v3082
      %v3204 = vsel %vm3195, %v3187, %v3084
      %v3205 = vsel %vm3195, %v3188, %v3086
      %v3206 = vsel %vm3195, %v3189, %v3088
      %v3207 = vsel %vm3195, %v3190, %v3090
      %v3208 = vsel %vm3195, %v3191, %v3092
      %v3209 = vsel %vm3195, %v3192, %v3094
      %v3210 = vsel %vm3195, %v3193, %v3096
      %v3211 = vsel %vm3195, %v3194, %v3098
      %vm3212 = vcmask 785408
      %v3213 = vsel %vm3212, %v3196, %v3132
      %v3214 = vsel %vm3212, %v3197, %v3134
      %v3215 = vsel %vm3212, %v3198, %v3136
      %v3216 = vsel %vm3212, %v3199, %v3138
      %v3217 = vsel %vm3212, %v3200, %v3140
      %v3218 = vsel %vm3212, %v3201, %v3142
      %v3219 = vsel %vm3212, %v3202, %v3144
      %v3220 = vsel %vm3212, %v3203, %v3146
      %v3221 = vsel %vm3212, %v3204, %v3148
      %v3222 = vsel %vm3212, %v3205, %v3150
      %v3223 = vsel %vm3212, %v3206, %v3152
      %v3224 = vsel %vm3212, %v3207, %v3154
      %v3225 = vsel %vm3212, %v3208, %v3156
      %v3226 = vsel %vm3212, %v3209, %v3158
      %v3227 = vsel %vm3212, %v3210, %v3160
      %v3228 = vsel %vm3212, %v3211, %v3162
      %v3229 = vpack.c.bf16 %v3214, %v3213
      %v3230 = vpack.c.bf16 %v3216, %v3215
      %v3231 = vpack.c.bf16 %v3218, %v3217
      %v3232 = vpack.c.bf16 %v3220, %v3219
      %v3233 = vpack.c.bf16 %v3222, %v3221
      %v3234 = vpack.c.bf16 %v3224, %v3223
      %v3235 = vpack.c.bf16 %v3226, %v3225
      %v3236 = vpack.c.bf16 %v3228, %v3227
      %v3237 = vld [vmem:[%s6] sm:$0xf]
      %v3238 = vld [vmem:[%s6 + $0x4] sm:$0xf]
      %v3239 = vld [vmem:[%s6 + $0x8] sm:$0xf]
      %v3240 = vld [vmem:[%s6 + $0xc] sm:$0xf]
      %v3241 = vld [vmem:[%s6 + $0x10] sm:$0xf]
      %v3242 = vld [vmem:[%s6 + $0x14] sm:$0xf]
      %v3243 = vld [vmem:[%s6 + $0x18] sm:$0xf]
      %v3244 = vld [vmem:[%s6 + $0x1c] sm:$0xf]
      %v3245 = vld [vmem:[%s6 + $0x20] sm:$0xf]
      %v3246 = vld [vmem:[%s6 + $0x24] sm:$0xf]
      %v3247 = vld [vmem:[%s6 + $0x28] sm:$0xf]
      %v3248 = vld [vmem:[%s6 + $0x2c] sm:$0xf]
      %v3249 = vld [vmem:[%s6 + $0x30] sm:$0xf]
      %v3250 = vld [vmem:[%s6 + $0x34] sm:$0xf]
      %v3251 = vld [vmem:[%s6 + $0x38] sm:$0xf]
      %v3252 = vld [vmem:[%s6 + $0x3c] sm:$0xf]
      %v3253 = vld [vmem:[%s7] sm:$0x1]
      %v3255 = vlaneseq
      %v3256 = vshrl.u32 %v3255, 7
      %v3257 = vsub.s32 0, %v3256
      %v3258 = vrot.slane %v3253, %v3257
      %v3276 = vunpack.c.l.b16 %v3237
      %v3277 = vunpack.c.l.b16 %v3238
      %v3278 = vunpack.c.l.b16 %v3239
      %v3279 = vunpack.c.l.b16 %v3240
      %v3280 = vunpack.c.l.b16 %v3241
      %v3281 = vunpack.c.l.b16 %v3242
      %v3282 = vunpack.c.l.b16 %v3243
      %v3283 = vunpack.c.l.b16 %v3244
      %v3284 = vunpack.c.l.b16 %v3245
      %v3285 = vunpack.c.l.b16 %v3246
      %v3286 = vunpack.c.l.b16 %v3247
      %v3287 = vunpack.c.l.b16 %v3248
      %v3288 = vunpack.c.l.b16 %v3249
      %v3289 = vunpack.c.l.b16 %v3250
      %v3290 = vunpack.c.l.b16 %v3251
      %v3291 = vunpack.c.l.b16 %v3252
      %v3292 = vpack.c.b16 %v3277, %v3276
      %v3293 = vpack.c.b16 %v3279, %v3278
      %v3294 = vpack.c.b16 %v3281, %v3280
      %v3295 = vpack.c.b16 %v3283, %v3282
      %v3296 = vpack.c.b16 %v3285, %v3284
      %v3297 = vpack.c.b16 %v3287, %v3286
      %v3298 = vpack.c.b16 %v3289, %v3288
      %v3299 = vpack.c.b16 %v3291, %v3290
      %3308 = vmatprep.subr.bf16.mxu0 0
      %3309 = vmatpush1.bf16.msra.mxu0 %v3292
      %3310 = vmatprep.subr.bf16.mxu0 0
      %3311 = vmatpush1.bf16.msra.mxu0 %v3293
      %3312 = vmatprep.subr.bf16.mxu0 0
      %3313 = vmatpush1.bf16.msra.mxu0 %v3294
      %3314 = vmatprep.subr.bf16.mxu0 0
      %3315 = vmatpush1.bf16.msra.mxu0 %v3295
      %3316 = vmatprep.subr.bf16.mxu0 0
      %3317 = vmatpush1.bf16.msra.mxu0 %v3296
      %3318 = vmatprep.subr.bf16.mxu0 0
      %3319 = vmatpush1.bf16.msra.mxu0 %v3297
      %3320 = vmatprep.subr.bf16.mxu0 0
      %3321 = vmatpush1.bf16.msra.mxu0 %v3298
      %3322 = vmatprep.subr.bf16.mxu0 0
      %3323 = vmatpush1.bf16.msra.mxu0 %v3299
      %3324 = vmatprep.subr.bf16.mxu0 0
      %3325 = vmatpush1.bf16.msra.mxu0 0
      %3326 = vmatprep.subr.bf16.mxu0 0
      %3327 = vmatpush1.bf16.msra.mxu0 0
      %3328 = vmatprep.subr.bf16.mxu0 0
      %3329 = vmatpush1.bf16.msra.mxu0 0
      %3330 = vmatprep.subr.bf16.mxu0 0
      %3331 = vmatpush1.bf16.msra.mxu0 0
      %3332 = vmatprep.subr.bf16.mxu0 0
      %3333 = vmatpush1.bf16.msra.mxu0 0
      %3334 = vmatprep.subr.bf16.mxu0 0
      %3335 = vmatpush1.bf16.msra.mxu0 0
      %3336 = vmatprep.subr.bf16.mxu0 0
      %3337 = vmatpush1.bf16.msra.mxu0 0
      %3338 = vmatprep.subr.bf16.mxu0 0
      %3339 = vmatpush1.bf16.msra.mxu0 0
      %3340 = vmatprep.mubr.bf16.mxu0 0
      %3341 = vmatmul.mubr.bf16.gmra.mrb[0].mxu0 %v3229
      %v3342 = vpop.f32.mrb[0].mxu0
      %v3343 = vadd.f32 %v3258, %v3342
      %v3344 = vpop.f32.mrb[0].mxu0
      %v3345 = vpop.f32.mrb[0].mxu0
      %v3346 = vadd.f32 %v3258, %v3345
      %v3347 = vpop.f32.mrb[0].mxu0
      %3348 = vmatprep.mubr.bf16.mxu0 0
      %3349 = vmatmul.mubr.bf16.gmra.mrb[0].mxu0 %v3230
      %v3350 = vpop.f32.mrb[0].mxu0
      %v3351 = vadd.f32 %v3258, %v3350
      %v3352 = vpop.f32.mrb[0].mxu0
      %v3353 = vpop.f32.mrb[0].mxu0
      %v3354 = vadd.f32 %v3258, %v3353
      %v3355 = vpop.f32.mrb[0].mxu0
      %3356 = vmatprep.mubr.bf16.mxu0 0
      %3357 = vmatmul.mubr.bf16.gmra.mrb[0].mxu0 %v3231
      %v3358 = vpop.f32.mrb[0].mxu0
      %v3359 = vadd.f32 %v3258, %v3358
      %v3360 = vpop.f32.mrb[0].mxu0
      %v3361 = vpop.f32.mrb[0].mxu0
      %v3362 = vadd.f32 %v3258, %v3361
      %v3363 = vpop.f32.mrb[0].mxu0
      %3364 = vmatprep.mubr.bf16.mxu0 0
      %3365 = vmatmul.mubr.bf16.gmra.mrb[0].mxu0 %v3232
      %v3366 = vpop.f32.mrb[0].mxu0
      %v3367 = vadd.f32 %v3258, %v3366
      %v3368 = vpop.f32.mrb[0].mxu0
      %v3369 = vpop.f32.mrb[0].mxu0
      %v3370 = vadd.f32 %v3258, %v3369
      %v3371 = vpop.f32.mrb[0].mxu0
      %3372 = vmatprep.mubr.bf16.mxu0 0
      %3373 = vmatmul.mubr.bf16.gmra.mrb[0].mxu0 %v3233
      %v3374 = vpop.f32.mrb[0].mxu0
      %v3375 = vadd.f32 %v3258, %v3374
      %v3376 = vpop.f32.mrb[0].mxu0
      %v3377 = vpop.f32.mrb[0].mxu0
      %v3378 = vadd.f32 %v3258, %v3377
      %v3379 = vpop.f32.mrb[0].mxu0
      %3380 = vmatprep.mubr.bf16.mxu0 0
      %3381 = vmatmul.mubr.bf16.gmra.mrb[0].mxu0 %v3234
      %v3382 = vpop.f32.mrb[0].mxu0
      %v3383 = vadd.f32 %v3258, %v3382
      %v3384 = vpop.f32.mrb[0].mxu0
      %v3385 = vpop.f32.mrb[0].mxu0
      %v3386 = vadd.f32 %v3258, %v3385
      %v3387 = vpop.f32.mrb[0].mxu0
      %3388 = vmatprep.mubr.bf16.mxu0 0
      %3389 = vmatmul.mubr.bf16.gmra.mrb[0].mxu0 %v3235
      %v3390 = vpop.f32.mrb[0].mxu0
      %v3391 = vadd.f32 %v3258, %v3390
      %v3392 = vpop.f32.mrb[0].mxu0
      %v3393 = vpop.f32.mrb[0].mxu0
      %v3394 = vadd.f32 %v3258, %v3393
      %v3395 = vpop.f32.mrb[0].mxu0
      %3396 = vmatprep.mubr.bf16.mxu0 0
      %3397 = vmatmul.mubr.bf16.gmra.mrb[0].mxu0 %v3236
      %v3398 = vpop.f32.mrb[0].mxu0
      %v3399 = vadd.f32 %v3258, %v3398
      %v3400 = vpop.f32.mrb[0].mxu0
      %v3401 = vpop.f32.mrb[0].mxu0
      %v3402 = vadd.f32 %v3258, %v3401
      %v3403 = vpop.f32.mrb[0].mxu0
      %3404 = vdwg.mxu0
      %v3405 = vadd.f32 %v537, %v3343
      %v3406 = vadd.f32 %v538, %v3346
      %v3407 = vadd.f32 %v539, %v3351
      %v3408 = vadd.f32 %v540, %v3354
      %v3409 = vadd.f32 %v541, %v3359
      %v3410 = vadd.f32 %v542, %v3362
      %v3411 = vadd.f32 %v543, %v3367
      %v3412 = vadd.f32 %v544, %v3370
      %v3413 = vadd.f32 %v545, %v3375
      %v3414 = vadd.f32 %v546, %v3378
      %v3415 = vadd.f32 %v547, %v3383
      %v3416 = vadd.f32 %v548, %v3386
      %v3417 = vadd.f32 %v549, %v3391
      %v3418 = vadd.f32 %v550, %v3394
      %v3419 = vadd.f32 %v551, %v3399
      %v3420 = vadd.f32 %v552, %v3402
      %3421 = vadd.xlane.f32.xlu0 %v3405
      %v3422 = vpop.xlane.xlu0 %3421
      %3423 = vadd.xlane.f32.xlu0 %v3406
      %v3424 = vpop.xlane.xlu0 %3423
      %3425 = vadd.xlane.f32.xlu0 %v3407
      %v3426 = vpop.xlane.xlu0 %3425
      %3427 = vadd.xlane.f32.xlu0 %v3408
      %v3428 = vpop.xlane.xlu0 %3427
      %3429 = vadd.xlane.f32.xlu0 %v3409
      %v3430 = vpop.xlane.xlu0 %3429
      %3431 = vadd.xlane.f32.xlu0 %v3410
      %v3432 = vpop.xlane.xlu0 %3431
      %3433 = vadd.xlane.f32.xlu0 %v3411
      %v3434 = vpop.xlane.xlu0 %3433
      %3435 = vadd.xlane.f32.xlu0 %v3412
      %v3436 = vpop.xlane.xlu0 %3435
      %3437 = vadd.xlane.f32.xlu0 %v3413
      %v3438 = vpop.xlane.xlu0 %3437
      %3439 = vadd.xlane.f32.xlu0 %v3414
      %v3440 = vpop.xlane.xlu0 %3439
      %3441 = vadd.xlane.f32.xlu0 %v3415
      %v3442 = vpop.xlane.xlu0 %3441
      %3443 = vadd.xlane.f32.xlu0 %v3416
      %v3444 = vpop.xlane.xlu0 %3443
      %3445 = vadd.xlane.f32.xlu0 %v3417
      %v3446 = vpop.xlane.xlu0 %3445
      %3447 = vadd.xlane.f32.xlu0 %v3418
      %v3448 = vpop.xlane.xlu0 %3447
      %3449 = vadd.xlane.f32.xlu0 %v3419
      %v3450 = vpop.xlane.xlu0 %3449
      %3451 = vadd.xlane.f32.xlu0 %v3420
      %v3452 = vpop.xlane.xlu0 %3451
      %v3453 = vmul.f32 %v3422, %v587
      %v3454 = vmul.f32 %v3424, %v587
      %v3455 = vmul.f32 %v3426, %v587
      %v3456 = vmul.f32 %v3428, %v587
      %v3457 = vmul.f32 %v3430, %v587
      %v3458 = vmul.f32 %v3432, %v587
      %v3459 = vmul.f32 %v3434, %v587
      %v3460 = vmul.f32 %v3436, %v587
      %v3461 = vmul.f32 %v3438, %v587
      %v3462 = vmul.f32 %v3440, %v587
      %v3463 = vmul.f32 %v3442, %v587
      %v3464 = vmul.f32 %v3444, %v587
      %v3465 = vmul.f32 %v3446, %v587
      %v3466 = vmul.f32 %v3448, %v587
      %v3467 = vmul.f32 %v3450, %v587
      %v3468 = vmul.f32 %v3452, %v587
      %v3469 = vsub.f32 %v3405, %v3453
      %v3470 = vsub.f32 %v3406, %v3454
      %v3471 = vsub.f32 %v3407, %v3455
      %v3472 = vsub.f32 %v3408, %v3456
      %v3473 = vsub.f32 %v3409, %v3457
      %v3474 = vsub.f32 %v3410, %v3458
      %v3475 = vsub.f32 %v3411, %v3459
      %v3476 = vsub.f32 %v3412, %v3460
      %v3477 = vsub.f32 %v3413, %v3461
      %v3478 = vsub.f32 %v3414, %v3462
      %v3479 = vsub.f32 %v3415, %v3463
      %v3480 = vsub.f32 %v3416, %v3464
      %v3481 = vsub.f32 %v3417, %v3465
      %v3482 = vsub.f32 %v3418, %v3466
      %v3483 = vsub.f32 %v3419, %v3467
      %v3484 = vsub.f32 %v3420, %v3468
      %v3485 = vmul.f32 %v3469, %v3469
      %v3486 = vmul.f32 %v3470, %v3470
      %v3487 = vmul.f32 %v3471, %v3471
      %v3488 = vmul.f32 %v3472, %v3472
      %v3489 = vmul.f32 %v3473, %v3473
      %v3490 = vmul.f32 %v3474, %v3474
      %v3491 = vmul.f32 %v3475, %v3475
      %v3492 = vmul.f32 %v3476, %v3476
      %v3493 = vmul.f32 %v3477, %v3477
      %v3494 = vmul.f32 %v3478, %v3478
      %v3495 = vmul.f32 %v3479, %v3479
      %v3496 = vmul.f32 %v3480, %v3480
      %v3497 = vmul.f32 %v3481, %v3481
      %v3498 = vmul.f32 %v3482, %v3482
      %v3499 = vmul.f32 %v3483, %v3483
      %v3500 = vmul.f32 %v3484, %v3484
      %3501 = vadd.xlane.f32.xlu0 %v3485
      %v3502 = vpop.xlane.xlu0 %3501
      %3503 = vadd.xlane.f32.xlu0 %v3486
      %v3504 = vpop.xlane.xlu0 %3503
      %3505 = vadd.xlane.f32.xlu0 %v3487
      %v3506 = vpop.xlane.xlu0 %3505
      %3507 = vadd.xlane.f32.xlu0 %v3488
      %v3508 = vpop.xlane.xlu0 %3507
      %3509 = vadd.xlane.f32.xlu0 %v3489
      %v3510 = vpop.xlane.xlu0 %3509
      %3511 = vadd.xlane.f32.xlu0 %v3490
      %v3512 = vpop.xlane.xlu0 %3511
      %3513 = vadd.xlane.f32.xlu0 %v3491
      %v3514 = vpop.xlane.xlu0 %3513
      %3515 = vadd.xlane.f32.xlu0 %v3492
      %v3516 = vpop.xlane.xlu0 %3515
      %3517 = vadd.xlane.f32.xlu0 %v3493
      %v3518 = vpop.xlane.xlu0 %3517
      %3519 = vadd.xlane.f32.xlu0 %v3494
      %v3520 = vpop.xlane.xlu0 %3519
      %3521 = vadd.xlane.f32.xlu0 %v3495
      %v3522 = vpop.xlane.xlu0 %3521
      %3523 = vadd.xlane.f32.xlu0 %v3496
      %v3524 = vpop.xlane.xlu0 %3523
      %3525 = vadd.xlane.f32.xlu0 %v3497
      %v3526 = vpop.xlane.xlu0 %3525
      %3527 = vadd.xlane.f32.xlu0 %v3498
      %v3528 = vpop.xlane.xlu0 %3527
      %3529 = vadd.xlane.f32.xlu0 %v3499
      %v3530 = vpop.xlane.xlu0 %3529
      %3531 = vadd.xlane.f32.xlu0 %v3500
      %v3532 = vpop.xlane.xlu0 %3531
      %v3533 = vmul.f32 %v3502, %v587
      %v3534 = vmul.f32 %v3504, %v587
      %v3535 = vmul.f32 %v3506, %v587
      %v3536 = vmul.f32 %v3508, %v587
      %v3537 = vmul.f32 %v3510, %v587
      %v3538 = vmul.f32 %v3512, %v587
      %v3539 = vmul.f32 %v3514, %v587
      %v3540 = vmul.f32 %v3516, %v587
      %v3541 = vmul.f32 %v3518, %v587
      %v3542 = vmul.f32 %v3520, %v587
      %v3543 = vmul.f32 %v3522, %v587
      %v3544 = vmul.f32 %v3524, %v587
      %v3545 = vmul.f32 %v3526, %v587
      %v3546 = vmul.f32 %v3528, %v587
      %v3547 = vmul.f32 %v3530, %v587
      %v3548 = vmul.f32 %v3532, %v587
      %v3549 = vadd.f32 %v3533, 1e-06
      %v3550 = vadd.f32 %v3534, 1e-06
      %v3551 = vadd.f32 %v3535, 1e-06
      %v3552 = vadd.f32 %v3536, 1e-06
      %v3553 = vadd.f32 %v3537, 1e-06
      %v3554 = vadd.f32 %v3538, 1e-06
      %v3555 = vadd.f32 %v3539, 1e-06
      %v3556 = vadd.f32 %v3540, 1e-06
      %v3557 = vadd.f32 %v3541, 1e-06
      %v3558 = vadd.f32 %v3542, 1e-06
      %v3559 = vadd.f32 %v3543, 1e-06
      %v3560 = vadd.f32 %v3544, 1e-06
      %v3561 = vadd.f32 %v3545, 1e-06
      %v3562 = vadd.f32 %v3546, 1e-06
      %v3563 = vadd.f32 %v3547, 1e-06
      %v3564 = vadd.f32 %v3548, 1e-06
      %v3565 = vrsqrt.pop %v3549
      %v3566 = vrsqrt.pop %v3550
      %v3567 = vrsqrt.pop %v3551
      %v3568 = vrsqrt.pop %v3552
      %v3569 = vrsqrt.pop %v3553
      %v3570 = vrsqrt.pop %v3554
      %v3571 = vrsqrt.pop %v3555
      %v3572 = vrsqrt.pop %v3556
      %v3573 = vrsqrt.pop %v3557
      %v3574 = vrsqrt.pop %v3558
      %v3575 = vrsqrt.pop %v3559
      %v3576 = vrsqrt.pop %v3560
      %v3577 = vrsqrt.pop %v3561
      %v3578 = vrsqrt.pop %v3562
      %v3579 = vrsqrt.pop %v3563
      %v3580 = vrsqrt.pop %v3564
      %v3581 = vmul.f32 %v3469, %v3565
      %v3582 = vmul.f32 %v3470, %v3566
      %v3583 = vmul.f32 %v3471, %v3567
      %v3584 = vmul.f32 %v3472, %v3568
      %v3585 = vmul.f32 %v3473, %v3569
      %v3586 = vmul.f32 %v3474, %v3570
      %v3587 = vmul.f32 %v3475, %v3571
      %v3588 = vmul.f32 %v3476, %v3572
      %v3589 = vmul.f32 %v3477, %v3573
      %v3590 = vmul.f32 %v3478, %v3574
      %v3591 = vmul.f32 %v3479, %v3575
      %v3592 = vmul.f32 %v3480, %v3576
      %v3593 = vmul.f32 %v3481, %v3577
      %v3594 = vmul.f32 %v3482, %v3578
      %v3595 = vmul.f32 %v3483, %v3579
      %v3596 = vmul.f32 %v3484, %v3580
      %v3597 = vmul.f32 %v3581, %v736
      %v3598 = vmul.f32 %v3582, %v736
      %v3599 = vmul.f32 %v3583, %v736
      %v3600 = vmul.f32 %v3584, %v736
      %v3601 = vmul.f32 %v3585, %v736
      %v3602 = vmul.f32 %v3586, %v736
      %v3603 = vmul.f32 %v3587, %v736
      %v3604 = vmul.f32 %v3588, %v736
      %v3605 = vmul.f32 %v3589, %v736
      %v3606 = vmul.f32 %v3590, %v736
      %v3607 = vmul.f32 %v3591, %v736
      %v3608 = vmul.f32 %v3592, %v736
      %v3609 = vmul.f32 %v3593, %v736
      %v3610 = vmul.f32 %v3594, %v736
      %v3611 = vmul.f32 %v3595, %v736
      %v3612 = vmul.f32 %v3596, %v736
      %v3613 = vadd.f32 %v3597, %v758
      %v3614 = vadd.f32 %v3598, %v758
      %v3615 = vadd.f32 %v3599, %v758
      %v3616 = vadd.f32 %v3600, %v758
      %v3617 = vadd.f32 %v3601, %v758
      %v3618 = vadd.f32 %v3602, %v758
      %v3619 = vadd.f32 %v3603, %v758
      %v3620 = vadd.f32 %v3604, %v758
      %v3621 = vadd.f32 %v3605, %v758
      %v3622 = vadd.f32 %v3606, %v758
      %v3623 = vadd.f32 %v3607, %v758
      %v3624 = vadd.f32 %v3608, %v758
      %v3625 = vadd.f32 %v3609, %v758
      %v3626 = vadd.f32 %v3610, %v758
      %v3627 = vadd.f32 %v3611, %v758
      %v3628 = vadd.f32 %v3612, %v758
      %v3629 = vld [vmem:[%s8] sm:$0x1]
      %v3630 = vld [vmem:[%s9] sm:$0x1]
      %3631 = vadd.xlane.f32.xlu0 %v3613
      %v3632 = vpop.xlane.xlu0 %3631
      %3633 = vadd.xlane.f32.xlu0 %v3614
      %v3634 = vpop.xlane.xlu0 %3633
      %3635 = vadd.xlane.f32.xlu0 %v3615
      %v3636 = vpop.xlane.xlu0 %3635
      %3637 = vadd.xlane.f32.xlu0 %v3616
      %v3638 = vpop.xlane.xlu0 %3637
      %3639 = vadd.xlane.f32.xlu0 %v3617
      %v3640 = vpop.xlane.xlu0 %3639
      %3641 = vadd.xlane.f32.xlu0 %v3618
      %v3642 = vpop.xlane.xlu0 %3641
      %3643 = vadd.xlane.f32.xlu0 %v3619
      %v3644 = vpop.xlane.xlu0 %3643
      %3645 = vadd.xlane.f32.xlu0 %v3620
      %v3646 = vpop.xlane.xlu0 %3645
      %3647 = vadd.xlane.f32.xlu0 %v3621
      %v3648 = vpop.xlane.xlu0 %3647
      %3649 = vadd.xlane.f32.xlu0 %v3622
      %v3650 = vpop.xlane.xlu0 %3649
      %3651 = vadd.xlane.f32.xlu0 %v3623
      %v3652 = vpop.xlane.xlu0 %3651
      %3653 = vadd.xlane.f32.xlu0 %v3624
      %v3654 = vpop.xlane.xlu0 %3653
      %3655 = vadd.xlane.f32.xlu0 %v3625
      %v3656 = vpop.xlane.xlu0 %3655
      %3657 = vadd.xlane.f32.xlu0 %v3626
      %v3658 = vpop.xlane.xlu0 %3657
      %3659 = vadd.xlane.f32.xlu0 %v3627
      %v3660 = vpop.xlane.xlu0 %3659
      %3661 = vadd.xlane.f32.xlu0 %v3628
      %v3662 = vpop.xlane.xlu0 %3661
      %v3663 = vmul.f32 %v3632, %v587
      %v3664 = vmul.f32 %v3634, %v587
      %v3665 = vmul.f32 %v3636, %v587
      %v3666 = vmul.f32 %v3638, %v587
      %v3667 = vmul.f32 %v3640, %v587
      %v3668 = vmul.f32 %v3642, %v587
      %v3669 = vmul.f32 %v3644, %v587
      %v3670 = vmul.f32 %v3646, %v587
      %v3671 = vmul.f32 %v3648, %v587
      %v3672 = vmul.f32 %v3650, %v587
      %v3673 = vmul.f32 %v3652, %v587
      %v3674 = vmul.f32 %v3654, %v587
      %v3675 = vmul.f32 %v3656, %v587
      %v3676 = vmul.f32 %v3658, %v587
      %v3677 = vmul.f32 %v3660, %v587
      %v3678 = vmul.f32 %v3662, %v587
      %v3679 = vsub.f32 %v3613, %v3663
      %v3680 = vsub.f32 %v3614, %v3664
      %v3681 = vsub.f32 %v3615, %v3665
      %v3682 = vsub.f32 %v3616, %v3666
      %v3683 = vsub.f32 %v3617, %v3667
      %v3684 = vsub.f32 %v3618, %v3668
      %v3685 = vsub.f32 %v3619, %v3669
      %v3686 = vsub.f32 %v3620, %v3670
      %v3687 = vsub.f32 %v3621, %v3671
      %v3688 = vsub.f32 %v3622, %v3672
      %v3689 = vsub.f32 %v3623, %v3673
      %v3690 = vsub.f32 %v3624, %v3674
      %v3691 = vsub.f32 %v3625, %v3675
      %v3692 = vsub.f32 %v3626, %v3676
      %v3693 = vsub.f32 %v3627, %v3677
      %v3694 = vsub.f32 %v3628, %v3678
      %v3695 = vmul.f32 %v3679, %v3679
      %v3696 = vmul.f32 %v3680, %v3680
      %v3697 = vmul.f32 %v3681, %v3681
      %v3698 = vmul.f32 %v3682, %v3682
      %v3699 = vmul.f32 %v3683, %v3683
      %v3700 = vmul.f32 %v3684, %v3684
      %v3701 = vmul.f32 %v3685, %v3685
      %v3702 = vmul.f32 %v3686, %v3686
      %v3703 = vmul.f32 %v3687, %v3687
      %v3704 = vmul.f32 %v3688, %v3688
      %v3705 = vmul.f32 %v3689, %v3689
      %v3706 = vmul.f32 %v3690, %v3690
      %v3707 = vmul.f32 %v3691, %v3691
      %v3708 = vmul.f32 %v3692, %v3692
      %v3709 = vmul.f32 %v3693, %v3693
      %v3710 = vmul.f32 %v3694, %v3694
      %3711 = vadd.xlane.f32.xlu0 %v3695
      %v3712 = vpop.xlane.xlu0 %3711
      %3713 = vadd.xlane.f32.xlu0 %v3696
      %v3714 = vpop.xlane.xlu0 %3713
      %3715 = vadd.xlane.f32.xlu0 %v3697
      %v3716 = vpop.xlane.xlu0 %3715
      %3717 = vadd.xlane.f32.xlu0 %v3698
      %v3718 = vpop.xlane.xlu0 %3717
      %3719 = vadd.xlane.f32.xlu0 %v3699
      %v3720 = vpop.xlane.xlu0 %3719
      %3721 = vadd.xlane.f32.xlu0 %v3700
      %v3722 = vpop.xlane.xlu0 %3721
      %3723 = vadd.xlane.f32.xlu0 %v3701
      %v3724 = vpop.xlane.xlu0 %3723
      %3725 = vadd.xlane.f32.xlu0 %v3702
      %v3726 = vpop.xlane.xlu0 %3725
      %3727 = vadd.xlane.f32.xlu0 %v3703
      %v3728 = vpop.xlane.xlu0 %3727
      %3729 = vadd.xlane.f32.xlu0 %v3704
      %v3730 = vpop.xlane.xlu0 %3729
      %3731 = vadd.xlane.f32.xlu0 %v3705
      %v3732 = vpop.xlane.xlu0 %3731
      %3733 = vadd.xlane.f32.xlu0 %v3706
      %v3734 = vpop.xlane.xlu0 %3733
      %3735 = vadd.xlane.f32.xlu0 %v3707
      %v3736 = vpop.xlane.xlu0 %3735
      %3737 = vadd.xlane.f32.xlu0 %v3708
      %v3738 = vpop.xlane.xlu0 %3737
      %3739 = vadd.xlane.f32.xlu0 %v3709
      %v3740 = vpop.xlane.xlu0 %3739
      %3741 = vadd.xlane.f32.xlu0 %v3710
      %v3742 = vpop.xlane.xlu0 %3741
      %v3743 = vmul.f32 %v3712, %v587
      %v3744 = vmul.f32 %v3714, %v587
      %v3745 = vmul.f32 %v3716, %v587
      %v3746 = vmul.f32 %v3718, %v587
      %v3747 = vmul.f32 %v3720, %v587
      %v3748 = vmul.f32 %v3722, %v587
      %v3749 = vmul.f32 %v3724, %v587
      %v3750 = vmul.f32 %v3726, %v587
      %v3751 = vmul.f32 %v3728, %v587
      %v3752 = vmul.f32 %v3730, %v587
      %v3753 = vmul.f32 %v3732, %v587
      %v3754 = vmul.f32 %v3734, %v587
      %v3755 = vmul.f32 %v3736, %v587
      %v3756 = vmul.f32 %v3738, %v587
      %v3757 = vmul.f32 %v3740, %v587
      %v3758 = vmul.f32 %v3742, %v587
      %v3759 = vadd.f32 %v3743, 1e-06
      %v3760 = vadd.f32 %v3744, 1e-06
      %v3761 = vadd.f32 %v3745, 1e-06
      %v3762 = vadd.f32 %v3746, 1e-06
      %v3763 = vadd.f32 %v3747, 1e-06
      %v3764 = vadd.f32 %v3748, 1e-06
      %v3765 = vadd.f32 %v3749, 1e-06
      %v3766 = vadd.f32 %v3750, 1e-06
      %v3767 = vadd.f32 %v3751, 1e-06
      %v3768 = vadd.f32 %v3752, 1e-06
      %v3769 = vadd.f32 %v3753, 1e-06
      %v3770 = vadd.f32 %v3754, 1e-06
      %v3771 = vadd.f32 %v3755, 1e-06
      %v3772 = vadd.f32 %v3756, 1e-06
      %v3773 = vadd.f32 %v3757, 1e-06
      %v3774 = vadd.f32 %v3758, 1e-06
      %v3775 = vrsqrt.pop %v3759
      %v3776 = vrsqrt.pop %v3760
      %v3777 = vrsqrt.pop %v3761
      %v3778 = vrsqrt.pop %v3762
      %v3779 = vrsqrt.pop %v3763
      %v3780 = vrsqrt.pop %v3764
      %v3781 = vrsqrt.pop %v3765
      %v3782 = vrsqrt.pop %v3766
      %v3783 = vrsqrt.pop %v3767
      %v3784 = vrsqrt.pop %v3768
      %v3785 = vrsqrt.pop %v3769
      %v3786 = vrsqrt.pop %v3770
      %v3787 = vrsqrt.pop %v3771
      %v3788 = vrsqrt.pop %v3772
      %v3789 = vrsqrt.pop %v3773
      %v3790 = vrsqrt.pop %v3774
      %v3791 = vmul.f32 %v3679, %v3775
      %v3792 = vmul.f32 %v3680, %v3776
      %v3793 = vmul.f32 %v3681, %v3777
      %v3794 = vmul.f32 %v3682, %v3778
      %v3795 = vmul.f32 %v3683, %v3779
      %v3796 = vmul.f32 %v3684, %v3780
      %v3797 = vmul.f32 %v3685, %v3781
      %v3798 = vmul.f32 %v3686, %v3782
      %v3799 = vmul.f32 %v3687, %v3783
      %v3800 = vmul.f32 %v3688, %v3784
      %v3801 = vmul.f32 %v3689, %v3785
      %v3802 = vmul.f32 %v3690, %v3786
      %v3803 = vmul.f32 %v3691, %v3787
      %v3804 = vmul.f32 %v3692, %v3788
      %v3805 = vmul.f32 %v3693, %v3789
      %v3806 = vmul.f32 %v3694, %v3790
      %v3808 = vlaneseq
      %v3809 = vshrl.u32 %v3808, 7
      %v3810 = vsub.s32 0, %v3809
      %v3811 = vrot.slane %v3629, %v3810
      %v3813 = vmul.f32 %v3791, %v3811
      %v3814 = vmul.f32 %v3792, %v3811
      %v3815 = vmul.f32 %v3793, %v3811
      %v3816 = vmul.f32 %v3794, %v3811
      %v3817 = vmul.f32 %v3795, %v3811
      %v3818 = vmul.f32 %v3796, %v3811
      %v3819 = vmul.f32 %v3797, %v3811
      %v3820 = vmul.f32 %v3798, %v3811
      %v3821 = vmul.f32 %v3799, %v3811
      %v3822 = vmul.f32 %v3800, %v3811
      %v3823 = vmul.f32 %v3801, %v3811
      %v3824 = vmul.f32 %v3802, %v3811
      %v3825 = vmul.f32 %v3803, %v3811
      %v3826 = vmul.f32 %v3804, %v3811
      %v3827 = vmul.f32 %v3805, %v3811
      %v3828 = vmul.f32 %v3806, %v3811
      %v3830 = vlaneseq
      %v3831 = vshrl.u32 %v3830, 7
      %v3832 = vsub.s32 0, %v3831
      %v3833 = vrot.slane %v3630, %v3832
      %v3835 = vadd.f32 %v3813, %v3833
      %v3836 = vadd.f32 %v3814, %v3833
      %v3837 = vadd.f32 %v3815, %v3833
      %v3838 = vadd.f32 %v3816, %v3833
      %v3839 = vadd.f32 %v3817, %v3833
      %v3840 = vadd.f32 %v3818, %v3833
      %v3841 = vadd.f32 %v3819, %v3833
      %v3842 = vadd.f32 %v3820, %v3833
      %v3843 = vadd.f32 %v3821, %v3833
      %v3844 = vadd.f32 %v3822, %v3833
      %v3845 = vadd.f32 %v3823, %v3833
      %v3846 = vadd.f32 %v3824, %v3833
      %v3847 = vadd.f32 %v3825, %v3833
      %v3848 = vadd.f32 %v3826, %v3833
      %v3849 = vadd.f32 %v3827, %v3833
      %v3850 = vadd.f32 %v3828, %v3833
      %v3851 = vpack.c.bf16 %v3836, %v3835
      %v3852 = vpack.c.bf16 %v3838, %v3837
      %v3853 = vpack.c.bf16 %v3840, %v3839
      %v3854 = vpack.c.bf16 %v3842, %v3841
      %v3855 = vpack.c.bf16 %v3844, %v3843
      %v3856 = vpack.c.bf16 %v3846, %v3845
      %v3857 = vpack.c.bf16 %v3848, %v3847
      %v3858 = vpack.c.bf16 %v3850, %v3849
      %v3859 = vld [vmem:[%s10] sm:$0xff]
      %v3860 = vld [vmem:[%s10 + $0x8] sm:$0xff]
      %v3861 = vld [vmem:[%s10 + $0x10] sm:$0xff]
      %v3862 = vld [vmem:[%s10 + $0x18] sm:$0xff]
      %v3863 = vld [vmem:[%s10 + $0x20] sm:$0xff]
      %v3864 = vld [vmem:[%s10 + $0x28] sm:$0xff]
      %v3865 = vld [vmem:[%s10 + $0x30] sm:$0xff]
      %v3866 = vld [vmem:[%s10 + $0x38] sm:$0xff]
      %v3867 = vld [vmem:[%s10 + $0x40] sm:$0xff]
      %v3868 = vld [vmem:[%s10 + $0x48] sm:$0xff]
      %v3869 = vld [vmem:[%s10 + $0x50] sm:$0xff]
      %v3870 = vld [vmem:[%s10 + $0x58] sm:$0xff]
      %v3871 = vld [vmem:[%s10 + $0x60] sm:$0xff]
      %v3872 = vld [vmem:[%s10 + $0x68] sm:$0xff]
      %v3873 = vld [vmem:[%s10 + $0x70] sm:$0xff]
      %v3874 = vld [vmem:[%s10 + $0x78] sm:$0xff]
      %v3875 = vld [vmem:[%s11] sm:$0x3]
      %v3877 = vlaneseq
      %v3878 = vshrl.u32 %v3877, 7
      %v3879 = vsub.s32 0, %v3878
      %v3880 = vrot.slane %v3875, %v3879
      %v3881 = vlaneseq
      %v3882 = vshrl.u32 %v3881, 7
      %v3883 = vsub.s32 1, %v3882
      %v3884 = vrot.slane %v3875, %v3883
      %v3903 = vunpack.c.l.b16 %v3859
      %v3904 = vunpack.c.h.b16 %v3859
      %v3905 = vunpack.c.l.b16 %v3860
      %v3906 = vunpack.c.h.b16 %v3860
      %v3907 = vunpack.c.l.b16 %v3861
      %v3908 = vunpack.c.h.b16 %v3861
      %v3909 = vunpack.c.l.b16 %v3862
      %v3910 = vunpack.c.h.b16 %v3862
      %v3911 = vunpack.c.l.b16 %v3863
      %v3912 = vunpack.c.h.b16 %v3863
      %v3913 = vunpack.c.l.b16 %v3864
      %v3914 = vunpack.c.h.b16 %v3864
      %v3915 = vunpack.c.l.b16 %v3865
      %v3916 = vunpack.c.h.b16 %v3865
      %v3917 = vunpack.c.l.b16 %v3866
      %v3918 = vunpack.c.h.b16 %v3866
      %v3919 = vunpack.c.l.b16 %v3867
      %v3920 = vunpack.c.h.b16 %v3867
      %v3921 = vunpack.c.l.b16 %v3868
      %v3922 = vunpack.c.h.b16 %v3868
      %v3923 = vunpack.c.l.b16 %v3869
      %v3924 = vunpack.c.h.b16 %v3869
      %v3925 = vunpack.c.l.b16 %v3870
      %v3926 = vunpack.c.h.b16 %v3870
      %v3927 = vunpack.c.l.b16 %v3871
      %v3928 = vunpack.c.h.b16 %v3871
      %v3929 = vunpack.c.l.b16 %v3872
      %v3930 = vunpack.c.h.b16 %v3872
      %v3931 = vunpack.c.l.b16 %v3873
      %v3932 = vunpack.c.h.b16 %v3873
      %v3933 = vunpack.c.l.b16 %v3874
      %v3934 = vunpack.c.h.b16 %v3874
      %v3935 = vpack.c.b16 %v3905, %v3903
      %v3936 = vpack.c.b16 %v3906, %v3904
      %v3937 = vpack.c.b16 %v3909, %v3907
      %v3938 = vpack.c.b16 %v3910, %v3908
      %v3939 = vpack.c.b16 %v3913, %v3911
      %v3940 = vpack.c.b16 %v3914, %v3912
      %v3941 = vpack.c.b16 %v3917, %v3915
      %v3942 = vpack.c.b16 %v3918, %v3916
      %v3943 = vpack.c.b16 %v3921, %v3919
      %v3944 = vpack.c.b16 %v3922, %v3920
      %v3945 = vpack.c.b16 %v3925, %v3923
      %v3946 = vpack.c.b16 %v3926, %v3924
      %v3947 = vpack.c.b16 %v3929, %v3927
      %v3948 = vpack.c.b16 %v3930, %v3928
      %v3949 = vpack.c.b16 %v3933, %v3931
      %v3950 = vpack.c.b16 %v3934, %v3932
      %3967 = vmatprep.subr.bf16.mxu0 %v3936
      %3968 = vmatpush1.bf16.msra.mxu0 %v3935
      %3969 = vmatprep.subr.bf16.mxu0 %v3938
      %3970 = vmatpush1.bf16.msra.mxu0 %v3937
      %3971 = vmatprep.subr.bf16.mxu0 %v3940
      %3972 = vmatpush1.bf16.msra.mxu0 %v3939
      %3973 = vmatprep.subr.bf16.mxu0 %v3942
      %3974 = vmatpush1.bf16.msra.mxu0 %v3941
      %3975 = vmatprep.subr.bf16.mxu0 %v3944
      %3976 = vmatpush1.bf16.msra.mxu0 %v3943
      %3977 = vmatprep.subr.bf16.mxu0 %v3946
      %3978 = vmatpush1.bf16.msra.mxu0 %v3945
      %3979 = vmatprep.subr.bf16.mxu0 %v3948
      %3980 = vmatpush1.bf16.msra.mxu0 %v3947
      %3981 = vmatprep.subr.bf16.mxu0 %v3950
      %3982 = vmatpush1.bf16.msra.mxu0 %v3949
      %3983 = vmatprep.subr.bf16.mxu0 0
      %3984 = vmatpush1.bf16.msra.mxu0 0
      %3985 = vmatprep.subr.bf16.mxu0 0
      %3986 = vmatpush1.bf16.msra.mxu0 0
      %3987 = vmatprep.subr.bf16.mxu0 0
      %3988 = vmatpush1.bf16.msra.mxu0 0
      %3989 = vmatprep.subr.bf16.mxu0 0
      %3990 = vmatpush1.bf16.msra.mxu0 0
      %3991 = vmatprep.subr.bf16.mxu0 0
      %3992 = vmatpush1.bf16.msra.mxu0 0
      %3993 = vmatprep.subr.bf16.mxu0 0
      %3994 = vmatpush1.bf16.msra.mxu0 0
      %3995 = vmatprep.subr.bf16.mxu0 0
      %3996 = vmatpush1.bf16.msra.mxu0 0
      %3997 = vmatprep.subr.bf16.mxu0 0
      %3998 = vmatpush1.bf16.msra.mxu0 0
      %3999 = vmatprep.mubr.bf16.mxu0 0
      %4000 = vmatmul.mubr.bf16.gmra.mrb[0].mxu0 %v3851
      %v4001 = vpop.f32.mrb[0].mxu0
      %v4002 = vadd.f32 %v3880, %v4001
      %v4003 = vpop.f32.mrb[0].mxu0
      %v4004 = vadd.f32 %v3884, %v4003
      %v4005 = vpop.f32.mrb[0].mxu0
      %v4006 = vadd.f32 %v3880, %v4005
      %v4007 = vpop.f32.mrb[0].mxu0
      %v4008 = vadd.f32 %v3884, %v4007
      %4009 = vmatprep.mubr.bf16.mxu0 0
      %4010 = vmatmul.mubr.bf16.gmra.mrb[0].mxu0 %v3852
      %v4011 = vpop.f32.mrb[0].mxu0
      %v4012 = vadd.f32 %v3880, %v4011
      %v4013 = vpop.f32.mrb[0].mxu0
      %v4014 = vadd.f32 %v3884, %v4013
      %v4015 = vpop.f32.mrb[0].mxu0
      %v4016 = vadd.f32 %v3880, %v4015
      %v4017 = vpop.f32.mrb[0].mxu0
      %v4018 = vadd.f32 %v3884, %v4017
      %4019 = vmatprep.mubr.bf16.mxu0 0
      %4020 = vmatmul.mubr.bf16.gmra.mrb[0].mxu0 %v3853
      %v4021 = vpop.f32.mrb[0].mxu0
      %v4022 = vadd.f32 %v3880, %v4021
      %v4023 = vpop.f32.mrb[0].mxu0
      %v4024 = vadd.f32 %v3884, %v4023
      %v4025 = vpop.f32.mrb[0].mxu0
      %v4026 = vadd.f32 %v3880, %v4025
      %v4027 = vpop.f32.mrb[0].mxu0
      %v4028 = vadd.f32 %v3884, %v4027
      %4029 = vmatprep.mubr.bf16.mxu0 0
      %4030 = vmatmul.mubr.bf16.gmra.mrb[0].mxu0 %v3854
      %v4031 = vpop.f32.mrb[0].mxu0
      %v4032 = vadd.f32 %v3880, %v4031
      %v4033 = vpop.f32.mrb[0].mxu0
      %v4034 = vadd.f32 %v3884, %v4033
      %v4035 = vpop.f32.mrb[0].mxu0
      %v4036 = vadd.f32 %v3880, %v4035
      %v4037 = vpop.f32.mrb[0].mxu0
      %v4038 = vadd.f32 %v3884, %v4037
      %4039 = vmatprep.mubr.bf16.mxu0 0
      %4040 = vmatmul.mubr.bf16.gmra.mrb[0].mxu0 %v3855
      %v4041 = vpop.f32.mrb[0].mxu0
      %v4042 = vadd.f32 %v3880, %v4041
      %v4043 = vpop.f32.mrb[0].mxu0
      %v4044 = vadd.f32 %v3884, %v4043
      %v4045 = vpop.f32.mrb[0].mxu0
      %v4046 = vadd.f32 %v3880, %v4045
      %v4047 = vpop.f32.mrb[0].mxu0
      %v4048 = vadd.f32 %v3884, %v4047
      %4049 = vmatprep.mubr.bf16.mxu0 0
      %4050 = vmatmul.mubr.bf16.gmra.mrb[0].mxu0 %v3856
      %v4051 = vpop.f32.mrb[0].mxu0
      %v4052 = vadd.f32 %v3880, %v4051
      %v4053 = vpop.f32.mrb[0].mxu0
      %v4054 = vadd.f32 %v3884, %v4053
      %v4055 = vpop.f32.mrb[0].mxu0
      %v4056 = vadd.f32 %v3880, %v4055
      %v4057 = vpop.f32.mrb[0].mxu0
      %v4058 = vadd.f32 %v3884, %v4057
      %4059 = vmatprep.mubr.bf16.mxu0 0
      %4060 = vmatmul.mubr.bf16.gmra.mrb[0].mxu0 %v3857
      %v4061 = vpop.f32.mrb[0].mxu0
      %v4062 = vadd.f32 %v3880, %v4061
      %v4063 = vpop.f32.mrb[0].mxu0
      %v4064 = vadd.f32 %v3884, %v4063
      %v4065 = vpop.f32.mrb[0].mxu0
      %v4066 = vadd.f32 %v3880, %v4065
      %v4067 = vpop.f32.mrb[0].mxu0
      %v4068 = vadd.f32 %v3884, %v4067
      %4069 = vmatprep.mubr.bf16.mxu0 0
      %4070 = vmatmul.mubr.bf16.gmra.mrb[0].mxu0 %v3858
      %v4071 = vpop.f32.mrb[0].mxu0
      %v4072 = vadd.f32 %v3880, %v4071
      %v4073 = vpop.f32.mrb[0].mxu0
      %v4074 = vadd.f32 %v3884, %v4073
      %v4075 = vpop.f32.mrb[0].mxu0
      %v4076 = vadd.f32 %v3880, %v4075
      %v4077 = vpop.f32.mrb[0].mxu0
      %v4078 = vadd.f32 %v3884, %v4077
      %4079 = vdwg.mxu0
      %v4080 = vmax.f32 %v4002, 0.0
      %v4081 = vmax.f32 %v4004, 0.0
      %v4082 = vmax.f32 %v4006, 0.0
      %v4083 = vmax.f32 %v4008, 0.0
      %v4084 = vmax.f32 %v4012, 0.0
      %v4085 = vmax.f32 %v4014, 0.0
      %v4086 = vmax.f32 %v4016, 0.0
      %v4087 = vmax.f32 %v4018, 0.0
      %v4088 = vmax.f32 %v4022, 0.0
      %v4089 = vmax.f32 %v4024, 0.0
      %v4090 = vmax.f32 %v4026, 0.0
      %v4091 = vmax.f32 %v4028, 0.0
      %v4092 = vmax.f32 %v4032, 0.0
      %v4093 = vmax.f32 %v4034, 0.0
      %v4094 = vmax.f32 %v4036, 0.0
      %v4095 = vmax.f32 %v4038, 0.0
      %v4096 = vmax.f32 %v4042, 0.0
      %v4097 = vmax.f32 %v4044, 0.0
      %v4098 = vmax.f32 %v4046, 0.0
      %v4099 = vmax.f32 %v4048, 0.0
      %v4100 = vmax.f32 %v4052, 0.0
      %v4101 = vmax.f32 %v4054, 0.0
      %v4102 = vmax.f32 %v4056, 0.0
      %v4103 = vmax.f32 %v4058, 0.0
      %v4104 = vmax.f32 %v4062, 0.0
      %v4105 = vmax.f32 %v4064, 0.0
      %v4106 = vmax.f32 %v4066, 0.0
      %v4107 = vmax.f32 %v4068, 0.0
      %v4108 = vmax.f32 %v4072, 0.0
      %v4109 = vmax.f32 %v4074, 0.0
      %v4110 = vmax.f32 %v4076, 0.0
      %v4111 = vmax.f32 %v4078, 0.0
      %v4112 = vpack.c.bf16 %v4082, %v4080
      %v4113 = vpack.c.bf16 %v4083, %v4081
      %v4114 = vpack.c.bf16 %v4086, %v4084
      %v4115 = vpack.c.bf16 %v4087, %v4085
      %v4116 = vpack.c.bf16 %v4090, %v4088
      %v4117 = vpack.c.bf16 %v4091, %v4089
      %v4118 = vpack.c.bf16 %v4094, %v4092
      %v4119 = vpack.c.bf16 %v4095, %v4093
      %v4120 = vpack.c.bf16 %v4098, %v4096
      %v4121 = vpack.c.bf16 %v4099, %v4097
      %v4122 = vpack.c.bf16 %v4102, %v4100
      %v4123 = vpack.c.bf16 %v4103, %v4101
      %v4124 = vpack.c.bf16 %v4106, %v4104
      %v4125 = vpack.c.bf16 %v4107, %v4105
      %v4126 = vpack.c.bf16 %v4110, %v4108
      %v4127 = vpack.c.bf16 %v4111, %v4109
      %v4128 = vld [vmem:[%s12] sm:$0xf]
      %v4129 = vld [vmem:[%s12 + $0x4] sm:$0xf]
      %v4130 = vld [vmem:[%s12 + $0x8] sm:$0xf]
      %v4131 = vld [vmem:[%s12 + $0xc] sm:$0xf]
      %v4132 = vld [vmem:[%s12 + $0x10] sm:$0xf]
      %v4133 = vld [vmem:[%s12 + $0x14] sm:$0xf]
      %v4134 = vld [vmem:[%s12 + $0x18] sm:$0xf]
      %v4135 = vld [vmem:[%s12 + $0x1c] sm:$0xf]
      %v4136 = vld [vmem:[%s12 + $0x20] sm:$0xf]
      %v4137 = vld [vmem:[%s12 + $0x24] sm:$0xf]
      %v4138 = vld [vmem:[%s12 + $0x28] sm:$0xf]
      %v4139 = vld [vmem:[%s12 + $0x2c] sm:$0xf]
      %v4140 = vld [vmem:[%s12 + $0x30] sm:$0xf]
      %v4141 = vld [vmem:[%s12 + $0x34] sm:$0xf]
      %v4142 = vld [vmem:[%s12 + $0x38] sm:$0xf]
      %v4143 = vld [vmem:[%s12 + $0x3c] sm:$0xf]
      %v4144 = vld [vmem:[%s12 + $0x40] sm:$0xf]
      %v4145 = vld [vmem:[%s12 + $0x44] sm:$0xf]
      %v4146 = vld [vmem:[%s12 + $0x48] sm:$0xf]
      %v4147 = vld [vmem:[%s12 + $0x4c] sm:$0xf]
      %v4148 = vld [vmem:[%s12 + $0x50] sm:$0xf]
      %v4149 = vld [vmem:[%s12 + $0x54] sm:$0xf]
      %v4150 = vld [vmem:[%s12 + $0x58] sm:$0xf]
      %v4151 = vld [vmem:[%s12 + $0x5c] sm:$0xf]
      %v4152 = vld [vmem:[%s12 + $0x60] sm:$0xf]
      %v4153 = vld [vmem:[%s12 + $0x64] sm:$0xf]
      %v4154 = vld [vmem:[%s12 + $0x68] sm:$0xf]
      %v4155 = vld [vmem:[%s12 + $0x6c] sm:$0xf]
      %v4156 = vld [vmem:[%s12 + $0x70] sm:$0xf]
      %v4157 = vld [vmem:[%s12 + $0x74] sm:$0xf]
      %v4158 = vld [vmem:[%s12 + $0x78] sm:$0xf]
      %v4159 = vld [vmem:[%s12 + $0x7c] sm:$0xf]
      %v4160 = vld [vmem:[%s13] sm:$0x1]
      %v4162 = vlaneseq
      %v4163 = vshrl.u32 %v4162, 7
      %v4164 = vsub.s32 0, %v4163
      %v4165 = vrot.slane %v4160, %v4164
      %v4199 = vunpack.c.l.b16 %v4128
      %v4200 = vunpack.c.l.b16 %v4129
      %v4201 = vunpack.c.l.b16 %v4130
      %v4202 = vunpack.c.l.b16 %v4131
      %v4203 = vunpack.c.l.b16 %v4132
      %v4204 = vunpack.c.l.b16 %v4133
      %v4205 = vunpack.c.l.b16 %v4134
      %v4206 = vunpack.c.l.b16 %v4135
      %v4207 = vunpack.c.l.b16 %v4136
      %v4208 = vunpack.c.l.b16 %v4137
      %v4209 = vunpack.c.l.b16 %v4138
      %v4210 = vunpack.c.l.b16 %v4139
      %v4211 = vunpack.c.l.b16 %v4140
      %v4212 = vunpack.c.l.b16 %v4141
      %v4213 = vunpack.c.l.b16 %v4142
      %v4214 = vunpack.c.l.b16 %v4143
      %v4215 = vunpack.c.l.b16 %v4144
      %v4216 = vunpack.c.l.b16 %v4145
      %v4217 = vunpack.c.l.b16 %v4146
      %v4218 = vunpack.c.l.b16 %v4147
      %v4219 = vunpack.c.l.b16 %v4148
      %v4220 = vunpack.c.l.b16 %v4149
      %v4221 = vunpack.c.l.b16 %v4150
      %v4222 = vunpack.c.l.b16 %v4151
      %v4223 = vunpack.c.l.b16 %v4152
      %v4224 = vunpack.c.l.b16 %v4153
      %v4225 = vunpack.c.l.b16 %v4154
      %v4226 = vunpack.c.l.b16 %v4155
      %v4227 = vunpack.c.l.b16 %v4156
      %v4228 = vunpack.c.l.b16 %v4157
      %v4229 = vunpack.c.l.b16 %v4158
      %v4230 = vunpack.c.l.b16 %v4159
      %v4231 = vpack.c.b16 %v4200, %v4199
      %v4232 = vpack.c.b16 %v4202, %v4201
      %v4233 = vpack.c.b16 %v4204, %v4203
      %v4234 = vpack.c.b16 %v4206, %v4205
      %v4235 = vpack.c.b16 %v4208, %v4207
      %v4236 = vpack.c.b16 %v4210, %v4209
      %v4237 = vpack.c.b16 %v4212, %v4211
      %v4238 = vpack.c.b16 %v4214, %v4213
      %v4239 = vpack.c.b16 %v4216, %v4215
      %v4240 = vpack.c.b16 %v4218, %v4217
      %v4241 = vpack.c.b16 %v4220, %v4219
      %v4242 = vpack.c.b16 %v4222, %v4221
      %v4243 = vpack.c.b16 %v4224, %v4223
      %v4244 = vpack.c.b16 %v4226, %v4225
      %v4245 = vpack.c.b16 %v4228, %v4227
      %v4246 = vpack.c.b16 %v4230, %v4229
      %4263 = vmatprep.subr.bf16.mxu0 0
      %4264 = vmatpush1.bf16.msra.mxu0 %v4231
      %4265 = vmatprep.subr.bf16.mxu0 0
      %4266 = vmatpush1.bf16.msra.mxu0 %v4232
      %4267 = vmatprep.subr.bf16.mxu0 0
      %4268 = vmatpush1.bf16.msra.mxu0 %v4233
      %4269 = vmatprep.subr.bf16.mxu0 0
      %4270 = vmatpush1.bf16.msra.mxu0 %v4234
      %4271 = vmatprep.subr.bf16.mxu0 0
      %4272 = vmatpush1.bf16.msra.mxu0 %v4235
      %4273 = vmatprep.subr.bf16.mxu0 0
      %4274 = vmatpush1.bf16.msra.mxu0 %v4236
      %4275 = vmatprep.subr.bf16.mxu0 0
      %4276 = vmatpush1.bf16.msra.mxu0 %v4237
      %4277 = vmatprep.subr.bf16.mxu0 0
      %4278 = vmatpush1.bf16.msra.mxu0 %v4238
      %4279 = vmatprep.subr.bf16.mxu0 0
      %4280 = vmatpush1.bf16.msra.mxu0 %v4239
      %4281 = vmatprep.subr.bf16.mxu0 0
      %4282 = vmatpush1.bf16.msra.mxu0 %v4240
      %4283 = vmatprep.subr.bf16.mxu0 0
      %4284 = vmatpush1.bf16.msra.mxu0 %v4241
      %4285 = vmatprep.subr.bf16.mxu0 0
      %4286 = vmatpush1.bf16.msra.mxu0 %v4242
      %4287 = vmatprep.subr.bf16.mxu0 0
      %4288 = vmatpush1.bf16.msra.mxu0 %v4243
      %4289 = vmatprep.subr.bf16.mxu0 0
      %4290 = vmatpush1.bf16.msra.mxu0 %v4244
      %4291 = vmatprep.subr.bf16.mxu0 0
      %4292 = vmatpush1.bf16.msra.mxu0 %v4245
      %4293 = vmatprep.subr.bf16.mxu0 0
      %4294 = vmatpush1.bf16.msra.mxu0 %v4246
      %4295 = vmatprep.mubr.bf16.mxu0 %v4113
      %4296 = vmatmul.mubr.bf16.gmra.mrb[0].mxu0 %v4112
      %v4297 = vpop.f32.mrb[0].mxu0
      %v4298 = vadd.f32 %v4165, %v4297
      %v4299 = vpop.f32.mrb[0].mxu0
      %v4300 = vpop.f32.mrb[0].mxu0
      %v4301 = vadd.f32 %v4165, %v4300
      %v4302 = vpop.f32.mrb[0].mxu0
      %4303 = vmatprep.mubr.bf16.mxu0 %v4115
      %4304 = vmatmul.mubr.bf16.gmra.mrb[0].mxu0 %v4114
      %v4305 = vpop.f32.mrb[0].mxu0
      %v4306 = vadd.f32 %v4165, %v4305
      %v4307 = vpop.f32.mrb[0].mxu0
      %v4308 = vpop.f32.mrb[0].mxu0
      %v4309 = vadd.f32 %v4165, %v4308
      %v4310 = vpop.f32.mrb[0].mxu0
      %4311 = vmatprep.mubr.bf16.mxu0 %v4117
      %4312 = vmatmul.mubr.bf16.gmra.mrb[0].mxu0 %v4116
      %v4313 = vpop.f32.mrb[0].mxu0
      %v4314 = vadd.f32 %v4165, %v4313
      %v4315 = vpop.f32.mrb[0].mxu0
      %v4316 = vpop.f32.mrb[0].mxu0
      %v4317 = vadd.f32 %v4165, %v4316
      %v4318 = vpop.f32.mrb[0].mxu0
      %4319 = vmatprep.mubr.bf16.mxu0 %v4119
      %4320 = vmatmul.mubr.bf16.gmra.mrb[0].mxu0 %v4118
      %v4321 = vpop.f32.mrb[0].mxu0
      %v4322 = vadd.f32 %v4165, %v4321
      %v4323 = vpop.f32.mrb[0].mxu0
      %v4324 = vpop.f32.mrb[0].mxu0
      %v4325 = vadd.f32 %v4165, %v4324
      %v4326 = vpop.f32.mrb[0].mxu0
      %4327 = vmatprep.mubr.bf16.mxu0 %v4121
      %4328 = vmatmul.mubr.bf16.gmra.mrb[0].mxu0 %v4120
      %v4329 = vpop.f32.mrb[0].mxu0
      %v4330 = vadd.f32 %v4165, %v4329
      %v4331 = vpop.f32.mrb[0].mxu0
      %v4332 = vpop.f32.mrb[0].mxu0
      %v4333 = vadd.f32 %v4165, %v4332
      %v4334 = vpop.f32.mrb[0].mxu0
      %4335 = vmatprep.mubr.bf16.mxu0 %v4123
      %4336 = vmatmul.mubr.bf16.gmra.mrb[0].mxu0 %v4122
      %v4337 = vpop.f32.mrb[0].mxu0
      %v4338 = vadd.f32 %v4165, %v4337
      %v4339 = vpop.f32.mrb[0].mxu0
      %v4340 = vpop.f32.mrb[0].mxu0
      %v4341 = vadd.f32 %v4165, %v4340
      %v4342 = vpop.f32.mrb[0].mxu0
      %4343 = vmatprep.mubr.bf16.mxu0 %v4125
      %4344 = vmatmul.mubr.bf16.gmra.mrb[0].mxu0 %v4124
      %v4345 = vpop.f32.mrb[0].mxu0
      %v4346 = vadd.f32 %v4165, %v4345
      %v4347 = vpop.f32.mrb[0].mxu0
      %v4348 = vpop.f32.mrb[0].mxu0
      %v4349 = vadd.f32 %v4165, %v4348
      %v4350 = vpop.f32.mrb[0].mxu0
      %4351 = vmatprep.mubr.bf16.mxu0 %v4127
      %4352 = vmatmul.mubr.bf16.gmra.mrb[0].mxu0 %v4126
      %v4353 = vpop.f32.mrb[0].mxu0
      %v4354 = vadd.f32 %v4165, %v4353
      %v4355 = vpop.f32.mrb[0].mxu0
      %v4356 = vpop.f32.mrb[0].mxu0
      %v4357 = vadd.f32 %v4165, %v4356
      %v4358 = vpop.f32.mrb[0].mxu0
      %4359 = vdwg.mxu0
      %v4360 = vadd.f32 %v4298, %v3613
      %v4361 = vadd.f32 %v4301, %v3614
      %v4362 = vadd.f32 %v4306, %v3615
      %v4363 = vadd.f32 %v4309, %v3616
      %v4364 = vadd.f32 %v4314, %v3617
      %v4365 = vadd.f32 %v4317, %v3618
      %v4366 = vadd.f32 %v4322, %v3619
      %v4367 = vadd.f32 %v4325, %v3620
      %v4368 = vadd.f32 %v4330, %v3621
      %v4369 = vadd.f32 %v4333, %v3622
      %v4370 = vadd.f32 %v4338, %v3623
      %v4371 = vadd.f32 %v4341, %v3624
      %v4372 = vadd.f32 %v4346, %v3625
      %v4373 = vadd.f32 %v4349, %v3626
      %v4374 = vadd.f32 %v4354, %v3627
      %v4375 = vadd.f32 %v4357, %v3628
      %v4376 = vadd.f32 %v4360, %v3405
      %v4377 = vadd.f32 %v4361, %v3406
      %v4378 = vadd.f32 %v4362, %v3407
      %v4379 = vadd.f32 %v4363, %v3408
      %v4380 = vadd.f32 %v4364, %v3409
      %v4381 = vadd.f32 %v4365, %v3410
      %v4382 = vadd.f32 %v4366, %v3411
      %v4383 = vadd.f32 %v4367, %v3412
      %v4384 = vadd.f32 %v4368, %v3413
      %v4385 = vadd.f32 %v4369, %v3414
      %v4386 = vadd.f32 %v4370, %v3415
      %v4387 = vadd.f32 %v4371, %v3416
      %v4388 = vadd.f32 %v4372, %v3417
      %v4389 = vadd.f32 %v4373, %v3418
      %v4390 = vadd.f32 %v4374, %v3419
      %v4391 = vadd.f32 %v4375, %v3420
      %v4392 = vld [vmem:[%s14] sm:$0x1]
      %v4393 = vld [vmem:[%s15] sm:$0x1]
      %4394 = vadd.xlane.f32.xlu0 %v4376
      %v4395 = vpop.xlane.xlu0 %4394
      %4396 = vadd.xlane.f32.xlu0 %v4377
      %v4397 = vpop.xlane.xlu0 %4396
      %4398 = vadd.xlane.f32.xlu0 %v4378
      %v4399 = vpop.xlane.xlu0 %4398
      %4400 = vadd.xlane.f32.xlu0 %v4379
      %v4401 = vpop.xlane.xlu0 %4400
      %4402 = vadd.xlane.f32.xlu0 %v4380
      %v4403 = vpop.xlane.xlu0 %4402
      %4404 = vadd.xlane.f32.xlu0 %v4381
      %v4405 = vpop.xlane.xlu0 %4404
      %4406 = vadd.xlane.f32.xlu0 %v4382
      %v4407 = vpop.xlane.xlu0 %4406
      %4408 = vadd.xlane.f32.xlu0 %v4383
      %v4409 = vpop.xlane.xlu0 %4408
      %4410 = vadd.xlane.f32.xlu0 %v4384
      %v4411 = vpop.xlane.xlu0 %4410
      %4412 = vadd.xlane.f32.xlu0 %v4385
      %v4413 = vpop.xlane.xlu0 %4412
      %4414 = vadd.xlane.f32.xlu0 %v4386
      %v4415 = vpop.xlane.xlu0 %4414
      %4416 = vadd.xlane.f32.xlu0 %v4387
      %v4417 = vpop.xlane.xlu0 %4416
      %4418 = vadd.xlane.f32.xlu0 %v4388
      %v4419 = vpop.xlane.xlu0 %4418
      %4420 = vadd.xlane.f32.xlu0 %v4389
      %v4421 = vpop.xlane.xlu0 %4420
      %4422 = vadd.xlane.f32.xlu0 %v4390
      %v4423 = vpop.xlane.xlu0 %4422
      %4424 = vadd.xlane.f32.xlu0 %v4391
      %v4425 = vpop.xlane.xlu0 %4424
      %v4426 = vmul.f32 %v4395, %v587
      %v4427 = vmul.f32 %v4397, %v587
      %v4428 = vmul.f32 %v4399, %v587
      %v4429 = vmul.f32 %v4401, %v587
      %v4430 = vmul.f32 %v4403, %v587
      %v4431 = vmul.f32 %v4405, %v587
      %v4432 = vmul.f32 %v4407, %v587
      %v4433 = vmul.f32 %v4409, %v587
      %v4434 = vmul.f32 %v4411, %v587
      %v4435 = vmul.f32 %v4413, %v587
      %v4436 = vmul.f32 %v4415, %v587
      %v4437 = vmul.f32 %v4417, %v587
      %v4438 = vmul.f32 %v4419, %v587
      %v4439 = vmul.f32 %v4421, %v587
      %v4440 = vmul.f32 %v4423, %v587
      %v4441 = vmul.f32 %v4425, %v587
      %v4442 = vsub.f32 %v4376, %v4426
      %v4443 = vsub.f32 %v4377, %v4427
      %v4444 = vsub.f32 %v4378, %v4428
      %v4445 = vsub.f32 %v4379, %v4429
      %v4446 = vsub.f32 %v4380, %v4430
      %v4447 = vsub.f32 %v4381, %v4431
      %v4448 = vsub.f32 %v4382, %v4432
      %v4449 = vsub.f32 %v4383, %v4433
      %v4450 = vsub.f32 %v4384, %v4434
      %v4451 = vsub.f32 %v4385, %v4435
      %v4452 = vsub.f32 %v4386, %v4436
      %v4453 = vsub.f32 %v4387, %v4437
      %v4454 = vsub.f32 %v4388, %v4438
      %v4455 = vsub.f32 %v4389, %v4439
      %v4456 = vsub.f32 %v4390, %v4440
      %v4457 = vsub.f32 %v4391, %v4441
      %v4458 = vmul.f32 %v4442, %v4442
      %v4459 = vmul.f32 %v4443, %v4443
      %v4460 = vmul.f32 %v4444, %v4444
      %v4461 = vmul.f32 %v4445, %v4445
      %v4462 = vmul.f32 %v4446, %v4446
      %v4463 = vmul.f32 %v4447, %v4447
      %v4464 = vmul.f32 %v4448, %v4448
      %v4465 = vmul.f32 %v4449, %v4449
      %v4466 = vmul.f32 %v4450, %v4450
      %v4467 = vmul.f32 %v4451, %v4451
      %v4468 = vmul.f32 %v4452, %v4452
      %v4469 = vmul.f32 %v4453, %v4453
      %v4470 = vmul.f32 %v4454, %v4454
      %v4471 = vmul.f32 %v4455, %v4455
      %v4472 = vmul.f32 %v4456, %v4456
      %v4473 = vmul.f32 %v4457, %v4457
      %4474 = vadd.xlane.f32.xlu0 %v4458
      %v4475 = vpop.xlane.xlu0 %4474
      %4476 = vadd.xlane.f32.xlu0 %v4459
      %v4477 = vpop.xlane.xlu0 %4476
      %4478 = vadd.xlane.f32.xlu0 %v4460
      %v4479 = vpop.xlane.xlu0 %4478
      %4480 = vadd.xlane.f32.xlu0 %v4461
      %v4481 = vpop.xlane.xlu0 %4480
      %4482 = vadd.xlane.f32.xlu0 %v4462
      %v4483 = vpop.xlane.xlu0 %4482
      %4484 = vadd.xlane.f32.xlu0 %v4463
      %v4485 = vpop.xlane.xlu0 %4484
      %4486 = vadd.xlane.f32.xlu0 %v4464
      %v4487 = vpop.xlane.xlu0 %4486
      %4488 = vadd.xlane.f32.xlu0 %v4465
      %v4489 = vpop.xlane.xlu0 %4488
      %4490 = vadd.xlane.f32.xlu0 %v4466
      %v4491 = vpop.xlane.xlu0 %4490
      %4492 = vadd.xlane.f32.xlu0 %v4467
      %v4493 = vpop.xlane.xlu0 %4492
      %4494 = vadd.xlane.f32.xlu0 %v4468
      %v4495 = vpop.xlane.xlu0 %4494
      %4496 = vadd.xlane.f32.xlu0 %v4469
      %v4497 = vpop.xlane.xlu0 %4496
      %4498 = vadd.xlane.f32.xlu0 %v4470
      %v4499 = vpop.xlane.xlu0 %4498
      %4500 = vadd.xlane.f32.xlu0 %v4471
      %v4501 = vpop.xlane.xlu0 %4500
      %4502 = vadd.xlane.f32.xlu0 %v4472
      %v4503 = vpop.xlane.xlu0 %4502
      %4504 = vadd.xlane.f32.xlu0 %v4473
      %v4505 = vpop.xlane.xlu0 %4504
      %v4506 = vmul.f32 %v4475, %v587
      %v4507 = vmul.f32 %v4477, %v587
      %v4508 = vmul.f32 %v4479, %v587
      %v4509 = vmul.f32 %v4481, %v587
      %v4510 = vmul.f32 %v4483, %v587
      %v4511 = vmul.f32 %v4485, %v587
      %v4512 = vmul.f32 %v4487, %v587
      %v4513 = vmul.f32 %v4489, %v587
      %v4514 = vmul.f32 %v4491, %v587
      %v4515 = vmul.f32 %v4493, %v587
      %v4516 = vmul.f32 %v4495, %v587
      %v4517 = vmul.f32 %v4497, %v587
      %v4518 = vmul.f32 %v4499, %v587
      %v4519 = vmul.f32 %v4501, %v587
      %v4520 = vmul.f32 %v4503, %v587
      %v4521 = vmul.f32 %v4505, %v587
      %v4522 = vadd.f32 %v4506, 1e-06
      %v4523 = vadd.f32 %v4507, 1e-06
      %v4524 = vadd.f32 %v4508, 1e-06
      %v4525 = vadd.f32 %v4509, 1e-06
      %v4526 = vadd.f32 %v4510, 1e-06
      %v4527 = vadd.f32 %v4511, 1e-06
      %v4528 = vadd.f32 %v4512, 1e-06
      %v4529 = vadd.f32 %v4513, 1e-06
      %v4530 = vadd.f32 %v4514, 1e-06
      %v4531 = vadd.f32 %v4515, 1e-06
      %v4532 = vadd.f32 %v4516, 1e-06
      %v4533 = vadd.f32 %v4517, 1e-06
      %v4534 = vadd.f32 %v4518, 1e-06
      %v4535 = vadd.f32 %v4519, 1e-06
      %v4536 = vadd.f32 %v4520, 1e-06
      %v4537 = vadd.f32 %v4521, 1e-06
      %v4538 = vrsqrt.pop %v4522
      %v4539 = vrsqrt.pop %v4523
      %v4540 = vrsqrt.pop %v4524
      %v4541 = vrsqrt.pop %v4525
      %v4542 = vrsqrt.pop %v4526
      %v4543 = vrsqrt.pop %v4527
      %v4544 = vrsqrt.pop %v4528
      %v4545 = vrsqrt.pop %v4529
      %v4546 = vrsqrt.pop %v4530
      %v4547 = vrsqrt.pop %v4531
      %v4548 = vrsqrt.pop %v4532
      %v4549 = vrsqrt.pop %v4533
      %v4550 = vrsqrt.pop %v4534
      %v4551 = vrsqrt.pop %v4535
      %v4552 = vrsqrt.pop %v4536
      %v4553 = vrsqrt.pop %v4537
      %v4554 = vmul.f32 %v4442, %v4538
      %v4555 = vmul.f32 %v4443, %v4539
      %v4556 = vmul.f32 %v4444, %v4540
      %v4557 = vmul.f32 %v4445, %v4541
      %v4558 = vmul.f32 %v4446, %v4542
      %v4559 = vmul.f32 %v4447, %v4543
      %v4560 = vmul.f32 %v4448, %v4544
      %v4561 = vmul.f32 %v4449, %v4545
      %v4562 = vmul.f32 %v4450, %v4546
      %v4563 = vmul.f32 %v4451, %v4547
      %v4564 = vmul.f32 %v4452, %v4548
      %v4565 = vmul.f32 %v4453, %v4549
      %v4566 = vmul.f32 %v4454, %v4550
      %v4567 = vmul.f32 %v4455, %v4551
      %v4568 = vmul.f32 %v4456, %v4552
      %v4569 = vmul.f32 %v4457, %v4553
      %v4571 = vlaneseq
      %v4572 = vshrl.u32 %v4571, 7
      %v4573 = vsub.s32 0, %v4572
      %v4574 = vrot.slane %v4392, %v4573
      %v4576 = vmul.f32 %v4554, %v4574
      %v4577 = vmul.f32 %v4555, %v4574
      %v4578 = vmul.f32 %v4556, %v4574
      %v4579 = vmul.f32 %v4557, %v4574
      %v4580 = vmul.f32 %v4558, %v4574
      %v4581 = vmul.f32 %v4559, %v4574
      %v4582 = vmul.f32 %v4560, %v4574
      %v4583 = vmul.f32 %v4561, %v4574
      %v4584 = vmul.f32 %v4562, %v4574
      %v4585 = vmul.f32 %v4563, %v4574
      %v4586 = vmul.f32 %v4564, %v4574
      %v4587 = vmul.f32 %v4565, %v4574
      %v4588 = vmul.f32 %v4566, %v4574
      %v4589 = vmul.f32 %v4567, %v4574
      %v4590 = vmul.f32 %v4568, %v4574
      %v4591 = vmul.f32 %v4569, %v4574
      %v4593 = vlaneseq
      %v4594 = vshrl.u32 %v4593, 7
      %v4595 = vsub.s32 0, %v4594
      %v4596 = vrot.slane %v4393, %v4595
      %v4598 = vadd.f32 %v4576, %v4596
      %v4599 = vadd.f32 %v4577, %v4596
      %v4600 = vadd.f32 %v4578, %v4596
      %v4601 = vadd.f32 %v4579, %v4596
      %v4602 = vadd.f32 %v4580, %v4596
      %v4603 = vadd.f32 %v4581, %v4596
      %v4604 = vadd.f32 %v4582, %v4596
      %v4605 = vadd.f32 %v4583, %v4596
      %v4606 = vadd.f32 %v4584, %v4596
      %v4607 = vadd.f32 %v4585, %v4596
      %v4608 = vadd.f32 %v4586, %v4596
      %v4609 = vadd.f32 %v4587, %v4596
      %v4610 = vadd.f32 %v4588, %v4596
      %v4611 = vadd.f32 %v4589, %v4596
      %v4612 = vadd.f32 %v4590, %v4596
      %v4613 = vadd.f32 %v4591, %v4596
      %4614 = vst [vmem:[%s535] sm:$0xff] %v4598
      %4615 = vst [vmem:[%s535 + $0x8] sm:$0xff] %v4599
      %4616 = vst [vmem:[%s535 + $0x10] sm:$0xff] %v4600
      %4617 = vst [vmem:[%s535 + $0x18] sm:$0xff] %v4601
      %4618 = vst [vmem:[%s535 + $0x20] sm:$0xff] %v4602
      %4619 = vst [vmem:[%s535 + $0x28] sm:$0xff] %v4603
      %4620 = vst [vmem:[%s535 + $0x30] sm:$0xff] %v4604
      %4621 = vst [vmem:[%s535 + $0x38] sm:$0xff] %v4605
      %4622 = vst [vmem:[%s535 + $0x40] sm:$0xff] %v4606
      %4623 = vst [vmem:[%s535 + $0x48] sm:$0xff] %v4607
      %4624 = vst [vmem:[%s535 + $0x50] sm:$0xff] %v4608
      %4625 = vst [vmem:[%s535 + $0x58] sm:$0xff] %v4609
      %4626 = vst [vmem:[%s535 + $0x60] sm:$0xff] %v4610
      %4627 = vst [vmem:[%s535 + $0x68] sm:$0xff] %v4611
      %4628 = vst [vmem:[%s535 + $0x70] sm:$0xff] %v4612
      %4629 = vst [vmem:[%s535 + $0x78] sm:$0xff] %v4613
      %p4630 = scmp.lt.s32.totalorder %s27, 1
      %s4631 = scalar_select %p4630, %s27, 1
      %s4632 = smul.addr %s4631, 16
      %s4633 = smul.addr %s4632, 8
      %s4634 = scalar_lea.vmem %s16, %s4633
      // Predicated region
      $region85: #{transformer_encoder_forward.3} parent=83 // pred_check
        %p4635 = pneg %p391
      $region86: #{transformer_encoder_forward.3} parent=83 // pred_check_branch
        %4637 = sbr.rel (%p4635) target = $region88
      $region87: #{transformer_encoder_forward.3} parent=83 // pred_region
        _
      $region88: #{transformer_encoder_forward.3} parent=83 // pred_fallthru
        _
    $region84: #{transformer_encoder_forward.3} parent=5 // pred_fallthru
      _
    %p4638 = scmp.le.s32.totalorder 2, %s22
    // Predicated region
    $region89: #{transformer_encoder_forward.3} parent=5 // pred_check
      %p4639 = pneg %p4638
    $region90: #{transformer_encoder_forward.3} parent=5 // pred_check_branch
      %4641 = sbr.rel (%p4639) target = $region92
    $region91: #{transformer_encoder_forward.3} parent=5 // pred_region
      %s4642 = ssub.s32 %s22, 2
      // Predicated region
      $region93: #{transformer_encoder_forward.3} parent=91 // pred_check
        %p4643 = pneg %p397
      $region94: #{transformer_encoder_forward.3} parent=91 // pred_check_branch
        %4645 = sbr.rel (%p4643) target = $region96
      $region95: #{transformer_encoder_forward.3} parent=91 // pred_region
        %p4646 = scmp.lt.s32.totalorder %s28, 1
        %s4647 = scalar_select %p4646, %s28, 1
        %s4648 = smul.addr %s4647, 16
        %s4649 = smul.addr %s4648, 8
        %s4650 = scalar_lea.vmem %s16, %s4649
      $region96: #{transformer_encoder_forward.3} parent=91 // pred_fallthru
        _
    $region92: #{transformer_encoder_forward.3} parent=5 // pred_fallthru
      _
  $region6: #{transformer_encoder_forward.3} parent=0 // loop_footer
    %s26 = sadd.s32 1, %s22
  $region7: #{transformer_encoder_forward.3} parent=0 // loop_footer_branch
    %21 = sbr.rel target = $region3
  $region8: #{transformer_encoder_forward.3} parent=0 // loop_exit
    _

</llo_original>
